<compile_context>
chip_gen: v6e
topology: v6e:2x2x1
jax: 0.10.0
libtpu: 0.0.40
codegen_flags: <defaults>
</compile_context>

<pallas_src>
import jax
import jax.numpy as jnp
import numpy as np
from jax.experimental import pallas as pl
from jax.experimental.pallas import tpu as pltpu

H1, W1 = 28, 28          # conv1 output spatial size
H2, W2 = 14, 14          # conv2 input/output spatial size (after pool1)
H3, W3 = 7, 7            # spatial size after pool2
C1, C2 = 32, 64          # conv output channels
NF1, NF2 = 128, 10       # fc sizes
K_FC = H3 * W3 * C2      # 3136


# ----------------------------------------------------------------------------
# Single fused kernel: one image per grid step, everything in VMEM.
# ----------------------------------------------------------------------------
def _net_kernel(x_ref, w1_ref, b1_ref, w2_ref, b2_ref,
                fw1_ref, fb1_ref, fw2_ref, fb2_ref, o_ref,
                p1_ref, hp1_ref, a1p_ref, p2_ref, hp2_ref):
    f32 = jnp.float32

    # ----------------- conv1 (3x3, pad 1, 1 -> 32 channels) -----------------
    x = x_ref[0]                                             # (30, 30, 1)
    taps = [x[dy:dy + H1, dx:dx + W1, :]
            for dy in range(3) for dx in range(3)]           # 9 x (28, 28, 1)
    patches = jnp.concatenate(taps, axis=-1)                 # (28, 28, 9)
    # Stage patches as a flat (H*W, 9) matrix -> conv1 is ONE 2-D MXU dot.
    for h in range(H1):
        p1_ref[pl.ds(h * W1, W1), :] = patches[h]
    acc1 = jnp.dot(p1_ref[...], w1_ref[...],
                   preferred_element_type=f32)               # (784, 32)

    # 2x2 max-pool (VPU only).  Rows of acc1 are h*28 + w.
    for i in range(H1 // 2):
        hp1_ref[i] = jnp.maximum(acc1[2 * i * W1:(2 * i + 1) * W1, :],
                                 acc1[(2 * i + 1) * W1:(2 * i + 2) * W1, :])
    pooled1 = jnp.maximum(hp1_ref[:, pl.ds(0, W1 // 2, stride=2), :],
                          hp1_ref[:, pl.ds(1, W1 // 2, stride=2), :])
    # Bias + ReLU after the pool (they commute with max).
    z1 = jnp.maximum(pooled1 + b1_ref[...], 0.0)             # (14, 14, 32)

    # ------------- zero-padded stage-1 activations kept in VMEM -------------
    a1p_ref[...] = jnp.zeros_like(a1p_ref)
    a1p_ref[1:H2 + 1, 1:W2 + 1, :] = z1                      # (16, 16, 32)

    # ----------------- conv2 (3x3, pad 1, 32 -> 64 channels) ----------------
    taps2 = [a1p_ref[dy:dy + H2, dx:dx + W2, :]
             for dy in range(3) for dx in range(3)]          # 9 x (14, 14, 32)
    patches2 = jnp.concatenate(taps2, axis=-1)               # (14, 14, 288)
    for h in range(H2):
        p2_ref[pl.ds(h * W2, W2), :] = patches2[h]
    acc2 = jnp.dot(p2_ref[...].astype(jnp.bfloat16), w2_ref[...],
                   preferred_element_type=f32)               # (196, 64)

    for i in range(H2 // 2):
        hp2_ref[i] = jnp.maximum(acc2[2 * i * W2:(2 * i + 1) * W2, :],
                                 acc2[(2 * i + 1) * W2:(2 * i + 2) * W2, :])
    pooled2 = jnp.maximum(hp2_ref[:, pl.ds(0, W2 // 2, stride=2), :],
                          hp2_ref[:, pl.ds(1, W2 // 2, stride=2), :])
    z2 = jnp.maximum(pooled2 + b2_ref[...], 0.0)             # (7, 7, 64)

    # -------- flatten (h, w, c) into lanes, then fc1 + ReLU + fc2 -----------
    rows = jnp.concatenate([z2[:, j:j + 1, :] for j in range(W3)],
                           axis=-1)                          # (7, 1, 448)
    xf = jnp.concatenate([rows[i] for i in range(H3)], axis=-1)   # (1, 3136)
    hfc = jnp.dot(xf.astype(jnp.bfloat16), fw1_ref[...],
                  preferred_element_type=f32) + fb1_ref[...]
    hfc = jnp.maximum(hfc, 0.0)                              # (1, 128)
    logits = jnp.dot(hfc, fw2_ref[...],
                     preferred_element_type=f32) + fb2_ref[...]
    o_ref[0] = logits.astype(o_ref.dtype)                    # (1, 10)


# ----------------------------------------------------------------------------
# Full Net forward: one pallas_call, grid over batch.
# ----------------------------------------------------------------------------
def net_forward(x_nchw, kp):
    bsz = x_nchw.shape[0]
    x = jnp.transpose(x_nchw, (0, 2, 3, 1))                  # (B, 28, 28, 1)
    xp = jnp.pad(x, ((0, 0), (1, 1), (1, 1), (0, 0)))        # (B, 30, 30, 1)

    out = pl.pallas_call(
        _net_kernel,
        out_shape=jax.ShapeDtypeStruct((bsz, 1, NF2), jnp.float32),
        grid=(bsz,),
        in_specs=[
            pl.BlockSpec((1, H1 + 2, W1 + 2, 1), lambda i: (i, 0, 0, 0)),
            pl.BlockSpec((9, C1), lambda i: (0, 0)),
            pl.BlockSpec((1, C1), lambda i: (0, 0)),
            pl.BlockSpec((9 * C1, C2), lambda i: (0, 0)),
            pl.BlockSpec((1, C2), lambda i: (0, 0)),
            pl.BlockSpec((K_FC, NF1), lambda i: (0, 0)),
            pl.BlockSpec((1, NF1), lambda i: (0, 0)),
            pl.BlockSpec((NF1, NF2), lambda i: (0, 0)),
            pl.BlockSpec((1, NF2), lambda i: (0, 0)),
        ],
        out_specs=pl.BlockSpec((1, 1, NF2), lambda i: (i, 0, 0)),
        scratch_shapes=[
            pltpu.VMEM((H1 * W1, 9), jnp.float32),           # conv1 patches
            pltpu.VMEM((H1 // 2, W1, C1), jnp.float32),      # conv1 H-pooled
            pltpu.VMEM((H2 + 2, W2 + 2, C1), jnp.float32),   # padded stage-1
            pltpu.VMEM((H2 * W2, 9 * C1), jnp.float32),      # conv2 patches
            pltpu.VMEM((H2 // 2, W2, C2), jnp.float32),      # conv2 H-pooled
        ],
        compiler_params=pltpu.CompilerParams(
            dimension_semantics=("parallel",)),
    )(xp, kp["conv1_w"], kp["conv1_b"], kp["conv2_w"], kp["conv2_b"],
      kp["fc1_w"], kp["fc1_b"], kp["fc2_w"], kp["fc2_b"])
    return out.reshape(bsz, NF2)


# ----------------------------------------------------------------------------
# One-time parameter preparation: PyTorch layout -> kernel layout.
# ----------------------------------------------------------------------------
def prepare_params(p):
    cout1 = p["conv1_w"].shape[0]
    cout2, cin2 = p["conv2_w"].shape[0], p["conv2_w"].shape[1]
    nf1 = p["fc1_w"].shape[0]
    # conv weights -> im2col layout (ky, kx, cin) x cout.
    w1 = jnp.transpose(p["conv1_w"], (2, 3, 1, 0)).reshape(9 * 1, cout1)
    w2 = jnp.transpose(p["conv2_w"], (2, 3, 1, 0)).reshape(9 * cin2, cout2)
    # fc1: torch flattens NCHW (c,h,w); the kernel flattens NHWC (h,w,c).
    fw1 = p["fc1_w"].reshape(nf1, cout2, 7, 7)
    fw1 = jnp.transpose(fw1, (2, 3, 1, 0)).reshape(7 * 7 * cout2, nf1)
    fw2 = jnp.transpose(p["fc2_w"], (1, 0))                  # (128, 10)
    return {
        "conv1_w": w1.astype(jnp.float32),
        "conv1_b": p["conv1_b"].reshape(1, -1),
        "conv2_w": w2.astype(jnp.bfloat16),    # bf16 MXU operand, f32 accum
        "conv2_b": p["conv2_b"].reshape(1, -1),
        "fc1_w": fw1.astype(jnp.bfloat16),     # halves the dominant weight DMA
        "fc1_b": p["fc1_b"].reshape(1, -1),
        "fc2_w": fw2.astype(jnp.float32),
        "fc2_b": p["fc2_b"].reshape(1, -1),
    }


# ----------------------------------------------------------------------------
# Deterministic PyTorch-style init U(-1/sqrt(fan_in), 1/sqrt(fan_in)).
# ----------------------------------------------------------------------------
def init_params(key):
    ks = jax.random.split(key, 8)

    def u(k, shape, fan_in):
        bound = 1.0 / np.sqrt(fan_in)
        return jax.random.uniform(k, shape, jnp.float32, -bound, bound)

    return {
        "conv1_w": u(ks[0], (32, 1, 3, 3), 1 * 9),
        "conv1_b": u(ks[1], (32,), 1 * 9),
        "conv2_w": u(ks[2], (64, 32, 3, 3), 32 * 9),
        "conv2_b": u(ks[3], (64,), 32 * 9),
        "fc1_w": u(ks[4], (128, 64 * 7 * 7), 64 * 7 * 7),
        "fc1_b": u(ks[5], (128,), 64 * 7 * 7),
        "fc2_w": u(ks[6], (10, 128), 128),
        "fc2_b": u(ks[7], (10,), 128),
    }


# ----------------------------------------------------------------------------
# Pure-JAX reference (matches the PyTorch forward) for a correctness check.
# ----------------------------------------------------------------------------
def reference_forward(x_nchw, params):
    def conv(x, w, b):
        y = jax.lax.conv_general_dilated(
            x, w, window_strides=(1, 1), padding=((1, 1), (1, 1)),
            dimension_numbers=("NCHW", "OIHW", "NCHW"))
        return y + b[None, :, None, None]

    def pool(x):
        return jax.lax.reduce_window(
            x, -jnp.inf, jax.lax.max, (1, 1, 2, 2), (1, 1, 2, 2), "VALID")

    y = pool(jax.nn.relu(conv(x_nchw, params["conv1_w"], params["conv1_b"])))
    y = pool(jax.nn.relu(conv(y, params["conv2_w"], params["conv2_b"])))
    y = y.reshape(y.shape[0], -1)
    y = jax.nn.relu(y @ params["fc1_w"].T + params["fc1_b"])
    return y @ params["fc2_w"].T + params["fc2_b"]


if __name__ == "__main__":
    key = jax.random.PRNGKey(0)
    pkey, xkey = jax.random.split(key)
    params = init_params(pkey)
    kparams = prepare_params(params)          # one-time layout conversion

    # fc1 expects 64*7*7 features => 28x28 single-channel input.
    x = jax.random.normal(xkey, (2, 1, 28, 28), jnp.float32)

    out = jax.jit(net_forward)(x, kparams)
    out = jax.block_until_ready(out)
    assert out.shape == (2, 10)

    ref = reference_forward(x, params)
    np.testing.assert_allclose(np.asarray(out), np.asarray(ref),
                               rtol=1e-2, atol=1e-2)

    print("KERNEL_OK")
</pallas_src>

<mosaic_0001>
module attributes {stable_mosaic.version = 11 : i64} {
  func.func @_net_kernel(%arg0: i32, %arg1: memref<1x30x30x1xf32, #tpu.memory_space<vmem>>, %arg2: memref<9x32xf32, #tpu.memory_space<vmem>>, %arg3: memref<1x32xf32, #tpu.memory_space<vmem>>, %arg4: memref<288x64xbf16, #tpu.memory_space<vmem>>, %arg5: memref<1x64xf32, #tpu.memory_space<vmem>>, %arg6: memref<3136x128xbf16, #tpu.memory_space<vmem>>, %arg7: memref<1x128xf32, #tpu.memory_space<vmem>>, %arg8: memref<128x10xf32, #tpu.memory_space<vmem>>, %arg9: memref<1x10xf32, #tpu.memory_space<vmem>>, %arg10: memref<1x1x10xf32, #tpu.memory_space<vmem>>, %arg11: memref<784x9xf32, #tpu.memory_space<vmem>>, %arg12: memref<14x28x32xf32, #tpu.memory_space<vmem>>, %arg13: memref<16x16x32xf32, #tpu.memory_space<vmem>>, %arg14: memref<196x288xf32, #tpu.memory_space<vmem>>, %arg15: memref<7x14x64xf32, #tpu.memory_space<vmem>>) attributes {dimension_semantics = [#tpu.dimension_semantics<parallel>], iteration_bounds = array<i64: 2>, scalar_prefetch = 0 : i64, scratch_operands = 5 : i64, tpu.core_type = #tpu.core_type<tc>, window_params = [{transform_indices = @transform_0, window_bounds = array<i64: 1, 30, 30, 1>}, {pipeline_mode = #tpu.pipeline_mode<synchronous>, transform_indices = @transform_1, window_bounds = array<i64: 9, 32>}, {pipeline_mode = #tpu.pipeline_mode<synchronous>, transform_indices = @transform_2, window_bounds = array<i64: 1, 32>}, {pipeline_mode = #tpu.pipeline_mode<synchronous>, transform_indices = @transform_3, window_bounds = array<i64: 288, 64>}, {pipeline_mode = #tpu.pipeline_mode<synchronous>, transform_indices = @transform_4, window_bounds = array<i64: 1, 64>}, {pipeline_mode = #tpu.pipeline_mode<synchronous>, transform_indices = @transform_5, window_bounds = array<i64: 3136, 128>}, {pipeline_mode = #tpu.pipeline_mode<synchronous>, transform_indices = @transform_6, window_bounds = array<i64: 1, 128>}, {pipeline_mode = #tpu.pipeline_mode<synchronous>, transform_indices = @transform_7, window_bounds = array<i64: 128, 10>}, {pipeline_mode = #tpu.pipeline_mode<synchronous>, transform_indices = @transform_8, window_bounds = array<i64: 1, 10>}, {transform_indices = @transform_9, window_bounds = array<i64: 1, 1, 10>}]} {
    %c0 = arith.constant 0 : index
    %c0_0 = arith.constant 0 : index
    %c0_1 = arith.constant 0 : index
    %c0_2 = arith.constant 0 : index
    %0 = vector.load %arg1[%c0, %c0_0, %c0_1, %c0_2] : memref<1x30x30x1xf32, #tpu.memory_space<vmem>>, vector<1x30x30x1xf32>
    %1 = vector.shape_cast %0 : vector<1x30x30x1xf32> to vector<30x30x1xf32>
    %2 = vector.extract_strided_slice %1 {offsets = [0, 0, 0], sizes = [28, 28, 1], strides = [1, 1, 1]} : vector<30x30x1xf32> to vector<28x28x1xf32>
    %3 = vector.extract_strided_slice %1 {offsets = [0, 1, 0], sizes = [28, 28, 1], strides = [1, 1, 1]} : vector<30x30x1xf32> to vector<28x28x1xf32>
    %4 = vector.extract_strided_slice %1 {offsets = [0, 2, 0], sizes = [28, 28, 1], strides = [1, 1, 1]} : vector<30x30x1xf32> to vector<28x28x1xf32>
    %5 = vector.extract_strided_slice %1 {offsets = [1, 0, 0], sizes = [28, 28, 1], strides = [1, 1, 1]} : vector<30x30x1xf32> to vector<28x28x1xf32>
    %6 = vector.extract_strided_slice %1 {offsets = [1, 1, 0], sizes = [28, 28, 1], strides = [1, 1, 1]} : vector<30x30x1xf32> to vector<28x28x1xf32>
    %7 = vector.extract_strided_slice %1 {offsets = [1, 2, 0], sizes = [28, 28, 1], strides = [1, 1, 1]} : vector<30x30x1xf32> to vector<28x28x1xf32>
    %8 = vector.extract_strided_slice %1 {offsets = [2, 0, 0], sizes = [28, 28, 1], strides = [1, 1, 1]} : vector<30x30x1xf32> to vector<28x28x1xf32>
    %9 = vector.extract_strided_slice %1 {offsets = [2, 1, 0], sizes = [28, 28, 1], strides = [1, 1, 1]} : vector<30x30x1xf32> to vector<28x28x1xf32>
    %10 = vector.extract_strided_slice %1 {offsets = [2, 2, 0], sizes = [28, 28, 1], strides = [1, 1, 1]} : vector<30x30x1xf32> to vector<28x28x1xf32>
    %11 = tpu.concatenate %2, %3, %4, %5, %6, %7, %8, %9, %10 in 2 : vector<28x28x1xf32>, vector<28x28x1xf32>, vector<28x28x1xf32>, vector<28x28x1xf32>, vector<28x28x1xf32>, vector<28x28x1xf32>, vector<28x28x1xf32>, vector<28x28x1xf32>, vector<28x28x1xf32> -> vector<28x28x9xf32>
    %12 = vector.extract_strided_slice %11 {offsets = [0, 0, 0], sizes = [1, 28, 9], strides = [1, 1, 1]} : vector<28x28x9xf32> to vector<1x28x9xf32>
    %13 = vector.shape_cast %12 : vector<1x28x9xf32> to vector<28x9xf32>
    %c0_3 = arith.constant 0 : index
    %c0_4 = arith.constant 0 : index
    %14 = vector.load %arg11[%c0_3, %c0_4] : memref<784x9xf32, #tpu.memory_space<vmem>>, vector<28x9xf32>
    tpu.vector_store %arg11[%c0_3, %c0_4], %13 {strides = array<i32>} : memref<784x9xf32, #tpu.memory_space<vmem>>, vector<28x9xf32>,
    %15 = vector.extract_strided_slice %11 {offsets = [1, 0, 0], sizes = [1, 28, 9], strides = [1, 1, 1]} : vector<28x28x9xf32> to vector<1x28x9xf32>
    %16 = vector.shape_cast %15 : vector<1x28x9xf32> to vector<28x9xf32>
    %c28 = arith.constant 28 : index
    %c0_5 = arith.constant 0 : index
    %17 = vector.load %arg11[%c28, %c0_5] : memref<784x9xf32, #tpu.memory_space<vmem>>, vector<28x9xf32>
    tpu.vector_store %arg11[%c28, %c0_5], %16 {strides = array<i32>} : memref<784x9xf32, #tpu.memory_space<vmem>>, vector<28x9xf32>,
    %18 = vector.extract_strided_slice %11 {offsets = [2, 0, 0], sizes = [1, 28, 9], strides = [1, 1, 1]} : vector<28x28x9xf32> to vector<1x28x9xf32>
    %19 = vector.shape_cast %18 : vector<1x28x9xf32> to vector<28x9xf32>
    %c56 = arith.constant 56 : index
    %c0_6 = arith.constant 0 : index
    %20 = vector.load %arg11[%c56, %c0_6] : memref<784x9xf32, #tpu.memory_space<vmem>>, vector<28x9xf32>
    tpu.vector_store %arg11[%c56, %c0_6], %19 {strides = array<i32>} : memref<784x9xf32, #tpu.memory_space<vmem>>, vector<28x9xf32>,
    %21 = vector.extract_strided_slice %11 {offsets = [3, 0, 0], sizes = [1, 28, 9], strides = [1, 1, 1]} : vector<28x28x9xf32> to vector<1x28x9xf32>
    %22 = vector.shape_cast %21 : vector<1x28x9xf32> to vector<28x9xf32>
    %c84 = arith.constant 84 : index
    %c0_7 = arith.constant 0 : index
    %23 = vector.load %arg11[%c84, %c0_7] : memref<784x9xf32, #tpu.memory_space<vmem>>, vector<28x9xf32>
    tpu.vector_store %arg11[%c84, %c0_7], %22 {strides = array<i32>} : memref<784x9xf32, #tpu.memory_space<vmem>>, vector<28x9xf32>,
    %24 = vector.extract_strided_slice %11 {offsets = [4, 0, 0], sizes = [1, 28, 9], strides = [1, 1, 1]} : vector<28x28x9xf32> to vector<1x28x9xf32>
    %25 = vector.shape_cast %24 : vector<1x28x9xf32> to vector<28x9xf32>
    %c112 = arith.constant 112 : index
    %c0_8 = arith.constant 0 : index
    %26 = vector.load %arg11[%c112, %c0_8] : memref<784x9xf32, #tpu.memory_space<vmem>>, vector<28x9xf32>
    tpu.vector_store %arg11[%c112, %c0_8], %25 {strides = array<i32>} : memref<784x9xf32, #tpu.memory_space<vmem>>, vector<28x9xf32>,
    %27 = vector.extract_strided_slice %11 {offsets = [5, 0, 0], sizes = [1, 28, 9], strides = [1, 1, 1]} : vector<28x28x9xf32> to vector<1x28x9xf32>
    %28 = vector.shape_cast %27 : vector<1x28x9xf32> to vector<28x9xf32>
    %c140 = arith.constant 140 : index
    %c0_9 = arith.constant 0 : index
    %29 = vector.load %arg11[%c140, %c0_9] : memref<784x9xf32, #tpu.memory_space<vmem>>, vector<28x9xf32>
    tpu.vector_store %arg11[%c140, %c0_9], %28 {strides = array<i32>} : memref<784x9xf32, #tpu.memory_space<vmem>>, vector<28x9xf32>,
    %30 = vector.extract_strided_slice %11 {offsets = [6, 0, 0], sizes = [1, 28, 9], strides = [1, 1, 1]} : vector<28x28x9xf32> to vector<1x28x9xf32>
    %31 = vector.shape_cast %30 : vector<1x28x9xf32> to vector<28x9xf32>
    %c168 = arith.constant 168 : index
    %c0_10 = arith.constant 0 : index
    %32 = vector.load %arg11[%c168, %c0_10] : memref<784x9xf32, #tpu.memory_space<vmem>>, vector<28x9xf32>
    tpu.vector_store %arg11[%c168, %c0_10], %31 {strides = array<i32>} : memref<784x9xf32, #tpu.memory_space<vmem>>, vector<28x9xf32>,
    %33 = vector.extract_strided_slice %11 {offsets = [7, 0, 0], sizes = [1, 28, 9], strides = [1, 1, 1]} : vector<28x28x9xf32> to vector<1x28x9xf32>
    %34 = vector.shape_cast %33 : vector<1x28x9xf32> to vector<28x9xf32>
    %c196 = arith.constant 196 : index
    %c0_11 = arith.constant 0 : index
    %35 = vector.load %arg11[%c196, %c0_11] : memref<784x9xf32, #tpu.memory_space<vmem>>, vector<28x9xf32>
    tpu.vector_store %arg11[%c196, %c0_11], %34 {strides = array<i32>} : memref<784x9xf32, #tpu.memory_space<vmem>>, vector<28x9xf32>,
    %36 = vector.extract_strided_slice %11 {offsets = [8, 0, 0], sizes = [1, 28, 9], strides = [1, 1, 1]} : vector<28x28x9xf32> to vector<1x28x9xf32>
    %37 = vector.shape_cast %36 : vector<1x28x9xf32> to vector<28x9xf32>
    %c224 = arith.constant 224 : index
    %c0_12 = arith.constant 0 : index
    %38 = vector.load %arg11[%c224, %c0_12] : memref<784x9xf32, #tpu.memory_space<vmem>>, vector<28x9xf32>
    tpu.vector_store %arg11[%c224, %c0_12], %37 {strides = array<i32>} : memref<784x9xf32, #tpu.memory_space<vmem>>, vector<28x9xf32>,
    %39 = vector.extract_strided_slice %11 {offsets = [9, 0, 0], sizes = [1, 28, 9], strides = [1, 1, 1]} : vector<28x28x9xf32> to vector<1x28x9xf32>
    %40 = vector.shape_cast %39 : vector<1x28x9xf32> to vector<28x9xf32>
    %c252 = arith.constant 252 : index
    %c0_13 = arith.constant 0 : index
    %41 = vector.load %arg11[%c252, %c0_13] : memref<784x9xf32, #tpu.memory_space<vmem>>, vector<28x9xf32>
    tpu.vector_store %arg11[%c252, %c0_13], %40 {strides = array<i32>} : memref<784x9xf32, #tpu.memory_space<vmem>>, vector<28x9xf32>,
    %42 = vector.extract_strided_slice %11 {offsets = [10, 0, 0], sizes = [1, 28, 9], strides = [1, 1, 1]} : vector<28x28x9xf32> to vector<1x28x9xf32>
    %43 = vector.shape_cast %42 : vector<1x28x9xf32> to vector<28x9xf32>
    %c280 = arith.constant 280 : index
    %c0_14 = arith.constant 0 : index
    %44 = vector.load %arg11[%c280, %c0_14] : memref<784x9xf32, #tpu.memory_space<vmem>>, vector<28x9xf32>
    tpu.vector_store %arg11[%c280, %c0_14], %43 {strides = array<i32>} : memref<784x9xf32, #tpu.memory_space<vmem>>, vector<28x9xf32>,
    %45 = vector.extract_strided_slice %11 {offsets = [11, 0, 0], sizes = [1, 28, 9], strides = [1, 1, 1]} : vector<28x28x9xf32> to vector<1x28x9xf32>
    %46 = vector.shape_cast %45 : vector<1x28x9xf32> to vector<28x9xf32>
    %c308 = arith.constant 308 : index
    %c0_15 = arith.constant 0 : index
    %47 = vector.load %arg11[%c308, %c0_15] : memref<784x9xf32, #tpu.memory_space<vmem>>, vector<28x9xf32>
    tpu.vector_store %arg11[%c308, %c0_15], %46 {strides = array<i32>} : memref<784x9xf32, #tpu.memory_space<vmem>>, vector<28x9xf32>,
    %48 = vector.extract_strided_slice %11 {offsets = [12, 0, 0], sizes = [1, 28, 9], strides = [1, 1, 1]} : vector<28x28x9xf32> to vector<1x28x9xf32>
    %49 = vector.shape_cast %48 : vector<1x28x9xf32> to vector<28x9xf32>
    %c336 = arith.constant 336 : index
    %c0_16 = arith.constant 0 : index
    %50 = vector.load %arg11[%c336, %c0_16] : memref<784x9xf32, #tpu.memory_space<vmem>>, vector<28x9xf32>
    tpu.vector_store %arg11[%c336, %c0_16], %49 {strides = array<i32>} : memref<784x9xf32, #tpu.memory_space<vmem>>, vector<28x9xf32>,
    %51 = vector.extract_strided_slice %11 {offsets = [13, 0, 0], sizes = [1, 28, 9], strides = [1, 1, 1]} : vector<28x28x9xf32> to vector<1x28x9xf32>
    %52 = vector.shape_cast %51 : vector<1x28x9xf32> to vector<28x9xf32>
    %c364 = arith.constant 364 : index
    %c0_17 = arith.constant 0 : index
    %53 = vector.load %arg11[%c364, %c0_17] : memref<784x9xf32, #tpu.memory_space<vmem>>, vector<28x9xf32>
    tpu.vector_store %arg11[%c364, %c0_17], %52 {strides = array<i32>} : memref<784x9xf32, #tpu.memory_space<vmem>>, vector<28x9xf32>,
    %54 = vector.extract_strided_slice %11 {offsets = [14, 0, 0], sizes = [1, 28, 9], strides = [1, 1, 1]} : vector<28x28x9xf32> to vector<1x28x9xf32>
    %55 = vector.shape_cast %54 : vector<1x28x9xf32> to vector<28x9xf32>
    %c392 = arith.constant 392 : index
    %c0_18 = arith.constant 0 : index
    %56 = vector.load %arg11[%c392, %c0_18] : memref<784x9xf32, #tpu.memory_space<vmem>>, vector<28x9xf32>
    tpu.vector_store %arg11[%c392, %c0_18], %55 {strides = array<i32>} : memref<784x9xf32, #tpu.memory_space<vmem>>, vector<28x9xf32>,
    %57 = vector.extract_strided_slice %11 {offsets = [15, 0, 0], sizes = [1, 28, 9], strides = [1, 1, 1]} : vector<28x28x9xf32> to vector<1x28x9xf32>
    %58 = vector.shape_cast %57 : vector<1x28x9xf32> to vector<28x9xf32>
    %c420 = arith.constant 420 : index
    %c0_19 = arith.constant 0 : index
    %59 = vector.load %arg11[%c420, %c0_19] : memref<784x9xf32, #tpu.memory_space<vmem>>, vector<28x9xf32>
    tpu.vector_store %arg11[%c420, %c0_19], %58 {strides = array<i32>} : memref<784x9xf32, #tpu.memory_space<vmem>>, vector<28x9xf32>,
    %60 = vector.extract_strided_slice %11 {offsets = [16, 0, 0], sizes = [1, 28, 9], strides = [1, 1, 1]} : vector<28x28x9xf32> to vector<1x28x9xf32>
    %61 = vector.shape_cast %60 : vector<1x28x9xf32> to vector<28x9xf32>
    %c448 = arith.constant 448 : index
    %c0_20 = arith.constant 0 : index
    %62 = vector.load %arg11[%c448, %c0_20] : memref<784x9xf32, #tpu.memory_space<vmem>>, vector<28x9xf32>
    tpu.vector_store %arg11[%c448, %c0_20], %61 {strides = array<i32>} : memref<784x9xf32, #tpu.memory_space<vmem>>, vector<28x9xf32>,
    %63 = vector.extract_strided_slice %11 {offsets = [17, 0, 0], sizes = [1, 28, 9], strides = [1, 1, 1]} : vector<28x28x9xf32> to vector<1x28x9xf32>
    %64 = vector.shape_cast %63 : vector<1x28x9xf32> to vector<28x9xf32>
    %c476 = arith.constant 476 : index
    %c0_21 = arith.constant 0 : index
    %65 = vector.load %arg11[%c476, %c0_21] : memref<784x9xf32, #tpu.memory_space<vmem>>, vector<28x9xf32>
    tpu.vector_store %arg11[%c476, %c0_21], %64 {strides = array<i32>} : memref<784x9xf32, #tpu.memory_space<vmem>>, vector<28x9xf32>,
    %66 = vector.extract_strided_slice %11 {offsets = [18, 0, 0], sizes = [1, 28, 9], strides = [1, 1, 1]} : vector<28x28x9xf32> to vector<1x28x9xf32>
    %67 = vector.shape_cast %66 : vector<1x28x9xf32> to vector<28x9xf32>
    %c504 = arith.constant 504 : index
    %c0_22 = arith.constant 0 : index
    %68 = vector.load %arg11[%c504, %c0_22] : memref<784x9xf32, #tpu.memory_space<vmem>>, vector<28x9xf32>
    tpu.vector_store %arg11[%c504, %c0_22], %67 {strides = array<i32>} : memref<784x9xf32, #tpu.memory_space<vmem>>, vector<28x9xf32>,
    %69 = vector.extract_strided_slice %11 {offsets = [19, 0, 0], sizes = [1, 28, 9], strides = [1, 1, 1]} : vector<28x28x9xf32> to vector<1x28x9xf32>
    %70 = vector.shape_cast %69 : vector<1x28x9xf32> to vector<28x9xf32>
    %c532 = arith.constant 532 : index
    %c0_23 = arith.constant 0 : index
    %71 = vector.load %arg11[%c532, %c0_23] : memref<784x9xf32, #tpu.memory_space<vmem>>, vector<28x9xf32>
    tpu.vector_store %arg11[%c532, %c0_23], %70 {strides = array<i32>} : memref<784x9xf32, #tpu.memory_space<vmem>>, vector<28x9xf32>,
    %72 = vector.extract_strided_slice %11 {offsets = [20, 0, 0], sizes = [1, 28, 9], strides = [1, 1, 1]} : vector<28x28x9xf32> to vector<1x28x9xf32>
    %73 = vector.shape_cast %72 : vector<1x28x9xf32> to vector<28x9xf32>
    %c560 = arith.constant 560 : index
    %c0_24 = arith.constant 0 : index
    %74 = vector.load %arg11[%c560, %c0_24] : memref<784x9xf32, #tpu.memory_space<vmem>>, vector<28x9xf32>
    tpu.vector_store %arg11[%c560, %c0_24], %73 {strides = array<i32>} : memref<784x9xf32, #tpu.memory_space<vmem>>, vector<28x9xf32>,
    %75 = vector.extract_strided_slice %11 {offsets = [21, 0, 0], sizes = [1, 28, 9], strides = [1, 1, 1]} : vector<28x28x9xf32> to vector<1x28x9xf32>
    %76 = vector.shape_cast %75 : vector<1x28x9xf32> to vector<28x9xf32>
    %c588 = arith.constant 588 : index
    %c0_25 = arith.constant 0 : index
    %77 = vector.load %arg11[%c588, %c0_25] : memref<784x9xf32, #tpu.memory_space<vmem>>, vector<28x9xf32>
    tpu.vector_store %arg11[%c588, %c0_25], %76 {strides = array<i32>} : memref<784x9xf32, #tpu.memory_space<vmem>>, vector<28x9xf32>,
    %78 = vector.extract_strided_slice %11 {offsets = [22, 0, 0], sizes = [1, 28, 9], strides = [1, 1, 1]} : vector<28x28x9xf32> to vector<1x28x9xf32>
    %79 = vector.shape_cast %78 : vector<1x28x9xf32> to vector<28x9xf32>
    %c616 = arith.constant 616 : index
    %c0_26 = arith.constant 0 : index
    %80 = vector.load %arg11[%c616, %c0_26] : memref<784x9xf32, #tpu.memory_space<vmem>>, vector<28x9xf32>
    tpu.vector_store %arg11[%c616, %c0_26], %79 {strides = array<i32>} : memref<784x9xf32, #tpu.memory_space<vmem>>, vector<28x9xf32>,
    %81 = vector.extract_strided_slice %11 {offsets = [23, 0, 0], sizes = [1, 28, 9], strides = [1, 1, 1]} : vector<28x28x9xf32> to vector<1x28x9xf32>
    %82 = vector.shape_cast %81 : vector<1x28x9xf32> to vector<28x9xf32>
    %c644 = arith.constant 644 : index
    %c0_27 = arith.constant 0 : index
    %83 = vector.load %arg11[%c644, %c0_27] : memref<784x9xf32, #tpu.memory_space<vmem>>, vector<28x9xf32>
    tpu.vector_store %arg11[%c644, %c0_27], %82 {strides = array<i32>} : memref<784x9xf32, #tpu.memory_space<vmem>>, vector<28x9xf32>,
    %84 = vector.extract_strided_slice %11 {offsets = [24, 0, 0], sizes = [1, 28, 9], strides = [1, 1, 1]} : vector<28x28x9xf32> to vector<1x28x9xf32>
    %85 = vector.shape_cast %84 : vector<1x28x9xf32> to vector<28x9xf32>
    %c672 = arith.constant 672 : index
    %c0_28 = arith.constant 0 : index
    %86 = vector.load %arg11[%c672, %c0_28] : memref<784x9xf32, #tpu.memory_space<vmem>>, vector<28x9xf32>
    tpu.vector_store %arg11[%c672, %c0_28], %85 {strides = array<i32>} : memref<784x9xf32, #tpu.memory_space<vmem>>, vector<28x9xf32>,
    %87 = vector.extract_strided_slice %11 {offsets = [25, 0, 0], sizes = [1, 28, 9], strides = [1, 1, 1]} : vector<28x28x9xf32> to vector<1x28x9xf32>
    %88 = vector.shape_cast %87 : vector<1x28x9xf32> to vector<28x9xf32>
    %c700 = arith.constant 700 : index
    %c0_29 = arith.constant 0 : index
    %89 = vector.load %arg11[%c700, %c0_29] : memref<784x9xf32, #tpu.memory_space<vmem>>, vector<28x9xf32>
    tpu.vector_store %arg11[%c700, %c0_29], %88 {strides = array<i32>} : memref<784x9xf32, #tpu.memory_space<vmem>>, vector<28x9xf32>,
    %90 = vector.extract_strided_slice %11 {offsets = [26, 0, 0], sizes = [1, 28, 9], strides = [1, 1, 1]} : vector<28x28x9xf32> to vector<1x28x9xf32>
    %91 = vector.shape_cast %90 : vector<1x28x9xf32> to vector<28x9xf32>
    %c728 = arith.constant 728 : index
    %c0_30 = arith.constant 0 : index
    %92 = vector.load %arg11[%c728, %c0_30] : memref<784x9xf32, #tpu.memory_space<vmem>>, vector<28x9xf32>
    tpu.vector_store %arg11[%c728, %c0_30], %91 {strides = array<i32>} : memref<784x9xf32, #tpu.memory_space<vmem>>, vector<28x9xf32>,
    %93 = vector.extract_strided_slice %11 {offsets = [27, 0, 0], sizes = [1, 28, 9], strides = [1, 1, 1]} : vector<28x28x9xf32> to vector<1x28x9xf32>
    %94 = vector.shape_cast %93 : vector<1x28x9xf32> to vector<28x9xf32>
    %c756 = arith.constant 756 : index
    %c0_31 = arith.constant 0 : index
    %95 = vector.load %arg11[%c756, %c0_31] : memref<784x9xf32, #tpu.memory_space<vmem>>, vector<28x9xf32>
    tpu.vector_store %arg11[%c756, %c0_31], %94 {strides = array<i32>} : memref<784x9xf32, #tpu.memory_space<vmem>>, vector<28x9xf32>,
    %c0_32 = arith.constant 0 : index
    %c0_33 = arith.constant 0 : index
    %96 = vector.load %arg11[%c0_32, %c0_33] : memref<784x9xf32, #tpu.memory_space<vmem>>, vector<784x9xf32>
    %c0_34 = arith.constant 0 : index
    %c0_35 = arith.constant 0 : index
    %97 = vector.load %arg2[%c0_34, %c0_35] : memref<9x32xf32, #tpu.memory_space<vmem>>, vector<9x32xf32>
    %cst = arith.constant dense<0.000000e+00> : vector<784x32xf32>
    %98 = tpu.matmul %96, %97, %cst {dimension_numbers = #tpu.dot_dimension_numbers<[1], [0], [0], [1], [0, 0, 1, 1], [], []>} : vector<784x9xf32>, vector<9x32xf32>, vector<784x32xf32> -> vector<784x32xf32>
    %99 = vector.extract_strided_slice %98 {offsets = [0, 0], sizes = [28, 32], strides = [1, 1]} : vector<784x32xf32> to vector<28x32xf32>
    %100 = vector.extract_strided_slice %98 {offsets = [28, 0], sizes = [28, 32], strides = [1, 1]} : vector<784x32xf32> to vector<28x32xf32>
    %101 = arith.maximumf %99, %100 : vector<28x32xf32>
    %c0_36 = arith.constant 0 : index
    %c0_37 = arith.constant 0 : index
    %c0_38 = arith.constant 0 : index
    %102 = vector.load %arg12[%c0_36, %c0_37, %c0_38] : memref<14x28x32xf32, #tpu.memory_space<vmem>>, vector<1x28x32xf32>
    %103 = vector.shape_cast %102 : vector<1x28x32xf32> to vector<28x32xf32>
    %104 = vector.shape_cast %101 : vector<28x32xf32> to vector<1x28x32xf32>
    tpu.vector_store %arg12[%c0_36, %c0_37, %c0_38], %104 {strides = array<i32>} : memref<14x28x32xf32, #tpu.memory_space<vmem>>, vector<1x28x32xf32>,
    %105 = vector.extract_strided_slice %98 {offsets = [56, 0], sizes = [28, 32], strides = [1, 1]} : vector<784x32xf32> to vector<28x32xf32>
    %106 = vector.extract_strided_slice %98 {offsets = [84, 0], sizes = [28, 32], strides = [1, 1]} : vector<784x32xf32> to vector<28x32xf32>
    %107 = arith.maximumf %105, %106 : vector<28x32xf32>
    %c1 = arith.constant 1 : index
    %c0_39 = arith.constant 0 : index
    %c0_40 = arith.constant 0 : index
    %108 = vector.load %arg12[%c1, %c0_39, %c0_40] : memref<14x28x32xf32, #tpu.memory_space<vmem>>, vector<1x28x32xf32>
    %109 = vector.shape_cast %108 : vector<1x28x32xf32> to vector<28x32xf32>
    %110 = vector.shape_cast %107 : vector<28x32xf32> to vector<1x28x32xf32>
    tpu.vector_store %arg12[%c1, %c0_39, %c0_40], %110 {strides = array<i32>} : memref<14x28x32xf32, #tpu.memory_space<vmem>>, vector<1x28x32xf32>,
    %111 = vector.extract_strided_slice %98 {offsets = [112, 0], sizes = [28, 32], strides = [1, 1]} : vector<784x32xf32> to vector<28x32xf32>
    %112 = vector.extract_strided_slice %98 {offsets = [140, 0], sizes = [28, 32], strides = [1, 1]} : vector<784x32xf32> to vector<28x32xf32>
    %113 = arith.maximumf %111, %112 : vector<28x32xf32>
    %c2 = arith.constant 2 : index
    %c0_41 = arith.constant 0 : index
    %c0_42 = arith.constant 0 : index
    %114 = vector.load %arg12[%c2, %c0_41, %c0_42] : memref<14x28x32xf32, #tpu.memory_space<vmem>>, vector<1x28x32xf32>
    %115 = vector.shape_cast %114 : vector<1x28x32xf32> to vector<28x32xf32>
    %116 = vector.shape_cast %113 : vector<28x32xf32> to vector<1x28x32xf32>
    tpu.vector_store %arg12[%c2, %c0_41, %c0_42], %116 {strides = array<i32>} : memref<14x28x32xf32, #tpu.memory_space<vmem>>, vector<1x28x32xf32>,
    %117 = vector.extract_strided_slice %98 {offsets = [168, 0], sizes = [28, 32], strides = [1, 1]} : vector<784x32xf32> to vector<28x32xf32>
    %118 = vector.extract_strided_slice %98 {offsets = [196, 0], sizes = [28, 32], strides = [1, 1]} : vector<784x32xf32> to vector<28x32xf32>
    %119 = arith.maximumf %117, %118 : vector<28x32xf32>
    %c3 = arith.constant 3 : index
    %c0_43 = arith.constant 0 : index
    %c0_44 = arith.constant 0 : index
    %120 = vector.load %arg12[%c3, %c0_43, %c0_44] : memref<14x28x32xf32, #tpu.memory_space<vmem>>, vector<1x28x32xf32>
    %121 = vector.shape_cast %120 : vector<1x28x32xf32> to vector<28x32xf32>
    %122 = vector.shape_cast %119 : vector<28x32xf32> to vector<1x28x32xf32>
    tpu.vector_store %arg12[%c3, %c0_43, %c0_44], %122 {strides = array<i32>} : memref<14x28x32xf32, #tpu.memory_space<vmem>>, vector<1x28x32xf32>,
    %123 = vector.extract_strided_slice %98 {offsets = [224, 0], sizes = [28, 32], strides = [1, 1]} : vector<784x32xf32> to vector<28x32xf32>
    %124 = vector.extract_strided_slice %98 {offsets = [252, 0], sizes = [28, 32], strides = [1, 1]} : vector<784x32xf32> to vector<28x32xf32>
    %125 = arith.maximumf %123, %124 : vector<28x32xf32>
    %c4 = arith.constant 4 : index
    %c0_45 = arith.constant 0 : index
    %c0_46 = arith.constant 0 : index
    %126 = vector.load %arg12[%c4, %c0_45, %c0_46] : memref<14x28x32xf32, #tpu.memory_space<vmem>>, vector<1x28x32xf32>
    %127 = vector.shape_cast %126 : vector<1x28x32xf32> to vector<28x32xf32>
    %128 = vector.shape_cast %125 : vector<28x32xf32> to vector<1x28x32xf32>
    tpu.vector_store %arg12[%c4, %c0_45, %c0_46], %128 {strides = array<i32>} : memref<14x28x32xf32, #tpu.memory_space<vmem>>, vector<1x28x32xf32>,
    %129 = vector.extract_strided_slice %98 {offsets = [280, 0], sizes = [28, 32], strides = [1, 1]} : vector<784x32xf32> to vector<28x32xf32>
    %130 = vector.extract_strided_slice %98 {offsets = [308, 0], sizes = [28, 32], strides = [1, 1]} : vector<784x32xf32> to vector<28x32xf32>
    %131 = arith.maximumf %129, %130 : vector<28x32xf32>
    %c5 = arith.constant 5 : index
    %c0_47 = arith.constant 0 : index
    %c0_48 = arith.constant 0 : index
    %132 = vector.load %arg12[%c5, %c0_47, %c0_48] : memref<14x28x32xf32, #tpu.memory_space<vmem>>, vector<1x28x32xf32>
    %133 = vector.shape_cast %132 : vector<1x28x32xf32> to vector<28x32xf32>
    %134 = vector.shape_cast %131 : vector<28x32xf32> to vector<1x28x32xf32>
    tpu.vector_store %arg12[%c5, %c0_47, %c0_48], %134 {strides = array<i32>} : memref<14x28x32xf32, #tpu.memory_space<vmem>>, vector<1x28x32xf32>,
    %135 = vector.extract_strided_slice %98 {offsets = [336, 0], sizes = [28, 32], strides = [1, 1]} : vector<784x32xf32> to vector<28x32xf32>
    %136 = vector.extract_strided_slice %98 {offsets = [364, 0], sizes = [28, 32], strides = [1, 1]} : vector<784x32xf32> to vector<28x32xf32>
    %137 = arith.maximumf %135, %136 : vector<28x32xf32>
    %c6 = arith.constant 6 : index
    %c0_49 = arith.constant 0 : index
    %c0_50 = arith.constant 0 : index
    %138 = vector.load %arg12[%c6, %c0_49, %c0_50] : memref<14x28x32xf32, #tpu.memory_space<vmem>>, vector<1x28x32xf32>
    %139 = vector.shape_cast %138 : vector<1x28x32xf32> to vector<28x32xf32>
    %140 = vector.shape_cast %137 : vector<28x32xf32> to vector<1x28x32xf32>
    tpu.vector_store %arg12[%c6, %c0_49, %c0_50], %140 {strides = array<i32>} : memref<14x28x32xf32, #tpu.memory_space<vmem>>, vector<1x28x32xf32>,
    %141 = vector.extract_strided_slice %98 {offsets = [392, 0], sizes = [28, 32], strides = [1, 1]} : vector<784x32xf32> to vector<28x32xf32>
    %142 = vector.extract_strided_slice %98 {offsets = [420, 0], sizes = [28, 32], strides = [1, 1]} : vector<784x32xf32> to vector<28x32xf32>
    %143 = arith.maximumf %141, %142 : vector<28x32xf32>
    %c7 = arith.constant 7 : index
    %c0_51 = arith.constant 0 : index
    %c0_52 = arith.constant 0 : index
    %144 = vector.load %arg12[%c7, %c0_51, %c0_52] : memref<14x28x32xf32, #tpu.memory_space<vmem>>, vector<1x28x32xf32>
    %145 = vector.shape_cast %144 : vector<1x28x32xf32> to vector<28x32xf32>
    %146 = vector.shape_cast %143 : vector<28x32xf32> to vector<1x28x32xf32>
    tpu.vector_store %arg12[%c7, %c0_51, %c0_52], %146 {strides = array<i32>} : memref<14x28x32xf32, #tpu.memory_space<vmem>>, vector<1x28x32xf32>,
    %147 = vector.extract_strided_slice %98 {offsets = [448, 0], sizes = [28, 32], strides = [1, 1]} : vector<784x32xf32> to vector<28x32xf32>
    %148 = vector.extract_strided_slice %98 {offsets = [476, 0], sizes = [28, 32], strides = [1, 1]} : vector<784x32xf32> to vector<28x32xf32>
    %149 = arith.maximumf %147, %148 : vector<28x32xf32>
    %c8 = arith.constant 8 : index
    %c0_53 = arith.constant 0 : index
    %c0_54 = arith.constant 0 : index
    %150 = vector.load %arg12[%c8, %c0_53, %c0_54] : memref<14x28x32xf32, #tpu.memory_space<vmem>>, vector<1x28x32xf32>
    %151 = vector.shape_cast %150 : vector<1x28x32xf32> to vector<28x32xf32>
    %152 = vector.shape_cast %149 : vector<28x32xf32> to vector<1x28x32xf32>
    tpu.vector_store %arg12[%c8, %c0_53, %c0_54], %152 {strides = array<i32>} : memref<14x28x32xf32, #tpu.memory_space<vmem>>, vector<1x28x32xf32>,
    %153 = vector.extract_strided_slice %98 {offsets = [504, 0], sizes = [28, 32], strides = [1, 1]} : vector<784x32xf32> to vector<28x32xf32>
    %154 = vector.extract_strided_slice %98 {offsets = [532, 0], sizes = [28, 32], strides = [1, 1]} : vector<784x32xf32> to vector<28x32xf32>
    %155 = arith.maximumf %153, %154 : vector<28x32xf32>
    %c9 = arith.constant 9 : index
    %c0_55 = arith.constant 0 : index
    %c0_56 = arith.constant 0 : index
    %156 = vector.load %arg12[%c9, %c0_55, %c0_56] : memref<14x28x32xf32, #tpu.memory_space<vmem>>, vector<1x28x32xf32>
    %157 = vector.shape_cast %156 : vector<1x28x32xf32> to vector<28x32xf32>
    %158 = vector.shape_cast %155 : vector<28x32xf32> to vector<1x28x32xf32>
    tpu.vector_store %arg12[%c9, %c0_55, %c0_56], %158 {strides = array<i32>} : memref<14x28x32xf32, #tpu.memory_space<vmem>>, vector<1x28x32xf32>,
    %159 = vector.extract_strided_slice %98 {offsets = [560, 0], sizes = [28, 32], strides = [1, 1]} : vector<784x32xf32> to vector<28x32xf32>
    %160 = vector.extract_strided_slice %98 {offsets = [588, 0], sizes = [28, 32], strides = [1, 1]} : vector<784x32xf32> to vector<28x32xf32>
    %161 = arith.maximumf %159, %160 : vector<28x32xf32>
    %c10 = arith.constant 10 : index
    %c0_57 = arith.constant 0 : index
    %c0_58 = arith.constant 0 : index
    %162 = vector.load %arg12[%c10, %c0_57, %c0_58] : memref<14x28x32xf32, #tpu.memory_space<vmem>>, vector<1x28x32xf32>
    %163 = vector.shape_cast %162 : vector<1x28x32xf32> to vector<28x32xf32>
    %164 = vector.shape_cast %161 : vector<28x32xf32> to vector<1x28x32xf32>
    tpu.vector_store %arg12[%c10, %c0_57, %c0_58], %164 {strides = array<i32>} : memref<14x28x32xf32, #tpu.memory_space<vmem>>, vector<1x28x32xf32>,
    %165 = vector.extract_strided_slice %98 {offsets = [616, 0], sizes = [28, 32], strides = [1, 1]} : vector<784x32xf32> to vector<28x32xf32>
    %166 = vector.extract_strided_slice %98 {offsets = [644, 0], sizes = [28, 32], strides = [1, 1]} : vector<784x32xf32> to vector<28x32xf32>
    %167 = arith.maximumf %165, %166 : vector<28x32xf32>
    %c11 = arith.constant 11 : index
    %c0_59 = arith.constant 0 : index
    %c0_60 = arith.constant 0 : index
    %168 = vector.load %arg12[%c11, %c0_59, %c0_60] : memref<14x28x32xf32, #tpu.memory_space<vmem>>, vector<1x28x32xf32>
    %169 = vector.shape_cast %168 : vector<1x28x32xf32> to vector<28x32xf32>
    %170 = vector.shape_cast %167 : vector<28x32xf32> to vector<1x28x32xf32>
    tpu.vector_store %arg12[%c11, %c0_59, %c0_60], %170 {strides = array<i32>} : memref<14x28x32xf32, #tpu.memory_space<vmem>>, vector<1x28x32xf32>,
    %171 = vector.extract_strided_slice %98 {offsets = [672, 0], sizes = [28, 32], strides = [1, 1]} : vector<784x32xf32> to vector<28x32xf32>
    %172 = vector.extract_strided_slice %98 {offsets = [700, 0], sizes = [28, 32], strides = [1, 1]} : vector<784x32xf32> to vector<28x32xf32>
    %173 = arith.maximumf %171, %172 : vector<28x32xf32>
    %c12 = arith.constant 12 : index
    %c0_61 = arith.constant 0 : index
    %c0_62 = arith.constant 0 : index
    %174 = vector.load %arg12[%c12, %c0_61, %c0_62] : memref<14x28x32xf32, #tpu.memory_space<vmem>>, vector<1x28x32xf32>
    %175 = vector.shape_cast %174 : vector<1x28x32xf32> to vector<28x32xf32>
    %176 = vector.shape_cast %173 : vector<28x32xf32> to vector<1x28x32xf32>
    tpu.vector_store %arg12[%c12, %c0_61, %c0_62], %176 {strides = array<i32>} : memref<14x28x32xf32, #tpu.memory_space<vmem>>, vector<1x28x32xf32>,
    %177 = vector.extract_strided_slice %98 {offsets = [728, 0], sizes = [28, 32], strides = [1, 1]} : vector<784x32xf32> to vector<28x32xf32>
    %178 = vector.extract_strided_slice %98 {offsets = [756, 0], sizes = [28, 32], strides = [1, 1]} : vector<784x32xf32> to vector<28x32xf32>
    %179 = arith.maximumf %177, %178 : vector<28x32xf32>
    %c13 = arith.constant 13 : index
    %c0_63 = arith.constant 0 : index
    %c0_64 = arith.constant 0 : index
    %180 = vector.load %arg12[%c13, %c0_63, %c0_64] : memref<14x28x32xf32, #tpu.memory_space<vmem>>, vector<1x28x32xf32>
    %181 = vector.shape_cast %180 : vector<1x28x32xf32> to vector<28x32xf32>
    %182 = vector.shape_cast %179 : vector<28x32xf32> to vector<1x28x32xf32>
    tpu.vector_store %arg12[%c13, %c0_63, %c0_64], %182 {strides = array<i32>} : memref<14x28x32xf32, #tpu.memory_space<vmem>>, vector<1x28x32xf32>,
    %c0_65 = arith.constant 0 : index
    %c0_66 = arith.constant 0 : index
    %c0_67 = arith.constant 0 : index
    %183 = tpu.strided_load %arg12[%c0_65, %c0_66, %c0_67] {strides = array<i32: 1, 2, 1>} : memref<14x28x32xf32, #tpu.memory_space<vmem>>, vector<14x14x32xf32>
    %c0_68 = arith.constant 0 : index
    %c1_69 = arith.constant 1 : index
    %c0_70 = arith.constant 0 : index
    %184 = tpu.strided_load %arg12[%c0_68, %c1_69, %c0_70] {strides = array<i32: 1, 2, 1>} : memref<14x28x32xf32, #tpu.memory_space<vmem>>, vector<14x14x32xf32>
    %185 = arith.maximumf %183, %184 : vector<14x14x32xf32>
    %c0_71 = arith.constant 0 : index
    %c0_72 = arith.constant 0 : index
    %186 = vector.load %arg3[%c0_71, %c0_72] : memref<1x32xf32, #tpu.memory_space<vmem>>, vector<1x32xf32>
    %187 = vector.shape_cast %186 : vector<1x32xf32> to vector<1x1x32xf32>
    %188 = vector.broadcast %187 : vector<1x1x32xf32> to vector<14x14x32xf32>
    %189 = arith.addf %185, %188 : vector<14x14x32xf32>
    %cst_73 = arith.constant 0.000000e+00 : f32
    %190 = vector.broadcast %cst_73 : f32 to vector<14x14x32xf32>
    %191 = arith.maximumf %189, %190 : vector<14x14x32xf32>
    %cst_74 = arith.constant 0.000000e+00 : f32
    %192 = vector.broadcast %cst_74 : f32 to vector<16x16x32xf32>
    %c0_75 = arith.constant 0 : index
    %c0_76 = arith.constant 0 : index
    %c0_77 = arith.constant 0 : index
    %193 = vector.load %arg13[%c0_75, %c0_76, %c0_77] : memref<16x16x32xf32, #tpu.memory_space<vmem>>, vector<16x16x32xf32>
    tpu.vector_store %arg13[%c0_75, %c0_76, %c0_77], %192 {strides = array<i32>} : memref<16x16x32xf32, #tpu.memory_space<vmem>>, vector<16x16x32xf32>,
    %c1_78 = arith.constant 1 : index
    %c1_79 = arith.constant 1 : index
    %c0_80 = arith.constant 0 : index
    %194 = vector.load %arg13[%c1_78, %c1_79, %c0_80] : memref<16x16x32xf32, #tpu.memory_space<vmem>>, vector<14x14x32xf32>
    tpu.vector_store %arg13[%c1_78, %c1_79, %c0_80], %191 {strides = array<i32>} : memref<16x16x32xf32, #tpu.memory_space<vmem>>, vector<14x14x32xf32>,
    %c0_81 = arith.constant 0 : index
    %c0_82 = arith.constant 0 : index
    %c0_83 = arith.constant 0 : index
    %195 = vector.load %arg13[%c0_81, %c0_82, %c0_83] : memref<16x16x32xf32, #tpu.memory_space<vmem>>, vector<14x14x32xf32>
    %c0_84 = arith.constant 0 : index
    %c1_85 = arith.constant 1 : index
    %c0_86 = arith.constant 0 : index
    %196 = vector.load %arg13[%c0_84, %c1_85, %c0_86] : memref<16x16x32xf32, #tpu.memory_space<vmem>>, vector<14x14x32xf32>
    %c0_87 = arith.constant 0 : index
    %c2_88 = arith.constant 2 : index
    %c0_89 = arith.constant 0 : index
    %197 = vector.load %arg13[%c0_87, %c2_88, %c0_89] : memref<16x16x32xf32, #tpu.memory_space<vmem>>, vector<14x14x32xf32>
    %c1_90 = arith.constant 1 : index
    %c0_91 = arith.constant 0 : index
    %c0_92 = arith.constant 0 : index
    %198 = vector.load %arg13[%c1_90, %c0_91, %c0_92] : memref<16x16x32xf32, #tpu.memory_space<vmem>>, vector<14x14x32xf32>
    %c1_93 = arith.constant 1 : index
    %c1_94 = arith.constant 1 : index
    %c0_95 = arith.constant 0 : index
    %199 = vector.load %arg13[%c1_93, %c1_94, %c0_95] : memref<16x16x32xf32, #tpu.memory_space<vmem>>, vector<14x14x32xf32>
    %c1_96 = arith.constant 1 : index
    %c2_97 = arith.constant 2 : index
    %c0_98 = arith.constant 0 : index
    %200 = vector.load %arg13[%c1_96, %c2_97, %c0_98] : memref<16x16x32xf32, #tpu.memory_space<vmem>>, vector<14x14x32xf32>
    %c2_99 = arith.constant 2 : index
    %c0_100 = arith.constant 0 : index
    %c0_101 = arith.constant 0 : index
    %201 = vector.load %arg13[%c2_99, %c0_100, %c0_101] : memref<16x16x32xf32, #tpu.memory_space<vmem>>, vector<14x14x32xf32>
    %c2_102 = arith.constant 2 : index
    %c1_103 = arith.constant 1 : index
    %c0_104 = arith.constant 0 : index
    %202 = vector.load %arg13[%c2_102, %c1_103, %c0_104] : memref<16x16x32xf32, #tpu.memory_space<vmem>>, vector<14x14x32xf32>
    %c2_105 = arith.constant 2 : index
    %c2_106 = arith.constant 2 : index
    %c0_107 = arith.constant 0 : index
    %203 = vector.load %arg13[%c2_105, %c2_106, %c0_107] : memref<16x16x32xf32, #tpu.memory_space<vmem>>, vector<14x14x32xf32>
    %204 = tpu.concatenate %195, %196, %197, %198, %199, %200, %201, %202, %203 in 2 : vector<14x14x32xf32>, vector<14x14x32xf32>, vector<14x14x32xf32>, vector<14x14x32xf32>, vector<14x14x32xf32>, vector<14x14x32xf32>, vector<14x14x32xf32>, vector<14x14x32xf32>, vector<14x14x32xf32> -> vector<14x14x288xf32>
    %205 = vector.extract_strided_slice %204 {offsets = [0, 0, 0], sizes = [1, 14, 288], strides = [1, 1, 1]} : vector<14x14x288xf32> to vector<1x14x288xf32>
    %206 = vector.shape_cast %205 : vector<1x14x288xf32> to vector<14x288xf32>
    %c0_108 = arith.constant 0 : index
    %c0_109 = arith.constant 0 : index
    %207 = vector.load %arg14[%c0_108, %c0_109] : memref<196x288xf32, #tpu.memory_space<vmem>>, vector<14x288xf32>
    tpu.vector_store %arg14[%c0_108, %c0_109], %206 {strides = array<i32>} : memref<196x288xf32, #tpu.memory_space<vmem>>, vector<14x288xf32>,
    %208 = vector.extract_strided_slice %204 {offsets = [1, 0, 0], sizes = [1, 14, 288], strides = [1, 1, 1]} : vector<14x14x288xf32> to vector<1x14x288xf32>
    %209 = vector.shape_cast %208 : vector<1x14x288xf32> to vector<14x288xf32>
    %c14 = arith.constant 14 : index
    %c0_110 = arith.constant 0 : index
    %210 = vector.load %arg14[%c14, %c0_110] : memref<196x288xf32, #tpu.memory_space<vmem>>, vector<14x288xf32>
    tpu.vector_store %arg14[%c14, %c0_110], %209 {strides = array<i32>} : memref<196x288xf32, #tpu.memory_space<vmem>>, vector<14x288xf32>,
    %211 = vector.extract_strided_slice %204 {offsets = [2, 0, 0], sizes = [1, 14, 288], strides = [1, 1, 1]} : vector<14x14x288xf32> to vector<1x14x288xf32>
    %212 = vector.shape_cast %211 : vector<1x14x288xf32> to vector<14x288xf32>
    %c28_111 = arith.constant 28 : index
    %c0_112 = arith.constant 0 : index
    %213 = vector.load %arg14[%c28_111, %c0_112] : memref<196x288xf32, #tpu.memory_space<vmem>>, vector<14x288xf32>
    tpu.vector_store %arg14[%c28_111, %c0_112], %212 {strides = array<i32>} : memref<196x288xf32, #tpu.memory_space<vmem>>, vector<14x288xf32>,
    %214 = vector.extract_strided_slice %204 {offsets = [3, 0, 0], sizes = [1, 14, 288], strides = [1, 1, 1]} : vector<14x14x288xf32> to vector<1x14x288xf32>
    %215 = vector.shape_cast %214 : vector<1x14x288xf32> to vector<14x288xf32>
    %c42 = arith.constant 42 : index
    %c0_113 = arith.constant 0 : index
    %216 = vector.load %arg14[%c42, %c0_113] : memref<196x288xf32, #tpu.memory_space<vmem>>, vector<14x288xf32>
    tpu.vector_store %arg14[%c42, %c0_113], %215 {strides = array<i32>} : memref<196x288xf32, #tpu.memory_space<vmem>>, vector<14x288xf32>,
    %217 = vector.extract_strided_slice %204 {offsets = [4, 0, 0], sizes = [1, 14, 288], strides = [1, 1, 1]} : vector<14x14x288xf32> to vector<1x14x288xf32>
    %218 = vector.shape_cast %217 : vector<1x14x288xf32> to vector<14x288xf32>
    %c56_114 = arith.constant 56 : index
    %c0_115 = arith.constant 0 : index
    %219 = vector.load %arg14[%c56_114, %c0_115] : memref<196x288xf32, #tpu.memory_space<vmem>>, vector<14x288xf32>
    tpu.vector_store %arg14[%c56_114, %c0_115], %218 {strides = array<i32>} : memref<196x288xf32, #tpu.memory_space<vmem>>, vector<14x288xf32>,
    %220 = vector.extract_strided_slice %204 {offsets = [5, 0, 0], sizes = [1, 14, 288], strides = [1, 1, 1]} : vector<14x14x288xf32> to vector<1x14x288xf32>
    %221 = vector.shape_cast %220 : vector<1x14x288xf32> to vector<14x288xf32>
    %c70 = arith.constant 70 : index
    %c0_116 = arith.constant 0 : index
    %222 = vector.load %arg14[%c70, %c0_116] : memref<196x288xf32, #tpu.memory_space<vmem>>, vector<14x288xf32>
    tpu.vector_store %arg14[%c70, %c0_116], %221 {strides = array<i32>} : memref<196x288xf32, #tpu.memory_space<vmem>>, vector<14x288xf32>,
    %223 = vector.extract_strided_slice %204 {offsets = [6, 0, 0], sizes = [1, 14, 288], strides = [1, 1, 1]} : vector<14x14x288xf32> to vector<1x14x288xf32>
    %224 = vector.shape_cast %223 : vector<1x14x288xf32> to vector<14x288xf32>
    %c84_117 = arith.constant 84 : index
    %c0_118 = arith.constant 0 : index
    %225 = vector.load %arg14[%c84_117, %c0_118] : memref<196x288xf32, #tpu.memory_space<vmem>>, vector<14x288xf32>
    tpu.vector_store %arg14[%c84_117, %c0_118], %224 {strides = array<i32>} : memref<196x288xf32, #tpu.memory_space<vmem>>, vector<14x288xf32>,
    %226 = vector.extract_strided_slice %204 {offsets = [7, 0, 0], sizes = [1, 14, 288], strides = [1, 1, 1]} : vector<14x14x288xf32> to vector<1x14x288xf32>
    %227 = vector.shape_cast %226 : vector<1x14x288xf32> to vector<14x288xf32>
    %c98 = arith.constant 98 : index
    %c0_119 = arith.constant 0 : index
    %228 = vector.load %arg14[%c98, %c0_119] : memref<196x288xf32, #tpu.memory_space<vmem>>, vector<14x288xf32>
    tpu.vector_store %arg14[%c98, %c0_119], %227 {strides = array<i32>} : memref<196x288xf32, #tpu.memory_space<vmem>>, vector<14x288xf32>,
    %229 = vector.extract_strided_slice %204 {offsets = [8, 0, 0], sizes = [1, 14, 288], strides = [1, 1, 1]} : vector<14x14x288xf32> to vector<1x14x288xf32>
    %230 = vector.shape_cast %229 : vector<1x14x288xf32> to vector<14x288xf32>
    %c112_120 = arith.constant 112 : index
    %c0_121 = arith.constant 0 : index
    %231 = vector.load %arg14[%c112_120, %c0_121] : memref<196x288xf32, #tpu.memory_space<vmem>>, vector<14x288xf32>
    tpu.vector_store %arg14[%c112_120, %c0_121], %230 {strides = array<i32>} : memref<196x288xf32, #tpu.memory_space<vmem>>, vector<14x288xf32>,
    %232 = vector.extract_strided_slice %204 {offsets = [9, 0, 0], sizes = [1, 14, 288], strides = [1, 1, 1]} : vector<14x14x288xf32> to vector<1x14x288xf32>
    %233 = vector.shape_cast %232 : vector<1x14x288xf32> to vector<14x288xf32>
    %c126 = arith.constant 126 : index
    %c0_122 = arith.constant 0 : index
    %234 = vector.load %arg14[%c126, %c0_122] : memref<196x288xf32, #tpu.memory_space<vmem>>, vector<14x288xf32>
    tpu.vector_store %arg14[%c126, %c0_122], %233 {strides = array<i32>} : memref<196x288xf32, #tpu.memory_space<vmem>>, vector<14x288xf32>,
    %235 = vector.extract_strided_slice %204 {offsets = [10, 0, 0], sizes = [1, 14, 288], strides = [1, 1, 1]} : vector<14x14x288xf32> to vector<1x14x288xf32>
    %236 = vector.shape_cast %235 : vector<1x14x288xf32> to vector<14x288xf32>
    %c140_123 = arith.constant 140 : index
    %c0_124 = arith.constant 0 : index
    %237 = vector.load %arg14[%c140_123, %c0_124] : memref<196x288xf32, #tpu.memory_space<vmem>>, vector<14x288xf32>
    tpu.vector_store %arg14[%c140_123, %c0_124], %236 {strides = array<i32>} : memref<196x288xf32, #tpu.memory_space<vmem>>, vector<14x288xf32>,
    %238 = vector.extract_strided_slice %204 {offsets = [11, 0, 0], sizes = [1, 14, 288], strides = [1, 1, 1]} : vector<14x14x288xf32> to vector<1x14x288xf32>
    %239 = vector.shape_cast %238 : vector<1x14x288xf32> to vector<14x288xf32>
    %c154 = arith.constant 154 : index
    %c0_125 = arith.constant 0 : index
    %240 = vector.load %arg14[%c154, %c0_125] : memref<196x288xf32, #tpu.memory_space<vmem>>, vector<14x288xf32>
    tpu.vector_store %arg14[%c154, %c0_125], %239 {strides = array<i32>} : memref<196x288xf32, #tpu.memory_space<vmem>>, vector<14x288xf32>,
    %241 = vector.extract_strided_slice %204 {offsets = [12, 0, 0], sizes = [1, 14, 288], strides = [1, 1, 1]} : vector<14x14x288xf32> to vector<1x14x288xf32>
    %242 = vector.shape_cast %241 : vector<1x14x288xf32> to vector<14x288xf32>
    %c168_126 = arith.constant 168 : index
    %c0_127 = arith.constant 0 : index
    %243 = vector.load %arg14[%c168_126, %c0_127] : memref<196x288xf32, #tpu.memory_space<vmem>>, vector<14x288xf32>
    tpu.vector_store %arg14[%c168_126, %c0_127], %242 {strides = array<i32>} : memref<196x288xf32, #tpu.memory_space<vmem>>, vector<14x288xf32>,
    %244 = vector.extract_strided_slice %204 {offsets = [13, 0, 0], sizes = [1, 14, 288], strides = [1, 1, 1]} : vector<14x14x288xf32> to vector<1x14x288xf32>
    %245 = vector.shape_cast %244 : vector<1x14x288xf32> to vector<14x288xf32>
    %c182 = arith.constant 182 : index
    %c0_128 = arith.constant 0 : index
    %246 = vector.load %arg14[%c182, %c0_128] : memref<196x288xf32, #tpu.memory_space<vmem>>, vector<14x288xf32>
    tpu.vector_store %arg14[%c182, %c0_128], %245 {strides = array<i32>} : memref<196x288xf32, #tpu.memory_space<vmem>>, vector<14x288xf32>,
    %c0_129 = arith.constant 0 : index
    %c0_130 = arith.constant 0 : index
    %247 = vector.load %arg14[%c0_129, %c0_130] : memref<196x288xf32, #tpu.memory_space<vmem>>, vector<196x288xf32>
    %248 = arith.truncf %247 : vector<196x288xf32> to vector<196x288xbf16>
    %c0_131 = arith.constant 0 : index
    %c0_132 = arith.constant 0 : index
    %249 = vector.load %arg4[%c0_131, %c0_132] : memref<288x64xbf16, #tpu.memory_space<vmem>>, vector<288x64xbf16>
    %cst_133 = arith.constant dense<0.000000e+00> : vector<196x64xf32>
    %250 = tpu.matmul %248, %249, %cst_133 {dimension_numbers = #tpu.dot_dimension_numbers<[1], [0], [0], [1], [0, 0, 1, 1], [], []>} : vector<196x288xbf16>, vector<288x64xbf16>, vector<196x64xf32> -> vector<196x64xf32>
    %251 = vector.extract_strided_slice %250 {offsets = [0, 0], sizes = [14, 64], strides = [1, 1]} : vector<196x64xf32> to vector<14x64xf32>
    %252 = vector.extract_strided_slice %250 {offsets = [14, 0], sizes = [14, 64], strides = [1, 1]} : vector<196x64xf32> to vector<14x64xf32>
    %253 = arith.maximumf %251, %252 : vector<14x64xf32>
    %c0_134 = arith.constant 0 : index
    %c0_135 = arith.constant 0 : index
    %c0_136 = arith.constant 0 : index
    %254 = vector.load %arg15[%c0_134, %c0_135, %c0_136] : memref<7x14x64xf32, #tpu.memory_space<vmem>>, vector<1x14x64xf32>
    %255 = vector.shape_cast %254 : vector<1x14x64xf32> to vector<14x64xf32>
    %256 = vector.shape_cast %253 : vector<14x64xf32> to vector<1x14x64xf32>
    tpu.vector_store %arg15[%c0_134, %c0_135, %c0_136], %256 {strides = array<i32>} : memref<7x14x64xf32, #tpu.memory_space<vmem>>, vector<1x14x64xf32>,
    %257 = vector.extract_strided_slice %250 {offsets = [28, 0], sizes = [14, 64], strides = [1, 1]} : vector<196x64xf32> to vector<14x64xf32>
    %258 = vector.extract_strided_slice %250 {offsets = [42, 0], sizes = [14, 64], strides = [1, 1]} : vector<196x64xf32> to vector<14x64xf32>
    %259 = arith.maximumf %257, %258 : vector<14x64xf32>
    %c1_137 = arith.constant 1 : index
    %c0_138 = arith.constant 0 : index
    %c0_139 = arith.constant 0 : index
    %260 = vector.load %arg15[%c1_137, %c0_138, %c0_139] : memref<7x14x64xf32, #tpu.memory_space<vmem>>, vector<1x14x64xf32>
    %261 = vector.shape_cast %260 : vector<1x14x64xf32> to vector<14x64xf32>
    %262 = vector.shape_cast %259 : vector<14x64xf32> to vector<1x14x64xf32>
    tpu.vector_store %arg15[%c1_137, %c0_138, %c0_139], %262 {strides = array<i32>} : memref<7x14x64xf32, #tpu.memory_space<vmem>>, vector<1x14x64xf32>,
    %263 = vector.extract_strided_slice %250 {offsets = [56, 0], sizes = [14, 64], strides = [1, 1]} : vector<196x64xf32> to vector<14x64xf32>
    %264 = vector.extract_strided_slice %250 {offsets = [70, 0], sizes = [14, 64], strides = [1, 1]} : vector<196x64xf32> to vector<14x64xf32>
    %265 = arith.maximumf %263, %264 : vector<14x64xf32>
    %c2_140 = arith.constant 2 : index
    %c0_141 = arith.constant 0 : index
    %c0_142 = arith.constant 0 : index
    %266 = vector.load %arg15[%c2_140, %c0_141, %c0_142] : memref<7x14x64xf32, #tpu.memory_space<vmem>>, vector<1x14x64xf32>
    %267 = vector.shape_cast %266 : vector<1x14x64xf32> to vector<14x64xf32>
    %268 = vector.shape_cast %265 : vector<14x64xf32> to vector<1x14x64xf32>
    tpu.vector_store %arg15[%c2_140, %c0_141, %c0_142], %268 {strides = array<i32>} : memref<7x14x64xf32, #tpu.memory_space<vmem>>, vector<1x14x64xf32>,
    %269 = vector.extract_strided_slice %250 {offsets = [84, 0], sizes = [14, 64], strides = [1, 1]} : vector<196x64xf32> to vector<14x64xf32>
    %270 = vector.extract_strided_slice %250 {offsets = [98, 0], sizes = [14, 64], strides = [1, 1]} : vector<196x64xf32> to vector<14x64xf32>
    %271 = arith.maximumf %269, %270 : vector<14x64xf32>
    %c3_143 = arith.constant 3 : index
    %c0_144 = arith.constant 0 : index
    %c0_145 = arith.constant 0 : index
    %272 = vector.load %arg15[%c3_143, %c0_144, %c0_145] : memref<7x14x64xf32, #tpu.memory_space<vmem>>, vector<1x14x64xf32>
    %273 = vector.shape_cast %272 : vector<1x14x64xf32> to vector<14x64xf32>
    %274 = vector.shape_cast %271 : vector<14x64xf32> to vector<1x14x64xf32>
    tpu.vector_store %arg15[%c3_143, %c0_144, %c0_145], %274 {strides = array<i32>} : memref<7x14x64xf32, #tpu.memory_space<vmem>>, vector<1x14x64xf32>,
    %275 = vector.extract_strided_slice %250 {offsets = [112, 0], sizes = [14, 64], strides = [1, 1]} : vector<196x64xf32> to vector<14x64xf32>
    %276 = vector.extract_strided_slice %250 {offsets = [126, 0], sizes = [14, 64], strides = [1, 1]} : vector<196x64xf32> to vector<14x64xf32>
    %277 = arith.maximumf %275, %276 : vector<14x64xf32>
    %c4_146 = arith.constant 4 : index
    %c0_147 = arith.constant 0 : index
    %c0_148 = arith.constant 0 : index
    %278 = vector.load %arg15[%c4_146, %c0_147, %c0_148] : memref<7x14x64xf32, #tpu.memory_space<vmem>>, vector<1x14x64xf32>
    %279 = vector.shape_cast %278 : vector<1x14x64xf32> to vector<14x64xf32>
    %280 = vector.shape_cast %277 : vector<14x64xf32> to vector<1x14x64xf32>
    tpu.vector_store %arg15[%c4_146, %c0_147, %c0_148], %280 {strides = array<i32>} : memref<7x14x64xf32, #tpu.memory_space<vmem>>, vector<1x14x64xf32>,
    %281 = vector.extract_strided_slice %250 {offsets = [140, 0], sizes = [14, 64], strides = [1, 1]} : vector<196x64xf32> to vector<14x64xf32>
    %282 = vector.extract_strided_slice %250 {offsets = [154, 0], sizes = [14, 64], strides = [1, 1]} : vector<196x64xf32> to vector<14x64xf32>
    %283 = arith.maximumf %281, %282 : vector<14x64xf32>
    %c5_149 = arith.constant 5 : index
    %c0_150 = arith.constant 0 : index
    %c0_151 = arith.constant 0 : index
    %284 = vector.load %arg15[%c5_149, %c0_150, %c0_151] : memref<7x14x64xf32, #tpu.memory_space<vmem>>, vector<1x14x64xf32>
    %285 = vector.shape_cast %284 : vector<1x14x64xf32> to vector<14x64xf32>
    %286 = vector.shape_cast %283 : vector<14x64xf32> to vector<1x14x64xf32>
    tpu.vector_store %arg15[%c5_149, %c0_150, %c0_151], %286 {strides = array<i32>} : memref<7x14x64xf32, #tpu.memory_space<vmem>>, vector<1x14x64xf32>,
    %287 = vector.extract_strided_slice %250 {offsets = [168, 0], sizes = [14, 64], strides = [1, 1]} : vector<196x64xf32> to vector<14x64xf32>
    %288 = vector.extract_strided_slice %250 {offsets = [182, 0], sizes = [14, 64], strides = [1, 1]} : vector<196x64xf32> to vector<14x64xf32>
    %289 = arith.maximumf %287, %288 : vector<14x64xf32>
    %c6_152 = arith.constant 6 : index
    %c0_153 = arith.constant 0 : index
    %c0_154 = arith.constant 0 : index
    %290 = vector.load %arg15[%c6_152, %c0_153, %c0_154] : memref<7x14x64xf32, #tpu.memory_space<vmem>>, vector<1x14x64xf32>
    %291 = vector.shape_cast %290 : vector<1x14x64xf32> to vector<14x64xf32>
    %292 = vector.shape_cast %289 : vector<14x64xf32> to vector<1x14x64xf32>
    tpu.vector_store %arg15[%c6_152, %c0_153, %c0_154], %292 {strides = array<i32>} : memref<7x14x64xf32, #tpu.memory_space<vmem>>, vector<1x14x64xf32>,
    %c0_155 = arith.constant 0 : index
    %c0_156 = arith.constant 0 : index
    %c0_157 = arith.constant 0 : index
    %293 = tpu.strided_load %arg15[%c0_155, %c0_156, %c0_157] {strides = array<i32: 1, 2, 1>} : memref<7x14x64xf32, #tpu.memory_space<vmem>>, vector<7x7x64xf32>
    %c0_158 = arith.constant 0 : index
    %c1_159 = arith.constant 1 : index
    %c0_160 = arith.constant 0 : index
    %294 = tpu.strided_load %arg15[%c0_158, %c1_159, %c0_160] {strides = array<i32: 1, 2, 1>} : memref<7x14x64xf32, #tpu.memory_space<vmem>>, vector<7x7x64xf32>
    %295 = arith.maximumf %293, %294 : vector<7x7x64xf32>
    %c0_161 = arith.constant 0 : index
    %c0_162 = arith.constant 0 : index
    %296 = vector.load %arg5[%c0_161, %c0_162] : memref<1x64xf32, #tpu.memory_space<vmem>>, vector<1x64xf32>
    %297 = vector.shape_cast %296 : vector<1x64xf32> to vector<1x1x64xf32>
    %298 = vector.broadcast %297 : vector<1x1x64xf32> to vector<7x7x64xf32>
    %299 = arith.addf %295, %298 : vector<7x7x64xf32>
    %cst_163 = arith.constant 0.000000e+00 : f32
    %300 = vector.broadcast %cst_163 : f32 to vector<7x7x64xf32>
    %301 = arith.maximumf %299, %300 : vector<7x7x64xf32>
    %302 = vector.extract_strided_slice %301 {offsets = [0, 0, 0], sizes = [7, 1, 64], strides = [1, 1, 1]} : vector<7x7x64xf32> to vector<7x1x64xf32>
    %303 = vector.extract_strided_slice %301 {offsets = [0, 1, 0], sizes = [7, 1, 64], strides = [1, 1, 1]} : vector<7x7x64xf32> to vector<7x1x64xf32>
    %304 = vector.extract_strided_slice %301 {offsets = [0, 2, 0], sizes = [7, 1, 64], strides = [1, 1, 1]} : vector<7x7x64xf32> to vector<7x1x64xf32>
    %305 = vector.extract_strided_slice %301 {offsets = [0, 3, 0], sizes = [7, 1, 64], strides = [1, 1, 1]} : vector<7x7x64xf32> to vector<7x1x64xf32>
    %306 = vector.extract_strided_slice %301 {offsets = [0, 4, 0], sizes = [7, 1, 64], strides = [1, 1, 1]} : vector<7x7x64xf32> to vector<7x1x64xf32>
    %307 = vector.extract_strided_slice %301 {offsets = [0, 5, 0], sizes = [7, 1, 64], strides = [1, 1, 1]} : vector<7x7x64xf32> to vector<7x1x64xf32>
    %308 = vector.extract_strided_slice %301 {offsets = [0, 6, 0], sizes = [7, 1, 64], strides = [1, 1, 1]} : vector<7x7x64xf32> to vector<7x1x64xf32>
    %309 = tpu.concatenate %302, %303, %304, %305, %306, %307, %308 in 2 : vector<7x1x64xf32>, vector<7x1x64xf32>, vector<7x1x64xf32>, vector<7x1x64xf32>, vector<7x1x64xf32>, vector<7x1x64xf32>, vector<7x1x64xf32> -> vector<7x1x448xf32>
    %310 = vector.extract_strided_slice %309 {offsets = [0, 0, 0], sizes = [1, 1, 448], strides = [1, 1, 1]} : vector<7x1x448xf32> to vector<1x1x448xf32>
    %311 = vector.shape_cast %310 : vector<1x1x448xf32> to vector<1x448xf32>
    %312 = vector.extract_strided_slice %309 {offsets = [1, 0, 0], sizes = [1, 1, 448], strides = [1, 1, 1]} : vector<7x1x448xf32> to vector<1x1x448xf32>
    %313 = vector.shape_cast %312 : vector<1x1x448xf32> to vector<1x448xf32>
    %314 = vector.extract_strided_slice %309 {offsets = [2, 0, 0], sizes = [1, 1, 448], strides = [1, 1, 1]} : vector<7x1x448xf32> to vector<1x1x448xf32>
    %315 = vector.shape_cast %314 : vector<1x1x448xf32> to vector<1x448xf32>
    %316 = vector.extract_strided_slice %309 {offsets = [3, 0, 0], sizes = [1, 1, 448], strides = [1, 1, 1]} : vector<7x1x448xf32> to vector<1x1x448xf32>
    %317 = vector.shape_cast %316 : vector<1x1x448xf32> to vector<1x448xf32>
    %318 = vector.extract_strided_slice %309 {offsets = [4, 0, 0], sizes = [1, 1, 448], strides = [1, 1, 1]} : vector<7x1x448xf32> to vector<1x1x448xf32>
    %319 = vector.shape_cast %318 : vector<1x1x448xf32> to vector<1x448xf32>
    %320 = vector.extract_strided_slice %309 {offsets = [5, 0, 0], sizes = [1, 1, 448], strides = [1, 1, 1]} : vector<7x1x448xf32> to vector<1x1x448xf32>
    %321 = vector.shape_cast %320 : vector<1x1x448xf32> to vector<1x448xf32>
    %322 = vector.extract_strided_slice %309 {offsets = [6, 0, 0], sizes = [1, 1, 448], strides = [1, 1, 1]} : vector<7x1x448xf32> to vector<1x1x448xf32>
    %323 = vector.shape_cast %322 : vector<1x1x448xf32> to vector<1x448xf32>
    %324 = tpu.concatenate %311, %313, %315, %317, %319, %321, %323 in 1 : vector<1x448xf32>, vector<1x448xf32>, vector<1x448xf32>, vector<1x448xf32>, vector<1x448xf32>, vector<1x448xf32>, vector<1x448xf32> -> vector<1x3136xf32>
    %325 = arith.truncf %324 : vector<1x3136xf32> to vector<1x3136xbf16>
    %c0_164 = arith.constant 0 : index
    %c0_165 = arith.constant 0 : index
    %326 = vector.load %arg6[%c0_164, %c0_165] : memref<3136x128xbf16, #tpu.memory_space<vmem>>, vector<3136x128xbf16>
    %cst_166 = arith.constant dense<0.000000e+00> : vector<1x128xf32>
    %327 = tpu.matmul %325, %326, %cst_166 {dimension_numbers = #tpu.dot_dimension_numbers<[1], [0], [0], [1], [0, 0, 1, 1], [], []>} : vector<1x3136xbf16>, vector<3136x128xbf16>, vector<1x128xf32> -> vector<1x128xf32>
    %c0_167 = arith.constant 0 : index
    %c0_168 = arith.constant 0 : index
    %328 = vector.load %arg7[%c0_167, %c0_168] : memref<1x128xf32, #tpu.memory_space<vmem>>, vector<1x128xf32>
    %329 = arith.addf %327, %328 : vector<1x128xf32>
    %cst_169 = arith.constant 0.000000e+00 : f32
    %330 = vector.broadcast %cst_169 : f32 to vector<1x128xf32>
    %331 = arith.maximumf %329, %330 : vector<1x128xf32>
    %c0_170 = arith.constant 0 : index
    %c0_171 = arith.constant 0 : index
    %332 = vector.load %arg8[%c0_170, %c0_171] : memref<128x10xf32, #tpu.memory_space<vmem>>, vector<128x10xf32>
    %cst_172 = arith.constant dense<0.000000e+00> : vector<1x10xf32>
    %333 = tpu.matmul %331, %332, %cst_172 {dimension_numbers = #tpu.dot_dimension_numbers<[1], [0], [0], [1], [0, 0, 1, 1], [], []>} : vector<1x128xf32>, vector<128x10xf32>, vector<1x10xf32> -> vector<1x10xf32>
    %c0_173 = arith.constant 0 : index
    %c0_174 = arith.constant 0 : index
    %334 = vector.load %arg9[%c0_173, %c0_174] : memref<1x10xf32, #tpu.memory_space<vmem>>, vector<1x10xf32>
    %335 = arith.addf %333, %334 : vector<1x10xf32>
    %c0_175 = arith.constant 0 : index
    %c0_176 = arith.constant 0 : index
    %c0_177 = arith.constant 0 : index
    %336 = vector.load %arg10[%c0_175, %c0_176, %c0_177] : memref<1x1x10xf32, #tpu.memory_space<vmem>>, vector<1x1x10xf32>
    %337 = vector.shape_cast %336 : vector<1x1x10xf32> to vector<1x10xf32>
    %338 = vector.shape_cast %335 : vector<1x10xf32> to vector<1x1x10xf32>
    tpu.vector_store %arg10[%c0_175, %c0_176, %c0_177], %338 {strides = array<i32>} : memref<1x1x10xf32, #tpu.memory_space<vmem>>, vector<1x1x10xf32>,
    return
  }
  func.func @transform_0(%arg0: i32) -> (i32, i32, i32, i32) {
    %c0_i32 = arith.constant 0 : i32
    %c0_i32_0 = arith.constant 0 : i32
    %c0_i32_1 = arith.constant 0 : i32
    %c0_i32_2 = arith.constant 0 : i32
    return %arg0, %c0_i32, %c0_i32_0, %c0_i32_1 : i32, i32, i32, i32
  }
  func.func @transform_1(%arg0: i32) -> (i32, i32) {
    %c0_i32 = arith.constant 0 : i32
    %c0_i32_0 = arith.constant 0 : i32
    %c0_i32_1 = arith.constant 0 : i32
    return %c0_i32, %c0_i32_0 : i32, i32
  }
  func.func @transform_2(%arg0: i32) -> (i32, i32) {
    %c0_i32 = arith.constant 0 : i32
    %c0_i32_0 = arith.constant 0 : i32
    %c0_i32_1 = arith.constant 0 : i32
    return %c0_i32, %c0_i32_0 : i32, i32
  }
  func.func @transform_3(%arg0: i32) -> (i32, i32) {
    %c0_i32 = arith.constant 0 : i32
    %c0_i32_0 = arith.constant 0 : i32
    %c0_i32_1 = arith.constant 0 : i32
    return %c0_i32, %c0_i32_0 : i32, i32
  }
  func.func @transform_4(%arg0: i32) -> (i32, i32) {
    %c0_i32 = arith.constant 0 : i32
    %c0_i32_0 = arith.constant 0 : i32
    %c0_i32_1 = arith.constant 0 : i32
    return %c0_i32, %c0_i32_0 : i32, i32
  }
  func.func @transform_5(%arg0: i32) -> (i32, i32) {
    %c0_i32 = arith.constant 0 : i32
    %c0_i32_0 = arith.constant 0 : i32
    %c0_i32_1 = arith.constant 0 : i32
    return %c0_i32, %c0_i32_0 : i32, i32
  }
  func.func @transform_6(%arg0: i32) -> (i32, i32) {
    %c0_i32 = arith.constant 0 : i32
    %c0_i32_0 = arith.constant 0 : i32
    %c0_i32_1 = arith.constant 0 : i32
    return %c0_i32, %c0_i32_0 : i32, i32
  }
  func.func @transform_7(%arg0: i32) -> (i32, i32) {
    %c0_i32 = arith.constant 0 : i32
    %c0_i32_0 = arith.constant 0 : i32
    %c0_i32_1 = arith.constant 0 : i32
    return %c0_i32, %c0_i32_0 : i32, i32
  }
  func.func @transform_8(%arg0: i32) -> (i32, i32) {
    %c0_i32 = arith.constant 0 : i32
    %c0_i32_0 = arith.constant 0 : i32
    %c0_i32_1 = arith.constant 0 : i32
    return %c0_i32, %c0_i32_0 : i32, i32
  }
  func.func @transform_9(%arg0: i32) -> (i32, i32, i32) {
    %c0_i32 = arith.constant 0 : i32
    %c0_i32_0 = arith.constant 0 : i32
    %c0_i32_1 = arith.constant 0 : i32
    return %arg0, %c0_i32, %c0_i32_0 : i32, i32, i32
  }
}

</mosaic_0001>

<llo_original>
// kernel: net_forward.1
$region0: #{net_forward.1}
  #allocation0 [shape = 'u32[]', space=smem, size = 0x4, offset = 0x4, fixed_abs, tag = 'smem constant byte address 0x4 - core index']
  #allocation1 [shape = 'u32[144,128]{1,0:T(1,128)}', space=vmem, size = 0x12000, scoped, tag = 'internal scratch']
  #allocation2 [shape = 'f32[784,9]{1,0:T(8,128)}', space=vmem, size = 0x62000, scoped, tag = 'scratch operand']
  #allocation3 [shape = 'f32[14,28,32]{2,1,0:T(8,128)}', space=vmem, size = 0x38000, scoped, tag = 'scratch operand']
  #allocation4 [shape = 'f32[16,16,32]{2,1,0:T(8,128)}', space=vmem, size = 0x20000, scoped, tag = 'scratch operand']
  #allocation5 [shape = 'f32[196,288]{1,0:T(8,128)}', space=vmem, size = 0x4b000, scoped, tag = 'scratch operand']
  #allocation6 [shape = 'f32[7,14,64]{2,1,0:T(8,128)}', space=vmem, size = 0xe000, scoped, tag = 'scratch operand']
  %s0 = inlined_call_operand.vmem [shape: f32[2,30,30,1], index: 0, kind: input, shape index: {}]
  %s1 = inlined_call_operand.vmem [shape: f32[9,32], index: 1, kind: input, shape index: {}]
  %s2 = inlined_call_operand.vmem [shape: f32[1,32], index: 2, kind: input, shape index: {}]
  %s3 = inlined_call_operand.vmem [shape: bf16[288,64], index: 3, kind: input, shape index: {}]
  %s4 = inlined_call_operand.vmem [shape: f32[1,64], index: 4, kind: input, shape index: {}]
  %s5 = inlined_call_operand.vmem [shape: bf16[3136,128], index: 5, kind: input, shape index: {}]
  %s6 = inlined_call_operand.vmem [shape: f32[1,128], index: 6, kind: input, shape index: {}]
  %s7 = inlined_call_operand.vmem [shape: f32[128,10], index: 7, kind: input, shape index: {}]
  %s8 = inlined_call_operand.vmem [shape: f32[1,10], index: 8, kind: input, shape index: {}]
  %s9 = inlined_call_operand.hbm [shape: f32[2,1,10], index: 9, kind: output, shape index: {}]
  %s10 = sld [smem:[#allocation0]]
  $region69: #{net_forward.1} parent=0
    _
  %s12 = ssub.s32 1, %s10
  %s13 = scalar_select 0, %s12, %s10
  $region1: #{net_forward.1} parent=0
    #allocation7 [shape = 'u8[1024]{0}', space=vmem, size = 0x400, scoped, tag = 'output window, operand 0']
    #allocation8 [shape = 's32[2]{0}', space=sflag, size = 0x8, scoped, tag = 'scoped memory for net_forward.1']
    %14 = vsyncpa [#allocation8], 0
    %s15 = scalar_lea.sflag [#allocation8], 1
    %16 = vsyncpa %s15, 0
    loop: start=0, step=1, limit=4
    $region2: #{net_forward.1} parent=1 // loop_pre_header
      _
    $region3: #{net_forward.1} parent=1 // loop_header
      %s18 = sphi 0, %s22
      %p19 = scmp.ge.s32.totalorder %s18, 4
      %s28 = sphi 0, %s30
      %s31 = sphi 0, %s28
      %s32 = sphi 0, %s31
      %s48 = sphi 0, %s32
      %s52 = sphi 0, %s52
      %s54 = sphi 0, %s52
      %s55 = sphi 0, %s54
      %s69 = sphi 0, %s55
      %s73 = sphi 0, %s73
      %s75 = sphi 0, %s73
      %s76 = sphi 0, %s75
      %s90 = sphi 0, %s76
      %s94 = sphi 0, %s94
      %s96 = sphi 0, %s94
      %s97 = sphi 0, %s96
      %s111 = sphi 0, %s97
      %s115 = sphi 0, %s115
      %s117 = sphi 0, %s115
      %s118 = sphi 0, %s117
      %s132 = sphi 0, %s118
      %s136 = sphi 0, %s136
      %s138 = sphi 0, %s136
      %s139 = sphi 0, %s138
      %s153 = sphi 0, %s139
      %s157 = sphi 0, %s157
      %s159 = sphi 0, %s157
      %s160 = sphi 0, %s159
      %s174 = sphi 0, %s160
      %s178 = sphi 0, %s178
      %s180 = sphi 0, %s178
      %s181 = sphi 0, %s180
      %s195 = sphi 0, %s181
      %s199 = sphi 0, %s199
      %s201 = sphi 0, %s199
      %s202 = sphi 0, %s201
      %s216 = sphi 0, %s202
      %s222 = sphi 0, %s224
      %s225 = sphi 0, %s222
      %s226 = sphi 0, %s225
      %s242 = sphi 0, %s226
    $region4: #{net_forward.1} parent=1 // loop_header_branch
      %21 = sbr.rel (%p19) target = $region8
    $region5: #{net_forward.1} parent=1 // loop_body
      %s23 = ssub.s32 %s18, 1
      %s24 = ssub.s32 %s18, 2
      %s25 = sadd.s32 %s18, 1
      %s26 = ssub.s32 %s18, %s25
      %p27 = scmp.eq.s32.totalorder %s26, 0
      %s29 = sadd.s32 %s28, 1
      %s30 = scalar_select %p27, %s28, %s29
      %p33 = pneg %p27
      %p34 = scmp.eq.s32.totalorder %s18, 1
      %p35 = por %p33, %p34
      %p36 = scmp.ne.s32.totalorder %s28, %s31
      %p37 = scmp.eq.s32.totalorder %s18, 0
      %p38 = por %p36, %p37
      %p39 = scmp.ne.s32.totalorder %s28, %s31
      %p40 = scmp.eq.s32.totalorder %s23, 1
      %p41 = por %p39, %p40
      %p42 = scmp.ne.s32.totalorder %s31, %s32
      %p43 = scmp.eq.s32.totalorder %s23, 0
      %p44 = por %p42, %p43
      %p45 = scmp.ne.s32.totalorder %s31, %s32
      %p46 = scmp.eq.s32.totalorder %s24, 1
      %p47 = por %p45, %p46
      %p49 = scmp.ne.s32.totalorder %s32, %s48
      %p50 = scmp.eq.s32.totalorder %s24, 0
      %p51 = por %p49, %p50
      %s53 = sadd.s32 %s52, 1
      %p56 = scmp.eq.s32.totalorder %s18, 1
      %p57 = scmp.ne.s32.totalorder %s52, %s54
      %p58 = scmp.eq.s32.totalorder %s18, 0
      %p59 = por %p57, %p58
      %p60 = scmp.ne.s32.totalorder %s52, %s54
      %p61 = scmp.eq.s32.totalorder %s23, 1
      %p62 = por %p60, %p61
      %p63 = scmp.ne.s32.totalorder %s54, %s55
      %p64 = scmp.eq.s32.totalorder %s23, 0
      %p65 = por %p63, %p64
      %p66 = scmp.ne.s32.totalorder %s54, %s55
      %p67 = scmp.eq.s32.totalorder %s24, 1
      %p68 = por %p66, %p67
      %p70 = scmp.ne.s32.totalorder %s55, %s69
      %p71 = scmp.eq.s32.totalorder %s24, 0
      %p72 = por %p70, %p71
      %s74 = sadd.s32 %s73, 1
      %p77 = scmp.eq.s32.totalorder %s18, 1
      %p78 = scmp.ne.s32.totalorder %s73, %s75
      %p79 = scmp.eq.s32.totalorder %s18, 0
      %p80 = por %p78, %p79
      %p81 = scmp.ne.s32.totalorder %s73, %s75
      %p82 = scmp.eq.s32.totalorder %s23, 1
      %p83 = por %p81, %p82
      %p84 = scmp.ne.s32.totalorder %s75, %s76
      %p85 = scmp.eq.s32.totalorder %s23, 0
      %p86 = por %p84, %p85
      %p87 = scmp.ne.s32.totalorder %s75, %s76
      %p88 = scmp.eq.s32.totalorder %s24, 1
      %p89 = por %p87, %p88
      %p91 = scmp.ne.s32.totalorder %s76, %s90
      %p92 = scmp.eq.s32.totalorder %s24, 0
      %p93 = por %p91, %p92
      %s95 = sadd.s32 %s94, 1
      %p98 = scmp.eq.s32.totalorder %s18, 1
      %p99 = scmp.ne.s32.totalorder %s94, %s96
      %p100 = scmp.eq.s32.totalorder %s18, 0
      %p101 = por %p99, %p100
      %p102 = scmp.ne.s32.totalorder %s94, %s96
      %p103 = scmp.eq.s32.totalorder %s23, 1
      %p104 = por %p102, %p103
      %p105 = scmp.ne.s32.totalorder %s96, %s97
      %p106 = scmp.eq.s32.totalorder %s23, 0
      %p107 = por %p105, %p106
      %p108 = scmp.ne.s32.totalorder %s96, %s97
      %p109 = scmp.eq.s32.totalorder %s24, 1
      %p110 = por %p108, %p109
      %p112 = scmp.ne.s32.totalorder %s97, %s111
      %p113 = scmp.eq.s32.totalorder %s24, 0
      %p114 = por %p112, %p113
      %s116 = sadd.s32 %s115, 1
      %p119 = scmp.eq.s32.totalorder %s18, 1
      %p120 = scmp.ne.s32.totalorder %s115, %s117
      %p121 = scmp.eq.s32.totalorder %s18, 0
      %p122 = por %p120, %p121
      %p123 = scmp.ne.s32.totalorder %s115, %s117
      %p124 = scmp.eq.s32.totalorder %s23, 1
      %p125 = por %p123, %p124
      %p126 = scmp.ne.s32.totalorder %s117, %s118
      %p127 = scmp.eq.s32.totalorder %s23, 0
      %p128 = por %p126, %p127
      %p129 = scmp.ne.s32.totalorder %s117, %s118
      %p130 = scmp.eq.s32.totalorder %s24, 1
      %p131 = por %p129, %p130
      %p133 = scmp.ne.s32.totalorder %s118, %s132
      %p134 = scmp.eq.s32.totalorder %s24, 0
      %p135 = por %p133, %p134
      %s137 = sadd.s32 %s136, 1
      %p140 = scmp.eq.s32.totalorder %s18, 1
      %p141 = scmp.ne.s32.totalorder %s136, %s138
      %p142 = scmp.eq.s32.totalorder %s18, 0
      %p143 = por %p141, %p142
      %p144 = scmp.ne.s32.totalorder %s136, %s138
      %p145 = scmp.eq.s32.totalorder %s23, 1
      %p146 = por %p144, %p145
      %p147 = scmp.ne.s32.totalorder %s138, %s139
      %p148 = scmp.eq.s32.totalorder %s23, 0
      %p149 = por %p147, %p148
      %p150 = scmp.ne.s32.totalorder %s138, %s139
      %p151 = scmp.eq.s32.totalorder %s24, 1
      %p152 = por %p150, %p151
      %p154 = scmp.ne.s32.totalorder %s139, %s153
      %p155 = scmp.eq.s32.totalorder %s24, 0
      %p156 = por %p154, %p155
      %s158 = sadd.s32 %s157, 1
      %p161 = scmp.eq.s32.totalorder %s18, 1
      %p162 = scmp.ne.s32.totalorder %s157, %s159
      %p163 = scmp.eq.s32.totalorder %s18, 0
      %p164 = por %p162, %p163
      %p165 = scmp.ne.s32.totalorder %s157, %s159
      %p166 = scmp.eq.s32.totalorder %s23, 1
      %p167 = por %p165, %p166
      %p168 = scmp.ne.s32.totalorder %s159, %s160
      %p169 = scmp.eq.s32.totalorder %s23, 0
      %p170 = por %p168, %p169
      %p171 = scmp.ne.s32.totalorder %s159, %s160
      %p172 = scmp.eq.s32.totalorder %s24, 1
      %p173 = por %p171, %p172
      %p175 = scmp.ne.s32.totalorder %s160, %s174
      %p176 = scmp.eq.s32.totalorder %s24, 0
      %p177 = por %p175, %p176
      %s179 = sadd.s32 %s178, 1
      %p182 = scmp.eq.s32.totalorder %s18, 1
      %p183 = scmp.ne.s32.totalorder %s178, %s180
      %p184 = scmp.eq.s32.totalorder %s18, 0
      %p185 = por %p183, %p184
      %p186 = scmp.ne.s32.totalorder %s178, %s180
      %p187 = scmp.eq.s32.totalorder %s23, 1
      %p188 = por %p186, %p187
      %p189 = scmp.ne.s32.totalorder %s180, %s181
      %p190 = scmp.eq.s32.totalorder %s23, 0
      %p191 = por %p189, %p190
      %p192 = scmp.ne.s32.totalorder %s180, %s181
      %p193 = scmp.eq.s32.totalorder %s24, 1
      %p194 = por %p192, %p193
      %p196 = scmp.ne.s32.totalorder %s181, %s195
      %p197 = scmp.eq.s32.totalorder %s24, 0
      %p198 = por %p196, %p197
      %s200 = sadd.s32 %s199, 1
      %p203 = scmp.eq.s32.totalorder %s18, 1
      %p204 = scmp.ne.s32.totalorder %s199, %s201
      %p205 = scmp.eq.s32.totalorder %s18, 0
      %p206 = por %p204, %p205
      %p207 = scmp.ne.s32.totalorder %s199, %s201
      %p208 = scmp.eq.s32.totalorder %s23, 1
      %p209 = por %p207, %p208
      %p210 = scmp.ne.s32.totalorder %s201, %s202
      %p211 = scmp.eq.s32.totalorder %s23, 0
      %p212 = por %p210, %p211
      %p213 = scmp.ne.s32.totalorder %s201, %s202
      %p214 = scmp.eq.s32.totalorder %s24, 1
      %p215 = por %p213, %p214
      %p217 = scmp.ne.s32.totalorder %s202, %s216
      %p218 = scmp.eq.s32.totalorder %s24, 0
      %p219 = por %p217, %p218
      %s220 = ssub.s32 %s18, %s25
      %p221 = scmp.eq.s32.totalorder %s220, 0
      %s223 = sadd.s32 %s222, 1
      %s224 = scalar_select %p221, %s222, %s223
      %p227 = pneg %p221
      %p228 = scmp.eq.s32.totalorder %s18, 1
      %p229 = por %p227, %p228
      %p230 = scmp.ne.s32.totalorder %s222, %s225
      %p231 = scmp.eq.s32.totalorder %s18, 0
      %p232 = por %p230, %p231
      %p233 = scmp.ne.s32.totalorder %s222, %s225
      %p234 = scmp.eq.s32.totalorder %s23, 1
      %p235 = por %p233, %p234
      %p236 = scmp.ne.s32.totalorder %s225, %s226
      %p237 = scmp.eq.s32.totalorder %s23, 0
      %p238 = por %p236, %p237
      %p239 = scmp.ne.s32.totalorder %s225, %s226
      %p240 = scmp.eq.s32.totalorder %s24, 1
      %p241 = por %p239, %p240
      %p243 = scmp.ne.s32.totalorder %s226, %s242
      %p244 = scmp.eq.s32.totalorder %s24, 0
      %p245 = por %p243, %p244
      %p246 = scmp.le.s32.totalorder 1, %s18
      %p247 = scmp.lt.s32.totalorder %s18, 3
      %p248 = pnand %p246, %p247
      %p249 = pneg %p248
      // Predicated region
      $region9: #{net_forward.1} parent=5 // pred_check
        _
      $region10: #{net_forward.1} parent=5 // pred_check_branch
        %251 = sbr.rel (%p248) target = $region12
      $region11: #{net_forward.1} parent=5 // pred_region
        %s252 = ssub.s32 %s18, 1
        // Predicated region
        $region13: #{net_forward.1} parent=11 // pred_check
          %p253 = pneg %p65
        $region14: #{net_forward.1} parent=11 // pred_check_branch
          %255 = sbr.rel (%p253) target = $region16
        $region15: #{net_forward.1} parent=11 // pred_region
          _
        $region16: #{net_forward.1} parent=11 // pred_fallthru
          _
        // Predicated region
        $region17: #{net_forward.1} parent=11 // pred_check
          %p256 = pneg %p86
        $region18: #{net_forward.1} parent=11 // pred_check_branch
          %258 = sbr.rel (%p256) target = $region20
        $region19: #{net_forward.1} parent=11 // pred_region
          _
        $region20: #{net_forward.1} parent=11 // pred_fallthru
          _
        // Predicated region
        $region21: #{net_forward.1} parent=11 // pred_check
          %p259 = pneg %p107
        $region22: #{net_forward.1} parent=11 // pred_check_branch
          %261 = sbr.rel (%p259) target = $region24
        $region23: #{net_forward.1} parent=11 // pred_region
          _
        $region24: #{net_forward.1} parent=11 // pred_fallthru
          _
        // Predicated region
        $region25: #{net_forward.1} parent=11 // pred_check
          %p262 = pneg %p128
        $region26: #{net_forward.1} parent=11 // pred_check_branch
          %264 = sbr.rel (%p262) target = $region28
        $region27: #{net_forward.1} parent=11 // pred_region
          _
        $region28: #{net_forward.1} parent=11 // pred_fallthru
          _
        // Predicated region
        $region29: #{net_forward.1} parent=11 // pred_check
          %p265 = pneg %p149
        $region30: #{net_forward.1} parent=11 // pred_check_branch
          %267 = sbr.rel (%p265) target = $region32
        $region31: #{net_forward.1} parent=11 // pred_region
          _
        $region32: #{net_forward.1} parent=11 // pred_fallthru
          _
        // Predicated region
        $region33: #{net_forward.1} parent=11 // pred_check
          %p268 = pneg %p170
        $region34: #{net_forward.1} parent=11 // pred_check_branch
          %270 = sbr.rel (%p268) target = $region36
        $region35: #{net_forward.1} parent=11 // pred_region
          _
        $region36: #{net_forward.1} parent=11 // pred_fallthru
          _
        // Predicated region
        $region37: #{net_forward.1} parent=11 // pred_check
          %p271 = pneg %p191
        $region38: #{net_forward.1} parent=11 // pred_check_branch
          %273 = sbr.rel (%p271) target = $region40
        $region39: #{net_forward.1} parent=11 // pred_region
          _
        $region40: #{net_forward.1} parent=11 // pred_fallthru
          _
        // Predicated region
        $region41: #{net_forward.1} parent=11 // pred_check
          %p274 = pneg %p212
        $region42: #{net_forward.1} parent=11 // pred_check_branch
          %276 = sbr.rel (%p274) target = $region44
        $region43: #{net_forward.1} parent=11 // pred_region
          _
        $region44: #{net_forward.1} parent=11 // pred_fallthru
          _
      $region12: #{net_forward.1} parent=5 // pred_fallthru
        _
      %p277 = scmp.lt.s32.totalorder %s18, 2
      // Predicated region
      $region45: #{net_forward.1} parent=5 // pred_check
        %p278 = pneg %p277
      $region46: #{net_forward.1} parent=5 // pred_check_branch
        %280 = sbr.rel (%p278) target = $region48
      $region47: #{net_forward.1} parent=5 // pred_region
        // Predicated region
        $region49: #{net_forward.1} parent=47 // pred_check
          %p281 = pneg %p38
        $region50: #{net_forward.1} parent=47 // pred_check_branch
          %283 = sbr.rel (%p281) target = $region52
        $region51: #{net_forward.1} parent=47 // pred_region
          %p284 = scmp.lt.s32.totalorder %s18, 1
          %s285 = scalar_select %p284, %s18, 1
          %s286 = smul.addr %s285, 120
          %s287 = smul.addr %s286, 8
          %s288 = scalar_lea.vmem %s0, %s287
        $region52: #{net_forward.1} parent=47 // pred_fallthru
          _
      $region48: #{net_forward.1} parent=5 // pred_fallthru
        _
      %p289 = scmp.le.s32.totalorder 1, %s18
      %p290 = scmp.lt.s32.totalorder %s18, 3
      %p291 = pnand %p289, %p290
      %p292 = pneg %p291
      // Predicated region
      $region53: #{net_forward.1} parent=5 // pred_check
        _
      $region54: #{net_forward.1} parent=5 // pred_check_branch
        %294 = sbr.rel (%p291) target = $region56
      $region55: #{net_forward.1} parent=5 // pred_region
        %s295 = ssub.s32 %s18, 1
        %p296 = scmp.lt.s32.totalorder %s23, 1
        %s297 = scalar_select %p296, %s23, 1
        %s298 = smul.addr %s297, 120
        %s299 = smul.addr %s298, 8
        %s300 = scalar_lea.vmem %s0, %s299
        %p301 = pneg %p44
        %p302 = pneg %p41
        %p303 = pneg %p65
        %p304 = pneg %p62
        %p305 = pneg %p86
        %p306 = pneg %p83
        %p307 = pneg %p107
        %p308 = pneg %p104
        %p309 = pneg %p128
        %p310 = pneg %p125
        %p311 = pneg %p149
        %p312 = pneg %p146
        %p313 = pneg %p170
        %p314 = pneg %p167
        %p315 = pneg %p191
        %p316 = pneg %p188
        %p317 = pneg %p212
        %p318 = pneg %p209
        %p319 = pneg %p238
        %p320 = pneg %p235
        %s321 = sand.u32 %s225, 1
        %s322 = scalar_lea.sflag [#allocation8], %s321
        %s323 = sand.u32 %s225, 1
        %s324 = scalar_lea.vmem [#allocation7], %s323
        %p325 = scmp.lt.s32.totalorder %s23, 1
        %s326 = scalar_select %p325, %s23, 1
        %s327 = smul.addr %s326, 120
        %s328 = smul.addr %s327, 8
        %s329 = scalar_lea.vmem %s0, %s328
        %v331 = vld [vmem:[%s329] sm:$0xff]
        %v332 = vld [vmem:[%s329 + $0x8] sm:$0xff]
        %v333 = vld [vmem:[%s329 + $0x10] sm:$0xff]
        %v334 = vld [vmem:[%s329 + $0x18] sm:$0x3f]
        %v335 = vld [vmem:[%s329 + $0x20] sm:$0xff]
        %v336 = vld [vmem:[%s329 + $0x28] sm:$0xff]
        %v337 = vld [vmem:[%s329 + $0x30] sm:$0xff]
        %v338 = vld [vmem:[%s329 + $0x38] sm:$0x3f]
        %v339 = vld [vmem:[%s329 + $0x40] sm:$0xff]
        %v340 = vld [vmem:[%s329 + $0x48] sm:$0xff]
        %v341 = vld [vmem:[%s329 + $0x50] sm:$0xff]
        %v342 = vld [vmem:[%s329 + $0x58] sm:$0x3f]
        %v343 = vld [vmem:[%s329 + $0x60] sm:$0xff]
        %v344 = vld [vmem:[%s329 + $0x68] sm:$0xff]
        %v345 = vld [vmem:[%s329 + $0x70] sm:$0xff]
        %v346 = vld [vmem:[%s329 + $0x78] sm:$0x3f]
        %v347 = vld [vmem:[%s329 + $0x80] sm:$0xff]
        %v348 = vld [vmem:[%s329 + $0x88] sm:$0xff]
        %v349 = vld [vmem:[%s329 + $0x90] sm:$0xff]
        %v350 = vld [vmem:[%s329 + $0x98] sm:$0x3f]
        %v351 = vld [vmem:[%s329 + $0xa0] sm:$0xff]
        %v352 = vld [vmem:[%s329 + $0xa8] sm:$0xff]
        %v353 = vld [vmem:[%s329 + $0xb0] sm:$0xff]
        %v354 = vld [vmem:[%s329 + $0xb8] sm:$0x3f]
        %v355 = vld [vmem:[%s329 + $0xc0] sm:$0xff]
        %v356 = vld [vmem:[%s329 + $0xc8] sm:$0xff]
        %v357 = vld [vmem:[%s329 + $0xd0] sm:$0xff]
        %v358 = vld [vmem:[%s329 + $0xd8] sm:$0x3f]
        %v359 = vld [vmem:[%s329 + $0xe0] sm:$0xff]
        %v360 = vld [vmem:[%s329 + $0xe8] sm:$0xff]
        %v361 = vld [vmem:[%s329 + $0xf0] sm:$0xff]
        %v362 = vld [vmem:[%s329 + $0xf8] sm:$0x3f]
        %v363 = vld [vmem:[%s329 + $0x100] sm:$0xff]
        %v364 = vld [vmem:[%s329 + $0x108] sm:$0xff]
        %v365 = vld [vmem:[%s329 + $0x110] sm:$0xff]
        %v366 = vld [vmem:[%s329 + $0x118] sm:$0x3f]
        %v367 = vld [vmem:[%s329 + $0x120] sm:$0xff]
        %v368 = vld [vmem:[%s329 + $0x128] sm:$0xff]
        %v369 = vld [vmem:[%s329 + $0x130] sm:$0xff]
        %v370 = vld [vmem:[%s329 + $0x138] sm:$0x3f]
        %v371 = vld [vmem:[%s329 + $0x140] sm:$0xff]
        %v372 = vld [vmem:[%s329 + $0x148] sm:$0xff]
        %v373 = vld [vmem:[%s329 + $0x150] sm:$0xff]
        %v374 = vld [vmem:[%s329 + $0x158] sm:$0x3f]
        %v375 = vld [vmem:[%s329 + $0x160] sm:$0xff]
        %v376 = vld [vmem:[%s329 + $0x168] sm:$0xff]
        %v377 = vld [vmem:[%s329 + $0x170] sm:$0xff]
        %v378 = vld [vmem:[%s329 + $0x178] sm:$0x3f]
        %v379 = vld [vmem:[%s329 + $0x180] sm:$0xff]
        %v380 = vld [vmem:[%s329 + $0x188] sm:$0xff]
        %v381 = vld [vmem:[%s329 + $0x190] sm:$0xff]
        %v382 = vld [vmem:[%s329 + $0x198] sm:$0x3f]
        %v383 = vld [vmem:[%s329 + $0x1a0] sm:$0xff]
        %v384 = vld [vmem:[%s329 + $0x1a8] sm:$0xff]
        %v385 = vld [vmem:[%s329 + $0x1b0] sm:$0xff]
        %v386 = vld [vmem:[%s329 + $0x1b8] sm:$0x3f]
        %v387 = vld [vmem:[%s329 + $0x1c0] sm:$0xff]
        %v388 = vld [vmem:[%s329 + $0x1c8] sm:$0xff]
        %v389 = vld [vmem:[%s329 + $0x1d0] sm:$0xff]
        %v390 = vld [vmem:[%s329 + $0x1d8] sm:$0x3f]
        %v391 = vld [vmem:[%s329 + $0x1e0] sm:$0xff]
        %v392 = vld [vmem:[%s329 + $0x1e8] sm:$0xff]
        %v393 = vld [vmem:[%s329 + $0x1f0] sm:$0xff]
        %v394 = vld [vmem:[%s329 + $0x1f8] sm:$0x3f]
        %v395 = vld [vmem:[%s329 + $0x200] sm:$0xff]
        %v396 = vld [vmem:[%s329 + $0x208] sm:$0xff]
        %v397 = vld [vmem:[%s329 + $0x210] sm:$0xff]
        %v398 = vld [vmem:[%s329 + $0x218] sm:$0x3f]
        %v399 = vld [vmem:[%s329 + $0x220] sm:$0xff]
        %v400 = vld [vmem:[%s329 + $0x228] sm:$0xff]
        %v401 = vld [vmem:[%s329 + $0x230] sm:$0xff]
        %v402 = vld [vmem:[%s329 + $0x238] sm:$0x3f]
        %v403 = vld [vmem:[%s329 + $0x240] sm:$0xff]
        %v404 = vld [vmem:[%s329 + $0x248] sm:$0xff]
        %v405 = vld [vmem:[%s329 + $0x250] sm:$0xff]
        %v406 = vld [vmem:[%s329 + $0x258] sm:$0x3f]
        %v407 = vld [vmem:[%s329 + $0x260] sm:$0xff]
        %v408 = vld [vmem:[%s329 + $0x268] sm:$0xff]
        %v409 = vld [vmem:[%s329 + $0x270] sm:$0xff]
        %v410 = vld [vmem:[%s329 + $0x278] sm:$0x3f]
        %v411 = vld [vmem:[%s329 + $0x280] sm:$0xff]
        %v412 = vld [vmem:[%s329 + $0x288] sm:$0xff]
        %v413 = vld [vmem:[%s329 + $0x290] sm:$0xff]
        %v414 = vld [vmem:[%s329 + $0x298] sm:$0x3f]
        %v415 = vld [vmem:[%s329 + $0x2a0] sm:$0xff]
        %v416 = vld [vmem:[%s329 + $0x2a8] sm:$0xff]
        %v417 = vld [vmem:[%s329 + $0x2b0] sm:$0xff]
        %v418 = vld [vmem:[%s329 + $0x2b8] sm:$0x3f]
        %v419 = vld [vmem:[%s329 + $0x2c0] sm:$0xff]
        %v420 = vld [vmem:[%s329 + $0x2c8] sm:$0xff]
        %v421 = vld [vmem:[%s329 + $0x2d0] sm:$0xff]
        %v422 = vld [vmem:[%s329 + $0x2d8] sm:$0x3f]
        %v423 = vld [vmem:[%s329 + $0x2e0] sm:$0xff]
        %v424 = vld [vmem:[%s329 + $0x2e8] sm:$0xff]
        %v425 = vld [vmem:[%s329 + $0x2f0] sm:$0xff]
        %v426 = vld [vmem:[%s329 + $0x2f8] sm:$0x3f]
        %v427 = vld [vmem:[%s329 + $0x300] sm:$0xff]
        %v428 = vld [vmem:[%s329 + $0x308] sm:$0xff]
        %v429 = vld [vmem:[%s329 + $0x310] sm:$0xff]
        %v430 = vld [vmem:[%s329 + $0x318] sm:$0x3f]
        %v431 = vld [vmem:[%s329 + $0x320] sm:$0xff]
        %v432 = vld [vmem:[%s329 + $0x328] sm:$0xff]
        %v433 = vld [vmem:[%s329 + $0x330] sm:$0xff]
        %v434 = vld [vmem:[%s329 + $0x338] sm:$0x3f]
        %v435 = vld [vmem:[%s329 + $0x340] sm:$0xff]
        %v436 = vld [vmem:[%s329 + $0x348] sm:$0xff]
        %v437 = vld [vmem:[%s329 + $0x350] sm:$0xff]
        %v438 = vld [vmem:[%s329 + $0x358] sm:$0x3f]
        %v439 = vld [vmem:[%s329 + $0x360] sm:$0xff]
        %v440 = vld [vmem:[%s329 + $0x368] sm:$0xff]
        %v441 = vld [vmem:[%s329 + $0x370] sm:$0xff]
        %v442 = vld [vmem:[%s329 + $0x378] sm:$0x3f]
        %v443 = vld [vmem:[%s329 + $0x380] sm:$0xff]
        %v444 = vld [vmem:[%s329 + $0x388] sm:$0xff]
        %v445 = vld [vmem:[%s329 + $0x390] sm:$0xff]
        %v446 = vld [vmem:[%s329 + $0x398] sm:$0x3f]
        %v447 = vld [vmem:[%s329 + $0x3a0] sm:$0xff]
        %v448 = vld [vmem:[%s329 + $0x3a8] sm:$0xff]
        %v449 = vld [vmem:[%s329 + $0x3b0] sm:$0xff]
        %v450 = vld [vmem:[%s329 + $0x3b8] sm:$0x3f]
        %vm563 = vcmask 1046528
        %v564 = vrot.slane %v331, 1
        %v565 = vrot.slane %v332, 1
        %v566 = vsel %vm563, %v564, %v565
        %v567 = vrot.slane %v333, 1
        %v568 = vsel %vm563, %v565, %v567
        %v569 = vrot.slane %v334, 1
        %v570 = vsel %vm563, %v567, %v569
        %v571 = vrot.slane %v335, 1
        %v572 = vrot.slane %v336, 1
        %v573 = vsel %vm563, %v571, %v572
        %v574 = vrot.slane %v337, 1
        %v575 = vsel %vm563, %v572, %v574
        %v576 = vrot.slane %v338, 1
        %v577 = vsel %vm563, %v574, %v576
        %v578 = vrot.slane %v339, 1
        %v579 = vrot.slane %v340, 1
        %v580 = vsel %vm563, %v578, %v579
        %v581 = vrot.slane %v341, 1
        %v582 = vsel %vm563, %v579, %v581
        %v583 = vrot.slane %v342, 1
        %v584 = vsel %vm563, %v581, %v583
        %v585 = vrot.slane %v343, 1
        %v586 = vrot.slane %v344, 1
        %v587 = vsel %vm563, %v585, %v586
        %v588 = vrot.slane %v345, 1
        %v589 = vsel %vm563, %v586, %v588
        %v590 = vrot.slane %v346, 1
        %v591 = vsel %vm563, %v588, %v590
        %v592 = vrot.slane %v347, 1
        %v593 = vrot.slane %v348, 1
        %v594 = vsel %vm563, %v592, %v593
        %v595 = vrot.slane %v349, 1
        %v596 = vsel %vm563, %v593, %v595
        %v597 = vrot.slane %v350, 1
        %v598 = vsel %vm563, %v595, %v597
        %v599 = vrot.slane %v351, 1
        %v600 = vrot.slane %v352, 1
        %v601 = vsel %vm563, %v599, %v600
        %v602 = vrot.slane %v353, 1
        %v603 = vsel %vm563, %v600, %v602
        %v604 = vrot.slane %v354, 1
        %v605 = vsel %vm563, %v602, %v604
        %v606 = vrot.slane %v355, 1
        %v607 = vrot.slane %v356, 1
        %v608 = vsel %vm563, %v606, %v607
        %v609 = vrot.slane %v357, 1
        %v610 = vsel %vm563, %v607, %v609
        %v611 = vrot.slane %v358, 1
        %v612 = vsel %vm563, %v609, %v611
        %v613 = vrot.slane %v359, 1
        %v614 = vrot.slane %v360, 1
        %v615 = vsel %vm563, %v613, %v614
        %v616 = vrot.slane %v361, 1
        %v617 = vsel %vm563, %v614, %v616
        %v618 = vrot.slane %v362, 1
        %v619 = vsel %vm563, %v616, %v618
        %v620 = vrot.slane %v363, 1
        %v621 = vrot.slane %v364, 1
        %v622 = vsel %vm563, %v620, %v621
        %v623 = vrot.slane %v365, 1
        %v624 = vsel %vm563, %v621, %v623
        %v625 = vrot.slane %v366, 1
        %v626 = vsel %vm563, %v623, %v625
        %v627 = vrot.slane %v367, 1
        %v628 = vrot.slane %v368, 1
        %v629 = vsel %vm563, %v627, %v628
        %v630 = vrot.slane %v369, 1
        %v631 = vsel %vm563, %v628, %v630
        %v632 = vrot.slane %v370, 1
        %v633 = vsel %vm563, %v630, %v632
        %v634 = vrot.slane %v371, 1
        %v635 = vrot.slane %v372, 1
        %v636 = vsel %vm563, %v634, %v635
        %v637 = vrot.slane %v373, 1
        %v638 = vsel %vm563, %v635, %v637
        %v639 = vrot.slane %v374, 1
        %v640 = vsel %vm563, %v637, %v639
        %v641 = vrot.slane %v375, 1
        %v642 = vrot.slane %v376, 1
        %v643 = vsel %vm563, %v641, %v642
        %v644 = vrot.slane %v377, 1
        %v645 = vsel %vm563, %v642, %v644
        %v646 = vrot.slane %v378, 1
        %v647 = vsel %vm563, %v644, %v646
        %v648 = vrot.slane %v379, 1
        %v649 = vrot.slane %v380, 1
        %v650 = vsel %vm563, %v648, %v649
        %v651 = vrot.slane %v381, 1
        %v652 = vsel %vm563, %v649, %v651
        %v653 = vrot.slane %v382, 1
        %v654 = vsel %vm563, %v651, %v653
        %v655 = vrot.slane %v383, 1
        %v656 = vrot.slane %v384, 1
        %v657 = vsel %vm563, %v655, %v656
        %v658 = vrot.slane %v385, 1
        %v659 = vsel %vm563, %v656, %v658
        %v660 = vrot.slane %v386, 1
        %v661 = vsel %vm563, %v658, %v660
        %v662 = vrot.slane %v387, 1
        %v663 = vrot.slane %v388, 1
        %v664 = vsel %vm563, %v662, %v663
        %v665 = vrot.slane %v389, 1
        %v666 = vsel %vm563, %v663, %v665
        %v667 = vrot.slane %v390, 1
        %v668 = vsel %vm563, %v665, %v667
        %v669 = vrot.slane %v391, 1
        %v670 = vrot.slane %v392, 1
        %v671 = vsel %vm563, %v669, %v670
        %v672 = vrot.slane %v393, 1
        %v673 = vsel %vm563, %v670, %v672
        %v674 = vrot.slane %v394, 1
        %v675 = vsel %vm563, %v672, %v674
        %v676 = vrot.slane %v395, 1
        %v677 = vrot.slane %v396, 1
        %v678 = vsel %vm563, %v676, %v677
        %v679 = vrot.slane %v397, 1
        %v680 = vsel %vm563, %v677, %v679
        %v681 = vrot.slane %v398, 1
        %v682 = vsel %vm563, %v679, %v681
        %v683 = vrot.slane %v399, 1
        %v684 = vrot.slane %v400, 1
        %v685 = vsel %vm563, %v683, %v684
        %v686 = vrot.slane %v401, 1
        %v687 = vsel %vm563, %v684, %v686
        %v688 = vrot.slane %v402, 1
        %v689 = vsel %vm563, %v686, %v688
        %v690 = vrot.slane %v403, 1
        %v691 = vrot.slane %v404, 1
        %v692 = vsel %vm563, %v690, %v691
        %v693 = vrot.slane %v405, 1
        %v694 = vsel %vm563, %v691, %v693
        %v695 = vrot.slane %v406, 1
        %v696 = vsel %vm563, %v693, %v695
        %v697 = vrot.slane %v407, 1
        %v698 = vrot.slane %v408, 1
        %v699 = vsel %vm563, %v697, %v698
        %v700 = vrot.slane %v409, 1
        %v701 = vsel %vm563, %v698, %v700
        %v702 = vrot.slane %v410, 1
        %v703 = vsel %vm563, %v700, %v702
        %v704 = vrot.slane %v411, 1
        %v705 = vrot.slane %v412, 1
        %v706 = vsel %vm563, %v704, %v705
        %v707 = vrot.slane %v413, 1
        %v708 = vsel %vm563, %v705, %v707
        %v709 = vrot.slane %v414, 1
        %v710 = vsel %vm563, %v707, %v709
        %v711 = vrot.slane %v415, 1
        %v712 = vrot.slane %v416, 1
        %v713 = vsel %vm563, %v711, %v712
        %v714 = vrot.slane %v417, 1
        %v715 = vsel %vm563, %v712, %v714
        %v716 = vrot.slane %v418, 1
        %v717 = vsel %vm563, %v714, %v716
        %v718 = vrot.slane %v419, 1
        %v719 = vrot.slane %v420, 1
        %v720 = vsel %vm563, %v718, %v719
        %v721 = vrot.slane %v421, 1
        %v722 = vsel %vm563, %v719, %v721
        %v723 = vrot.slane %v422, 1
        %v724 = vsel %vm563, %v721, %v723
        %v725 = vrot.slane %v423, 1
        %v726 = vrot.slane %v424, 1
        %v727 = vsel %vm563, %v725, %v726
        %v728 = vrot.slane %v425, 1
        %v729 = vsel %vm563, %v726, %v728
        %v730 = vrot.slane %v426, 1
        %v731 = vsel %vm563, %v728, %v730
        %v732 = vrot.slane %v427, 1
        %v733 = vrot.slane %v428, 1
        %v734 = vsel %vm563, %v732, %v733
        %v735 = vrot.slane %v429, 1
        %v736 = vsel %vm563, %v733, %v735
        %v737 = vrot.slane %v430, 1
        %v738 = vsel %vm563, %v735, %v737
        %v739 = vrot.slane %v431, 1
        %v740 = vrot.slane %v432, 1
        %v741 = vsel %vm563, %v739, %v740
        %v742 = vrot.slane %v433, 1
        %v743 = vsel %vm563, %v740, %v742
        %v744 = vrot.slane %v434, 1
        %v745 = vsel %vm563, %v742, %v744
        %v746 = vrot.slane %v435, 1
        %v747 = vrot.slane %v436, 1
        %v748 = vsel %vm563, %v746, %v747
        %v749 = vrot.slane %v437, 1
        %v750 = vsel %vm563, %v747, %v749
        %v751 = vrot.slane %v438, 1
        %v752 = vsel %vm563, %v749, %v751
        %v753 = vrot.slane %v439, 1
        %v754 = vrot.slane %v440, 1
        %v755 = vsel %vm563, %v753, %v754
        %v756 = vrot.slane %v441, 1
        %v757 = vsel %vm563, %v754, %v756
        %v758 = vrot.slane %v442, 1
        %v759 = vsel %vm563, %v756, %v758
        %760 = vrot.lane.b32.xlu0 %v566, 1
        %v761 = vpop.permute.xlu0 %760
        %762 = vrot.lane.b32.xlu0 %v568, 1
        %v763 = vpop.permute.xlu0 %762
        %764 = vrot.lane.b32.xlu0 %v570, 1
        %v765 = vpop.permute.xlu0 %764
        %766 = vrot.lane.b32.xlu0 %v569, 1
        %v767 = vpop.permute.xlu0 %766
        %768 = vrot.lane.b32.xlu0 %v573, 1
        %v769 = vpop.permute.xlu0 %768
        %770 = vrot.lane.b32.xlu0 %v575, 1
        %v771 = vpop.permute.xlu0 %770
        %772 = vrot.lane.b32.xlu0 %v577, 1
        %v773 = vpop.permute.xlu0 %772
        %774 = vrot.lane.b32.xlu0 %v576, 1
        %v775 = vpop.permute.xlu0 %774
        %776 = vrot.lane.b32.xlu0 %v580, 1
        %v777 = vpop.permute.xlu0 %776
        %778 = vrot.lane.b32.xlu0 %v582, 1
        %v779 = vpop.permute.xlu0 %778
        %780 = vrot.lane.b32.xlu0 %v584, 1
        %v781 = vpop.permute.xlu0 %780
        %782 = vrot.lane.b32.xlu0 %v583, 1
        %v783 = vpop.permute.xlu0 %782
        %784 = vrot.lane.b32.xlu0 %v587, 1
        %v785 = vpop.permute.xlu0 %784
        %786 = vrot.lane.b32.xlu0 %v589, 1
        %v787 = vpop.permute.xlu0 %786
        %788 = vrot.lane.b32.xlu0 %v591, 1
        %v789 = vpop.permute.xlu0 %788
        %790 = vrot.lane.b32.xlu0 %v590, 1
        %v791 = vpop.permute.xlu0 %790
        %792 = vrot.lane.b32.xlu0 %v594, 1
        %v793 = vpop.permute.xlu0 %792
        %794 = vrot.lane.b32.xlu0 %v596, 1
        %v795 = vpop.permute.xlu0 %794
        %796 = vrot.lane.b32.xlu0 %v598, 1
        %v797 = vpop.permute.xlu0 %796
        %798 = vrot.lane.b32.xlu0 %v597, 1
        %v799 = vpop.permute.xlu0 %798
        %800 = vrot.lane.b32.xlu0 %v601, 1
        %v801 = vpop.permute.xlu0 %800
        %802 = vrot.lane.b32.xlu0 %v603, 1
        %v803 = vpop.permute.xlu0 %802
        %804 = vrot.lane.b32.xlu0 %v605, 1
        %v805 = vpop.permute.xlu0 %804
        %806 = vrot.lane.b32.xlu0 %v604, 1
        %v807 = vpop.permute.xlu0 %806
        %808 = vrot.lane.b32.xlu0 %v608, 1
        %v809 = vpop.permute.xlu0 %808
        %810 = vrot.lane.b32.xlu0 %v610, 1
        %v811 = vpop.permute.xlu0 %810
        %812 = vrot.lane.b32.xlu0 %v612, 1
        %v813 = vpop.permute.xlu0 %812
        %814 = vrot.lane.b32.xlu0 %v611, 1
        %v815 = vpop.permute.xlu0 %814
        %816 = vrot.lane.b32.xlu0 %v615, 1
        %v817 = vpop.permute.xlu0 %816
        %818 = vrot.lane.b32.xlu0 %v617, 1
        %v819 = vpop.permute.xlu0 %818
        %820 = vrot.lane.b32.xlu0 %v619, 1
        %v821 = vpop.permute.xlu0 %820
        %822 = vrot.lane.b32.xlu0 %v618, 1
        %v823 = vpop.permute.xlu0 %822
        %824 = vrot.lane.b32.xlu0 %v622, 1
        %v825 = vpop.permute.xlu0 %824
        %826 = vrot.lane.b32.xlu0 %v624, 1
        %v827 = vpop.permute.xlu0 %826
        %828 = vrot.lane.b32.xlu0 %v626, 1
        %v829 = vpop.permute.xlu0 %828
        %830 = vrot.lane.b32.xlu0 %v625, 1
        %v831 = vpop.permute.xlu0 %830
        %832 = vrot.lane.b32.xlu0 %v629, 1
        %v833 = vpop.permute.xlu0 %832
        %834 = vrot.lane.b32.xlu0 %v631, 1
        %v835 = vpop.permute.xlu0 %834
        %836 = vrot.lane.b32.xlu0 %v633, 1
        %v837 = vpop.permute.xlu0 %836
        %838 = vrot.lane.b32.xlu0 %v632, 1
        %v839 = vpop.permute.xlu0 %838
        %840 = vrot.lane.b32.xlu0 %v636, 1
        %v841 = vpop.permute.xlu0 %840
        %842 = vrot.lane.b32.xlu0 %v638, 1
        %v843 = vpop.permute.xlu0 %842
        %844 = vrot.lane.b32.xlu0 %v640, 1
        %v845 = vpop.permute.xlu0 %844
        %846 = vrot.lane.b32.xlu0 %v639, 1
        %v847 = vpop.permute.xlu0 %846
        %848 = vrot.lane.b32.xlu0 %v643, 1
        %v849 = vpop.permute.xlu0 %848
        %850 = vrot.lane.b32.xlu0 %v645, 1
        %v851 = vpop.permute.xlu0 %850
        %852 = vrot.lane.b32.xlu0 %v647, 1
        %v853 = vpop.permute.xlu0 %852
        %854 = vrot.lane.b32.xlu0 %v646, 1
        %v855 = vpop.permute.xlu0 %854
        %856 = vrot.lane.b32.xlu0 %v650, 1
        %v857 = vpop.permute.xlu0 %856
        %858 = vrot.lane.b32.xlu0 %v652, 1
        %v859 = vpop.permute.xlu0 %858
        %860 = vrot.lane.b32.xlu0 %v654, 1
        %v861 = vpop.permute.xlu0 %860
        %862 = vrot.lane.b32.xlu0 %v653, 1
        %v863 = vpop.permute.xlu0 %862
        %864 = vrot.lane.b32.xlu0 %v657, 1
        %v865 = vpop.permute.xlu0 %864
        %866 = vrot.lane.b32.xlu0 %v659, 1
        %v867 = vpop.permute.xlu0 %866
        %868 = vrot.lane.b32.xlu0 %v661, 1
        %v869 = vpop.permute.xlu0 %868
        %870 = vrot.lane.b32.xlu0 %v660, 1
        %v871 = vpop.permute.xlu0 %870
        %872 = vrot.lane.b32.xlu0 %v664, 1
        %v873 = vpop.permute.xlu0 %872
        %874 = vrot.lane.b32.xlu0 %v666, 1
        %v875 = vpop.permute.xlu0 %874
        %876 = vrot.lane.b32.xlu0 %v668, 1
        %v877 = vpop.permute.xlu0 %876
        %878 = vrot.lane.b32.xlu0 %v667, 1
        %v879 = vpop.permute.xlu0 %878
        %880 = vrot.lane.b32.xlu0 %v671, 1
        %v881 = vpop.permute.xlu0 %880
        %882 = vrot.lane.b32.xlu0 %v673, 1
        %v883 = vpop.permute.xlu0 %882
        %884 = vrot.lane.b32.xlu0 %v675, 1
        %v885 = vpop.permute.xlu0 %884
        %886 = vrot.lane.b32.xlu0 %v674, 1
        %v887 = vpop.permute.xlu0 %886
        %888 = vrot.lane.b32.xlu0 %v678, 1
        %v889 = vpop.permute.xlu0 %888
        %890 = vrot.lane.b32.xlu0 %v680, 1
        %v891 = vpop.permute.xlu0 %890
        %892 = vrot.lane.b32.xlu0 %v682, 1
        %v893 = vpop.permute.xlu0 %892
        %894 = vrot.lane.b32.xlu0 %v681, 1
        %v895 = vpop.permute.xlu0 %894
        %896 = vrot.lane.b32.xlu0 %v685, 1
        %v897 = vpop.permute.xlu0 %896
        %898 = vrot.lane.b32.xlu0 %v687, 1
        %v899 = vpop.permute.xlu0 %898
        %900 = vrot.lane.b32.xlu0 %v689, 1
        %v901 = vpop.permute.xlu0 %900
        %902 = vrot.lane.b32.xlu0 %v688, 1
        %v903 = vpop.permute.xlu0 %902
        %904 = vrot.lane.b32.xlu0 %v692, 1
        %v905 = vpop.permute.xlu0 %904
        %906 = vrot.lane.b32.xlu0 %v694, 1
        %v907 = vpop.permute.xlu0 %906
        %908 = vrot.lane.b32.xlu0 %v696, 1
        %v909 = vpop.permute.xlu0 %908
        %910 = vrot.lane.b32.xlu0 %v695, 1
        %v911 = vpop.permute.xlu0 %910
        %912 = vrot.lane.b32.xlu0 %v699, 1
        %v913 = vpop.permute.xlu0 %912
        %914 = vrot.lane.b32.xlu0 %v701, 1
        %v915 = vpop.permute.xlu0 %914
        %916 = vrot.lane.b32.xlu0 %v703, 1
        %v917 = vpop.permute.xlu0 %916
        %918 = vrot.lane.b32.xlu0 %v702, 1
        %v919 = vpop.permute.xlu0 %918
        %920 = vrot.lane.b32.xlu0 %v706, 1
        %v921 = vpop.permute.xlu0 %920
        %922 = vrot.lane.b32.xlu0 %v708, 1
        %v923 = vpop.permute.xlu0 %922
        %924 = vrot.lane.b32.xlu0 %v710, 1
        %v925 = vpop.permute.xlu0 %924
        %926 = vrot.lane.b32.xlu0 %v709, 1
        %v927 = vpop.permute.xlu0 %926
        %928 = vrot.lane.b32.xlu0 %v713, 1
        %v929 = vpop.permute.xlu0 %928
        %930 = vrot.lane.b32.xlu0 %v715, 1
        %v931 = vpop.permute.xlu0 %930
        %932 = vrot.lane.b32.xlu0 %v717, 1
        %v933 = vpop.permute.xlu0 %932
        %934 = vrot.lane.b32.xlu0 %v716, 1
        %v935 = vpop.permute.xlu0 %934
        %936 = vrot.lane.b32.xlu0 %v720, 1
        %v937 = vpop.permute.xlu0 %936
        %938 = vrot.lane.b32.xlu0 %v722, 1
        %v939 = vpop.permute.xlu0 %938
        %940 = vrot.lane.b32.xlu0 %v724, 1
        %v941 = vpop.permute.xlu0 %940
        %942 = vrot.lane.b32.xlu0 %v723, 1
        %v943 = vpop.permute.xlu0 %942
        %944 = vrot.lane.b32.xlu0 %v727, 1
        %v945 = vpop.permute.xlu0 %944
        %946 = vrot.lane.b32.xlu0 %v729, 1
        %v947 = vpop.permute.xlu0 %946
        %948 = vrot.lane.b32.xlu0 %v731, 1
        %v949 = vpop.permute.xlu0 %948
        %950 = vrot.lane.b32.xlu0 %v730, 1
        %v951 = vpop.permute.xlu0 %950
        %952 = vrot.lane.b32.xlu0 %v734, 1
        %v953 = vpop.permute.xlu0 %952
        %954 = vrot.lane.b32.xlu0 %v736, 1
        %v955 = vpop.permute.xlu0 %954
        %956 = vrot.lane.b32.xlu0 %v738, 1
        %v957 = vpop.permute.xlu0 %956
        %958 = vrot.lane.b32.xlu0 %v737, 1
        %v959 = vpop.permute.xlu0 %958
        %960 = vrot.lane.b32.xlu0 %v741, 1
        %v961 = vpop.permute.xlu0 %960
        %962 = vrot.lane.b32.xlu0 %v743, 1
        %v963 = vpop.permute.xlu0 %962
        %964 = vrot.lane.b32.xlu0 %v745, 1
        %v965 = vpop.permute.xlu0 %964
        %966 = vrot.lane.b32.xlu0 %v744, 1
        %v967 = vpop.permute.xlu0 %966
        %968 = vrot.lane.b32.xlu0 %v748, 1
        %v969 = vpop.permute.xlu0 %968
        %970 = vrot.lane.b32.xlu0 %v750, 1
        %v971 = vpop.permute.xlu0 %970
        %972 = vrot.lane.b32.xlu0 %v752, 1
        %v973 = vpop.permute.xlu0 %972
        %974 = vrot.lane.b32.xlu0 %v751, 1
        %v975 = vpop.permute.xlu0 %974
        %976 = vrot.lane.b32.xlu0 %v755, 1
        %v977 = vpop.permute.xlu0 %976
        %978 = vrot.lane.b32.xlu0 %v757, 1
        %v979 = vpop.permute.xlu0 %978
        %980 = vrot.lane.b32.xlu0 %v759, 1
        %v981 = vpop.permute.xlu0 %980
        %982 = vrot.lane.b32.xlu0 %v758, 1
        %v983 = vpop.permute.xlu0 %982
        %vm1096 = vcmask 1045504
        %v1097 = vrot.slane %v331, 2
        %v1098 = vrot.slane %v332, 2
        %v1099 = vsel %vm1096, %v1097, %v1098
        %v1100 = vrot.slane %v333, 2
        %v1101 = vsel %vm1096, %v1098, %v1100
        %v1102 = vrot.slane %v334, 2
        %v1103 = vsel %vm1096, %v1100, %v1102
        %v1104 = vrot.slane %v335, 2
        %v1105 = vrot.slane %v336, 2
        %v1106 = vsel %vm1096, %v1104, %v1105
        %v1107 = vrot.slane %v337, 2
        %v1108 = vsel %vm1096, %v1105, %v1107
        %v1109 = vrot.slane %v338, 2
        %v1110 = vsel %vm1096, %v1107, %v1109
        %v1111 = vrot.slane %v339, 2
        %v1112 = vrot.slane %v340, 2
        %v1113 = vsel %vm1096, %v1111, %v1112
        %v1114 = vrot.slane %v341, 2
        %v1115 = vsel %vm1096, %v1112, %v1114
        %v1116 = vrot.slane %v342, 2
        %v1117 = vsel %vm1096, %v1114, %v1116
        %v1118 = vrot.slane %v343, 2
        %v1119 = vrot.slane %v344, 2
        %v1120 = vsel %vm1096, %v1118, %v1119
        %v1121 = vrot.slane %v345, 2
        %v1122 = vsel %vm1096, %v1119, %v1121
        %v1123 = vrot.slane %v346, 2
        %v1124 = vsel %vm1096, %v1121, %v1123
        %v1125 = vrot.slane %v347, 2
        %v1126 = vrot.slane %v348, 2
        %v1127 = vsel %vm1096, %v1125, %v1126
        %v1128 = vrot.slane %v349, 2
        %v1129 = vsel %vm1096, %v1126, %v1128
        %v1130 = vrot.slane %v350, 2
        %v1131 = vsel %vm1096, %v1128, %v1130
        %v1132 = vrot.slane %v351, 2
        %v1133 = vrot.slane %v352, 2
        %v1134 = vsel %vm1096, %v1132, %v1133
        %v1135 = vrot.slane %v353, 2
        %v1136 = vsel %vm1096, %v1133, %v1135
        %v1137 = vrot.slane %v354, 2
        %v1138 = vsel %vm1096, %v1135, %v1137
        %v1139 = vrot.slane %v355, 2
        %v1140 = vrot.slane %v356, 2
        %v1141 = vsel %vm1096, %v1139, %v1140
        %v1142 = vrot.slane %v357, 2
        %v1143 = vsel %vm1096, %v1140, %v1142
        %v1144 = vrot.slane %v358, 2
        %v1145 = vsel %vm1096, %v1142, %v1144
        %v1146 = vrot.slane %v359, 2
        %v1147 = vrot.slane %v360, 2
        %v1148 = vsel %vm1096, %v1146, %v1147
        %v1149 = vrot.slane %v361, 2
        %v1150 = vsel %vm1096, %v1147, %v1149
        %v1151 = vrot.slane %v362, 2
        %v1152 = vsel %vm1096, %v1149, %v1151
        %v1153 = vrot.slane %v363, 2
        %v1154 = vrot.slane %v364, 2
        %v1155 = vsel %vm1096, %v1153, %v1154
        %v1156 = vrot.slane %v365, 2
        %v1157 = vsel %vm1096, %v1154, %v1156
        %v1158 = vrot.slane %v366, 2
        %v1159 = vsel %vm1096, %v1156, %v1158
        %v1160 = vrot.slane %v367, 2
        %v1161 = vrot.slane %v368, 2
        %v1162 = vsel %vm1096, %v1160, %v1161
        %v1163 = vrot.slane %v369, 2
        %v1164 = vsel %vm1096, %v1161, %v1163
        %v1165 = vrot.slane %v370, 2
        %v1166 = vsel %vm1096, %v1163, %v1165
        %v1167 = vrot.slane %v371, 2
        %v1168 = vrot.slane %v372, 2
        %v1169 = vsel %vm1096, %v1167, %v1168
        %v1170 = vrot.slane %v373, 2
        %v1171 = vsel %vm1096, %v1168, %v1170
        %v1172 = vrot.slane %v374, 2
        %v1173 = vsel %vm1096, %v1170, %v1172
        %v1174 = vrot.slane %v375, 2
        %v1175 = vrot.slane %v376, 2
        %v1176 = vsel %vm1096, %v1174, %v1175
        %v1177 = vrot.slane %v377, 2
        %v1178 = vsel %vm1096, %v1175, %v1177
        %v1179 = vrot.slane %v378, 2
        %v1180 = vsel %vm1096, %v1177, %v1179
        %v1181 = vrot.slane %v379, 2
        %v1182 = vrot.slane %v380, 2
        %v1183 = vsel %vm1096, %v1181, %v1182
        %v1184 = vrot.slane %v381, 2
        %v1185 = vsel %vm1096, %v1182, %v1184
        %v1186 = vrot.slane %v382, 2
        %v1187 = vsel %vm1096, %v1184, %v1186
        %v1188 = vrot.slane %v383, 2
        %v1189 = vrot.slane %v384, 2
        %v1190 = vsel %vm1096, %v1188, %v1189
        %v1191 = vrot.slane %v385, 2
        %v1192 = vsel %vm1096, %v1189, %v1191
        %v1193 = vrot.slane %v386, 2
        %v1194 = vsel %vm1096, %v1191, %v1193
        %v1195 = vrot.slane %v387, 2
        %v1196 = vrot.slane %v388, 2
        %v1197 = vsel %vm1096, %v1195, %v1196
        %v1198 = vrot.slane %v389, 2
        %v1199 = vsel %vm1096, %v1196, %v1198
        %v1200 = vrot.slane %v390, 2
        %v1201 = vsel %vm1096, %v1198, %v1200
        %v1202 = vrot.slane %v391, 2
        %v1203 = vrot.slane %v392, 2
        %v1204 = vsel %vm1096, %v1202, %v1203
        %v1205 = vrot.slane %v393, 2
        %v1206 = vsel %vm1096, %v1203, %v1205
        %v1207 = vrot.slane %v394, 2
        %v1208 = vsel %vm1096, %v1205, %v1207
        %v1209 = vrot.slane %v395, 2
        %v1210 = vrot.slane %v396, 2
        %v1211 = vsel %vm1096, %v1209, %v1210
        %v1212 = vrot.slane %v397, 2
        %v1213 = vsel %vm1096, %v1210, %v1212
        %v1214 = vrot.slane %v398, 2
        %v1215 = vsel %vm1096, %v1212, %v1214
        %v1216 = vrot.slane %v399, 2
        %v1217 = vrot.slane %v400, 2
        %v1218 = vsel %vm1096, %v1216, %v1217
        %v1219 = vrot.slane %v401, 2
        %v1220 = vsel %vm1096, %v1217, %v1219
        %v1221 = vrot.slane %v402, 2
        %v1222 = vsel %vm1096, %v1219, %v1221
        %v1223 = vrot.slane %v403, 2
        %v1224 = vrot.slane %v404, 2
        %v1225 = vsel %vm1096, %v1223, %v1224
        %v1226 = vrot.slane %v405, 2
        %v1227 = vsel %vm1096, %v1224, %v1226
        %v1228 = vrot.slane %v406, 2
        %v1229 = vsel %vm1096, %v1226, %v1228
        %v1230 = vrot.slane %v407, 2
        %v1231 = vrot.slane %v408, 2
        %v1232 = vsel %vm1096, %v1230, %v1231
        %v1233 = vrot.slane %v409, 2
        %v1234 = vsel %vm1096, %v1231, %v1233
        %v1235 = vrot.slane %v410, 2
        %v1236 = vsel %vm1096, %v1233, %v1235
        %v1237 = vrot.slane %v411, 2
        %v1238 = vrot.slane %v412, 2
        %v1239 = vsel %vm1096, %v1237, %v1238
        %v1240 = vrot.slane %v413, 2
        %v1241 = vsel %vm1096, %v1238, %v1240
        %v1242 = vrot.slane %v414, 2
        %v1243 = vsel %vm1096, %v1240, %v1242
        %v1244 = vrot.slane %v415, 2
        %v1245 = vrot.slane %v416, 2
        %v1246 = vsel %vm1096, %v1244, %v1245
        %v1247 = vrot.slane %v417, 2
        %v1248 = vsel %vm1096, %v1245, %v1247
        %v1249 = vrot.slane %v418, 2
        %v1250 = vsel %vm1096, %v1247, %v1249
        %v1251 = vrot.slane %v419, 2
        %v1252 = vrot.slane %v420, 2
        %v1253 = vsel %vm1096, %v1251, %v1252
        %v1254 = vrot.slane %v421, 2
        %v1255 = vsel %vm1096, %v1252, %v1254
        %v1256 = vrot.slane %v422, 2
        %v1257 = vsel %vm1096, %v1254, %v1256
        %v1258 = vrot.slane %v423, 2
        %v1259 = vrot.slane %v424, 2
        %v1260 = vsel %vm1096, %v1258, %v1259
        %v1261 = vrot.slane %v425, 2
        %v1262 = vsel %vm1096, %v1259, %v1261
        %v1263 = vrot.slane %v426, 2
        %v1264 = vsel %vm1096, %v1261, %v1263
        %v1265 = vrot.slane %v427, 2
        %v1266 = vrot.slane %v428, 2
        %v1267 = vsel %vm1096, %v1265, %v1266
        %v1268 = vrot.slane %v429, 2
        %v1269 = vsel %vm1096, %v1266, %v1268
        %v1270 = vrot.slane %v430, 2
        %v1271 = vsel %vm1096, %v1268, %v1270
        %v1272 = vrot.slane %v431, 2
        %v1273 = vrot.slane %v432, 2
        %v1274 = vsel %vm1096, %v1272, %v1273
        %v1275 = vrot.slane %v433, 2
        %v1276 = vsel %vm1096, %v1273, %v1275
        %v1277 = vrot.slane %v434, 2
        %v1278 = vsel %vm1096, %v1275, %v1277
        %v1279 = vrot.slane %v435, 2
        %v1280 = vrot.slane %v436, 2
        %v1281 = vsel %vm1096, %v1279, %v1280
        %v1282 = vrot.slane %v437, 2
        %v1283 = vsel %vm1096, %v1280, %v1282
        %v1284 = vrot.slane %v438, 2
        %v1285 = vsel %vm1096, %v1282, %v1284
        %v1286 = vrot.slane %v439, 2
        %v1287 = vrot.slane %v440, 2
        %v1288 = vsel %vm1096, %v1286, %v1287
        %v1289 = vrot.slane %v441, 2
        %v1290 = vsel %vm1096, %v1287, %v1289
        %v1291 = vrot.slane %v442, 2
        %v1292 = vsel %vm1096, %v1289, %v1291
        %1293 = vrot.lane.b32.xlu0 %v1099, 2
        %v1294 = vpop.permute.xlu0 %1293
        %1295 = vrot.lane.b32.xlu0 %v1101, 2
        %v1296 = vpop.permute.xlu0 %1295
        %1297 = vrot.lane.b32.xlu0 %v1103, 2
        %v1298 = vpop.permute.xlu0 %1297
        %1299 = vrot.lane.b32.xlu0 %v1102, 2
        %v1300 = vpop.permute.xlu0 %1299
        %1301 = vrot.lane.b32.xlu0 %v1106, 2
        %v1302 = vpop.permute.xlu0 %1301
        %1303 = vrot.lane.b32.xlu0 %v1108, 2
        %v1304 = vpop.permute.xlu0 %1303
        %1305 = vrot.lane.b32.xlu0 %v1110, 2
        %v1306 = vpop.permute.xlu0 %1305
        %1307 = vrot.lane.b32.xlu0 %v1109, 2
        %v1308 = vpop.permute.xlu0 %1307
        %1309 = vrot.lane.b32.xlu0 %v1113, 2
        %v1310 = vpop.permute.xlu0 %1309
        %1311 = vrot.lane.b32.xlu0 %v1115, 2
        %v1312 = vpop.permute.xlu0 %1311
        %1313 = vrot.lane.b32.xlu0 %v1117, 2
        %v1314 = vpop.permute.xlu0 %1313
        %1315 = vrot.lane.b32.xlu0 %v1116, 2
        %v1316 = vpop.permute.xlu0 %1315
        %1317 = vrot.lane.b32.xlu0 %v1120, 2
        %v1318 = vpop.permute.xlu0 %1317
        %1319 = vrot.lane.b32.xlu0 %v1122, 2
        %v1320 = vpop.permute.xlu0 %1319
        %1321 = vrot.lane.b32.xlu0 %v1124, 2
        %v1322 = vpop.permute.xlu0 %1321
        %1323 = vrot.lane.b32.xlu0 %v1123, 2
        %v1324 = vpop.permute.xlu0 %1323
        %1325 = vrot.lane.b32.xlu0 %v1127, 2
        %v1326 = vpop.permute.xlu0 %1325
        %1327 = vrot.lane.b32.xlu0 %v1129, 2
        %v1328 = vpop.permute.xlu0 %1327
        %1329 = vrot.lane.b32.xlu0 %v1131, 2
        %v1330 = vpop.permute.xlu0 %1329
        %1331 = vrot.lane.b32.xlu0 %v1130, 2
        %v1332 = vpop.permute.xlu0 %1331
        %1333 = vrot.lane.b32.xlu0 %v1134, 2
        %v1334 = vpop.permute.xlu0 %1333
        %1335 = vrot.lane.b32.xlu0 %v1136, 2
        %v1336 = vpop.permute.xlu0 %1335
        %1337 = vrot.lane.b32.xlu0 %v1138, 2
        %v1338 = vpop.permute.xlu0 %1337
        %1339 = vrot.lane.b32.xlu0 %v1137, 2
        %v1340 = vpop.permute.xlu0 %1339
        %1341 = vrot.lane.b32.xlu0 %v1141, 2
        %v1342 = vpop.permute.xlu0 %1341
        %1343 = vrot.lane.b32.xlu0 %v1143, 2
        %v1344 = vpop.permute.xlu0 %1343
        %1345 = vrot.lane.b32.xlu0 %v1145, 2
        %v1346 = vpop.permute.xlu0 %1345
        %1347 = vrot.lane.b32.xlu0 %v1144, 2
        %v1348 = vpop.permute.xlu0 %1347
        %1349 = vrot.lane.b32.xlu0 %v1148, 2
        %v1350 = vpop.permute.xlu0 %1349
        %1351 = vrot.lane.b32.xlu0 %v1150, 2
        %v1352 = vpop.permute.xlu0 %1351
        %1353 = vrot.lane.b32.xlu0 %v1152, 2
        %v1354 = vpop.permute.xlu0 %1353
        %1355 = vrot.lane.b32.xlu0 %v1151, 2
        %v1356 = vpop.permute.xlu0 %1355
        %1357 = vrot.lane.b32.xlu0 %v1155, 2
        %v1358 = vpop.permute.xlu0 %1357
        %1359 = vrot.lane.b32.xlu0 %v1157, 2
        %v1360 = vpop.permute.xlu0 %1359
        %1361 = vrot.lane.b32.xlu0 %v1159, 2
        %v1362 = vpop.permute.xlu0 %1361
        %1363 = vrot.lane.b32.xlu0 %v1158, 2
        %v1364 = vpop.permute.xlu0 %1363
        %1365 = vrot.lane.b32.xlu0 %v1162, 2
        %v1366 = vpop.permute.xlu0 %1365
        %1367 = vrot.lane.b32.xlu0 %v1164, 2
        %v1368 = vpop.permute.xlu0 %1367
        %1369 = vrot.lane.b32.xlu0 %v1166, 2
        %v1370 = vpop.permute.xlu0 %1369
        %1371 = vrot.lane.b32.xlu0 %v1165, 2
        %v1372 = vpop.permute.xlu0 %1371
        %1373 = vrot.lane.b32.xlu0 %v1169, 2
        %v1374 = vpop.permute.xlu0 %1373
        %1375 = vrot.lane.b32.xlu0 %v1171, 2
        %v1376 = vpop.permute.xlu0 %1375
        %1377 = vrot.lane.b32.xlu0 %v1173, 2
        %v1378 = vpop.permute.xlu0 %1377
        %1379 = vrot.lane.b32.xlu0 %v1172, 2
        %v1380 = vpop.permute.xlu0 %1379
        %1381 = vrot.lane.b32.xlu0 %v1176, 2
        %v1382 = vpop.permute.xlu0 %1381
        %1383 = vrot.lane.b32.xlu0 %v1178, 2
        %v1384 = vpop.permute.xlu0 %1383
        %1385 = vrot.lane.b32.xlu0 %v1180, 2
        %v1386 = vpop.permute.xlu0 %1385
        %1387 = vrot.lane.b32.xlu0 %v1179, 2
        %v1388 = vpop.permute.xlu0 %1387
        %1389 = vrot.lane.b32.xlu0 %v1183, 2
        %v1390 = vpop.permute.xlu0 %1389
        %1391 = vrot.lane.b32.xlu0 %v1185, 2
        %v1392 = vpop.permute.xlu0 %1391
        %1393 = vrot.lane.b32.xlu0 %v1187, 2
        %v1394 = vpop.permute.xlu0 %1393
        %1395 = vrot.lane.b32.xlu0 %v1186, 2
        %v1396 = vpop.permute.xlu0 %1395
        %1397 = vrot.lane.b32.xlu0 %v1190, 2
        %v1398 = vpop.permute.xlu0 %1397
        %1399 = vrot.lane.b32.xlu0 %v1192, 2
        %v1400 = vpop.permute.xlu0 %1399
        %1401 = vrot.lane.b32.xlu0 %v1194, 2
        %v1402 = vpop.permute.xlu0 %1401
        %1403 = vrot.lane.b32.xlu0 %v1193, 2
        %v1404 = vpop.permute.xlu0 %1403
        %1405 = vrot.lane.b32.xlu0 %v1197, 2
        %v1406 = vpop.permute.xlu0 %1405
        %1407 = vrot.lane.b32.xlu0 %v1199, 2
        %v1408 = vpop.permute.xlu0 %1407
        %1409 = vrot.lane.b32.xlu0 %v1201, 2
        %v1410 = vpop.permute.xlu0 %1409
        %1411 = vrot.lane.b32.xlu0 %v1200, 2
        %v1412 = vpop.permute.xlu0 %1411
        %1413 = vrot.lane.b32.xlu0 %v1204, 2
        %v1414 = vpop.permute.xlu0 %1413
        %1415 = vrot.lane.b32.xlu0 %v1206, 2
        %v1416 = vpop.permute.xlu0 %1415
        %1417 = vrot.lane.b32.xlu0 %v1208, 2
        %v1418 = vpop.permute.xlu0 %1417
        %1419 = vrot.lane.b32.xlu0 %v1207, 2
        %v1420 = vpop.permute.xlu0 %1419
        %1421 = vrot.lane.b32.xlu0 %v1211, 2
        %v1422 = vpop.permute.xlu0 %1421
        %1423 = vrot.lane.b32.xlu0 %v1213, 2
        %v1424 = vpop.permute.xlu0 %1423
        %1425 = vrot.lane.b32.xlu0 %v1215, 2
        %v1426 = vpop.permute.xlu0 %1425
        %1427 = vrot.lane.b32.xlu0 %v1214, 2
        %v1428 = vpop.permute.xlu0 %1427
        %1429 = vrot.lane.b32.xlu0 %v1218, 2
        %v1430 = vpop.permute.xlu0 %1429
        %1431 = vrot.lane.b32.xlu0 %v1220, 2
        %v1432 = vpop.permute.xlu0 %1431
        %1433 = vrot.lane.b32.xlu0 %v1222, 2
        %v1434 = vpop.permute.xlu0 %1433
        %1435 = vrot.lane.b32.xlu0 %v1221, 2
        %v1436 = vpop.permute.xlu0 %1435
        %1437 = vrot.lane.b32.xlu0 %v1225, 2
        %v1438 = vpop.permute.xlu0 %1437
        %1439 = vrot.lane.b32.xlu0 %v1227, 2
        %v1440 = vpop.permute.xlu0 %1439
        %1441 = vrot.lane.b32.xlu0 %v1229, 2
        %v1442 = vpop.permute.xlu0 %1441
        %1443 = vrot.lane.b32.xlu0 %v1228, 2
        %v1444 = vpop.permute.xlu0 %1443
        %1445 = vrot.lane.b32.xlu0 %v1232, 2
        %v1446 = vpop.permute.xlu0 %1445
        %1447 = vrot.lane.b32.xlu0 %v1234, 2
        %v1448 = vpop.permute.xlu0 %1447
        %1449 = vrot.lane.b32.xlu0 %v1236, 2
        %v1450 = vpop.permute.xlu0 %1449
        %1451 = vrot.lane.b32.xlu0 %v1235, 2
        %v1452 = vpop.permute.xlu0 %1451
        %1453 = vrot.lane.b32.xlu0 %v1239, 2
        %v1454 = vpop.permute.xlu0 %1453
        %1455 = vrot.lane.b32.xlu0 %v1241, 2
        %v1456 = vpop.permute.xlu0 %1455
        %1457 = vrot.lane.b32.xlu0 %v1243, 2
        %v1458 = vpop.permute.xlu0 %1457
        %1459 = vrot.lane.b32.xlu0 %v1242, 2
        %v1460 = vpop.permute.xlu0 %1459
        %1461 = vrot.lane.b32.xlu0 %v1246, 2
        %v1462 = vpop.permute.xlu0 %1461
        %1463 = vrot.lane.b32.xlu0 %v1248, 2
        %v1464 = vpop.permute.xlu0 %1463
        %1465 = vrot.lane.b32.xlu0 %v1250, 2
        %v1466 = vpop.permute.xlu0 %1465
        %1467 = vrot.lane.b32.xlu0 %v1249, 2
        %v1468 = vpop.permute.xlu0 %1467
        %1469 = vrot.lane.b32.xlu0 %v1253, 2
        %v1470 = vpop.permute.xlu0 %1469
        %1471 = vrot.lane.b32.xlu0 %v1255, 2
        %v1472 = vpop.permute.xlu0 %1471
        %1473 = vrot.lane.b32.xlu0 %v1257, 2
        %v1474 = vpop.permute.xlu0 %1473
        %1475 = vrot.lane.b32.xlu0 %v1256, 2
        %v1476 = vpop.permute.xlu0 %1475
        %1477 = vrot.lane.b32.xlu0 %v1260, 2
        %v1478 = vpop.permute.xlu0 %1477
        %1479 = vrot.lane.b32.xlu0 %v1262, 2
        %v1480 = vpop.permute.xlu0 %1479
        %1481 = vrot.lane.b32.xlu0 %v1264, 2
        %v1482 = vpop.permute.xlu0 %1481
        %1483 = vrot.lane.b32.xlu0 %v1263, 2
        %v1484 = vpop.permute.xlu0 %1483
        %1485 = vrot.lane.b32.xlu0 %v1267, 2
        %v1486 = vpop.permute.xlu0 %1485
        %1487 = vrot.lane.b32.xlu0 %v1269, 2
        %v1488 = vpop.permute.xlu0 %1487
        %1489 = vrot.lane.b32.xlu0 %v1271, 2
        %v1490 = vpop.permute.xlu0 %1489
        %1491 = vrot.lane.b32.xlu0 %v1270, 2
        %v1492 = vpop.permute.xlu0 %1491
        %1493 = vrot.lane.b32.xlu0 %v1274, 2
        %v1494 = vpop.permute.xlu0 %1493
        %1495 = vrot.lane.b32.xlu0 %v1276, 2
        %v1496 = vpop.permute.xlu0 %1495
        %1497 = vrot.lane.b32.xlu0 %v1278, 2
        %v1498 = vpop.permute.xlu0 %1497
        %1499 = vrot.lane.b32.xlu0 %v1277, 2
        %v1500 = vpop.permute.xlu0 %1499
        %1501 = vrot.lane.b32.xlu0 %v1281, 2
        %v1502 = vpop.permute.xlu0 %1501
        %1503 = vrot.lane.b32.xlu0 %v1283, 2
        %v1504 = vpop.permute.xlu0 %1503
        %1505 = vrot.lane.b32.xlu0 %v1285, 2
        %v1506 = vpop.permute.xlu0 %1505
        %1507 = vrot.lane.b32.xlu0 %v1284, 2
        %v1508 = vpop.permute.xlu0 %1507
        %1509 = vrot.lane.b32.xlu0 %v1288, 2
        %v1510 = vpop.permute.xlu0 %1509
        %1511 = vrot.lane.b32.xlu0 %v1290, 2
        %v1512 = vpop.permute.xlu0 %1511
        %1513 = vrot.lane.b32.xlu0 %v1292, 2
        %v1514 = vpop.permute.xlu0 %1513
        %1515 = vrot.lane.b32.xlu0 %v1291, 2
        %v1516 = vpop.permute.xlu0 %1515
        %1633 = vrot.lane.b32.xlu0 %v335, 3
        %v1634 = vpop.permute.xlu0 %1633
        %1635 = vrot.lane.b32.xlu0 %v336, 3
        %v1636 = vpop.permute.xlu0 %1635
        %1637 = vrot.lane.b32.xlu0 %v337, 3
        %v1638 = vpop.permute.xlu0 %1637
        %1639 = vrot.lane.b32.xlu0 %v338, 3
        %v1640 = vpop.permute.xlu0 %1639
        %1641 = vrot.lane.b32.xlu0 %v339, 3
        %v1642 = vpop.permute.xlu0 %1641
        %1643 = vrot.lane.b32.xlu0 %v340, 3
        %v1644 = vpop.permute.xlu0 %1643
        %1645 = vrot.lane.b32.xlu0 %v341, 3
        %v1646 = vpop.permute.xlu0 %1645
        %1647 = vrot.lane.b32.xlu0 %v342, 3
        %v1648 = vpop.permute.xlu0 %1647
        %1649 = vrot.lane.b32.xlu0 %v343, 3
        %v1650 = vpop.permute.xlu0 %1649
        %1651 = vrot.lane.b32.xlu0 %v344, 3
        %v1652 = vpop.permute.xlu0 %1651
        %1653 = vrot.lane.b32.xlu0 %v345, 3
        %v1654 = vpop.permute.xlu0 %1653
        %1655 = vrot.lane.b32.xlu0 %v346, 3
        %v1656 = vpop.permute.xlu0 %1655
        %1657 = vrot.lane.b32.xlu0 %v347, 3
        %v1658 = vpop.permute.xlu0 %1657
        %1659 = vrot.lane.b32.xlu0 %v348, 3
        %v1660 = vpop.permute.xlu0 %1659
        %1661 = vrot.lane.b32.xlu0 %v349, 3
        %v1662 = vpop.permute.xlu0 %1661
        %1663 = vrot.lane.b32.xlu0 %v350, 3
        %v1664 = vpop.permute.xlu0 %1663
        %1665 = vrot.lane.b32.xlu0 %v351, 3
        %v1666 = vpop.permute.xlu0 %1665
        %1667 = vrot.lane.b32.xlu0 %v352, 3
        %v1668 = vpop.permute.xlu0 %1667
        %1669 = vrot.lane.b32.xlu0 %v353, 3
        %v1670 = vpop.permute.xlu0 %1669
        %1671 = vrot.lane.b32.xlu0 %v354, 3
        %v1672 = vpop.permute.xlu0 %1671
        %1673 = vrot.lane.b32.xlu0 %v355, 3
        %v1674 = vpop.permute.xlu0 %1673
        %1675 = vrot.lane.b32.xlu0 %v356, 3
        %v1676 = vpop.permute.xlu0 %1675
        %1677 = vrot.lane.b32.xlu0 %v357, 3
        %v1678 = vpop.permute.xlu0 %1677
        %1679 = vrot.lane.b32.xlu0 %v358, 3
        %v1680 = vpop.permute.xlu0 %1679
        %1681 = vrot.lane.b32.xlu0 %v359, 3
        %v1682 = vpop.permute.xlu0 %1681
        %1683 = vrot.lane.b32.xlu0 %v360, 3
        %v1684 = vpop.permute.xlu0 %1683
        %1685 = vrot.lane.b32.xlu0 %v361, 3
        %v1686 = vpop.permute.xlu0 %1685
        %1687 = vrot.lane.b32.xlu0 %v362, 3
        %v1688 = vpop.permute.xlu0 %1687
        %1689 = vrot.lane.b32.xlu0 %v363, 3
        %v1690 = vpop.permute.xlu0 %1689
        %1691 = vrot.lane.b32.xlu0 %v364, 3
        %v1692 = vpop.permute.xlu0 %1691
        %1693 = vrot.lane.b32.xlu0 %v365, 3
        %v1694 = vpop.permute.xlu0 %1693
        %1695 = vrot.lane.b32.xlu0 %v366, 3
        %v1696 = vpop.permute.xlu0 %1695
        %1697 = vrot.lane.b32.xlu0 %v367, 3
        %v1698 = vpop.permute.xlu0 %1697
        %1699 = vrot.lane.b32.xlu0 %v368, 3
        %v1700 = vpop.permute.xlu0 %1699
        %1701 = vrot.lane.b32.xlu0 %v369, 3
        %v1702 = vpop.permute.xlu0 %1701
        %1703 = vrot.lane.b32.xlu0 %v370, 3
        %v1704 = vpop.permute.xlu0 %1703
        %1705 = vrot.lane.b32.xlu0 %v371, 3
        %v1706 = vpop.permute.xlu0 %1705
        %1707 = vrot.lane.b32.xlu0 %v372, 3
        %v1708 = vpop.permute.xlu0 %1707
        %1709 = vrot.lane.b32.xlu0 %v373, 3
        %v1710 = vpop.permute.xlu0 %1709
        %1711 = vrot.lane.b32.xlu0 %v374, 3
        %v1712 = vpop.permute.xlu0 %1711
        %1713 = vrot.lane.b32.xlu0 %v375, 3
        %v1714 = vpop.permute.xlu0 %1713
        %1715 = vrot.lane.b32.xlu0 %v376, 3
        %v1716 = vpop.permute.xlu0 %1715
        %1717 = vrot.lane.b32.xlu0 %v377, 3
        %v1718 = vpop.permute.xlu0 %1717
        %1719 = vrot.lane.b32.xlu0 %v378, 3
        %v1720 = vpop.permute.xlu0 %1719
        %1721 = vrot.lane.b32.xlu0 %v379, 3
        %v1722 = vpop.permute.xlu0 %1721
        %1723 = vrot.lane.b32.xlu0 %v380, 3
        %v1724 = vpop.permute.xlu0 %1723
        %1725 = vrot.lane.b32.xlu0 %v381, 3
        %v1726 = vpop.permute.xlu0 %1725
        %1727 = vrot.lane.b32.xlu0 %v382, 3
        %v1728 = vpop.permute.xlu0 %1727
        %1729 = vrot.lane.b32.xlu0 %v383, 3
        %v1730 = vpop.permute.xlu0 %1729
        %1731 = vrot.lane.b32.xlu0 %v384, 3
        %v1732 = vpop.permute.xlu0 %1731
        %1733 = vrot.lane.b32.xlu0 %v385, 3
        %v1734 = vpop.permute.xlu0 %1733
        %1735 = vrot.lane.b32.xlu0 %v386, 3
        %v1736 = vpop.permute.xlu0 %1735
        %1737 = vrot.lane.b32.xlu0 %v387, 3
        %v1738 = vpop.permute.xlu0 %1737
        %1739 = vrot.lane.b32.xlu0 %v388, 3
        %v1740 = vpop.permute.xlu0 %1739
        %1741 = vrot.lane.b32.xlu0 %v389, 3
        %v1742 = vpop.permute.xlu0 %1741
        %1743 = vrot.lane.b32.xlu0 %v390, 3
        %v1744 = vpop.permute.xlu0 %1743
        %1745 = vrot.lane.b32.xlu0 %v391, 3
        %v1746 = vpop.permute.xlu0 %1745
        %1747 = vrot.lane.b32.xlu0 %v392, 3
        %v1748 = vpop.permute.xlu0 %1747
        %1749 = vrot.lane.b32.xlu0 %v393, 3
        %v1750 = vpop.permute.xlu0 %1749
        %1751 = vrot.lane.b32.xlu0 %v394, 3
        %v1752 = vpop.permute.xlu0 %1751
        %1753 = vrot.lane.b32.xlu0 %v395, 3
        %v1754 = vpop.permute.xlu0 %1753
        %1755 = vrot.lane.b32.xlu0 %v396, 3
        %v1756 = vpop.permute.xlu0 %1755
        %1757 = vrot.lane.b32.xlu0 %v397, 3
        %v1758 = vpop.permute.xlu0 %1757
        %1759 = vrot.lane.b32.xlu0 %v398, 3
        %v1760 = vpop.permute.xlu0 %1759
        %1761 = vrot.lane.b32.xlu0 %v399, 3
        %v1762 = vpop.permute.xlu0 %1761
        %1763 = vrot.lane.b32.xlu0 %v400, 3
        %v1764 = vpop.permute.xlu0 %1763
        %1765 = vrot.lane.b32.xlu0 %v401, 3
        %v1766 = vpop.permute.xlu0 %1765
        %1767 = vrot.lane.b32.xlu0 %v402, 3
        %v1768 = vpop.permute.xlu0 %1767
        %1769 = vrot.lane.b32.xlu0 %v403, 3
        %v1770 = vpop.permute.xlu0 %1769
        %1771 = vrot.lane.b32.xlu0 %v404, 3
        %v1772 = vpop.permute.xlu0 %1771
        %1773 = vrot.lane.b32.xlu0 %v405, 3
        %v1774 = vpop.permute.xlu0 %1773
        %1775 = vrot.lane.b32.xlu0 %v406, 3
        %v1776 = vpop.permute.xlu0 %1775
        %1777 = vrot.lane.b32.xlu0 %v407, 3
        %v1778 = vpop.permute.xlu0 %1777
        %1779 = vrot.lane.b32.xlu0 %v408, 3
        %v1780 = vpop.permute.xlu0 %1779
        %1781 = vrot.lane.b32.xlu0 %v409, 3
        %v1782 = vpop.permute.xlu0 %1781
        %1783 = vrot.lane.b32.xlu0 %v410, 3
        %v1784 = vpop.permute.xlu0 %1783
        %1785 = vrot.lane.b32.xlu0 %v411, 3
        %v1786 = vpop.permute.xlu0 %1785
        %1787 = vrot.lane.b32.xlu0 %v412, 3
        %v1788 = vpop.permute.xlu0 %1787
        %1789 = vrot.lane.b32.xlu0 %v413, 3
        %v1790 = vpop.permute.xlu0 %1789
        %1791 = vrot.lane.b32.xlu0 %v414, 3
        %v1792 = vpop.permute.xlu0 %1791
        %1793 = vrot.lane.b32.xlu0 %v415, 3
        %v1794 = vpop.permute.xlu0 %1793
        %1795 = vrot.lane.b32.xlu0 %v416, 3
        %v1796 = vpop.permute.xlu0 %1795
        %1797 = vrot.lane.b32.xlu0 %v417, 3
        %v1798 = vpop.permute.xlu0 %1797
        %1799 = vrot.lane.b32.xlu0 %v418, 3
        %v1800 = vpop.permute.xlu0 %1799
        %1801 = vrot.lane.b32.xlu0 %v419, 3
        %v1802 = vpop.permute.xlu0 %1801
        %1803 = vrot.lane.b32.xlu0 %v420, 3
        %v1804 = vpop.permute.xlu0 %1803
        %1805 = vrot.lane.b32.xlu0 %v421, 3
        %v1806 = vpop.permute.xlu0 %1805
        %1807 = vrot.lane.b32.xlu0 %v422, 3
        %v1808 = vpop.permute.xlu0 %1807
        %1809 = vrot.lane.b32.xlu0 %v423, 3
        %v1810 = vpop.permute.xlu0 %1809
        %1811 = vrot.lane.b32.xlu0 %v424, 3
        %v1812 = vpop.permute.xlu0 %1811
        %1813 = vrot.lane.b32.xlu0 %v425, 3
        %v1814 = vpop.permute.xlu0 %1813
        %1815 = vrot.lane.b32.xlu0 %v426, 3
        %v1816 = vpop.permute.xlu0 %1815
        %1817 = vrot.lane.b32.xlu0 %v427, 3
        %v1818 = vpop.permute.xlu0 %1817
        %1819 = vrot.lane.b32.xlu0 %v428, 3
        %v1820 = vpop.permute.xlu0 %1819
        %1821 = vrot.lane.b32.xlu0 %v429, 3
        %v1822 = vpop.permute.xlu0 %1821
        %1823 = vrot.lane.b32.xlu0 %v430, 3
        %v1824 = vpop.permute.xlu0 %1823
        %1825 = vrot.lane.b32.xlu0 %v431, 3
        %v1826 = vpop.permute.xlu0 %1825
        %1827 = vrot.lane.b32.xlu0 %v432, 3
        %v1828 = vpop.permute.xlu0 %1827
        %1829 = vrot.lane.b32.xlu0 %v433, 3
        %v1830 = vpop.permute.xlu0 %1829
        %1831 = vrot.lane.b32.xlu0 %v434, 3
        %v1832 = vpop.permute.xlu0 %1831
        %1833 = vrot.lane.b32.xlu0 %v435, 3
        %v1834 = vpop.permute.xlu0 %1833
        %1835 = vrot.lane.b32.xlu0 %v436, 3
        %v1836 = vpop.permute.xlu0 %1835
        %1837 = vrot.lane.b32.xlu0 %v437, 3
        %v1838 = vpop.permute.xlu0 %1837
        %1839 = vrot.lane.b32.xlu0 %v438, 3
        %v1840 = vpop.permute.xlu0 %1839
        %1841 = vrot.lane.b32.xlu0 %v439, 3
        %v1842 = vpop.permute.xlu0 %1841
        %1843 = vrot.lane.b32.xlu0 %v440, 3
        %v1844 = vpop.permute.xlu0 %1843
        %1845 = vrot.lane.b32.xlu0 %v441, 3
        %v1846 = vpop.permute.xlu0 %1845
        %1847 = vrot.lane.b32.xlu0 %v442, 3
        %v1848 = vpop.permute.xlu0 %1847
        %1849 = vrot.lane.b32.xlu0 %v443, 3
        %v1850 = vpop.permute.xlu0 %1849
        %1851 = vrot.lane.b32.xlu0 %v444, 3
        %v1852 = vpop.permute.xlu0 %1851
        %1853 = vrot.lane.b32.xlu0 %v445, 3
        %v1854 = vpop.permute.xlu0 %1853
        %1855 = vrot.lane.b32.xlu0 %v446, 3
        %v1856 = vpop.permute.xlu0 %1855
        %v1969 = vrot.slane %v443, 1
        %v1970 = vrot.slane %v444, 1
        %v1971 = vsel %vm563, %v1969, %v1970
        %v1972 = vrot.slane %v445, 1
        %v1973 = vsel %vm563, %v1970, %v1972
        %v1974 = vrot.slane %v446, 1
        %v1975 = vsel %vm563, %v1972, %v1974
        %1976 = vrot.lane.b32.xlu0 %v573, 4
        %v1977 = vpop.permute.xlu0 %1976
        %1978 = vrot.lane.b32.xlu0 %v575, 4
        %v1979 = vpop.permute.xlu0 %1978
        %1980 = vrot.lane.b32.xlu0 %v577, 4
        %v1981 = vpop.permute.xlu0 %1980
        %1982 = vrot.lane.b32.xlu0 %v576, 4
        %v1983 = vpop.permute.xlu0 %1982
        %1984 = vrot.lane.b32.xlu0 %v580, 4
        %v1985 = vpop.permute.xlu0 %1984
        %1986 = vrot.lane.b32.xlu0 %v582, 4
        %v1987 = vpop.permute.xlu0 %1986
        %1988 = vrot.lane.b32.xlu0 %v584, 4
        %v1989 = vpop.permute.xlu0 %1988
        %1990 = vrot.lane.b32.xlu0 %v583, 4
        %v1991 = vpop.permute.xlu0 %1990
        %1992 = vrot.lane.b32.xlu0 %v587, 4
        %v1993 = vpop.permute.xlu0 %1992
        %1994 = vrot.lane.b32.xlu0 %v589, 4
        %v1995 = vpop.permute.xlu0 %1994
        %1996 = vrot.lane.b32.xlu0 %v591, 4
        %v1997 = vpop.permute.xlu0 %1996
        %1998 = vrot.lane.b32.xlu0 %v590, 4
        %v1999 = vpop.permute.xlu0 %1998
        %2000 = vrot.lane.b32.xlu0 %v594, 4
        %v2001 = vpop.permute.xlu0 %2000
        %2002 = vrot.lane.b32.xlu0 %v596, 4
        %v2003 = vpop.permute.xlu0 %2002
        %2004 = vrot.lane.b32.xlu0 %v598, 4
        %v2005 = vpop.permute.xlu0 %2004
        %2006 = vrot.lane.b32.xlu0 %v597, 4
        %v2007 = vpop.permute.xlu0 %2006
        %2008 = vrot.lane.b32.xlu0 %v601, 4
        %v2009 = vpop.permute.xlu0 %2008
        %2010 = vrot.lane.b32.xlu0 %v603, 4
        %v2011 = vpop.permute.xlu0 %2010
        %2012 = vrot.lane.b32.xlu0 %v605, 4
        %v2013 = vpop.permute.xlu0 %2012
        %2014 = vrot.lane.b32.xlu0 %v604, 4
        %v2015 = vpop.permute.xlu0 %2014
        %2016 = vrot.lane.b32.xlu0 %v608, 4
        %v2017 = vpop.permute.xlu0 %2016
        %2018 = vrot.lane.b32.xlu0 %v610, 4
        %v2019 = vpop.permute.xlu0 %2018
        %2020 = vrot.lane.b32.xlu0 %v612, 4
        %v2021 = vpop.permute.xlu0 %2020
        %2022 = vrot.lane.b32.xlu0 %v611, 4
        %v2023 = vpop.permute.xlu0 %2022
        %2024 = vrot.lane.b32.xlu0 %v615, 4
        %v2025 = vpop.permute.xlu0 %2024
        %2026 = vrot.lane.b32.xlu0 %v617, 4
        %v2027 = vpop.permute.xlu0 %2026
        %2028 = vrot.lane.b32.xlu0 %v619, 4
        %v2029 = vpop.permute.xlu0 %2028
        %2030 = vrot.lane.b32.xlu0 %v618, 4
        %v2031 = vpop.permute.xlu0 %2030
        %2032 = vrot.lane.b32.xlu0 %v622, 4
        %v2033 = vpop.permute.xlu0 %2032
        %2034 = vrot.lane.b32.xlu0 %v624, 4
        %v2035 = vpop.permute.xlu0 %2034
        %2036 = vrot.lane.b32.xlu0 %v626, 4
        %v2037 = vpop.permute.xlu0 %2036
        %2038 = vrot.lane.b32.xlu0 %v625, 4
        %v2039 = vpop.permute.xlu0 %2038
        %2040 = vrot.lane.b32.xlu0 %v629, 4
        %v2041 = vpop.permute.xlu0 %2040
        %2042 = vrot.lane.b32.xlu0 %v631, 4
        %v2043 = vpop.permute.xlu0 %2042
        %2044 = vrot.lane.b32.xlu0 %v633, 4
        %v2045 = vpop.permute.xlu0 %2044
        %2046 = vrot.lane.b32.xlu0 %v632, 4
        %v2047 = vpop.permute.xlu0 %2046
        %2048 = vrot.lane.b32.xlu0 %v636, 4
        %v2049 = vpop.permute.xlu0 %2048
        %2050 = vrot.lane.b32.xlu0 %v638, 4
        %v2051 = vpop.permute.xlu0 %2050
        %2052 = vrot.lane.b32.xlu0 %v640, 4
        %v2053 = vpop.permute.xlu0 %2052
        %2054 = vrot.lane.b32.xlu0 %v639, 4
        %v2055 = vpop.permute.xlu0 %2054
        %2056 = vrot.lane.b32.xlu0 %v643, 4
        %v2057 = vpop.permute.xlu0 %2056
        %2058 = vrot.lane.b32.xlu0 %v645, 4
        %v2059 = vpop.permute.xlu0 %2058
        %2060 = vrot.lane.b32.xlu0 %v647, 4
        %v2061 = vpop.permute.xlu0 %2060
        %2062 = vrot.lane.b32.xlu0 %v646, 4
        %v2063 = vpop.permute.xlu0 %2062
        %2064 = vrot.lane.b32.xlu0 %v650, 4
        %v2065 = vpop.permute.xlu0 %2064
        %2066 = vrot.lane.b32.xlu0 %v652, 4
        %v2067 = vpop.permute.xlu0 %2066
        %2068 = vrot.lane.b32.xlu0 %v654, 4
        %v2069 = vpop.permute.xlu0 %2068
        %2070 = vrot.lane.b32.xlu0 %v653, 4
        %v2071 = vpop.permute.xlu0 %2070
        %2072 = vrot.lane.b32.xlu0 %v657, 4
        %v2073 = vpop.permute.xlu0 %2072
        %2074 = vrot.lane.b32.xlu0 %v659, 4
        %v2075 = vpop.permute.xlu0 %2074
        %2076 = vrot.lane.b32.xlu0 %v661, 4
        %v2077 = vpop.permute.xlu0 %2076
        %2078 = vrot.lane.b32.xlu0 %v660, 4
        %v2079 = vpop.permute.xlu0 %2078
        %2080 = vrot.lane.b32.xlu0 %v664, 4
        %v2081 = vpop.permute.xlu0 %2080
        %2082 = vrot.lane.b32.xlu0 %v666, 4
        %v2083 = vpop.permute.xlu0 %2082
        %2084 = vrot.lane.b32.xlu0 %v668, 4
        %v2085 = vpop.permute.xlu0 %2084
        %2086 = vrot.lane.b32.xlu0 %v667, 4
        %v2087 = vpop.permute.xlu0 %2086
        %2088 = vrot.lane.b32.xlu0 %v671, 4
        %v2089 = vpop.permute.xlu0 %2088
        %2090 = vrot.lane.b32.xlu0 %v673, 4
        %v2091 = vpop.permute.xlu0 %2090
        %2092 = vrot.lane.b32.xlu0 %v675, 4
        %v2093 = vpop.permute.xlu0 %2092
        %2094 = vrot.lane.b32.xlu0 %v674, 4
        %v2095 = vpop.permute.xlu0 %2094
        %2096 = vrot.lane.b32.xlu0 %v678, 4
        %v2097 = vpop.permute.xlu0 %2096
        %2098 = vrot.lane.b32.xlu0 %v680, 4
        %v2099 = vpop.permute.xlu0 %2098
        %2100 = vrot.lane.b32.xlu0 %v682, 4
        %v2101 = vpop.permute.xlu0 %2100
        %2102 = vrot.lane.b32.xlu0 %v681, 4
        %v2103 = vpop.permute.xlu0 %2102
        %2104 = vrot.lane.b32.xlu0 %v685, 4
        %v2105 = vpop.permute.xlu0 %2104
        %2106 = vrot.lane.b32.xlu0 %v687, 4
        %v2107 = vpop.permute.xlu0 %2106
        %2108 = vrot.lane.b32.xlu0 %v689, 4
        %v2109 = vpop.permute.xlu0 %2108
        %2110 = vrot.lane.b32.xlu0 %v688, 4
        %v2111 = vpop.permute.xlu0 %2110
        %2112 = vrot.lane.b32.xlu0 %v692, 4
        %v2113 = vpop.permute.xlu0 %2112
        %2114 = vrot.lane.b32.xlu0 %v694, 4
        %v2115 = vpop.permute.xlu0 %2114
        %2116 = vrot.lane.b32.xlu0 %v696, 4
        %v2117 = vpop.permute.xlu0 %2116
        %2118 = vrot.lane.b32.xlu0 %v695, 4
        %v2119 = vpop.permute.xlu0 %2118
        %2120 = vrot.lane.b32.xlu0 %v699, 4
        %v2121 = vpop.permute.xlu0 %2120
        %2122 = vrot.lane.b32.xlu0 %v701, 4
        %v2123 = vpop.permute.xlu0 %2122
        %2124 = vrot.lane.b32.xlu0 %v703, 4
        %v2125 = vpop.permute.xlu0 %2124
        %2126 = vrot.lane.b32.xlu0 %v702, 4
        %v2127 = vpop.permute.xlu0 %2126
        %2128 = vrot.lane.b32.xlu0 %v706, 4
        %v2129 = vpop.permute.xlu0 %2128
        %2130 = vrot.lane.b32.xlu0 %v708, 4
        %v2131 = vpop.permute.xlu0 %2130
        %2132 = vrot.lane.b32.xlu0 %v710, 4
        %v2133 = vpop.permute.xlu0 %2132
        %2134 = vrot.lane.b32.xlu0 %v709, 4
        %v2135 = vpop.permute.xlu0 %2134
        %2136 = vrot.lane.b32.xlu0 %v713, 4
        %v2137 = vpop.permute.xlu0 %2136
        %2138 = vrot.lane.b32.xlu0 %v715, 4
        %v2139 = vpop.permute.xlu0 %2138
        %2140 = vrot.lane.b32.xlu0 %v717, 4
        %v2141 = vpop.permute.xlu0 %2140
        %2142 = vrot.lane.b32.xlu0 %v716, 4
        %v2143 = vpop.permute.xlu0 %2142
        %2144 = vrot.lane.b32.xlu0 %v720, 4
        %v2145 = vpop.permute.xlu0 %2144
        %2146 = vrot.lane.b32.xlu0 %v722, 4
        %v2147 = vpop.permute.xlu0 %2146
        %2148 = vrot.lane.b32.xlu0 %v724, 4
        %v2149 = vpop.permute.xlu0 %2148
        %2150 = vrot.lane.b32.xlu0 %v723, 4
        %v2151 = vpop.permute.xlu0 %2150
        %2152 = vrot.lane.b32.xlu0 %v727, 4
        %v2153 = vpop.permute.xlu0 %2152
        %2154 = vrot.lane.b32.xlu0 %v729, 4
        %v2155 = vpop.permute.xlu0 %2154
        %2156 = vrot.lane.b32.xlu0 %v731, 4
        %v2157 = vpop.permute.xlu0 %2156
        %2158 = vrot.lane.b32.xlu0 %v730, 4
        %v2159 = vpop.permute.xlu0 %2158
        %2160 = vrot.lane.b32.xlu0 %v734, 4
        %v2161 = vpop.permute.xlu0 %2160
        %2162 = vrot.lane.b32.xlu0 %v736, 4
        %v2163 = vpop.permute.xlu0 %2162
        %2164 = vrot.lane.b32.xlu0 %v738, 4
        %v2165 = vpop.permute.xlu0 %2164
        %2166 = vrot.lane.b32.xlu0 %v737, 4
        %v2167 = vpop.permute.xlu0 %2166
        %2168 = vrot.lane.b32.xlu0 %v741, 4
        %v2169 = vpop.permute.xlu0 %2168
        %2170 = vrot.lane.b32.xlu0 %v743, 4
        %v2171 = vpop.permute.xlu0 %2170
        %2172 = vrot.lane.b32.xlu0 %v745, 4
        %v2173 = vpop.permute.xlu0 %2172
        %2174 = vrot.lane.b32.xlu0 %v744, 4
        %v2175 = vpop.permute.xlu0 %2174
        %2176 = vrot.lane.b32.xlu0 %v748, 4
        %v2177 = vpop.permute.xlu0 %2176
        %2178 = vrot.lane.b32.xlu0 %v750, 4
        %v2179 = vpop.permute.xlu0 %2178
        %2180 = vrot.lane.b32.xlu0 %v752, 4
        %v2181 = vpop.permute.xlu0 %2180
        %2182 = vrot.lane.b32.xlu0 %v751, 4
        %v2183 = vpop.permute.xlu0 %2182
        %2184 = vrot.lane.b32.xlu0 %v755, 4
        %v2185 = vpop.permute.xlu0 %2184
        %2186 = vrot.lane.b32.xlu0 %v757, 4
        %v2187 = vpop.permute.xlu0 %2186
        %2188 = vrot.lane.b32.xlu0 %v759, 4
        %v2189 = vpop.permute.xlu0 %2188
        %2190 = vrot.lane.b32.xlu0 %v758, 4
        %v2191 = vpop.permute.xlu0 %2190
        %2192 = vrot.lane.b32.xlu0 %v1971, 4
        %v2193 = vpop.permute.xlu0 %2192
        %2194 = vrot.lane.b32.xlu0 %v1973, 4
        %v2195 = vpop.permute.xlu0 %2194
        %2196 = vrot.lane.b32.xlu0 %v1975, 4
        %v2197 = vpop.permute.xlu0 %2196
        %2198 = vrot.lane.b32.xlu0 %v1974, 4
        %v2199 = vpop.permute.xlu0 %2198
        %v2312 = vrot.slane %v443, 2
        %v2313 = vrot.slane %v444, 2
        %v2314 = vsel %vm1096, %v2312, %v2313
        %v2315 = vrot.slane %v445, 2
        %v2316 = vsel %vm1096, %v2313, %v2315
        %v2317 = vrot.slane %v446, 2
        %v2318 = vsel %vm1096, %v2315, %v2317
        %2319 = vrot.lane.b32.xlu0 %v1106, 5
        %v2320 = vpop.permute.xlu0 %2319
        %2321 = vrot.lane.b32.xlu0 %v1108, 5
        %v2322 = vpop.permute.xlu0 %2321
        %2323 = vrot.lane.b32.xlu0 %v1110, 5
        %v2324 = vpop.permute.xlu0 %2323
        %2325 = vrot.lane.b32.xlu0 %v1109, 5
        %v2326 = vpop.permute.xlu0 %2325
        %2327 = vrot.lane.b32.xlu0 %v1113, 5
        %v2328 = vpop.permute.xlu0 %2327
        %2329 = vrot.lane.b32.xlu0 %v1115, 5
        %v2330 = vpop.permute.xlu0 %2329
        %2331 = vrot.lane.b32.xlu0 %v1117, 5
        %v2332 = vpop.permute.xlu0 %2331
        %2333 = vrot.lane.b32.xlu0 %v1116, 5
        %v2334 = vpop.permute.xlu0 %2333
        %2335 = vrot.lane.b32.xlu0 %v1120, 5
        %v2336 = vpop.permute.xlu0 %2335
        %2337 = vrot.lane.b32.xlu0 %v1122, 5
        %v2338 = vpop.permute.xlu0 %2337
        %2339 = vrot.lane.b32.xlu0 %v1124, 5
        %v2340 = vpop.permute.xlu0 %2339
        %2341 = vrot.lane.b32.xlu0 %v1123, 5
        %v2342 = vpop.permute.xlu0 %2341
        %2343 = vrot.lane.b32.xlu0 %v1127, 5
        %v2344 = vpop.permute.xlu0 %2343
        %2345 = vrot.lane.b32.xlu0 %v1129, 5
        %v2346 = vpop.permute.xlu0 %2345
        %2347 = vrot.lane.b32.xlu0 %v1131, 5
        %v2348 = vpop.permute.xlu0 %2347
        %2349 = vrot.lane.b32.xlu0 %v1130, 5
        %v2350 = vpop.permute.xlu0 %2349
        %2351 = vrot.lane.b32.xlu0 %v1134, 5
        %v2352 = vpop.permute.xlu0 %2351
        %2353 = vrot.lane.b32.xlu0 %v1136, 5
        %v2354 = vpop.permute.xlu0 %2353
        %2355 = vrot.lane.b32.xlu0 %v1138, 5
        %v2356 = vpop.permute.xlu0 %2355
        %2357 = vrot.lane.b32.xlu0 %v1137, 5
        %v2358 = vpop.permute.xlu0 %2357
        %2359 = vrot.lane.b32.xlu0 %v1141, 5
        %v2360 = vpop.permute.xlu0 %2359
        %2361 = vrot.lane.b32.xlu0 %v1143, 5
        %v2362 = vpop.permute.xlu0 %2361
        %2363 = vrot.lane.b32.xlu0 %v1145, 5
        %v2364 = vpop.permute.xlu0 %2363
        %2365 = vrot.lane.b32.xlu0 %v1144, 5
        %v2366 = vpop.permute.xlu0 %2365
        %2367 = vrot.lane.b32.xlu0 %v1148, 5
        %v2368 = vpop.permute.xlu0 %2367
        %2369 = vrot.lane.b32.xlu0 %v1150, 5
        %v2370 = vpop.permute.xlu0 %2369
        %2371 = vrot.lane.b32.xlu0 %v1152, 5
        %v2372 = vpop.permute.xlu0 %2371
        %2373 = vrot.lane.b32.xlu0 %v1151, 5
        %v2374 = vpop.permute.xlu0 %2373
        %2375 = vrot.lane.b32.xlu0 %v1155, 5
        %v2376 = vpop.permute.xlu0 %2375
        %2377 = vrot.lane.b32.xlu0 %v1157, 5
        %v2378 = vpop.permute.xlu0 %2377
        %2379 = vrot.lane.b32.xlu0 %v1159, 5
        %v2380 = vpop.permute.xlu0 %2379
        %2381 = vrot.lane.b32.xlu0 %v1158, 5
        %v2382 = vpop.permute.xlu0 %2381
        %2383 = vrot.lane.b32.xlu0 %v1162, 5
        %v2384 = vpop.permute.xlu0 %2383
        %2385 = vrot.lane.b32.xlu0 %v1164, 5
        %v2386 = vpop.permute.xlu0 %2385
        %2387 = vrot.lane.b32.xlu0 %v1166, 5
        %v2388 = vpop.permute.xlu0 %2387
        %2389 = vrot.lane.b32.xlu0 %v1165, 5
        %v2390 = vpop.permute.xlu0 %2389
        %2391 = vrot.lane.b32.xlu0 %v1169, 5
        %v2392 = vpop.permute.xlu0 %2391
        %2393 = vrot.lane.b32.xlu0 %v1171, 5
        %v2394 = vpop.permute.xlu0 %2393
        %2395 = vrot.lane.b32.xlu0 %v1173, 5
        %v2396 = vpop.permute.xlu0 %2395
        %2397 = vrot.lane.b32.xlu0 %v1172, 5
        %v2398 = vpop.permute.xlu0 %2397
        %2399 = vrot.lane.b32.xlu0 %v1176, 5
        %v2400 = vpop.permute.xlu0 %2399
        %2401 = vrot.lane.b32.xlu0 %v1178, 5
        %v2402 = vpop.permute.xlu0 %2401
        %2403 = vrot.lane.b32.xlu0 %v1180, 5
        %v2404 = vpop.permute.xlu0 %2403
        %2405 = vrot.lane.b32.xlu0 %v1179, 5
        %v2406 = vpop.permute.xlu0 %2405
        %2407 = vrot.lane.b32.xlu0 %v1183, 5
        %v2408 = vpop.permute.xlu0 %2407
        %2409 = vrot.lane.b32.xlu0 %v1185, 5
        %v2410 = vpop.permute.xlu0 %2409
        %2411 = vrot.lane.b32.xlu0 %v1187, 5
        %v2412 = vpop.permute.xlu0 %2411
        %2413 = vrot.lane.b32.xlu0 %v1186, 5
        %v2414 = vpop.permute.xlu0 %2413
        %2415 = vrot.lane.b32.xlu0 %v1190, 5
        %v2416 = vpop.permute.xlu0 %2415
        %2417 = vrot.lane.b32.xlu0 %v1192, 5
        %v2418 = vpop.permute.xlu0 %2417
        %2419 = vrot.lane.b32.xlu0 %v1194, 5
        %v2420 = vpop.permute.xlu0 %2419
        %2421 = vrot.lane.b32.xlu0 %v1193, 5
        %v2422 = vpop.permute.xlu0 %2421
        %2423 = vrot.lane.b32.xlu0 %v1197, 5
        %v2424 = vpop.permute.xlu0 %2423
        %2425 = vrot.lane.b32.xlu0 %v1199, 5
        %v2426 = vpop.permute.xlu0 %2425
        %2427 = vrot.lane.b32.xlu0 %v1201, 5
        %v2428 = vpop.permute.xlu0 %2427
        %2429 = vrot.lane.b32.xlu0 %v1200, 5
        %v2430 = vpop.permute.xlu0 %2429
        %2431 = vrot.lane.b32.xlu0 %v1204, 5
        %v2432 = vpop.permute.xlu0 %2431
        %2433 = vrot.lane.b32.xlu0 %v1206, 5
        %v2434 = vpop.permute.xlu0 %2433
        %2435 = vrot.lane.b32.xlu0 %v1208, 5
        %v2436 = vpop.permute.xlu0 %2435
        %2437 = vrot.lane.b32.xlu0 %v1207, 5
        %v2438 = vpop.permute.xlu0 %2437
        %2439 = vrot.lane.b32.xlu0 %v1211, 5
        %v2440 = vpop.permute.xlu0 %2439
        %2441 = vrot.lane.b32.xlu0 %v1213, 5
        %v2442 = vpop.permute.xlu0 %2441
        %2443 = vrot.lane.b32.xlu0 %v1215, 5
        %v2444 = vpop.permute.xlu0 %2443
        %2445 = vrot.lane.b32.xlu0 %v1214, 5
        %v2446 = vpop.permute.xlu0 %2445
        %2447 = vrot.lane.b32.xlu0 %v1218, 5
        %v2448 = vpop.permute.xlu0 %2447
        %2449 = vrot.lane.b32.xlu0 %v1220, 5
        %v2450 = vpop.permute.xlu0 %2449
        %2451 = vrot.lane.b32.xlu0 %v1222, 5
        %v2452 = vpop.permute.xlu0 %2451
        %2453 = vrot.lane.b32.xlu0 %v1221, 5
        %v2454 = vpop.permute.xlu0 %2453
        %2455 = vrot.lane.b32.xlu0 %v1225, 5
        %v2456 = vpop.permute.xlu0 %2455
        %2457 = vrot.lane.b32.xlu0 %v1227, 5
        %v2458 = vpop.permute.xlu0 %2457
        %2459 = vrot.lane.b32.xlu0 %v1229, 5
        %v2460 = vpop.permute.xlu0 %2459
        %2461 = vrot.lane.b32.xlu0 %v1228, 5
        %v2462 = vpop.permute.xlu0 %2461
        %2463 = vrot.lane.b32.xlu0 %v1232, 5
        %v2464 = vpop.permute.xlu0 %2463
        %2465 = vrot.lane.b32.xlu0 %v1234, 5
        %v2466 = vpop.permute.xlu0 %2465
        %2467 = vrot.lane.b32.xlu0 %v1236, 5
        %v2468 = vpop.permute.xlu0 %2467
        %2469 = vrot.lane.b32.xlu0 %v1235, 5
        %v2470 = vpop.permute.xlu0 %2469
        %2471 = vrot.lane.b32.xlu0 %v1239, 5
        %v2472 = vpop.permute.xlu0 %2471
        %2473 = vrot.lane.b32.xlu0 %v1241, 5
        %v2474 = vpop.permute.xlu0 %2473
        %2475 = vrot.lane.b32.xlu0 %v1243, 5
        %v2476 = vpop.permute.xlu0 %2475
        %2477 = vrot.lane.b32.xlu0 %v1242, 5
        %v2478 = vpop.permute.xlu0 %2477
        %2479 = vrot.lane.b32.xlu0 %v1246, 5
        %v2480 = vpop.permute.xlu0 %2479
        %2481 = vrot.lane.b32.xlu0 %v1248, 5
        %v2482 = vpop.permute.xlu0 %2481
        %2483 = vrot.lane.b32.xlu0 %v1250, 5
        %v2484 = vpop.permute.xlu0 %2483
        %2485 = vrot.lane.b32.xlu0 %v1249, 5
        %v2486 = vpop.permute.xlu0 %2485
        %2487 = vrot.lane.b32.xlu0 %v1253, 5
        %v2488 = vpop.permute.xlu0 %2487
        %2489 = vrot.lane.b32.xlu0 %v1255, 5
        %v2490 = vpop.permute.xlu0 %2489
        %2491 = vrot.lane.b32.xlu0 %v1257, 5
        %v2492 = vpop.permute.xlu0 %2491
        %2493 = vrot.lane.b32.xlu0 %v1256, 5
        %v2494 = vpop.permute.xlu0 %2493
        %2495 = vrot.lane.b32.xlu0 %v1260, 5
        %v2496 = vpop.permute.xlu0 %2495
        %2497 = vrot.lane.b32.xlu0 %v1262, 5
        %v2498 = vpop.permute.xlu0 %2497
        %2499 = vrot.lane.b32.xlu0 %v1264, 5
        %v2500 = vpop.permute.xlu0 %2499
        %2501 = vrot.lane.b32.xlu0 %v1263, 5
        %v2502 = vpop.permute.xlu0 %2501
        %2503 = vrot.lane.b32.xlu0 %v1267, 5
        %v2504 = vpop.permute.xlu0 %2503
        %2505 = vrot.lane.b32.xlu0 %v1269, 5
        %v2506 = vpop.permute.xlu0 %2505
        %2507 = vrot.lane.b32.xlu0 %v1271, 5
        %v2508 = vpop.permute.xlu0 %2507
        %2509 = vrot.lane.b32.xlu0 %v1270, 5
        %v2510 = vpop.permute.xlu0 %2509
        %2511 = vrot.lane.b32.xlu0 %v1274, 5
        %v2512 = vpop.permute.xlu0 %2511
        %2513 = vrot.lane.b32.xlu0 %v1276, 5
        %v2514 = vpop.permute.xlu0 %2513
        %2515 = vrot.lane.b32.xlu0 %v1278, 5
        %v2516 = vpop.permute.xlu0 %2515
        %2517 = vrot.lane.b32.xlu0 %v1277, 5
        %v2518 = vpop.permute.xlu0 %2517
        %2519 = vrot.lane.b32.xlu0 %v1281, 5
        %v2520 = vpop.permute.xlu0 %2519
        %2521 = vrot.lane.b32.xlu0 %v1283, 5
        %v2522 = vpop.permute.xlu0 %2521
        %2523 = vrot.lane.b32.xlu0 %v1285, 5
        %v2524 = vpop.permute.xlu0 %2523
        %2525 = vrot.lane.b32.xlu0 %v1284, 5
        %v2526 = vpop.permute.xlu0 %2525
        %2527 = vrot.lane.b32.xlu0 %v1288, 5
        %v2528 = vpop.permute.xlu0 %2527
        %2529 = vrot.lane.b32.xlu0 %v1290, 5
        %v2530 = vpop.permute.xlu0 %2529
        %2531 = vrot.lane.b32.xlu0 %v1292, 5
        %v2532 = vpop.permute.xlu0 %2531
        %2533 = vrot.lane.b32.xlu0 %v1291, 5
        %v2534 = vpop.permute.xlu0 %2533
        %2535 = vrot.lane.b32.xlu0 %v2314, 5
        %v2536 = vpop.permute.xlu0 %2535
        %2537 = vrot.lane.b32.xlu0 %v2316, 5
        %v2538 = vpop.permute.xlu0 %2537
        %2539 = vrot.lane.b32.xlu0 %v2318, 5
        %v2540 = vpop.permute.xlu0 %2539
        %2541 = vrot.lane.b32.xlu0 %v2317, 5
        %v2542 = vpop.permute.xlu0 %2541
        %2659 = vrot.lane.b32.xlu0 %v339, 6
        %v2660 = vpop.permute.xlu0 %2659
        %2661 = vrot.lane.b32.xlu0 %v340, 6
        %v2662 = vpop.permute.xlu0 %2661
        %2663 = vrot.lane.b32.xlu0 %v341, 6
        %v2664 = vpop.permute.xlu0 %2663
        %2665 = vrot.lane.b32.xlu0 %v342, 6
        %v2666 = vpop.permute.xlu0 %2665
        %2667 = vrot.lane.b32.xlu0 %v343, 6
        %v2668 = vpop.permute.xlu0 %2667
        %2669 = vrot.lane.b32.xlu0 %v344, 6
        %v2670 = vpop.permute.xlu0 %2669
        %2671 = vrot.lane.b32.xlu0 %v345, 6
        %v2672 = vpop.permute.xlu0 %2671
        %2673 = vrot.lane.b32.xlu0 %v346, 6
        %v2674 = vpop.permute.xlu0 %2673
        %2675 = vrot.lane.b32.xlu0 %v347, 6
        %v2676 = vpop.permute.xlu0 %2675
        %2677 = vrot.lane.b32.xlu0 %v348, 6
        %v2678 = vpop.permute.xlu0 %2677
        %2679 = vrot.lane.b32.xlu0 %v349, 6
        %v2680 = vpop.permute.xlu0 %2679
        %2681 = vrot.lane.b32.xlu0 %v350, 6
        %v2682 = vpop.permute.xlu0 %2681
        %2683 = vrot.lane.b32.xlu0 %v351, 6
        %v2684 = vpop.permute.xlu0 %2683
        %2685 = vrot.lane.b32.xlu0 %v352, 6
        %v2686 = vpop.permute.xlu0 %2685
        %2687 = vrot.lane.b32.xlu0 %v353, 6
        %v2688 = vpop.permute.xlu0 %2687
        %2689 = vrot.lane.b32.xlu0 %v354, 6
        %v2690 = vpop.permute.xlu0 %2689
        %2691 = vrot.lane.b32.xlu0 %v355, 6
        %v2692 = vpop.permute.xlu0 %2691
        %2693 = vrot.lane.b32.xlu0 %v356, 6
        %v2694 = vpop.permute.xlu0 %2693
        %2695 = vrot.lane.b32.xlu0 %v357, 6
        %v2696 = vpop.permute.xlu0 %2695
        %2697 = vrot.lane.b32.xlu0 %v358, 6
        %v2698 = vpop.permute.xlu0 %2697
        %2699 = vrot.lane.b32.xlu0 %v359, 6
        %v2700 = vpop.permute.xlu0 %2699
        %2701 = vrot.lane.b32.xlu0 %v360, 6
        %v2702 = vpop.permute.xlu0 %2701
        %2703 = vrot.lane.b32.xlu0 %v361, 6
        %v2704 = vpop.permute.xlu0 %2703
        %2705 = vrot.lane.b32.xlu0 %v362, 6
        %v2706 = vpop.permute.xlu0 %2705
        %2707 = vrot.lane.b32.xlu0 %v363, 6
        %v2708 = vpop.permute.xlu0 %2707
        %2709 = vrot.lane.b32.xlu0 %v364, 6
        %v2710 = vpop.permute.xlu0 %2709
        %2711 = vrot.lane.b32.xlu0 %v365, 6
        %v2712 = vpop.permute.xlu0 %2711
        %2713 = vrot.lane.b32.xlu0 %v366, 6
        %v2714 = vpop.permute.xlu0 %2713
        %2715 = vrot.lane.b32.xlu0 %v367, 6
        %v2716 = vpop.permute.xlu0 %2715
        %2717 = vrot.lane.b32.xlu0 %v368, 6
        %v2718 = vpop.permute.xlu0 %2717
        %2719 = vrot.lane.b32.xlu0 %v369, 6
        %v2720 = vpop.permute.xlu0 %2719
        %2721 = vrot.lane.b32.xlu0 %v370, 6
        %v2722 = vpop.permute.xlu0 %2721
        %2723 = vrot.lane.b32.xlu0 %v371, 6
        %v2724 = vpop.permute.xlu0 %2723
        %2725 = vrot.lane.b32.xlu0 %v372, 6
        %v2726 = vpop.permute.xlu0 %2725
        %2727 = vrot.lane.b32.xlu0 %v373, 6
        %v2728 = vpop.permute.xlu0 %2727
        %2729 = vrot.lane.b32.xlu0 %v374, 6
        %v2730 = vpop.permute.xlu0 %2729
        %2731 = vrot.lane.b32.xlu0 %v375, 6
        %v2732 = vpop.permute.xlu0 %2731
        %2733 = vrot.lane.b32.xlu0 %v376, 6
        %v2734 = vpop.permute.xlu0 %2733
        %2735 = vrot.lane.b32.xlu0 %v377, 6
        %v2736 = vpop.permute.xlu0 %2735
        %2737 = vrot.lane.b32.xlu0 %v378, 6
        %v2738 = vpop.permute.xlu0 %2737
        %2739 = vrot.lane.b32.xlu0 %v379, 6
        %v2740 = vpop.permute.xlu0 %2739
        %2741 = vrot.lane.b32.xlu0 %v380, 6
        %v2742 = vpop.permute.xlu0 %2741
        %2743 = vrot.lane.b32.xlu0 %v381, 6
        %v2744 = vpop.permute.xlu0 %2743
        %2745 = vrot.lane.b32.xlu0 %v382, 6
        %v2746 = vpop.permute.xlu0 %2745
        %2747 = vrot.lane.b32.xlu0 %v383, 6
        %v2748 = vpop.permute.xlu0 %2747
        %2749 = vrot.lane.b32.xlu0 %v384, 6
        %v2750 = vpop.permute.xlu0 %2749
        %2751 = vrot.lane.b32.xlu0 %v385, 6
        %v2752 = vpop.permute.xlu0 %2751
        %2753 = vrot.lane.b32.xlu0 %v386, 6
        %v2754 = vpop.permute.xlu0 %2753
        %2755 = vrot.lane.b32.xlu0 %v387, 6
        %v2756 = vpop.permute.xlu0 %2755
        %2757 = vrot.lane.b32.xlu0 %v388, 6
        %v2758 = vpop.permute.xlu0 %2757
        %2759 = vrot.lane.b32.xlu0 %v389, 6
        %v2760 = vpop.permute.xlu0 %2759
        %2761 = vrot.lane.b32.xlu0 %v390, 6
        %v2762 = vpop.permute.xlu0 %2761
        %2763 = vrot.lane.b32.xlu0 %v391, 6
        %v2764 = vpop.permute.xlu0 %2763
        %2765 = vrot.lane.b32.xlu0 %v392, 6
        %v2766 = vpop.permute.xlu0 %2765
        %2767 = vrot.lane.b32.xlu0 %v393, 6
        %v2768 = vpop.permute.xlu0 %2767
        %2769 = vrot.lane.b32.xlu0 %v394, 6
        %v2770 = vpop.permute.xlu0 %2769
        %2771 = vrot.lane.b32.xlu0 %v395, 6
        %v2772 = vpop.permute.xlu0 %2771
        %2773 = vrot.lane.b32.xlu0 %v396, 6
        %v2774 = vpop.permute.xlu0 %2773
        %2775 = vrot.lane.b32.xlu0 %v397, 6
        %v2776 = vpop.permute.xlu0 %2775
        %2777 = vrot.lane.b32.xlu0 %v398, 6
        %v2778 = vpop.permute.xlu0 %2777
        %2779 = vrot.lane.b32.xlu0 %v399, 6
        %v2780 = vpop.permute.xlu0 %2779
        %2781 = vrot.lane.b32.xlu0 %v400, 6
        %v2782 = vpop.permute.xlu0 %2781
        %2783 = vrot.lane.b32.xlu0 %v401, 6
        %v2784 = vpop.permute.xlu0 %2783
        %2785 = vrot.lane.b32.xlu0 %v402, 6
        %v2786 = vpop.permute.xlu0 %2785
        %2787 = vrot.lane.b32.xlu0 %v403, 6
        %v2788 = vpop.permute.xlu0 %2787
        %2789 = vrot.lane.b32.xlu0 %v404, 6
        %v2790 = vpop.permute.xlu0 %2789
        %2791 = vrot.lane.b32.xlu0 %v405, 6
        %v2792 = vpop.permute.xlu0 %2791
        %2793 = vrot.lane.b32.xlu0 %v406, 6
        %v2794 = vpop.permute.xlu0 %2793
        %2795 = vrot.lane.b32.xlu0 %v407, 6
        %v2796 = vpop.permute.xlu0 %2795
        %2797 = vrot.lane.b32.xlu0 %v408, 6
        %v2798 = vpop.permute.xlu0 %2797
        %2799 = vrot.lane.b32.xlu0 %v409, 6
        %v2800 = vpop.permute.xlu0 %2799
        %2801 = vrot.lane.b32.xlu0 %v410, 6
        %v2802 = vpop.permute.xlu0 %2801
        %2803 = vrot.lane.b32.xlu0 %v411, 6
        %v2804 = vpop.permute.xlu0 %2803
        %2805 = vrot.lane.b32.xlu0 %v412, 6
        %v2806 = vpop.permute.xlu0 %2805
        %2807 = vrot.lane.b32.xlu0 %v413, 6
        %v2808 = vpop.permute.xlu0 %2807
        %2809 = vrot.lane.b32.xlu0 %v414, 6
        %v2810 = vpop.permute.xlu0 %2809
        %2811 = vrot.lane.b32.xlu0 %v415, 6
        %v2812 = vpop.permute.xlu0 %2811
        %2813 = vrot.lane.b32.xlu0 %v416, 6
        %v2814 = vpop.permute.xlu0 %2813
        %2815 = vrot.lane.b32.xlu0 %v417, 6
        %v2816 = vpop.permute.xlu0 %2815
        %2817 = vrot.lane.b32.xlu0 %v418, 6
        %v2818 = vpop.permute.xlu0 %2817
        %2819 = vrot.lane.b32.xlu0 %v419, 6
        %v2820 = vpop.permute.xlu0 %2819
        %2821 = vrot.lane.b32.xlu0 %v420, 6
        %v2822 = vpop.permute.xlu0 %2821
        %2823 = vrot.lane.b32.xlu0 %v421, 6
        %v2824 = vpop.permute.xlu0 %2823
        %2825 = vrot.lane.b32.xlu0 %v422, 6
        %v2826 = vpop.permute.xlu0 %2825
        %2827 = vrot.lane.b32.xlu0 %v423, 6
        %v2828 = vpop.permute.xlu0 %2827
        %2829 = vrot.lane.b32.xlu0 %v424, 6
        %v2830 = vpop.permute.xlu0 %2829
        %2831 = vrot.lane.b32.xlu0 %v425, 6
        %v2832 = vpop.permute.xlu0 %2831
        %2833 = vrot.lane.b32.xlu0 %v426, 6
        %v2834 = vpop.permute.xlu0 %2833
        %2835 = vrot.lane.b32.xlu0 %v427, 6
        %v2836 = vpop.permute.xlu0 %2835
        %2837 = vrot.lane.b32.xlu0 %v428, 6
        %v2838 = vpop.permute.xlu0 %2837
        %2839 = vrot.lane.b32.xlu0 %v429, 6
        %v2840 = vpop.permute.xlu0 %2839
        %2841 = vrot.lane.b32.xlu0 %v430, 6
        %v2842 = vpop.permute.xlu0 %2841
        %2843 = vrot.lane.b32.xlu0 %v431, 6
        %v2844 = vpop.permute.xlu0 %2843
        %2845 = vrot.lane.b32.xlu0 %v432, 6
        %v2846 = vpop.permute.xlu0 %2845
        %2847 = vrot.lane.b32.xlu0 %v433, 6
        %v2848 = vpop.permute.xlu0 %2847
        %2849 = vrot.lane.b32.xlu0 %v434, 6
        %v2850 = vpop.permute.xlu0 %2849
        %2851 = vrot.lane.b32.xlu0 %v435, 6
        %v2852 = vpop.permute.xlu0 %2851
        %2853 = vrot.lane.b32.xlu0 %v436, 6
        %v2854 = vpop.permute.xlu0 %2853
        %2855 = vrot.lane.b32.xlu0 %v437, 6
        %v2856 = vpop.permute.xlu0 %2855
        %2857 = vrot.lane.b32.xlu0 %v438, 6
        %v2858 = vpop.permute.xlu0 %2857
        %2859 = vrot.lane.b32.xlu0 %v439, 6
        %v2860 = vpop.permute.xlu0 %2859
        %2861 = vrot.lane.b32.xlu0 %v440, 6
        %v2862 = vpop.permute.xlu0 %2861
        %2863 = vrot.lane.b32.xlu0 %v441, 6
        %v2864 = vpop.permute.xlu0 %2863
        %2865 = vrot.lane.b32.xlu0 %v442, 6
        %v2866 = vpop.permute.xlu0 %2865
        %2867 = vrot.lane.b32.xlu0 %v443, 6
        %v2868 = vpop.permute.xlu0 %2867
        %2869 = vrot.lane.b32.xlu0 %v444, 6
        %v2870 = vpop.permute.xlu0 %2869
        %2871 = vrot.lane.b32.xlu0 %v445, 6
        %v2872 = vpop.permute.xlu0 %2871
        %2873 = vrot.lane.b32.xlu0 %v446, 6
        %v2874 = vpop.permute.xlu0 %2873
        %2875 = vrot.lane.b32.xlu0 %v447, 6
        %v2876 = vpop.permute.xlu0 %2875
        %2877 = vrot.lane.b32.xlu0 %v448, 6
        %v2878 = vpop.permute.xlu0 %2877
        %2879 = vrot.lane.b32.xlu0 %v449, 6
        %v2880 = vpop.permute.xlu0 %2879
        %2881 = vrot.lane.b32.xlu0 %v450, 6
        %v2882 = vpop.permute.xlu0 %2881
        %v2995 = vrot.slane %v447, 1
        %v2996 = vrot.slane %v448, 1
        %v2997 = vsel %vm563, %v2995, %v2996
        %v2998 = vrot.slane %v449, 1
        %v2999 = vsel %vm563, %v2996, %v2998
        %v3000 = vrot.slane %v450, 1
        %v3001 = vsel %vm563, %v2998, %v3000
        %3002 = vrot.lane.b32.xlu0 %v580, 7
        %v3003 = vpop.permute.xlu0 %3002
        %3004 = vrot.lane.b32.xlu0 %v582, 7
        %v3005 = vpop.permute.xlu0 %3004
        %3006 = vrot.lane.b32.xlu0 %v584, 7
        %v3007 = vpop.permute.xlu0 %3006
        %3008 = vrot.lane.b32.xlu0 %v583, 7
        %v3009 = vpop.permute.xlu0 %3008
        %3010 = vrot.lane.b32.xlu0 %v587, 7
        %v3011 = vpop.permute.xlu0 %3010
        %3012 = vrot.lane.b32.xlu0 %v589, 7
        %v3013 = vpop.permute.xlu0 %3012
        %3014 = vrot.lane.b32.xlu0 %v591, 7
        %v3015 = vpop.permute.xlu0 %3014
        %3016 = vrot.lane.b32.xlu0 %v590, 7
        %v3017 = vpop.permute.xlu0 %3016
        %3018 = vrot.lane.b32.xlu0 %v594, 7
        %v3019 = vpop.permute.xlu0 %3018
        %3020 = vrot.lane.b32.xlu0 %v596, 7
        %v3021 = vpop.permute.xlu0 %3020
        %3022 = vrot.lane.b32.xlu0 %v598, 7
        %v3023 = vpop.permute.xlu0 %3022
        %3024 = vrot.lane.b32.xlu0 %v597, 7
        %v3025 = vpop.permute.xlu0 %3024
        %3026 = vrot.lane.b32.xlu0 %v601, 7
        %v3027 = vpop.permute.xlu0 %3026
        %3028 = vrot.lane.b32.xlu0 %v603, 7
        %v3029 = vpop.permute.xlu0 %3028
        %3030 = vrot.lane.b32.xlu0 %v605, 7
        %v3031 = vpop.permute.xlu0 %3030
        %3032 = vrot.lane.b32.xlu0 %v604, 7
        %v3033 = vpop.permute.xlu0 %3032
        %3034 = vrot.lane.b32.xlu0 %v608, 7
        %v3035 = vpop.permute.xlu0 %3034
        %3036 = vrot.lane.b32.xlu0 %v610, 7
        %v3037 = vpop.permute.xlu0 %3036
        %3038 = vrot.lane.b32.xlu0 %v612, 7
        %v3039 = vpop.permute.xlu0 %3038
        %3040 = vrot.lane.b32.xlu0 %v611, 7
        %v3041 = vpop.permute.xlu0 %3040
        %3042 = vrot.lane.b32.xlu0 %v615, 7
        %v3043 = vpop.permute.xlu0 %3042
        %3044 = vrot.lane.b32.xlu0 %v617, 7
        %v3045 = vpop.permute.xlu0 %3044
        %3046 = vrot.lane.b32.xlu0 %v619, 7
        %v3047 = vpop.permute.xlu0 %3046
        %3048 = vrot.lane.b32.xlu0 %v618, 7
        %v3049 = vpop.permute.xlu0 %3048
        %3050 = vrot.lane.b32.xlu0 %v622, 7
        %v3051 = vpop.permute.xlu0 %3050
        %3052 = vrot.lane.b32.xlu0 %v624, 7
        %v3053 = vpop.permute.xlu0 %3052
        %3054 = vrot.lane.b32.xlu0 %v626, 7
        %v3055 = vpop.permute.xlu0 %3054
        %3056 = vrot.lane.b32.xlu0 %v625, 7
        %v3057 = vpop.permute.xlu0 %3056
        %3058 = vrot.lane.b32.xlu0 %v629, 7
        %v3059 = vpop.permute.xlu0 %3058
        %3060 = vrot.lane.b32.xlu0 %v631, 7
        %v3061 = vpop.permute.xlu0 %3060
        %3062 = vrot.lane.b32.xlu0 %v633, 7
        %v3063 = vpop.permute.xlu0 %3062
        %3064 = vrot.lane.b32.xlu0 %v632, 7
        %v3065 = vpop.permute.xlu0 %3064
        %3066 = vrot.lane.b32.xlu0 %v636, 7
        %v3067 = vpop.permute.xlu0 %3066
        %3068 = vrot.lane.b32.xlu0 %v638, 7
        %v3069 = vpop.permute.xlu0 %3068
        %3070 = vrot.lane.b32.xlu0 %v640, 7
        %v3071 = vpop.permute.xlu0 %3070
        %3072 = vrot.lane.b32.xlu0 %v639, 7
        %v3073 = vpop.permute.xlu0 %3072
        %3074 = vrot.lane.b32.xlu0 %v643, 7
        %v3075 = vpop.permute.xlu0 %3074
        %3076 = vrot.lane.b32.xlu0 %v645, 7
        %v3077 = vpop.permute.xlu0 %3076
        %3078 = vrot.lane.b32.xlu0 %v647, 7
        %v3079 = vpop.permute.xlu0 %3078
        %3080 = vrot.lane.b32.xlu0 %v646, 7
        %v3081 = vpop.permute.xlu0 %3080
        %3082 = vrot.lane.b32.xlu0 %v650, 7
        %v3083 = vpop.permute.xlu0 %3082
        %3084 = vrot.lane.b32.xlu0 %v652, 7
        %v3085 = vpop.permute.xlu0 %3084
        %3086 = vrot.lane.b32.xlu0 %v654, 7
        %v3087 = vpop.permute.xlu0 %3086
        %3088 = vrot.lane.b32.xlu0 %v653, 7
        %v3089 = vpop.permute.xlu0 %3088
        %3090 = vrot.lane.b32.xlu0 %v657, 7
        %v3091 = vpop.permute.xlu0 %3090
        %3092 = vrot.lane.b32.xlu0 %v659, 7
        %v3093 = vpop.permute.xlu0 %3092
        %3094 = vrot.lane.b32.xlu0 %v661, 7
        %v3095 = vpop.permute.xlu0 %3094
        %3096 = vrot.lane.b32.xlu0 %v660, 7
        %v3097 = vpop.permute.xlu0 %3096
        %3098 = vrot.lane.b32.xlu0 %v664, 7
        %v3099 = vpop.permute.xlu0 %3098
        %3100 = vrot.lane.b32.xlu0 %v666, 7
        %v3101 = vpop.permute.xlu0 %3100
        %3102 = vrot.lane.b32.xlu0 %v668, 7
        %v3103 = vpop.permute.xlu0 %3102
        %3104 = vrot.lane.b32.xlu0 %v667, 7
        %v3105 = vpop.permute.xlu0 %3104
        %3106 = vrot.lane.b32.xlu0 %v671, 7
        %v3107 = vpop.permute.xlu0 %3106
        %3108 = vrot.lane.b32.xlu0 %v673, 7
        %v3109 = vpop.permute.xlu0 %3108
        %3110 = vrot.lane.b32.xlu0 %v675, 7
        %v3111 = vpop.permute.xlu0 %3110
        %3112 = vrot.lane.b32.xlu0 %v674, 7
        %v3113 = vpop.permute.xlu0 %3112
        %3114 = vrot.lane.b32.xlu0 %v678, 7
        %v3115 = vpop.permute.xlu0 %3114
        %3116 = vrot.lane.b32.xlu0 %v680, 7
        %v3117 = vpop.permute.xlu0 %3116
        %3118 = vrot.lane.b32.xlu0 %v682, 7
        %v3119 = vpop.permute.xlu0 %3118
        %3120 = vrot.lane.b32.xlu0 %v681, 7
        %v3121 = vpop.permute.xlu0 %3120
        %3122 = vrot.lane.b32.xlu0 %v685, 7
        %v3123 = vpop.permute.xlu0 %3122
        %3124 = vrot.lane.b32.xlu0 %v687, 7
        %v3125 = vpop.permute.xlu0 %3124
        %3126 = vrot.lane.b32.xlu0 %v689, 7
        %v3127 = vpop.permute.xlu0 %3126
        %3128 = vrot.lane.b32.xlu0 %v688, 7
        %v3129 = vpop.permute.xlu0 %3128
        %3130 = vrot.lane.b32.xlu0 %v692, 7
        %v3131 = vpop.permute.xlu0 %3130
        %3132 = vrot.lane.b32.xlu0 %v694, 7
        %v3133 = vpop.permute.xlu0 %3132
        %3134 = vrot.lane.b32.xlu0 %v696, 7
        %v3135 = vpop.permute.xlu0 %3134
        %3136 = vrot.lane.b32.xlu0 %v695, 7
        %v3137 = vpop.permute.xlu0 %3136
        %3138 = vrot.lane.b32.xlu0 %v699, 7
        %v3139 = vpop.permute.xlu0 %3138
        %3140 = vrot.lane.b32.xlu0 %v701, 7
        %v3141 = vpop.permute.xlu0 %3140
        %3142 = vrot.lane.b32.xlu0 %v703, 7
        %v3143 = vpop.permute.xlu0 %3142
        %3144 = vrot.lane.b32.xlu0 %v702, 7
        %v3145 = vpop.permute.xlu0 %3144
        %3146 = vrot.lane.b32.xlu0 %v706, 7
        %v3147 = vpop.permute.xlu0 %3146
        %3148 = vrot.lane.b32.xlu0 %v708, 7
        %v3149 = vpop.permute.xlu0 %3148
        %3150 = vrot.lane.b32.xlu0 %v710, 7
        %v3151 = vpop.permute.xlu0 %3150
        %3152 = vrot.lane.b32.xlu0 %v709, 7
        %v3153 = vpop.permute.xlu0 %3152
        %3154 = vrot.lane.b32.xlu0 %v713, 7
        %v3155 = vpop.permute.xlu0 %3154
        %3156 = vrot.lane.b32.xlu0 %v715, 7
        %v3157 = vpop.permute.xlu0 %3156
        %3158 = vrot.lane.b32.xlu0 %v717, 7
        %v3159 = vpop.permute.xlu0 %3158
        %3160 = vrot.lane.b32.xlu0 %v716, 7
        %v3161 = vpop.permute.xlu0 %3160
        %3162 = vrot.lane.b32.xlu0 %v720, 7
        %v3163 = vpop.permute.xlu0 %3162
        %3164 = vrot.lane.b32.xlu0 %v722, 7
        %v3165 = vpop.permute.xlu0 %3164
        %3166 = vrot.lane.b32.xlu0 %v724, 7
        %v3167 = vpop.permute.xlu0 %3166
        %3168 = vrot.lane.b32.xlu0 %v723, 7
        %v3169 = vpop.permute.xlu0 %3168
        %3170 = vrot.lane.b32.xlu0 %v727, 7
        %v3171 = vpop.permute.xlu0 %3170
        %3172 = vrot.lane.b32.xlu0 %v729, 7
        %v3173 = vpop.permute.xlu0 %3172
        %3174 = vrot.lane.b32.xlu0 %v731, 7
        %v3175 = vpop.permute.xlu0 %3174
        %3176 = vrot.lane.b32.xlu0 %v730, 7
        %v3177 = vpop.permute.xlu0 %3176
        %3178 = vrot.lane.b32.xlu0 %v734, 7
        %v3179 = vpop.permute.xlu0 %3178
        %3180 = vrot.lane.b32.xlu0 %v736, 7
        %v3181 = vpop.permute.xlu0 %3180
        %3182 = vrot.lane.b32.xlu0 %v738, 7
        %v3183 = vpop.permute.xlu0 %3182
        %3184 = vrot.lane.b32.xlu0 %v737, 7
        %v3185 = vpop.permute.xlu0 %3184
        %3186 = vrot.lane.b32.xlu0 %v741, 7
        %v3187 = vpop.permute.xlu0 %3186
        %3188 = vrot.lane.b32.xlu0 %v743, 7
        %v3189 = vpop.permute.xlu0 %3188
        %3190 = vrot.lane.b32.xlu0 %v745, 7
        %v3191 = vpop.permute.xlu0 %3190
        %3192 = vrot.lane.b32.xlu0 %v744, 7
        %v3193 = vpop.permute.xlu0 %3192
        %3194 = vrot.lane.b32.xlu0 %v748, 7
        %v3195 = vpop.permute.xlu0 %3194
        %3196 = vrot.lane.b32.xlu0 %v750, 7
        %v3197 = vpop.permute.xlu0 %3196
        %3198 = vrot.lane.b32.xlu0 %v752, 7
        %v3199 = vpop.permute.xlu0 %3198
        %3200 = vrot.lane.b32.xlu0 %v751, 7
        %v3201 = vpop.permute.xlu0 %3200
        %3202 = vrot.lane.b32.xlu0 %v755, 7
        %v3203 = vpop.permute.xlu0 %3202
        %3204 = vrot.lane.b32.xlu0 %v757, 7
        %v3205 = vpop.permute.xlu0 %3204
        %3206 = vrot.lane.b32.xlu0 %v759, 7
        %v3207 = vpop.permute.xlu0 %3206
        %3208 = vrot.lane.b32.xlu0 %v758, 7
        %v3209 = vpop.permute.xlu0 %3208
        %3210 = vrot.lane.b32.xlu0 %v1971, 7
        %v3211 = vpop.permute.xlu0 %3210
        %3212 = vrot.lane.b32.xlu0 %v1973, 7
        %v3213 = vpop.permute.xlu0 %3212
        %3214 = vrot.lane.b32.xlu0 %v1975, 7
        %v3215 = vpop.permute.xlu0 %3214
        %3216 = vrot.lane.b32.xlu0 %v1974, 7
        %v3217 = vpop.permute.xlu0 %3216
        %3218 = vrot.lane.b32.xlu0 %v2997, 7
        %v3219 = vpop.permute.xlu0 %3218
        %3220 = vrot.lane.b32.xlu0 %v2999, 7
        %v3221 = vpop.permute.xlu0 %3220
        %3222 = vrot.lane.b32.xlu0 %v3001, 7
        %v3223 = vpop.permute.xlu0 %3222
        %3224 = vrot.lane.b32.xlu0 %v3000, 7
        %v3225 = vpop.permute.xlu0 %3224
        %v3338 = vrot.slane %v447, 2
        %v3339 = vrot.slane %v448, 2
        %v3340 = vsel %vm1096, %v3338, %v3339
        %v3341 = vrot.slane %v449, 2
        %v3342 = vsel %vm1096, %v3339, %v3341
        %v3343 = vrot.slane %v450, 2
        %v3344 = vsel %vm1096, %v3341, %v3343
        %3345 = vrot.lane.b32.xlu0 %v1113, 8
        %v3346 = vpop.permute.xlu0 %3345
        %3347 = vrot.lane.b32.xlu0 %v1115, 8
        %v3348 = vpop.permute.xlu0 %3347
        %3349 = vrot.lane.b32.xlu0 %v1117, 8
        %v3350 = vpop.permute.xlu0 %3349
        %3351 = vrot.lane.b32.xlu0 %v1116, 8
        %v3352 = vpop.permute.xlu0 %3351
        %3353 = vrot.lane.b32.xlu0 %v1120, 8
        %v3354 = vpop.permute.xlu0 %3353
        %3355 = vrot.lane.b32.xlu0 %v1122, 8
        %v3356 = vpop.permute.xlu0 %3355
        %3357 = vrot.lane.b32.xlu0 %v1124, 8
        %v3358 = vpop.permute.xlu0 %3357
        %3359 = vrot.lane.b32.xlu0 %v1123, 8
        %v3360 = vpop.permute.xlu0 %3359
        %3361 = vrot.lane.b32.xlu0 %v1127, 8
        %v3362 = vpop.permute.xlu0 %3361
        %3363 = vrot.lane.b32.xlu0 %v1129, 8
        %v3364 = vpop.permute.xlu0 %3363
        %3365 = vrot.lane.b32.xlu0 %v1131, 8
        %v3366 = vpop.permute.xlu0 %3365
        %3367 = vrot.lane.b32.xlu0 %v1130, 8
        %v3368 = vpop.permute.xlu0 %3367
        %3369 = vrot.lane.b32.xlu0 %v1134, 8
        %v3370 = vpop.permute.xlu0 %3369
        %3371 = vrot.lane.b32.xlu0 %v1136, 8
        %v3372 = vpop.permute.xlu0 %3371
        %3373 = vrot.lane.b32.xlu0 %v1138, 8
        %v3374 = vpop.permute.xlu0 %3373
        %3375 = vrot.lane.b32.xlu0 %v1137, 8
        %v3376 = vpop.permute.xlu0 %3375
        %3377 = vrot.lane.b32.xlu0 %v1141, 8
        %v3378 = vpop.permute.xlu0 %3377
        %3379 = vrot.lane.b32.xlu0 %v1143, 8
        %v3380 = vpop.permute.xlu0 %3379
        %3381 = vrot.lane.b32.xlu0 %v1145, 8
        %v3382 = vpop.permute.xlu0 %3381
        %3383 = vrot.lane.b32.xlu0 %v1144, 8
        %v3384 = vpop.permute.xlu0 %3383
        %3385 = vrot.lane.b32.xlu0 %v1148, 8
        %v3386 = vpop.permute.xlu0 %3385
        %3387 = vrot.lane.b32.xlu0 %v1150, 8
        %v3388 = vpop.permute.xlu0 %3387
        %3389 = vrot.lane.b32.xlu0 %v1152, 8
        %v3390 = vpop.permute.xlu0 %3389
        %3391 = vrot.lane.b32.xlu0 %v1151, 8
        %v3392 = vpop.permute.xlu0 %3391
        %3393 = vrot.lane.b32.xlu0 %v1155, 8
        %v3394 = vpop.permute.xlu0 %3393
        %3395 = vrot.lane.b32.xlu0 %v1157, 8
        %v3396 = vpop.permute.xlu0 %3395
        %3397 = vrot.lane.b32.xlu0 %v1159, 8
        %v3398 = vpop.permute.xlu0 %3397
        %3399 = vrot.lane.b32.xlu0 %v1158, 8
        %v3400 = vpop.permute.xlu0 %3399
        %3401 = vrot.lane.b32.xlu0 %v1162, 8
        %v3402 = vpop.permute.xlu0 %3401
        %3403 = vrot.lane.b32.xlu0 %v1164, 8
        %v3404 = vpop.permute.xlu0 %3403
        %3405 = vrot.lane.b32.xlu0 %v1166, 8
        %v3406 = vpop.permute.xlu0 %3405
        %3407 = vrot.lane.b32.xlu0 %v1165, 8
        %v3408 = vpop.permute.xlu0 %3407
        %3409 = vrot.lane.b32.xlu0 %v1169, 8
        %v3410 = vpop.permute.xlu0 %3409
        %3411 = vrot.lane.b32.xlu0 %v1171, 8
        %v3412 = vpop.permute.xlu0 %3411
        %3413 = vrot.lane.b32.xlu0 %v1173, 8
        %v3414 = vpop.permute.xlu0 %3413
        %3415 = vrot.lane.b32.xlu0 %v1172, 8
        %v3416 = vpop.permute.xlu0 %3415
        %3417 = vrot.lane.b32.xlu0 %v1176, 8
        %v3418 = vpop.permute.xlu0 %3417
        %3419 = vrot.lane.b32.xlu0 %v1178, 8
        %v3420 = vpop.permute.xlu0 %3419
        %3421 = vrot.lane.b32.xlu0 %v1180, 8
        %v3422 = vpop.permute.xlu0 %3421
        %3423 = vrot.lane.b32.xlu0 %v1179, 8
        %v3424 = vpop.permute.xlu0 %3423
        %3425 = vrot.lane.b32.xlu0 %v1183, 8
        %v3426 = vpop.permute.xlu0 %3425
        %3427 = vrot.lane.b32.xlu0 %v1185, 8
        %v3428 = vpop.permute.xlu0 %3427
        %3429 = vrot.lane.b32.xlu0 %v1187, 8
        %v3430 = vpop.permute.xlu0 %3429
        %3431 = vrot.lane.b32.xlu0 %v1186, 8
        %v3432 = vpop.permute.xlu0 %3431
        %3433 = vrot.lane.b32.xlu0 %v1190, 8
        %v3434 = vpop.permute.xlu0 %3433
        %3435 = vrot.lane.b32.xlu0 %v1192, 8
        %v3436 = vpop.permute.xlu0 %3435
        %3437 = vrot.lane.b32.xlu0 %v1194, 8
        %v3438 = vpop.permute.xlu0 %3437
        %3439 = vrot.lane.b32.xlu0 %v1193, 8
        %v3440 = vpop.permute.xlu0 %3439
        %3441 = vrot.lane.b32.xlu0 %v1197, 8
        %v3442 = vpop.permute.xlu0 %3441
        %3443 = vrot.lane.b32.xlu0 %v1199, 8
        %v3444 = vpop.permute.xlu0 %3443
        %3445 = vrot.lane.b32.xlu0 %v1201, 8
        %v3446 = vpop.permute.xlu0 %3445
        %3447 = vrot.lane.b32.xlu0 %v1200, 8
        %v3448 = vpop.permute.xlu0 %3447
        %3449 = vrot.lane.b32.xlu0 %v1204, 8
        %v3450 = vpop.permute.xlu0 %3449
        %3451 = vrot.lane.b32.xlu0 %v1206, 8
        %v3452 = vpop.permute.xlu0 %3451
        %3453 = vrot.lane.b32.xlu0 %v1208, 8
        %v3454 = vpop.permute.xlu0 %3453
        %3455 = vrot.lane.b32.xlu0 %v1207, 8
        %v3456 = vpop.permute.xlu0 %3455
        %3457 = vrot.lane.b32.xlu0 %v1211, 8
        %v3458 = vpop.permute.xlu0 %3457
        %3459 = vrot.lane.b32.xlu0 %v1213, 8
        %v3460 = vpop.permute.xlu0 %3459
        %3461 = vrot.lane.b32.xlu0 %v1215, 8
        %v3462 = vpop.permute.xlu0 %3461
        %3463 = vrot.lane.b32.xlu0 %v1214, 8
        %v3464 = vpop.permute.xlu0 %3463
        %3465 = vrot.lane.b32.xlu0 %v1218, 8
        %v3466 = vpop.permute.xlu0 %3465
        %3467 = vrot.lane.b32.xlu0 %v1220, 8
        %v3468 = vpop.permute.xlu0 %3467
        %3469 = vrot.lane.b32.xlu0 %v1222, 8
        %v3470 = vpop.permute.xlu0 %3469
        %3471 = vrot.lane.b32.xlu0 %v1221, 8
        %v3472 = vpop.permute.xlu0 %3471
        %3473 = vrot.lane.b32.xlu0 %v1225, 8
        %v3474 = vpop.permute.xlu0 %3473
        %3475 = vrot.lane.b32.xlu0 %v1227, 8
        %v3476 = vpop.permute.xlu0 %3475
        %3477 = vrot.lane.b32.xlu0 %v1229, 8
        %v3478 = vpop.permute.xlu0 %3477
        %3479 = vrot.lane.b32.xlu0 %v1228, 8
        %v3480 = vpop.permute.xlu0 %3479
        %3481 = vrot.lane.b32.xlu0 %v1232, 8
        %v3482 = vpop.permute.xlu0 %3481
        %3483 = vrot.lane.b32.xlu0 %v1234, 8
        %v3484 = vpop.permute.xlu0 %3483
        %3485 = vrot.lane.b32.xlu0 %v1236, 8
        %v3486 = vpop.permute.xlu0 %3485
        %3487 = vrot.lane.b32.xlu0 %v1235, 8
        %v3488 = vpop.permute.xlu0 %3487
        %3489 = vrot.lane.b32.xlu0 %v1239, 8
        %v3490 = vpop.permute.xlu0 %3489
        %3491 = vrot.lane.b32.xlu0 %v1241, 8
        %v3492 = vpop.permute.xlu0 %3491
        %3493 = vrot.lane.b32.xlu0 %v1243, 8
        %v3494 = vpop.permute.xlu0 %3493
        %3495 = vrot.lane.b32.xlu0 %v1242, 8
        %v3496 = vpop.permute.xlu0 %3495
        %3497 = vrot.lane.b32.xlu0 %v1246, 8
        %v3498 = vpop.permute.xlu0 %3497
        %3499 = vrot.lane.b32.xlu0 %v1248, 8
        %v3500 = vpop.permute.xlu0 %3499
        %3501 = vrot.lane.b32.xlu0 %v1250, 8
        %v3502 = vpop.permute.xlu0 %3501
        %3503 = vrot.lane.b32.xlu0 %v1249, 8
        %v3504 = vpop.permute.xlu0 %3503
        %3505 = vrot.lane.b32.xlu0 %v1253, 8
        %v3506 = vpop.permute.xlu0 %3505
        %3507 = vrot.lane.b32.xlu0 %v1255, 8
        %v3508 = vpop.permute.xlu0 %3507
        %3509 = vrot.lane.b32.xlu0 %v1257, 8
        %v3510 = vpop.permute.xlu0 %3509
        %3511 = vrot.lane.b32.xlu0 %v1256, 8
        %v3512 = vpop.permute.xlu0 %3511
        %3513 = vrot.lane.b32.xlu0 %v1260, 8
        %v3514 = vpop.permute.xlu0 %3513
        %3515 = vrot.lane.b32.xlu0 %v1262, 8
        %v3516 = vpop.permute.xlu0 %3515
        %3517 = vrot.lane.b32.xlu0 %v1264, 8
        %v3518 = vpop.permute.xlu0 %3517
        %3519 = vrot.lane.b32.xlu0 %v1263, 8
        %v3520 = vpop.permute.xlu0 %3519
        %3521 = vrot.lane.b32.xlu0 %v1267, 8
        %v3522 = vpop.permute.xlu0 %3521
        %3523 = vrot.lane.b32.xlu0 %v1269, 8
        %v3524 = vpop.permute.xlu0 %3523
        %3525 = vrot.lane.b32.xlu0 %v1271, 8
        %v3526 = vpop.permute.xlu0 %3525
        %3527 = vrot.lane.b32.xlu0 %v1270, 8
        %v3528 = vpop.permute.xlu0 %3527
        %3529 = vrot.lane.b32.xlu0 %v1274, 8
        %v3530 = vpop.permute.xlu0 %3529
        %3531 = vrot.lane.b32.xlu0 %v1276, 8
        %v3532 = vpop.permute.xlu0 %3531
        %3533 = vrot.lane.b32.xlu0 %v1278, 8
        %v3534 = vpop.permute.xlu0 %3533
        %3535 = vrot.lane.b32.xlu0 %v1277, 8
        %v3536 = vpop.permute.xlu0 %3535
        %3537 = vrot.lane.b32.xlu0 %v1281, 8
        %v3538 = vpop.permute.xlu0 %3537
        %3539 = vrot.lane.b32.xlu0 %v1283, 8
        %v3540 = vpop.permute.xlu0 %3539
        %3541 = vrot.lane.b32.xlu0 %v1285, 8
        %v3542 = vpop.permute.xlu0 %3541
        %3543 = vrot.lane.b32.xlu0 %v1284, 8
        %v3544 = vpop.permute.xlu0 %3543
        %3545 = vrot.lane.b32.xlu0 %v1288, 8
        %v3546 = vpop.permute.xlu0 %3545
        %3547 = vrot.lane.b32.xlu0 %v1290, 8
        %v3548 = vpop.permute.xlu0 %3547
        %3549 = vrot.lane.b32.xlu0 %v1292, 8
        %v3550 = vpop.permute.xlu0 %3549
        %3551 = vrot.lane.b32.xlu0 %v1291, 8
        %v3552 = vpop.permute.xlu0 %3551
        %3553 = vrot.lane.b32.xlu0 %v2314, 8
        %v3554 = vpop.permute.xlu0 %3553
        %3555 = vrot.lane.b32.xlu0 %v2316, 8
        %v3556 = vpop.permute.xlu0 %3555
        %3557 = vrot.lane.b32.xlu0 %v2318, 8
        %v3558 = vpop.permute.xlu0 %3557
        %3559 = vrot.lane.b32.xlu0 %v2317, 8
        %v3560 = vpop.permute.xlu0 %3559
        %3561 = vrot.lane.b32.xlu0 %v3340, 8
        %v3562 = vpop.permute.xlu0 %3561
        %3563 = vrot.lane.b32.xlu0 %v3342, 8
        %v3564 = vpop.permute.xlu0 %3563
        %3565 = vrot.lane.b32.xlu0 %v3344, 8
        %v3566 = vpop.permute.xlu0 %3565
        %3567 = vrot.lane.b32.xlu0 %v3343, 8
        %v3568 = vpop.permute.xlu0 %3567
        %vm3681 = vcmask 7168
        %v3682 = vsel %vm3681, %v331, %v761
        %v3683 = vsel %vm3681, %v332, %v763
        %v3684 = vsel %vm3681, %v333, %v765
        %v3685 = vsel %vm3681, %v334, %v767
        %v3686 = vsel %vm3681, %v335, %v769
        %v3687 = vsel %vm3681, %v336, %v771
        %v3688 = vsel %vm3681, %v337, %v773
        %v3689 = vsel %vm3681, %v338, %v775
        %v3690 = vsel %vm3681, %v339, %v777
        %v3691 = vsel %vm3681, %v340, %v779
        %v3692 = vsel %vm3681, %v341, %v781
        %v3693 = vsel %vm3681, %v342, %v783
        %v3694 = vsel %vm3681, %v343, %v785
        %v3695 = vsel %vm3681, %v344, %v787
        %v3696 = vsel %vm3681, %v345, %v789
        %v3697 = vsel %vm3681, %v346, %v791
        %v3698 = vsel %vm3681, %v347, %v793
        %v3699 = vsel %vm3681, %v348, %v795
        %v3700 = vsel %vm3681, %v349, %v797
        %v3701 = vsel %vm3681, %v350, %v799
        %v3702 = vsel %vm3681, %v351, %v801
        %v3703 = vsel %vm3681, %v352, %v803
        %v3704 = vsel %vm3681, %v353, %v805
        %v3705 = vsel %vm3681, %v354, %v807
        %v3706 = vsel %vm3681, %v355, %v809
        %v3707 = vsel %vm3681, %v356, %v811
        %v3708 = vsel %vm3681, %v357, %v813
        %v3709 = vsel %vm3681, %v358, %v815
        %v3710 = vsel %vm3681, %v359, %v817
        %v3711 = vsel %vm3681, %v360, %v819
        %v3712 = vsel %vm3681, %v361, %v821
        %v3713 = vsel %vm3681, %v362, %v823
        %v3714 = vsel %vm3681, %v363, %v825
        %v3715 = vsel %vm3681, %v364, %v827
        %v3716 = vsel %vm3681, %v365, %v829
        %v3717 = vsel %vm3681, %v366, %v831
        %v3718 = vsel %vm3681, %v367, %v833
        %v3719 = vsel %vm3681, %v368, %v835
        %v3720 = vsel %vm3681, %v369, %v837
        %v3721 = vsel %vm3681, %v370, %v839
        %v3722 = vsel %vm3681, %v371, %v841
        %v3723 = vsel %vm3681, %v372, %v843
        %v3724 = vsel %vm3681, %v373, %v845
        %v3725 = vsel %vm3681, %v374, %v847
        %v3726 = vsel %vm3681, %v375, %v849
        %v3727 = vsel %vm3681, %v376, %v851
        %v3728 = vsel %vm3681, %v377, %v853
        %v3729 = vsel %vm3681, %v378, %v855
        %v3730 = vsel %vm3681, %v379, %v857
        %v3731 = vsel %vm3681, %v380, %v859
        %v3732 = vsel %vm3681, %v381, %v861
        %v3733 = vsel %vm3681, %v382, %v863
        %v3734 = vsel %vm3681, %v383, %v865
        %v3735 = vsel %vm3681, %v384, %v867
        %v3736 = vsel %vm3681, %v385, %v869
        %v3737 = vsel %vm3681, %v386, %v871
        %v3738 = vsel %vm3681, %v387, %v873
        %v3739 = vsel %vm3681, %v388, %v875
        %v3740 = vsel %vm3681, %v389, %v877
        %v3741 = vsel %vm3681, %v390, %v879
        %v3742 = vsel %vm3681, %v391, %v881
        %v3743 = vsel %vm3681, %v392, %v883
        %v3744 = vsel %vm3681, %v393, %v885
        %v3745 = vsel %vm3681, %v394, %v887
        %v3746 = vsel %vm3681, %v395, %v889
        %v3747 = vsel %vm3681, %v396, %v891
        %v3748 = vsel %vm3681, %v397, %v893
        %v3749 = vsel %vm3681, %v398, %v895
        %v3750 = vsel %vm3681, %v399, %v897
        %v3751 = vsel %vm3681, %v400, %v899
        %v3752 = vsel %vm3681, %v401, %v901
        %v3753 = vsel %vm3681, %v402, %v903
        %v3754 = vsel %vm3681, %v403, %v905
        %v3755 = vsel %vm3681, %v404, %v907
        %v3756 = vsel %vm3681, %v405, %v909
        %v3757 = vsel %vm3681, %v406, %v911
        %v3758 = vsel %vm3681, %v407, %v913
        %v3759 = vsel %vm3681, %v408, %v915
        %v3760 = vsel %vm3681, %v409, %v917
        %v3761 = vsel %vm3681, %v410, %v919
        %v3762 = vsel %vm3681, %v411, %v921
        %v3763 = vsel %vm3681, %v412, %v923
        %v3764 = vsel %vm3681, %v413, %v925
        %v3765 = vsel %vm3681, %v414, %v927
        %v3766 = vsel %vm3681, %v415, %v929
        %v3767 = vsel %vm3681, %v416, %v931
        %v3768 = vsel %vm3681, %v417, %v933
        %v3769 = vsel %vm3681, %v418, %v935
        %v3770 = vsel %vm3681, %v419, %v937
        %v3771 = vsel %vm3681, %v420, %v939
        %v3772 = vsel %vm3681, %v421, %v941
        %v3773 = vsel %vm3681, %v422, %v943
        %v3774 = vsel %vm3681, %v423, %v945
        %v3775 = vsel %vm3681, %v424, %v947
        %v3776 = vsel %vm3681, %v425, %v949
        %v3777 = vsel %vm3681, %v426, %v951
        %v3778 = vsel %vm3681, %v427, %v953
        %v3779 = vsel %vm3681, %v428, %v955
        %v3780 = vsel %vm3681, %v429, %v957
        %v3781 = vsel %vm3681, %v430, %v959
        %v3782 = vsel %vm3681, %v431, %v961
        %v3783 = vsel %vm3681, %v432, %v963
        %v3784 = vsel %vm3681, %v433, %v965
        %v3785 = vsel %vm3681, %v434, %v967
        %v3786 = vsel %vm3681, %v435, %v969
        %v3787 = vsel %vm3681, %v436, %v971
        %v3788 = vsel %vm3681, %v437, %v973
        %v3789 = vsel %vm3681, %v438, %v975
        %v3790 = vsel %vm3681, %v439, %v977
        %v3791 = vsel %vm3681, %v440, %v979
        %v3792 = vsel %vm3681, %v441, %v981
        %v3793 = vsel %vm3681, %v442, %v983
        %vm3794 = vcmask 15360
        %v3795 = vsel %vm3794, %v3682, %v1294
        %v3796 = vsel %vm3794, %v3683, %v1296
        %v3797 = vsel %vm3794, %v3684, %v1298
        %v3798 = vsel %vm3794, %v3685, %v1300
        %v3799 = vsel %vm3794, %v3686, %v1302
        %v3800 = vsel %vm3794, %v3687, %v1304
        %v3801 = vsel %vm3794, %v3688, %v1306
        %v3802 = vsel %vm3794, %v3689, %v1308
        %v3803 = vsel %vm3794, %v3690, %v1310
        %v3804 = vsel %vm3794, %v3691, %v1312
        %v3805 = vsel %vm3794, %v3692, %v1314
        %v3806 = vsel %vm3794, %v3693, %v1316
        %v3807 = vsel %vm3794, %v3694, %v1318
        %v3808 = vsel %vm3794, %v3695, %v1320
        %v3809 = vsel %vm3794, %v3696, %v1322
        %v3810 = vsel %vm3794, %v3697, %v1324
        %v3811 = vsel %vm3794, %v3698, %v1326
        %v3812 = vsel %vm3794, %v3699, %v1328
        %v3813 = vsel %vm3794, %v3700, %v1330
        %v3814 = vsel %vm3794, %v3701, %v1332
        %v3815 = vsel %vm3794, %v3702, %v1334
        %v3816 = vsel %vm3794, %v3703, %v1336
        %v3817 = vsel %vm3794, %v3704, %v1338
        %v3818 = vsel %vm3794, %v3705, %v1340
        %v3819 = vsel %vm3794, %v3706, %v1342
        %v3820 = vsel %vm3794, %v3707, %v1344
        %v3821 = vsel %vm3794, %v3708, %v1346
        %v3822 = vsel %vm3794, %v3709, %v1348
        %v3823 = vsel %vm3794, %v3710, %v1350
        %v3824 = vsel %vm3794, %v3711, %v1352
        %v3825 = vsel %vm3794, %v3712, %v1354
        %v3826 = vsel %vm3794, %v3713, %v1356
        %v3827 = vsel %vm3794, %v3714, %v1358
        %v3828 = vsel %vm3794, %v3715, %v1360
        %v3829 = vsel %vm3794, %v3716, %v1362
        %v3830 = vsel %vm3794, %v3717, %v1364
        %v3831 = vsel %vm3794, %v3718, %v1366
        %v3832 = vsel %vm3794, %v3719, %v1368
        %v3833 = vsel %vm3794, %v3720, %v1370
        %v3834 = vsel %vm3794, %v3721, %v1372
        %v3835 = vsel %vm3794, %v3722, %v1374
        %v3836 = vsel %vm3794, %v3723, %v1376
        %v3837 = vsel %vm3794, %v3724, %v1378
        %v3838 = vsel %vm3794, %v3725, %v1380
        %v3839 = vsel %vm3794, %v3726, %v1382
        %v3840 = vsel %vm3794, %v3727, %v1384
        %v3841 = vsel %vm3794, %v3728, %v1386
        %v3842 = vsel %vm3794, %v3729, %v1388
        %v3843 = vsel %vm3794, %v3730, %v1390
        %v3844 = vsel %vm3794, %v3731, %v1392
        %v3845 = vsel %vm3794, %v3732, %v1394
        %v3846 = vsel %vm3794, %v3733, %v1396
        %v3847 = vsel %vm3794, %v3734, %v1398
        %v3848 = vsel %vm3794, %v3735, %v1400
        %v3849 = vsel %vm3794, %v3736, %v1402
        %v3850 = vsel %vm3794, %v3737, %v1404
        %v3851 = vsel %vm3794, %v3738, %v1406
        %v3852 = vsel %vm3794, %v3739, %v1408
        %v3853 = vsel %vm3794, %v3740, %v1410
        %v3854 = vsel %vm3794, %v3741, %v1412
        %v3855 = vsel %vm3794, %v3742, %v1414
        %v3856 = vsel %vm3794, %v3743, %v1416
        %v3857 = vsel %vm3794, %v3744, %v1418
        %v3858 = vsel %vm3794, %v3745, %v1420
        %v3859 = vsel %vm3794, %v3746, %v1422
        %v3860 = vsel %vm3794, %v3747, %v1424
        %v3861 = vsel %vm3794, %v3748, %v1426
        %v3862 = vsel %vm3794, %v3749, %v1428
        %v3863 = vsel %vm3794, %v3750, %v1430
        %v3864 = vsel %vm3794, %v3751, %v1432
        %v3865 = vsel %vm3794, %v3752, %v1434
        %v3866 = vsel %vm3794, %v3753, %v1436
        %v3867 = vsel %vm3794, %v3754, %v1438
        %v3868 = vsel %vm3794, %v3755, %v1440
        %v3869 = vsel %vm3794, %v3756, %v1442
        %v3870 = vsel %vm3794, %v3757, %v1444
        %v3871 = vsel %vm3794, %v3758, %v1446
        %v3872 = vsel %vm3794, %v3759, %v1448
        %v3873 = vsel %vm3794, %v3760, %v1450
        %v3874 = vsel %vm3794, %v3761, %v1452
        %v3875 = vsel %vm3794, %v3762, %v1454
        %v3876 = vsel %vm3794, %v3763, %v1456
        %v3877 = vsel %vm3794, %v3764, %v1458
        %v3878 = vsel %vm3794, %v3765, %v1460
        %v3879 = vsel %vm3794, %v3766, %v1462
        %v3880 = vsel %vm3794, %v3767, %v1464
        %v3881 = vsel %vm3794, %v3768, %v1466
        %v3882 = vsel %vm3794, %v3769, %v1468
        %v3883 = vsel %vm3794, %v3770, %v1470
        %v3884 = vsel %vm3794, %v3771, %v1472
        %v3885 = vsel %vm3794, %v3772, %v1474
        %v3886 = vsel %vm3794, %v3773, %v1476
        %v3887 = vsel %vm3794, %v3774, %v1478
        %v3888 = vsel %vm3794, %v3775, %v1480
        %v3889 = vsel %vm3794, %v3776, %v1482
        %v3890 = vsel %vm3794, %v3777, %v1484
        %v3891 = vsel %vm3794, %v3778, %v1486
        %v3892 = vsel %vm3794, %v3779, %v1488
        %v3893 = vsel %vm3794, %v3780, %v1490
        %v3894 = vsel %vm3794, %v3781, %v1492
        %v3895 = vsel %vm3794, %v3782, %v1494
        %v3896 = vsel %vm3794, %v3783, %v1496
        %v3897 = vsel %vm3794, %v3784, %v1498
        %v3898 = vsel %vm3794, %v3785, %v1500
        %v3899 = vsel %vm3794, %v3786, %v1502
        %v3900 = vsel %vm3794, %v3787, %v1504
        %v3901 = vsel %vm3794, %v3788, %v1506
        %v3902 = vsel %vm3794, %v3789, %v1508
        %v3903 = vsel %vm3794, %v3790, %v1510
        %v3904 = vsel %vm3794, %v3791, %v1512
        %v3905 = vsel %vm3794, %v3792, %v1514
        %v3906 = vsel %vm3794, %v3793, %v1516
        %vm3907 = vcmask 23552
        %v3908 = vsel %vm3907, %v3795, %v1634
        %v3909 = vsel %vm3907, %v3796, %v1636
        %v3910 = vsel %vm3907, %v3797, %v1638
        %v3911 = vsel %vm3907, %v3798, %v1640
        %v3912 = vsel %vm3907, %v3799, %v1642
        %v3913 = vsel %vm3907, %v3800, %v1644
        %v3914 = vsel %vm3907, %v3801, %v1646
        %v3915 = vsel %vm3907, %v3802, %v1648
        %v3916 = vsel %vm3907, %v3803, %v1650
        %v3917 = vsel %vm3907, %v3804, %v1652
        %v3918 = vsel %vm3907, %v3805, %v1654
        %v3919 = vsel %vm3907, %v3806, %v1656
        %v3920 = vsel %vm3907, %v3807, %v1658
        %v3921 = vsel %vm3907, %v3808, %v1660
        %v3922 = vsel %vm3907, %v3809, %v1662
        %v3923 = vsel %vm3907, %v3810, %v1664
        %v3924 = vsel %vm3907, %v3811, %v1666
        %v3925 = vsel %vm3907, %v3812, %v1668
        %v3926 = vsel %vm3907, %v3813, %v1670
        %v3927 = vsel %vm3907, %v3814, %v1672
        %v3928 = vsel %vm3907, %v3815, %v1674
        %v3929 = vsel %vm3907, %v3816, %v1676
        %v3930 = vsel %vm3907, %v3817, %v1678
        %v3931 = vsel %vm3907, %v3818, %v1680
        %v3932 = vsel %vm3907, %v3819, %v1682
        %v3933 = vsel %vm3907, %v3820, %v1684
        %v3934 = vsel %vm3907, %v3821, %v1686
        %v3935 = vsel %vm3907, %v3822, %v1688
        %v3936 = vsel %vm3907, %v3823, %v1690
        %v3937 = vsel %vm3907, %v3824, %v1692
        %v3938 = vsel %vm3907, %v3825, %v1694
        %v3939 = vsel %vm3907, %v3826, %v1696
        %v3940 = vsel %vm3907, %v3827, %v1698
        %v3941 = vsel %vm3907, %v3828, %v1700
        %v3942 = vsel %vm3907, %v3829, %v1702
        %v3943 = vsel %vm3907, %v3830, %v1704
        %v3944 = vsel %vm3907, %v3831, %v1706
        %v3945 = vsel %vm3907, %v3832, %v1708
        %v3946 = vsel %vm3907, %v3833, %v1710
        %v3947 = vsel %vm3907, %v3834, %v1712
        %v3948 = vsel %vm3907, %v3835, %v1714
        %v3949 = vsel %vm3907, %v3836, %v1716
        %v3950 = vsel %vm3907, %v3837, %v1718
        %v3951 = vsel %vm3907, %v3838, %v1720
        %v3952 = vsel %vm3907, %v3839, %v1722
        %v3953 = vsel %vm3907, %v3840, %v1724
        %v3954 = vsel %vm3907, %v3841, %v1726
        %v3955 = vsel %vm3907, %v3842, %v1728
        %v3956 = vsel %vm3907, %v3843, %v1730
        %v3957 = vsel %vm3907, %v3844, %v1732
        %v3958 = vsel %vm3907, %v3845, %v1734
        %v3959 = vsel %vm3907, %v3846, %v1736
        %v3960 = vsel %vm3907, %v3847, %v1738
        %v3961 = vsel %vm3907, %v3848, %v1740
        %v3962 = vsel %vm3907, %v3849, %v1742
        %v3963 = vsel %vm3907, %v3850, %v1744
        %v3964 = vsel %vm3907, %v3851, %v1746
        %v3965 = vsel %vm3907, %v3852, %v1748
        %v3966 = vsel %vm3907, %v3853, %v1750
        %v3967 = vsel %vm3907, %v3854, %v1752
        %v3968 = vsel %vm3907, %v3855, %v1754
        %v3969 = vsel %vm3907, %v3856, %v1756
        %v3970 = vsel %vm3907, %v3857, %v1758
        %v3971 = vsel %vm3907, %v3858, %v1760
        %v3972 = vsel %vm3907, %v3859, %v1762
        %v3973 = vsel %vm3907, %v3860, %v1764
        %v3974 = vsel %vm3907, %v3861, %v1766
        %v3975 = vsel %vm3907, %v3862, %v1768
        %v3976 = vsel %vm3907, %v3863, %v1770
        %v3977 = vsel %vm3907, %v3864, %v1772
        %v3978 = vsel %vm3907, %v3865, %v1774
        %v3979 = vsel %vm3907, %v3866, %v1776
        %v3980 = vsel %vm3907, %v3867, %v1778
        %v3981 = vsel %vm3907, %v3868, %v1780
        %v3982 = vsel %vm3907, %v3869, %v1782
        %v3983 = vsel %vm3907, %v3870, %v1784
        %v3984 = vsel %vm3907, %v3871, %v1786
        %v3985 = vsel %vm3907, %v3872, %v1788
        %v3986 = vsel %vm3907, %v3873, %v1790
        %v3987 = vsel %vm3907, %v3874, %v1792
        %v3988 = vsel %vm3907, %v3875, %v1794
        %v3989 = vsel %vm3907, %v3876, %v1796
        %v3990 = vsel %vm3907, %v3877, %v1798
        %v3991 = vsel %vm3907, %v3878, %v1800
        %v3992 = vsel %vm3907, %v3879, %v1802
        %v3993 = vsel %vm3907, %v3880, %v1804
        %v3994 = vsel %vm3907, %v3881, %v1806
        %v3995 = vsel %vm3907, %v3882, %v1808
        %v3996 = vsel %vm3907, %v3883, %v1810
        %v3997 = vsel %vm3907, %v3884, %v1812
        %v3998 = vsel %vm3907, %v3885, %v1814
        %v3999 = vsel %vm3907, %v3886, %v1816
        %v4000 = vsel %vm3907, %v3887, %v1818
        %v4001 = vsel %vm3907, %v3888, %v1820
        %v4002 = vsel %vm3907, %v3889, %v1822
        %v4003 = vsel %vm3907, %v3890, %v1824
        %v4004 = vsel %vm3907, %v3891, %v1826
        %v4005 = vsel %vm3907, %v3892, %v1828
        %v4006 = vsel %vm3907, %v3893, %v1830
        %v4007 = vsel %vm3907, %v3894, %v1832
        %v4008 = vsel %vm3907, %v3895, %v1834
        %v4009 = vsel %vm3907, %v3896, %v1836
        %v4010 = vsel %vm3907, %v3897, %v1838
        %v4011 = vsel %vm3907, %v3898, %v1840
        %v4012 = vsel %vm3907, %v3899, %v1842
        %v4013 = vsel %vm3907, %v3900, %v1844
        %v4014 = vsel %vm3907, %v3901, %v1846
        %v4015 = vsel %vm3907, %v3902, %v1848
        %v4016 = vsel %vm3907, %v3903, %v1850
        %v4017 = vsel %vm3907, %v3904, %v1852
        %v4018 = vsel %vm3907, %v3905, %v1854
        %v4019 = vsel %vm3907, %v3906, %v1856
        %vm4020 = vcmask 31744
        %v4021 = vsel %vm4020, %v3908, %v1977
        %v4022 = vsel %vm4020, %v3909, %v1979
        %v4023 = vsel %vm4020, %v3910, %v1981
        %v4024 = vsel %vm4020, %v3911, %v1983
        %v4025 = vsel %vm4020, %v3912, %v1985
        %v4026 = vsel %vm4020, %v3913, %v1987
        %v4027 = vsel %vm4020, %v3914, %v1989
        %v4028 = vsel %vm4020, %v3915, %v1991
        %v4029 = vsel %vm4020, %v3916, %v1993
        %v4030 = vsel %vm4020, %v3917, %v1995
        %v4031 = vsel %vm4020, %v3918, %v1997
        %v4032 = vsel %vm4020, %v3919, %v1999
        %v4033 = vsel %vm4020, %v3920, %v2001
        %v4034 = vsel %vm4020, %v3921, %v2003
        %v4035 = vsel %vm4020, %v3922, %v2005
        %v4036 = vsel %vm4020, %v3923, %v2007
        %v4037 = vsel %vm4020, %v3924, %v2009
        %v4038 = vsel %vm4020, %v3925, %v2011
        %v4039 = vsel %vm4020, %v3926, %v2013
        %v4040 = vsel %vm4020, %v3927, %v2015
        %v4041 = vsel %vm4020, %v3928, %v2017
        %v4042 = vsel %vm4020, %v3929, %v2019
        %v4043 = vsel %vm4020, %v3930, %v2021
        %v4044 = vsel %vm4020, %v3931, %v2023
        %v4045 = vsel %vm4020, %v3932, %v2025
        %v4046 = vsel %vm4020, %v3933, %v2027
        %v4047 = vsel %vm4020, %v3934, %v2029
        %v4048 = vsel %vm4020, %v3935, %v2031
        %v4049 = vsel %vm4020, %v3936, %v2033
        %v4050 = vsel %vm4020, %v3937, %v2035
        %v4051 = vsel %vm4020, %v3938, %v2037
        %v4052 = vsel %vm4020, %v3939, %v2039
        %v4053 = vsel %vm4020, %v3940, %v2041
        %v4054 = vsel %vm4020, %v3941, %v2043
        %v4055 = vsel %vm4020, %v3942, %v2045
        %v4056 = vsel %vm4020, %v3943, %v2047
        %v4057 = vsel %vm4020, %v3944, %v2049
        %v4058 = vsel %vm4020, %v3945, %v2051
        %v4059 = vsel %vm4020, %v3946, %v2053
        %v4060 = vsel %vm4020, %v3947, %v2055
        %v4061 = vsel %vm4020, %v3948, %v2057
        %v4062 = vsel %vm4020, %v3949, %v2059
        %v4063 = vsel %vm4020, %v3950, %v2061
        %v4064 = vsel %vm4020, %v3951, %v2063
        %v4065 = vsel %vm4020, %v3952, %v2065
        %v4066 = vsel %vm4020, %v3953, %v2067
        %v4067 = vsel %vm4020, %v3954, %v2069
        %v4068 = vsel %vm4020, %v3955, %v2071
        %v4069 = vsel %vm4020, %v3956, %v2073
        %v4070 = vsel %vm4020, %v3957, %v2075
        %v4071 = vsel %vm4020, %v3958, %v2077
        %v4072 = vsel %vm4020, %v3959, %v2079
        %v4073 = vsel %vm4020, %v3960, %v2081
        %v4074 = vsel %vm4020, %v3961, %v2083
        %v4075 = vsel %vm4020, %v3962, %v2085
        %v4076 = vsel %vm4020, %v3963, %v2087
        %v4077 = vsel %vm4020, %v3964, %v2089
        %v4078 = vsel %vm4020, %v3965, %v2091
        %v4079 = vsel %vm4020, %v3966, %v2093
        %v4080 = vsel %vm4020, %v3967, %v2095
        %v4081 = vsel %vm4020, %v3968, %v2097
        %v4082 = vsel %vm4020, %v3969, %v2099
        %v4083 = vsel %vm4020, %v3970, %v2101
        %v4084 = vsel %vm4020, %v3971, %v2103
        %v4085 = vsel %vm4020, %v3972, %v2105
        %v4086 = vsel %vm4020, %v3973, %v2107
        %v4087 = vsel %vm4020, %v3974, %v2109
        %v4088 = vsel %vm4020, %v3975, %v2111
        %v4089 = vsel %vm4020, %v3976, %v2113
        %v4090 = vsel %vm4020, %v3977, %v2115
        %v4091 = vsel %vm4020, %v3978, %v2117
        %v4092 = vsel %vm4020, %v3979, %v2119
        %v4093 = vsel %vm4020, %v3980, %v2121
        %v4094 = vsel %vm4020, %v3981, %v2123
        %v4095 = vsel %vm4020, %v3982, %v2125
        %v4096 = vsel %vm4020, %v3983, %v2127
        %v4097 = vsel %vm4020, %v3984, %v2129
        %v4098 = vsel %vm4020, %v3985, %v2131
        %v4099 = vsel %vm4020, %v3986, %v2133
        %v4100 = vsel %vm4020, %v3987, %v2135
        %v4101 = vsel %vm4020, %v3988, %v2137
        %v4102 = vsel %vm4020, %v3989, %v2139
        %v4103 = vsel %vm4020, %v3990, %v2141
        %v4104 = vsel %vm4020, %v3991, %v2143
        %v4105 = vsel %vm4020, %v3992, %v2145
        %v4106 = vsel %vm4020, %v3993, %v2147
        %v4107 = vsel %vm4020, %v3994, %v2149
        %v4108 = vsel %vm4020, %v3995, %v2151
        %v4109 = vsel %vm4020, %v3996, %v2153
        %v4110 = vsel %vm4020, %v3997, %v2155
        %v4111 = vsel %vm4020, %v3998, %v2157
        %v4112 = vsel %vm4020, %v3999, %v2159
        %v4113 = vsel %vm4020, %v4000, %v2161
        %v4114 = vsel %vm4020, %v4001, %v2163
        %v4115 = vsel %vm4020, %v4002, %v2165
        %v4116 = vsel %vm4020, %v4003, %v2167
        %v4117 = vsel %vm4020, %v4004, %v2169
        %v4118 = vsel %vm4020, %v4005, %v2171
        %v4119 = vsel %vm4020, %v4006, %v2173
        %v4120 = vsel %vm4020, %v4007, %v2175
        %v4121 = vsel %vm4020, %v4008, %v2177
        %v4122 = vsel %vm4020, %v4009, %v2179
        %v4123 = vsel %vm4020, %v4010, %v2181
        %v4124 = vsel %vm4020, %v4011, %v2183
        %v4125 = vsel %vm4020, %v4012, %v2185
        %v4126 = vsel %vm4020, %v4013, %v2187
        %v4127 = vsel %vm4020, %v4014, %v2189
        %v4128 = vsel %vm4020, %v4015, %v2191
        %v4129 = vsel %vm4020, %v4016, %v2193
        %v4130 = vsel %vm4020, %v4017, %v2195
        %v4131 = vsel %vm4020, %v4018, %v2197
        %v4132 = vsel %vm4020, %v4019, %v2199
        %vm4133 = vcmask 39936
        %v4134 = vsel %vm4133, %v4021, %v2320
        %v4135 = vsel %vm4133, %v4022, %v2322
        %v4136 = vsel %vm4133, %v4023, %v2324
        %v4137 = vsel %vm4133, %v4024, %v2326
        %v4138 = vsel %vm4133, %v4025, %v2328
        %v4139 = vsel %vm4133, %v4026, %v2330
        %v4140 = vsel %vm4133, %v4027, %v2332
        %v4141 = vsel %vm4133, %v4028, %v2334
        %v4142 = vsel %vm4133, %v4029, %v2336
        %v4143 = vsel %vm4133, %v4030, %v2338
        %v4144 = vsel %vm4133, %v4031, %v2340
        %v4145 = vsel %vm4133, %v4032, %v2342
        %v4146 = vsel %vm4133, %v4033, %v2344
        %v4147 = vsel %vm4133, %v4034, %v2346
        %v4148 = vsel %vm4133, %v4035, %v2348
        %v4149 = vsel %vm4133, %v4036, %v2350
        %v4150 = vsel %vm4133, %v4037, %v2352
        %v4151 = vsel %vm4133, %v4038, %v2354
        %v4152 = vsel %vm4133, %v4039, %v2356
        %v4153 = vsel %vm4133, %v4040, %v2358
        %v4154 = vsel %vm4133, %v4041, %v2360
        %v4155 = vsel %vm4133, %v4042, %v2362
        %v4156 = vsel %vm4133, %v4043, %v2364
        %v4157 = vsel %vm4133, %v4044, %v2366
        %v4158 = vsel %vm4133, %v4045, %v2368
        %v4159 = vsel %vm4133, %v4046, %v2370
        %v4160 = vsel %vm4133, %v4047, %v2372
        %v4161 = vsel %vm4133, %v4048, %v2374
        %v4162 = vsel %vm4133, %v4049, %v2376
        %v4163 = vsel %vm4133, %v4050, %v2378
        %v4164 = vsel %vm4133, %v4051, %v2380
        %v4165 = vsel %vm4133, %v4052, %v2382
        %v4166 = vsel %vm4133, %v4053, %v2384
        %v4167 = vsel %vm4133, %v4054, %v2386
        %v4168 = vsel %vm4133, %v4055, %v2388
        %v4169 = vsel %vm4133, %v4056, %v2390
        %v4170 = vsel %vm4133, %v4057, %v2392
        %v4171 = vsel %vm4133, %v4058, %v2394
        %v4172 = vsel %vm4133, %v4059, %v2396
        %v4173 = vsel %vm4133, %v4060, %v2398
        %v4174 = vsel %vm4133, %v4061, %v2400
        %v4175 = vsel %vm4133, %v4062, %v2402
        %v4176 = vsel %vm4133, %v4063, %v2404
        %v4177 = vsel %vm4133, %v4064, %v2406
        %v4178 = vsel %vm4133, %v4065, %v2408
        %v4179 = vsel %vm4133, %v4066, %v2410
        %v4180 = vsel %vm4133, %v4067, %v2412
        %v4181 = vsel %vm4133, %v4068, %v2414
        %v4182 = vsel %vm4133, %v4069, %v2416
        %v4183 = vsel %vm4133, %v4070, %v2418
        %v4184 = vsel %vm4133, %v4071, %v2420
        %v4185 = vsel %vm4133, %v4072, %v2422
        %v4186 = vsel %vm4133, %v4073, %v2424
        %v4187 = vsel %vm4133, %v4074, %v2426
        %v4188 = vsel %vm4133, %v4075, %v2428
        %v4189 = vsel %vm4133, %v4076, %v2430
        %v4190 = vsel %vm4133, %v4077, %v2432
        %v4191 = vsel %vm4133, %v4078, %v2434
        %v4192 = vsel %vm4133, %v4079, %v2436
        %v4193 = vsel %vm4133, %v4080, %v2438
        %v4194 = vsel %vm4133, %v4081, %v2440
        %v4195 = vsel %vm4133, %v4082, %v2442
        %v4196 = vsel %vm4133, %v4083, %v2444
        %v4197 = vsel %vm4133, %v4084, %v2446
        %v4198 = vsel %vm4133, %v4085, %v2448
        %v4199 = vsel %vm4133, %v4086, %v2450
        %v4200 = vsel %vm4133, %v4087, %v2452
        %v4201 = vsel %vm4133, %v4088, %v2454
        %v4202 = vsel %vm4133, %v4089, %v2456
        %v4203 = vsel %vm4133, %v4090, %v2458
        %v4204 = vsel %vm4133, %v4091, %v2460
        %v4205 = vsel %vm4133, %v4092, %v2462
        %v4206 = vsel %vm4133, %v4093, %v2464
        %v4207 = vsel %vm4133, %v4094, %v2466
        %v4208 = vsel %vm4133, %v4095, %v2468
        %v4209 = vsel %vm4133, %v4096, %v2470
        %v4210 = vsel %vm4133, %v4097, %v2472
        %v4211 = vsel %vm4133, %v4098, %v2474
        %v4212 = vsel %vm4133, %v4099, %v2476
        %v4213 = vsel %vm4133, %v4100, %v2478
        %v4214 = vsel %vm4133, %v4101, %v2480
        %v4215 = vsel %vm4133, %v4102, %v2482
        %v4216 = vsel %vm4133, %v4103, %v2484
        %v4217 = vsel %vm4133, %v4104, %v2486
        %v4218 = vsel %vm4133, %v4105, %v2488
        %v4219 = vsel %vm4133, %v4106, %v2490
        %v4220 = vsel %vm4133, %v4107, %v2492
        %v4221 = vsel %vm4133, %v4108, %v2494
        %v4222 = vsel %vm4133, %v4109, %v2496
        %v4223 = vsel %vm4133, %v4110, %v2498
        %v4224 = vsel %vm4133, %v4111, %v2500
        %v4225 = vsel %vm4133, %v4112, %v2502
        %v4226 = vsel %vm4133, %v4113, %v2504
        %v4227 = vsel %vm4133, %v4114, %v2506
        %v4228 = vsel %vm4133, %v4115, %v2508
        %v4229 = vsel %vm4133, %v4116, %v2510
        %v4230 = vsel %vm4133, %v4117, %v2512
        %v4231 = vsel %vm4133, %v4118, %v2514
        %v4232 = vsel %vm4133, %v4119, %v2516
        %v4233 = vsel %vm4133, %v4120, %v2518
        %v4234 = vsel %vm4133, %v4121, %v2520
        %v4235 = vsel %vm4133, %v4122, %v2522
        %v4236 = vsel %vm4133, %v4123, %v2524
        %v4237 = vsel %vm4133, %v4124, %v2526
        %v4238 = vsel %vm4133, %v4125, %v2528
        %v4239 = vsel %vm4133, %v4126, %v2530
        %v4240 = vsel %vm4133, %v4127, %v2532
        %v4241 = vsel %vm4133, %v4128, %v2534
        %v4242 = vsel %vm4133, %v4129, %v2536
        %v4243 = vsel %vm4133, %v4130, %v2538
        %v4244 = vsel %vm4133, %v4131, %v2540
        %v4245 = vsel %vm4133, %v4132, %v2542
        %vm4246 = vcmask 48128
        %v4247 = vsel %vm4246, %v4134, %v2660
        %v4248 = vsel %vm4246, %v4135, %v2662
        %v4249 = vsel %vm4246, %v4136, %v2664
        %v4250 = vsel %vm4246, %v4137, %v2666
        %v4251 = vsel %vm4246, %v4138, %v2668
        %v4252 = vsel %vm4246, %v4139, %v2670
        %v4253 = vsel %vm4246, %v4140, %v2672
        %v4254 = vsel %vm4246, %v4141, %v2674
        %v4255 = vsel %vm4246, %v4142, %v2676
        %v4256 = vsel %vm4246, %v4143, %v2678
        %v4257 = vsel %vm4246, %v4144, %v2680
        %v4258 = vsel %vm4246, %v4145, %v2682
        %v4259 = vsel %vm4246, %v4146, %v2684
        %v4260 = vsel %vm4246, %v4147, %v2686
        %v4261 = vsel %vm4246, %v4148, %v2688
        %v4262 = vsel %vm4246, %v4149, %v2690
        %v4263 = vsel %vm4246, %v4150, %v2692
        %v4264 = vsel %vm4246, %v4151, %v2694
        %v4265 = vsel %vm4246, %v4152, %v2696
        %v4266 = vsel %vm4246, %v4153, %v2698
        %v4267 = vsel %vm4246, %v4154, %v2700
        %v4268 = vsel %vm4246, %v4155, %v2702
        %v4269 = vsel %vm4246, %v4156, %v2704
        %v4270 = vsel %vm4246, %v4157, %v2706
        %v4271 = vsel %vm4246, %v4158, %v2708
        %v4272 = vsel %vm4246, %v4159, %v2710
        %v4273 = vsel %vm4246, %v4160, %v2712
        %v4274 = vsel %vm4246, %v4161, %v2714
        %v4275 = vsel %vm4246, %v4162, %v2716
        %v4276 = vsel %vm4246, %v4163, %v2718
        %v4277 = vsel %vm4246, %v4164, %v2720
        %v4278 = vsel %vm4246, %v4165, %v2722
        %v4279 = vsel %vm4246, %v4166, %v2724
        %v4280 = vsel %vm4246, %v4167, %v2726
        %v4281 = vsel %vm4246, %v4168, %v2728
        %v4282 = vsel %vm4246, %v4169, %v2730
        %v4283 = vsel %vm4246, %v4170, %v2732
        %v4284 = vsel %vm4246, %v4171, %v2734
        %v4285 = vsel %vm4246, %v4172, %v2736
        %v4286 = vsel %vm4246, %v4173, %v2738
        %v4287 = vsel %vm4246, %v4174, %v2740
        %v4288 = vsel %vm4246, %v4175, %v2742
        %v4289 = vsel %vm4246, %v4176, %v2744
        %v4290 = vsel %vm4246, %v4177, %v2746
        %v4291 = vsel %vm4246, %v4178, %v2748
        %v4292 = vsel %vm4246, %v4179, %v2750
        %v4293 = vsel %vm4246, %v4180, %v2752
        %v4294 = vsel %vm4246, %v4181, %v2754
        %v4295 = vsel %vm4246, %v4182, %v2756
        %v4296 = vsel %vm4246, %v4183, %v2758
        %v4297 = vsel %vm4246, %v4184, %v2760
        %v4298 = vsel %vm4246, %v4185, %v2762
        %v4299 = vsel %vm4246, %v4186, %v2764
        %v4300 = vsel %vm4246, %v4187, %v2766
        %v4301 = vsel %vm4246, %v4188, %v2768
        %v4302 = vsel %vm4246, %v4189, %v2770
        %v4303 = vsel %vm4246, %v4190, %v2772
        %v4304 = vsel %vm4246, %v4191, %v2774
        %v4305 = vsel %vm4246, %v4192, %v2776
        %v4306 = vsel %vm4246, %v4193, %v2778
        %v4307 = vsel %vm4246, %v4194, %v2780
        %v4308 = vsel %vm4246, %v4195, %v2782
        %v4309 = vsel %vm4246, %v4196, %v2784
        %v4310 = vsel %vm4246, %v4197, %v2786
        %v4311 = vsel %vm4246, %v4198, %v2788
        %v4312 = vsel %vm4246, %v4199, %v2790
        %v4313 = vsel %vm4246, %v4200, %v2792
        %v4314 = vsel %vm4246, %v4201, %v2794
        %v4315 = vsel %vm4246, %v4202, %v2796
        %v4316 = vsel %vm4246, %v4203, %v2798
        %v4317 = vsel %vm4246, %v4204, %v2800
        %v4318 = vsel %vm4246, %v4205, %v2802
        %v4319 = vsel %vm4246, %v4206, %v2804
        %v4320 = vsel %vm4246, %v4207, %v2806
        %v4321 = vsel %vm4246, %v4208, %v2808
        %v4322 = vsel %vm4246, %v4209, %v2810
        %v4323 = vsel %vm4246, %v4210, %v2812
        %v4324 = vsel %vm4246, %v4211, %v2814
        %v4325 = vsel %vm4246, %v4212, %v2816
        %v4326 = vsel %vm4246, %v4213, %v2818
        %v4327 = vsel %vm4246, %v4214, %v2820
        %v4328 = vsel %vm4246, %v4215, %v2822
        %v4329 = vsel %vm4246, %v4216, %v2824
        %v4330 = vsel %vm4246, %v4217, %v2826
        %v4331 = vsel %vm4246, %v4218, %v2828
        %v4332 = vsel %vm4246, %v4219, %v2830
        %v4333 = vsel %vm4246, %v4220, %v2832
        %v4334 = vsel %vm4246, %v4221, %v2834
        %v4335 = vsel %vm4246, %v4222, %v2836
        %v4336 = vsel %vm4246, %v4223, %v2838
        %v4337 = vsel %vm4246, %v4224, %v2840
        %v4338 = vsel %vm4246, %v4225, %v2842
        %v4339 = vsel %vm4246, %v4226, %v2844
        %v4340 = vsel %vm4246, %v4227, %v2846
        %v4341 = vsel %vm4246, %v4228, %v2848
        %v4342 = vsel %vm4246, %v4229, %v2850
        %v4343 = vsel %vm4246, %v4230, %v2852
        %v4344 = vsel %vm4246, %v4231, %v2854
        %v4345 = vsel %vm4246, %v4232, %v2856
        %v4346 = vsel %vm4246, %v4233, %v2858
        %v4347 = vsel %vm4246, %v4234, %v2860
        %v4348 = vsel %vm4246, %v4235, %v2862
        %v4349 = vsel %vm4246, %v4236, %v2864
        %v4350 = vsel %vm4246, %v4237, %v2866
        %v4351 = vsel %vm4246, %v4238, %v2868
        %v4352 = vsel %vm4246, %v4239, %v2870
        %v4353 = vsel %vm4246, %v4240, %v2872
        %v4354 = vsel %vm4246, %v4241, %v2874
        %v4355 = vsel %vm4246, %v4242, %v2876
        %v4356 = vsel %vm4246, %v4243, %v2878
        %v4357 = vsel %vm4246, %v4244, %v2880
        %v4358 = vsel %vm4246, %v4245, %v2882
        %vm4359 = vcmask 56320
        %v4360 = vsel %vm4359, %v4247, %v3003
        %v4361 = vsel %vm4359, %v4248, %v3005
        %v4362 = vsel %vm4359, %v4249, %v3007
        %v4363 = vsel %vm4359, %v4250, %v3009
        %v4364 = vsel %vm4359, %v4251, %v3011
        %v4365 = vsel %vm4359, %v4252, %v3013
        %v4366 = vsel %vm4359, %v4253, %v3015
        %v4367 = vsel %vm4359, %v4254, %v3017
        %v4368 = vsel %vm4359, %v4255, %v3019
        %v4369 = vsel %vm4359, %v4256, %v3021
        %v4370 = vsel %vm4359, %v4257, %v3023
        %v4371 = vsel %vm4359, %v4258, %v3025
        %v4372 = vsel %vm4359, %v4259, %v3027
        %v4373 = vsel %vm4359, %v4260, %v3029
        %v4374 = vsel %vm4359, %v4261, %v3031
        %v4375 = vsel %vm4359, %v4262, %v3033
        %v4376 = vsel %vm4359, %v4263, %v3035
        %v4377 = vsel %vm4359, %v4264, %v3037
        %v4378 = vsel %vm4359, %v4265, %v3039
        %v4379 = vsel %vm4359, %v4266, %v3041
        %v4380 = vsel %vm4359, %v4267, %v3043
        %v4381 = vsel %vm4359, %v4268, %v3045
        %v4382 = vsel %vm4359, %v4269, %v3047
        %v4383 = vsel %vm4359, %v4270, %v3049
        %v4384 = vsel %vm4359, %v4271, %v3051
        %v4385 = vsel %vm4359, %v4272, %v3053
        %v4386 = vsel %vm4359, %v4273, %v3055
        %v4387 = vsel %vm4359, %v4274, %v3057
        %v4388 = vsel %vm4359, %v4275, %v3059
        %v4389 = vsel %vm4359, %v4276, %v3061
        %v4390 = vsel %vm4359, %v4277, %v3063
        %v4391 = vsel %vm4359, %v4278, %v3065
        %v4392 = vsel %vm4359, %v4279, %v3067
        %v4393 = vsel %vm4359, %v4280, %v3069
        %v4394 = vsel %vm4359, %v4281, %v3071
        %v4395 = vsel %vm4359, %v4282, %v3073
        %v4396 = vsel %vm4359, %v4283, %v3075
        %v4397 = vsel %vm4359, %v4284, %v3077
        %v4398 = vsel %vm4359, %v4285, %v3079
        %v4399 = vsel %vm4359, %v4286, %v3081
        %v4400 = vsel %vm4359, %v4287, %v3083
        %v4401 = vsel %vm4359, %v4288, %v3085
        %v4402 = vsel %vm4359, %v4289, %v3087
        %v4403 = vsel %vm4359, %v4290, %v3089
        %v4404 = vsel %vm4359, %v4291, %v3091
        %v4405 = vsel %vm4359, %v4292, %v3093
        %v4406 = vsel %vm4359, %v4293, %v3095
        %v4407 = vsel %vm4359, %v4294, %v3097
        %v4408 = vsel %vm4359, %v4295, %v3099
        %v4409 = vsel %vm4359, %v4296, %v3101
        %v4410 = vsel %vm4359, %v4297, %v3103
        %v4411 = vsel %vm4359, %v4298, %v3105
        %v4412 = vsel %vm4359, %v4299, %v3107
        %v4413 = vsel %vm4359, %v4300, %v3109
        %v4414 = vsel %vm4359, %v4301, %v3111
        %v4415 = vsel %vm4359, %v4302, %v3113
        %v4416 = vsel %vm4359, %v4303, %v3115
        %v4417 = vsel %vm4359, %v4304, %v3117
        %v4418 = vsel %vm4359, %v4305, %v3119
        %v4419 = vsel %vm4359, %v4306, %v3121
        %v4420 = vsel %vm4359, %v4307, %v3123
        %v4421 = vsel %vm4359, %v4308, %v3125
        %v4422 = vsel %vm4359, %v4309, %v3127
        %v4423 = vsel %vm4359, %v4310, %v3129
        %v4424 = vsel %vm4359, %v4311, %v3131
        %v4425 = vsel %vm4359, %v4312, %v3133
        %v4426 = vsel %vm4359, %v4313, %v3135
        %v4427 = vsel %vm4359, %v4314, %v3137
        %v4428 = vsel %vm4359, %v4315, %v3139
        %v4429 = vsel %vm4359, %v4316, %v3141
        %v4430 = vsel %vm4359, %v4317, %v3143
        %v4431 = vsel %vm4359, %v4318, %v3145
        %v4432 = vsel %vm4359, %v4319, %v3147
        %v4433 = vsel %vm4359, %v4320, %v3149
        %v4434 = vsel %vm4359, %v4321, %v3151
        %v4435 = vsel %vm4359, %v4322, %v3153
        %v4436 = vsel %vm4359, %v4323, %v3155
        %v4437 = vsel %vm4359, %v4324, %v3157
        %v4438 = vsel %vm4359, %v4325, %v3159
        %v4439 = vsel %vm4359, %v4326, %v3161
        %v4440 = vsel %vm4359, %v4327, %v3163
        %v4441 = vsel %vm4359, %v4328, %v3165
        %v4442 = vsel %vm4359, %v4329, %v3167
        %v4443 = vsel %vm4359, %v4330, %v3169
        %v4444 = vsel %vm4359, %v4331, %v3171
        %v4445 = vsel %vm4359, %v4332, %v3173
        %v4446 = vsel %vm4359, %v4333, %v3175
        %v4447 = vsel %vm4359, %v4334, %v3177
        %v4448 = vsel %vm4359, %v4335, %v3179
        %v4449 = vsel %vm4359, %v4336, %v3181
        %v4450 = vsel %vm4359, %v4337, %v3183
        %v4451 = vsel %vm4359, %v4338, %v3185
        %v4452 = vsel %vm4359, %v4339, %v3187
        %v4453 = vsel %vm4359, %v4340, %v3189
        %v4454 = vsel %vm4359, %v4341, %v3191
        %v4455 = vsel %vm4359, %v4342, %v3193
        %v4456 = vsel %vm4359, %v4343, %v3195
        %v4457 = vsel %vm4359, %v4344, %v3197
        %v4458 = vsel %vm4359, %v4345, %v3199
        %v4459 = vsel %vm4359, %v4346, %v3201
        %v4460 = vsel %vm4359, %v4347, %v3203
        %v4461 = vsel %vm4359, %v4348, %v3205
        %v4462 = vsel %vm4359, %v4349, %v3207
        %v4463 = vsel %vm4359, %v4350, %v3209
        %v4464 = vsel %vm4359, %v4351, %v3211
        %v4465 = vsel %vm4359, %v4352, %v3213
        %v4466 = vsel %vm4359, %v4353, %v3215
        %v4467 = vsel %vm4359, %v4354, %v3217
        %v4468 = vsel %vm4359, %v4355, %v3219
        %v4469 = vsel %vm4359, %v4356, %v3221
        %v4470 = vsel %vm4359, %v4357, %v3223
        %v4471 = vsel %vm4359, %v4358, %v3225
        %vm4472 = vcmask 64512
        %v4473 = vsel %vm4472, %v4360, %v3346
        %v4474 = vsel %vm4472, %v4361, %v3348
        %v4475 = vsel %vm4472, %v4362, %v3350
        %v4476 = vsel %vm4472, %v4363, %v3352
        %v4477 = vsel %vm4472, %v4364, %v3354
        %v4478 = vsel %vm4472, %v4365, %v3356
        %v4479 = vsel %vm4472, %v4366, %v3358
        %v4480 = vsel %vm4472, %v4367, %v3360
        %v4481 = vsel %vm4472, %v4368, %v3362
        %v4482 = vsel %vm4472, %v4369, %v3364
        %v4483 = vsel %vm4472, %v4370, %v3366
        %v4484 = vsel %vm4472, %v4371, %v3368
        %v4485 = vsel %vm4472, %v4372, %v3370
        %v4486 = vsel %vm4472, %v4373, %v3372
        %v4487 = vsel %vm4472, %v4374, %v3374
        %v4488 = vsel %vm4472, %v4375, %v3376
        %v4489 = vsel %vm4472, %v4376, %v3378
        %v4490 = vsel %vm4472, %v4377, %v3380
        %v4491 = vsel %vm4472, %v4378, %v3382
        %v4492 = vsel %vm4472, %v4379, %v3384
        %v4493 = vsel %vm4472, %v4380, %v3386
        %v4494 = vsel %vm4472, %v4381, %v3388
        %v4495 = vsel %vm4472, %v4382, %v3390
        %v4496 = vsel %vm4472, %v4383, %v3392
        %v4497 = vsel %vm4472, %v4384, %v3394
        %v4498 = vsel %vm4472, %v4385, %v3396
        %v4499 = vsel %vm4472, %v4386, %v3398
        %v4500 = vsel %vm4472, %v4387, %v3400
        %v4501 = vsel %vm4472, %v4388, %v3402
        %v4502 = vsel %vm4472, %v4389, %v3404
        %v4503 = vsel %vm4472, %v4390, %v3406
        %v4504 = vsel %vm4472, %v4391, %v3408
        %v4505 = vsel %vm4472, %v4392, %v3410
        %v4506 = vsel %vm4472, %v4393, %v3412
        %v4507 = vsel %vm4472, %v4394, %v3414
        %v4508 = vsel %vm4472, %v4395, %v3416
        %v4509 = vsel %vm4472, %v4396, %v3418
        %v4510 = vsel %vm4472, %v4397, %v3420
        %v4511 = vsel %vm4472, %v4398, %v3422
        %v4512 = vsel %vm4472, %v4399, %v3424
        %v4513 = vsel %vm4472, %v4400, %v3426
        %v4514 = vsel %vm4472, %v4401, %v3428
        %v4515 = vsel %vm4472, %v4402, %v3430
        %v4516 = vsel %vm4472, %v4403, %v3432
        %v4517 = vsel %vm4472, %v4404, %v3434
        %v4518 = vsel %vm4472, %v4405, %v3436
        %v4519 = vsel %vm4472, %v4406, %v3438
        %v4520 = vsel %vm4472, %v4407, %v3440
        %v4521 = vsel %vm4472, %v4408, %v3442
        %v4522 = vsel %vm4472, %v4409, %v3444
        %v4523 = vsel %vm4472, %v4410, %v3446
        %v4524 = vsel %vm4472, %v4411, %v3448
        %v4525 = vsel %vm4472, %v4412, %v3450
        %v4526 = vsel %vm4472, %v4413, %v3452
        %v4527 = vsel %vm4472, %v4414, %v3454
        %v4528 = vsel %vm4472, %v4415, %v3456
        %v4529 = vsel %vm4472, %v4416, %v3458
        %v4530 = vsel %vm4472, %v4417, %v3460
        %v4531 = vsel %vm4472, %v4418, %v3462
        %v4532 = vsel %vm4472, %v4419, %v3464
        %v4533 = vsel %vm4472, %v4420, %v3466
        %v4534 = vsel %vm4472, %v4421, %v3468
        %v4535 = vsel %vm4472, %v4422, %v3470
        %v4536 = vsel %vm4472, %v4423, %v3472
        %v4537 = vsel %vm4472, %v4424, %v3474
        %v4538 = vsel %vm4472, %v4425, %v3476
        %v4539 = vsel %vm4472, %v4426, %v3478
        %v4540 = vsel %vm4472, %v4427, %v3480
        %v4541 = vsel %vm4472, %v4428, %v3482
        %v4542 = vsel %vm4472, %v4429, %v3484
        %v4543 = vsel %vm4472, %v4430, %v3486
        %v4544 = vsel %vm4472, %v4431, %v3488
        %v4545 = vsel %vm4472, %v4432, %v3490
        %v4546 = vsel %vm4472, %v4433, %v3492
        %v4547 = vsel %vm4472, %v4434, %v3494
        %v4548 = vsel %vm4472, %v4435, %v3496
        %v4549 = vsel %vm4472, %v4436, %v3498
        %v4550 = vsel %vm4472, %v4437, %v3500
        %v4551 = vsel %vm4472, %v4438, %v3502
        %v4552 = vsel %vm4472, %v4439, %v3504
        %v4553 = vsel %vm4472, %v4440, %v3506
        %v4554 = vsel %vm4472, %v4441, %v3508
        %v4555 = vsel %vm4472, %v4442, %v3510
        %v4556 = vsel %vm4472, %v4443, %v3512
        %v4557 = vsel %vm4472, %v4444, %v3514
        %v4558 = vsel %vm4472, %v4445, %v3516
        %v4559 = vsel %vm4472, %v4446, %v3518
        %v4560 = vsel %vm4472, %v4447, %v3520
        %v4561 = vsel %vm4472, %v4448, %v3522
        %v4562 = vsel %vm4472, %v4449, %v3524
        %v4563 = vsel %vm4472, %v4450, %v3526
        %v4564 = vsel %vm4472, %v4451, %v3528
        %v4565 = vsel %vm4472, %v4452, %v3530
        %v4566 = vsel %vm4472, %v4453, %v3532
        %v4567 = vsel %vm4472, %v4454, %v3534
        %v4568 = vsel %vm4472, %v4455, %v3536
        %v4569 = vsel %vm4472, %v4456, %v3538
        %v4570 = vsel %vm4472, %v4457, %v3540
        %v4571 = vsel %vm4472, %v4458, %v3542
        %v4572 = vsel %vm4472, %v4459, %v3544
        %v4573 = vsel %vm4472, %v4460, %v3546
        %v4574 = vsel %vm4472, %v4461, %v3548
        %v4575 = vsel %vm4472, %v4462, %v3550
        %v4576 = vsel %vm4472, %v4463, %v3552
        %v4577 = vsel %vm4472, %v4464, %v3554
        %v4578 = vsel %vm4472, %v4465, %v3556
        %v4579 = vsel %vm4472, %v4466, %v3558
        %v4580 = vsel %vm4472, %v4467, %v3560
        %v4581 = vsel %vm4472, %v4468, %v3562
        %v4582 = vsel %vm4472, %v4469, %v3564
        %v4583 = vsel %vm4472, %v4470, %v3566
        %v4584 = vsel %vm4472, %v4471, %v3568
        %vm4585 = vcmask 72704
        %4586 = vst.msk [vmem:[#allocation2] sm:$0xff] %vm4585, %v4473
        %4587 = vst.msk [vmem:[#allocation2 + $0x8] sm:$0xff] %vm4585, %v4474
        %4588 = vst.msk [vmem:[#allocation2 + $0x10] sm:$0xff] %vm4585, %v4475
        %vm4589 = vcmask 68608
        %4590 = vst.msk [vmem:[#allocation2 + $0x18] sm:$0xf] %vm4589, %v4476
        %4591 = vst.msk [vmem:[#allocation2 + $0x1c] sm:$0xff] %vm4585, %v4477
        %4592 = vst.msk [vmem:[#allocation2 + $0x24] sm:$0xff] %vm4585, %v4478
        %4593 = vst.msk [vmem:[#allocation2 + $0x2c] sm:$0xff] %vm4585, %v4479
        %4594 = vst.msk [vmem:[#allocation2 + $0x34] sm:$0xf] %vm4589, %v4480
        %4595 = vst.msk [vmem:[#allocation2 + $0x38] sm:$0xff] %vm4585, %v4481
        %4596 = vst.msk [vmem:[#allocation2 + $0x40] sm:$0xff] %vm4585, %v4482
        %4597 = vst.msk [vmem:[#allocation2 + $0x48] sm:$0xff] %vm4585, %v4483
        %4598 = vst.msk [vmem:[#allocation2 + $0x50] sm:$0xf] %vm4589, %v4484
        %4599 = vst.msk [vmem:[#allocation2 + $0x54] sm:$0xff] %vm4585, %v4485
        %4600 = vst.msk [vmem:[#allocation2 + $0x5c] sm:$0xff] %vm4585, %v4486
        %4601 = vst.msk [vmem:[#allocation2 + $0x64] sm:$0xff] %vm4585, %v4487
        %4602 = vst.msk [vmem:[#allocation2 + $0x6c] sm:$0xf] %vm4589, %v4488
        %4603 = vst.msk [vmem:[#allocation2 + $0x70] sm:$0xff] %vm4585, %v4489
        %4604 = vst.msk [vmem:[#allocation2 + $0x78] sm:$0xff] %vm4585, %v4490
        %4605 = vst.msk [vmem:[#allocation2 + $0x80] sm:$0xff] %vm4585, %v4491
        %4606 = vst.msk [vmem:[#allocation2 + $0x88] sm:$0xf] %vm4589, %v4492
        %4607 = vst.msk [vmem:[#allocation2 + $0x8c] sm:$0xff] %vm4585, %v4493
        %4608 = vst.msk [vmem:[#allocation2 + $0x94] sm:$0xff] %vm4585, %v4494
        %4609 = vst.msk [vmem:[#allocation2 + $0x9c] sm:$0xff] %vm4585, %v4495
        %4610 = vst.msk [vmem:[#allocation2 + $0xa4] sm:$0xf] %vm4589, %v4496
        %4611 = vst.msk [vmem:[#allocation2 + $0xa8] sm:$0xff] %vm4585, %v4497
        %4612 = vst.msk [vmem:[#allocation2 + $0xb0] sm:$0xff] %vm4585, %v4498
        %4613 = vst.msk [vmem:[#allocation2 + $0xb8] sm:$0xff] %vm4585, %v4499
        %4614 = vst.msk [vmem:[#allocation2 + $0xc0] sm:$0xf] %vm4589, %v4500
        %4615 = vst.msk [vmem:[#allocation2 + $0xc4] sm:$0xff] %vm4585, %v4501
        %4616 = vst.msk [vmem:[#allocation2 + $0xcc] sm:$0xff] %vm4585, %v4502
        %4617 = vst.msk [vmem:[#allocation2 + $0xd4] sm:$0xff] %vm4585, %v4503
        %4618 = vst.msk [vmem:[#allocation2 + $0xdc] sm:$0xf] %vm4589, %v4504
        %4619 = vst.msk [vmem:[#allocation2 + $0xe0] sm:$0xff] %vm4585, %v4505
        %4620 = vst.msk [vmem:[#allocation2 + $0xe8] sm:$0xff] %vm4585, %v4506
        %4621 = vst.msk [vmem:[#allocation2 + $0xf0] sm:$0xff] %vm4585, %v4507
        %4622 = vst.msk [vmem:[#allocation2 + $0xf8] sm:$0xf] %vm4589, %v4508
        %4623 = vst.msk [vmem:[#allocation2 + $0xfc] sm:$0xff] %vm4585, %v4509
        %4624 = vst.msk [vmem:[#allocation2 + $0x104] sm:$0xff] %vm4585, %v4510
        %4625 = vst.msk [vmem:[#allocation2 + $0x10c] sm:$0xff] %vm4585, %v4511
        %4626 = vst.msk [vmem:[#allocation2 + $0x114] sm:$0xf] %vm4589, %v4512
        %4627 = vst.msk [vmem:[#allocation2 + $0x118] sm:$0xff] %vm4585, %v4513
        %4628 = vst.msk [vmem:[#allocation2 + $0x120] sm:$0xff] %vm4585, %v4514
        %4629 = vst.msk [vmem:[#allocation2 + $0x128] sm:$0xff] %vm4585, %v4515
        %4630 = vst.msk [vmem:[#allocation2 + $0x130] sm:$0xf] %vm4589, %v4516
        %4631 = vst.msk [vmem:[#allocation2 + $0x134] sm:$0xff] %vm4585, %v4517
        %4632 = vst.msk [vmem:[#allocation2 + $0x13c] sm:$0xff] %vm4585, %v4518
        %4633 = vst.msk [vmem:[#allocation2 + $0x144] sm:$0xff] %vm4585, %v4519
        %4634 = vst.msk [vmem:[#allocation2 + $0x14c] sm:$0xf] %vm4589, %v4520
        %4635 = vst.msk [vmem:[#allocation2 + $0x150] sm:$0xff] %vm4585, %v4521
        %4636 = vst.msk [vmem:[#allocation2 + $0x158] sm:$0xff] %vm4585, %v4522
        %4637 = vst.msk [vmem:[#allocation2 + $0x160] sm:$0xff] %vm4585, %v4523
        %4638 = vst.msk [vmem:[#allocation2 + $0x168] sm:$0xf] %vm4589, %v4524
        %4639 = vst.msk [vmem:[#allocation2 + $0x16c] sm:$0xff] %vm4585, %v4525
        %4640 = vst.msk [vmem:[#allocation2 + $0x174] sm:$0xff] %vm4585, %v4526
        %4641 = vst.msk [vmem:[#allocation2 + $0x17c] sm:$0xff] %vm4585, %v4527
        %4642 = vst.msk [vmem:[#allocation2 + $0x184] sm:$0xf] %vm4589, %v4528
        %4643 = vst.msk [vmem:[#allocation2 + $0x188] sm:$0xff] %vm4585, %v4529
        %4644 = vst.msk [vmem:[#allocation2 + $0x190] sm:$0xff] %vm4585, %v4530
        %4645 = vst.msk [vmem:[#allocation2 + $0x198] sm:$0xff] %vm4585, %v4531
        %4646 = vst.msk [vmem:[#allocation2 + $0x1a0] sm:$0xf] %vm4589, %v4532
        %4647 = vst.msk [vmem:[#allocation2 + $0x1a4] sm:$0xff] %vm4585, %v4533
        %4648 = vst.msk [vmem:[#allocation2 + $0x1ac] sm:$0xff] %vm4585, %v4534
        %4649 = vst.msk [vmem:[#allocation2 + $0x1b4] sm:$0xff] %vm4585, %v4535
        %4650 = vst.msk [vmem:[#allocation2 + $0x1bc] sm:$0xf] %vm4589, %v4536
        %4651 = vst.msk [vmem:[#allocation2 + $0x1c0] sm:$0xff] %vm4585, %v4537
        %4652 = vst.msk [vmem:[#allocation2 + $0x1c8] sm:$0xff] %vm4585, %v4538
        %4653 = vst.msk [vmem:[#allocation2 + $0x1d0] sm:$0xff] %vm4585, %v4539
        %4654 = vst.msk [vmem:[#allocation2 + $0x1d8] sm:$0xf] %vm4589, %v4540
        %4655 = vst.msk [vmem:[#allocation2 + $0x1dc] sm:$0xff] %vm4585, %v4541
        %4656 = vst.msk [vmem:[#allocation2 + $0x1e4] sm:$0xff] %vm4585, %v4542
        %4657 = vst.msk [vmem:[#allocation2 + $0x1ec] sm:$0xff] %vm4585, %v4543
        %4658 = vst.msk [vmem:[#allocation2 + $0x1f4] sm:$0xf] %vm4589, %v4544
        %4659 = vst.msk [vmem:[#allocation2 + $0x1f8] sm:$0xff] %vm4585, %v4545
        %4660 = vst.msk [vmem:[#allocation2 + $0x200] sm:$0xff] %vm4585, %v4546
        %4661 = vst.msk [vmem:[#allocation2 + $0x208] sm:$0xff] %vm4585, %v4547
        %4662 = vst.msk [vmem:[#allocation2 + $0x210] sm:$0xf] %vm4589, %v4548
        %4663 = vst.msk [vmem:[#allocation2 + $0x214] sm:$0xff] %vm4585, %v4549
        %4664 = vst.msk [vmem:[#allocation2 + $0x21c] sm:$0xff] %vm4585, %v4550
        %4665 = vst.msk [vmem:[#allocation2 + $0x224] sm:$0xff] %vm4585, %v4551
        %4666 = vst.msk [vmem:[#allocation2 + $0x22c] sm:$0xf] %vm4589, %v4552
        %4667 = vst.msk [vmem:[#allocation2 + $0x230] sm:$0xff] %vm4585, %v4553
        %4668 = vst.msk [vmem:[#allocation2 + $0x238] sm:$0xff] %vm4585, %v4554
        %4669 = vst.msk [vmem:[#allocation2 + $0x240] sm:$0xff] %vm4585, %v4555
        %4670 = vst.msk [vmem:[#allocation2 + $0x248] sm:$0xf] %vm4589, %v4556
        %4671 = vst.msk [vmem:[#allocation2 + $0x24c] sm:$0xff] %vm4585, %v4557
        %4672 = vst.msk [vmem:[#allocation2 + $0x254] sm:$0xff] %vm4585, %v4558
        %4673 = vst.msk [vmem:[#allocation2 + $0x25c] sm:$0xff] %vm4585, %v4559
        %4674 = vst.msk [vmem:[#allocation2 + $0x264] sm:$0xf] %vm4589, %v4560
        %4675 = vst.msk [vmem:[#allocation2 + $0x268] sm:$0xff] %vm4585, %v4561
        %4676 = vst.msk [vmem:[#allocation2 + $0x270] sm:$0xff] %vm4585, %v4562
        %4677 = vst.msk [vmem:[#allocation2 + $0x278] sm:$0xff] %vm4585, %v4563
        %4678 = vst.msk [vmem:[#allocation2 + $0x280] sm:$0xf] %vm4589, %v4564
        %4679 = vst.msk [vmem:[#allocation2 + $0x284] sm:$0xff] %vm4585, %v4565
        %4680 = vst.msk [vmem:[#allocation2 + $0x28c] sm:$0xff] %vm4585, %v4566
        %4681 = vst.msk [vmem:[#allocation2 + $0x294] sm:$0xff] %vm4585, %v4567
        %4682 = vst.msk [vmem:[#allocation2 + $0x29c] sm:$0xf] %vm4589, %v4568
        %4683 = vst.msk [vmem:[#allocation2 + $0x2a0] sm:$0xff] %vm4585, %v4569
        %4684 = vst.msk [vmem:[#allocation2 + $0x2a8] sm:$0xff] %vm4585, %v4570
        %4685 = vst.msk [vmem:[#allocation2 + $0x2b0] sm:$0xff] %vm4585, %v4571
        %4686 = vst.msk [vmem:[#allocation2 + $0x2b8] sm:$0xf] %vm4589, %v4572
        %4687 = vst.msk [vmem:[#allocation2 + $0x2bc] sm:$0xff] %vm4585, %v4573
        %4688 = vst.msk [vmem:[#allocation2 + $0x2c4] sm:$0xff] %vm4585, %v4574
        %4689 = vst.msk [vmem:[#allocation2 + $0x2cc] sm:$0xff] %vm4585, %v4575
        %4690 = vst.msk [vmem:[#allocation2 + $0x2d4] sm:$0xf] %vm4589, %v4576
        %4691 = vst.msk [vmem:[#allocation2 + $0x2d8] sm:$0xff] %vm4585, %v4577
        %4692 = vst.msk [vmem:[#allocation2 + $0x2e0] sm:$0xff] %vm4585, %v4578
        %4693 = vst.msk [vmem:[#allocation2 + $0x2e8] sm:$0xff] %vm4585, %v4579
        %4694 = vst.msk [vmem:[#allocation2 + $0x2f0] sm:$0xf] %vm4589, %v4580
        %4695 = vst.msk [vmem:[#allocation2 + $0x2f4] sm:$0xff] %vm4585, %v4581
        %4696 = vst.msk [vmem:[#allocation2 + $0x2fc] sm:$0xff] %vm4585, %v4582
        %4697 = vst.msk [vmem:[#allocation2 + $0x304] sm:$0xff] %vm4585, %v4583
        %4698 = vst.msk [vmem:[#allocation2 + $0x30c] sm:$0xf] %vm4589, %v4584
        %v4699 = vld [vmem:[#allocation2] sm:$0xff]
        %v4700 = vld [vmem:[#allocation2 + $0x8] sm:$0xff]
        %v4701 = vld [vmem:[#allocation2 + $0x10] sm:$0xff]
        %v4702 = vld [vmem:[#allocation2 + $0x18] sm:$0xff]
        %v4703 = vld [vmem:[#allocation2 + $0x20] sm:$0xff]
        %v4704 = vld [vmem:[#allocation2 + $0x28] sm:$0xff]
        %v4705 = vld [vmem:[#allocation2 + $0x30] sm:$0xff]
        %v4706 = vld [vmem:[#allocation2 + $0x38] sm:$0xff]
        %v4707 = vld [vmem:[#allocation2 + $0x40] sm:$0xff]
        %v4708 = vld [vmem:[#allocation2 + $0x48] sm:$0xff]
        %v4709 = vld [vmem:[#allocation2 + $0x50] sm:$0xff]
        %v4710 = vld [vmem:[#allocation2 + $0x58] sm:$0xff]
        %v4711 = vld [vmem:[#allocation2 + $0x60] sm:$0xff]
        %v4712 = vld [vmem:[#allocation2 + $0x68] sm:$0xff]
        %v4713 = vld [vmem:[#allocation2 + $0x70] sm:$0xff]
        %v4714 = vld [vmem:[#allocation2 + $0x78] sm:$0xff]
        %v4715 = vld [vmem:[#allocation2 + $0x80] sm:$0xff]
        %v4716 = vld [vmem:[#allocation2 + $0x88] sm:$0xff]
        %v4717 = vld [vmem:[#allocation2 + $0x90] sm:$0xff]
        %v4718 = vld [vmem:[#allocation2 + $0x98] sm:$0xff]
        %v4719 = vld [vmem:[#allocation2 + $0xa0] sm:$0xff]
        %v4720 = vld [vmem:[#allocation2 + $0xa8] sm:$0xff]
        %v4721 = vld [vmem:[#allocation2 + $0xb0] sm:$0xff]
        %v4722 = vld [vmem:[#allocation2 + $0xb8] sm:$0xff]
        %v4723 = vld [vmem:[#allocation2 + $0xc0] sm:$0xff]
        %v4724 = vld [vmem:[#allocation2 + $0xc8] sm:$0xff]
        %v4725 = vld [vmem:[#allocation2 + $0xd0] sm:$0xff]
        %v4726 = vld [vmem:[#allocation2 + $0xd8] sm:$0xff]
        %v4727 = vld [vmem:[#allocation2 + $0xe0] sm:$0xff]
        %v4728 = vld [vmem:[#allocation2 + $0xe8] sm:$0xff]
        %v4729 = vld [vmem:[#allocation2 + $0xf0] sm:$0xff]
        %v4730 = vld [vmem:[#allocation2 + $0xf8] sm:$0xff]
        %v4731 = vld [vmem:[#allocation2 + $0x100] sm:$0xff]
        %v4732 = vld [vmem:[#allocation2 + $0x108] sm:$0xff]
        %v4733 = vld [vmem:[#allocation2 + $0x110] sm:$0xff]
        %v4734 = vld [vmem:[#allocation2 + $0x118] sm:$0xff]
        %v4735 = vld [vmem:[#allocation2 + $0x120] sm:$0xff]
        %v4736 = vld [vmem:[#allocation2 + $0x128] sm:$0xff]
        %v4737 = vld [vmem:[#allocation2 + $0x130] sm:$0xff]
        %v4738 = vld [vmem:[#allocation2 + $0x138] sm:$0xff]
        %v4739 = vld [vmem:[#allocation2 + $0x140] sm:$0xff]
        %v4740 = vld [vmem:[#allocation2 + $0x148] sm:$0xff]
        %v4741 = vld [vmem:[#allocation2 + $0x150] sm:$0xff]
        %v4742 = vld [vmem:[#allocation2 + $0x158] sm:$0xff]
        %v4743 = vld [vmem:[#allocation2 + $0x160] sm:$0xff]
        %v4744 = vld [vmem:[#allocation2 + $0x168] sm:$0xff]
        %v4745 = vld [vmem:[#allocation2 + $0x170] sm:$0xff]
        %v4746 = vld [vmem:[#allocation2 + $0x178] sm:$0xff]
        %v4747 = vld [vmem:[#allocation2 + $0x180] sm:$0xff]
        %v4748 = vld [vmem:[#allocation2 + $0x188] sm:$0xff]
        %v4749 = vld [vmem:[#allocation2 + $0x190] sm:$0xff]
        %v4750 = vld [vmem:[#allocation2 + $0x198] sm:$0xff]
        %v4751 = vld [vmem:[#allocation2 + $0x1a0] sm:$0xff]
        %v4752 = vld [vmem:[#allocation2 + $0x1a8] sm:$0xff]
        %v4753 = vld [vmem:[#allocation2 + $0x1b0] sm:$0xff]
        %v4754 = vld [vmem:[#allocation2 + $0x1b8] sm:$0xff]
        %v4755 = vld [vmem:[#allocation2 + $0x1c0] sm:$0xff]
        %v4756 = vld [vmem:[#allocation2 + $0x1c8] sm:$0xff]
        %v4757 = vld [vmem:[#allocation2 + $0x1d0] sm:$0xff]
        %v4758 = vld [vmem:[#allocation2 + $0x1d8] sm:$0xff]
        %v4759 = vld [vmem:[#allocation2 + $0x1e0] sm:$0xff]
        %v4760 = vld [vmem:[#allocation2 + $0x1e8] sm:$0xff]
        %v4761 = vld [vmem:[#allocation2 + $0x1f0] sm:$0xff]
        %v4762 = vld [vmem:[#allocation2 + $0x1f8] sm:$0xff]
        %v4763 = vld [vmem:[#allocation2 + $0x200] sm:$0xff]
        %v4764 = vld [vmem:[#allocation2 + $0x208] sm:$0xff]
        %v4765 = vld [vmem:[#allocation2 + $0x210] sm:$0xff]
        %v4766 = vld [vmem:[#allocation2 + $0x218] sm:$0xff]
        %v4767 = vld [vmem:[#allocation2 + $0x220] sm:$0xff]
        %v4768 = vld [vmem:[#allocation2 + $0x228] sm:$0xff]
        %v4769 = vld [vmem:[#allocation2 + $0x230] sm:$0xff]
        %v4770 = vld [vmem:[#allocation2 + $0x238] sm:$0xff]
        %v4771 = vld [vmem:[#allocation2 + $0x240] sm:$0xff]
        %v4772 = vld [vmem:[#allocation2 + $0x248] sm:$0xff]
        %v4773 = vld [vmem:[#allocation2 + $0x250] sm:$0xff]
        %v4774 = vld [vmem:[#allocation2 + $0x258] sm:$0xff]
        %v4775 = vld [vmem:[#allocation2 + $0x260] sm:$0xff]
        %v4776 = vld [vmem:[#allocation2 + $0x268] sm:$0xff]
        %v4777 = vld [vmem:[#allocation2 + $0x270] sm:$0xff]
        %v4778 = vld [vmem:[#allocation2 + $0x278] sm:$0xff]
        %v4779 = vld [vmem:[#allocation2 + $0x280] sm:$0xff]
        %v4780 = vld [vmem:[#allocation2 + $0x288] sm:$0xff]
        %v4781 = vld [vmem:[#allocation2 + $0x290] sm:$0xff]
        %v4782 = vld [vmem:[#allocation2 + $0x298] sm:$0xff]
        %v4783 = vld [vmem:[#allocation2 + $0x2a0] sm:$0xff]
        %v4784 = vld [vmem:[#allocation2 + $0x2a8] sm:$0xff]
        %v4785 = vld [vmem:[#allocation2 + $0x2b0] sm:$0xff]
        %v4786 = vld [vmem:[#allocation2 + $0x2b8] sm:$0xff]
        %v4787 = vld [vmem:[#allocation2 + $0x2c0] sm:$0xff]
        %v4788 = vld [vmem:[#allocation2 + $0x2c8] sm:$0xff]
        %v4789 = vld [vmem:[#allocation2 + $0x2d0] sm:$0xff]
        %v4790 = vld [vmem:[#allocation2 + $0x2d8] sm:$0xff]
        %v4791 = vld [vmem:[#allocation2 + $0x2e0] sm:$0xff]
        %v4792 = vld [vmem:[#allocation2 + $0x2e8] sm:$0xff]
        %v4793 = vld [vmem:[#allocation2 + $0x2f0] sm:$0xff]
        %v4794 = vld [vmem:[#allocation2 + $0x2f8] sm:$0xff]
        %v4795 = vld [vmem:[#allocation2 + $0x300] sm:$0xff]
        %v4796 = vld [vmem:[#allocation2 + $0x308] sm:$0xff]
        %v4797 = vld [vmem:[%s1] sm:$0xff]
        %v4798 = vld [vmem:[%s1 + $0x8] sm:$0x1]
        %v4800 = vsel %vm4585, %v4699, 0
        %v4803 = vsel %vm4585, %v4700, 0
        %v4806 = vsel %vm4585, %v4701, 0
        %v4809 = vsel %vm4585, %v4702, 0
        %v4812 = vsel %vm4585, %v4703, 0
        %v4815 = vsel %vm4585, %v4704, 0
        %v4818 = vsel %vm4585, %v4705, 0
        %v4821 = vsel %vm4585, %v4706, 0
        %v4824 = vsel %vm4585, %v4707, 0
        %v4827 = vsel %vm4585, %v4708, 0
        %v4830 = vsel %vm4585, %v4709, 0
        %v4833 = vsel %vm4585, %v4710, 0
        %v4836 = vsel %vm4585, %v4711, 0
        %v4839 = vsel %vm4585, %v4712, 0
        %v4842 = vsel %vm4585, %v4713, 0
        %v4845 = vsel %vm4585, %v4714, 0
        %v4848 = vsel %vm4585, %v4715, 0
        %v4851 = vsel %vm4585, %v4716, 0
        %v4854 = vsel %vm4585, %v4717, 0
        %v4857 = vsel %vm4585, %v4718, 0
        %v4860 = vsel %vm4585, %v4719, 0
        %v4863 = vsel %vm4585, %v4720, 0
        %v4866 = vsel %vm4585, %v4721, 0
        %v4869 = vsel %vm4585, %v4722, 0
        %v4872 = vsel %vm4585, %v4723, 0
        %v4875 = vsel %vm4585, %v4724, 0
        %v4878 = vsel %vm4585, %v4725, 0
        %v4881 = vsel %vm4585, %v4726, 0
        %v4884 = vsel %vm4585, %v4727, 0
        %v4887 = vsel %vm4585, %v4728, 0
        %v4890 = vsel %vm4585, %v4729, 0
        %v4893 = vsel %vm4585, %v4730, 0
        %v4896 = vsel %vm4585, %v4731, 0
        %v4899 = vsel %vm4585, %v4732, 0
        %v4902 = vsel %vm4585, %v4733, 0
        %v4905 = vsel %vm4585, %v4734, 0
        %v4908 = vsel %vm4585, %v4735, 0
        %v4911 = vsel %vm4585, %v4736, 0
        %v4914 = vsel %vm4585, %v4737, 0
        %v4917 = vsel %vm4585, %v4738, 0
        %v4920 = vsel %vm4585, %v4739, 0
        %v4923 = vsel %vm4585, %v4740, 0
        %v4926 = vsel %vm4585, %v4741, 0
        %v4929 = vsel %vm4585, %v4742, 0
        %v4932 = vsel %vm4585, %v4743, 0
        %v4935 = vsel %vm4585, %v4744, 0
        %v4938 = vsel %vm4585, %v4745, 0
        %v4941 = vsel %vm4585, %v4746, 0
        %v4944 = vsel %vm4585, %v4747, 0
        %v4947 = vsel %vm4585, %v4748, 0
        %v4950 = vsel %vm4585, %v4749, 0
        %v4953 = vsel %vm4585, %v4750, 0
        %v4956 = vsel %vm4585, %v4751, 0
        %v4959 = vsel %vm4585, %v4752, 0
        %v4962 = vsel %vm4585, %v4753, 0
        %v4965 = vsel %vm4585, %v4754, 0
        %v4968 = vsel %vm4585, %v4755, 0
        %v4971 = vsel %vm4585, %v4756, 0
        %v4974 = vsel %vm4585, %v4757, 0
        %v4977 = vsel %vm4585, %v4758, 0
        %v4980 = vsel %vm4585, %v4759, 0
        %v4983 = vsel %vm4585, %v4760, 0
        %v4986 = vsel %vm4585, %v4761, 0
        %v4989 = vsel %vm4585, %v4762, 0
        %v4992 = vsel %vm4585, %v4763, 0
        %v4995 = vsel %vm4585, %v4764, 0
        %v4998 = vsel %vm4585, %v4765, 0
        %v5001 = vsel %vm4585, %v4766, 0
        %v5004 = vsel %vm4585, %v4767, 0
        %v5007 = vsel %vm4585, %v4768, 0
        %v5010 = vsel %vm4585, %v4769, 0
        %v5013 = vsel %vm4585, %v4770, 0
        %v5016 = vsel %vm4585, %v4771, 0
        %v5019 = vsel %vm4585, %v4772, 0
        %v5022 = vsel %vm4585, %v4773, 0
        %v5025 = vsel %vm4585, %v4774, 0
        %v5028 = vsel %vm4585, %v4775, 0
        %v5031 = vsel %vm4585, %v4776, 0
        %v5034 = vsel %vm4585, %v4777, 0
        %v5037 = vsel %vm4585, %v4778, 0
        %v5040 = vsel %vm4585, %v4779, 0
        %v5043 = vsel %vm4585, %v4780, 0
        %v5046 = vsel %vm4585, %v4781, 0
        %v5049 = vsel %vm4585, %v4782, 0
        %v5052 = vsel %vm4585, %v4783, 0
        %v5055 = vsel %vm4585, %v4784, 0
        %v5058 = vsel %vm4585, %v4785, 0
        %v5061 = vsel %vm4585, %v4786, 0
        %v5064 = vsel %vm4585, %v4787, 0
        %v5067 = vsel %vm4585, %v4788, 0
        %v5070 = vsel %vm4585, %v4789, 0
        %v5073 = vsel %vm4585, %v4790, 0
        %v5076 = vsel %vm4585, %v4791, 0
        %v5079 = vsel %vm4585, %v4792, 0
        %v5082 = vsel %vm4585, %v4793, 0
        %v5085 = vsel %vm4585, %v4794, 0
        %v5088 = vsel %vm4585, %v4795, 0
        %v5091 = vsel %vm4585, %v4796, 0
        %vm5093 = vcmask 1040384
        %v5095 = vsel %vm5093, %v4798, 0
        %5097 = vmatprep.subr.mxu0 0.0
        %5098 = vmatpush1.msra.mxu0 0.0
        %5099 = vmatprep.subr.mxu0 0.0
        %5100 = vmatpush1.msra.mxu0 0.0
        %5101 = vmatprep.subr.mxu0 0.0
        %5102 = vmatpush1.msra.mxu0 0.0
        %5103 = vmatprep.subr.mxu0 0.0
        %5104 = vmatpush1.msra.mxu0 0.0
        %5105 = vmatprep.subr.mxu0 0.0
        %5106 = vmatpush1.msra.mxu0 0.0
        %5107 = vmatprep.subr.mxu0 0.0
        %5108 = vmatpush1.msra.mxu0 0.0
        %5109 = vmatprep.subr.mxu0 0.0
        %5110 = vmatpush1.msra.mxu0 0.0
        %5111 = vmatprep.subr.mxu0 0.0
        %5112 = vmatpush1.msra.mxu0 0.0
        %5113 = vmatprep.subr.mxu0 0.0
        %5114 = vmatpush1.msra.mxu0 0.0
        %5115 = vmatprep.subr.mxu0 0.0
        %5116 = vmatpush1.msra.mxu0 0.0
        %5117 = vmatprep.subr.mxu0 0.0
        %5118 = vmatpush1.msra.mxu0 0.0
        %5119 = vmatprep.subr.mxu0 0.0
        %5120 = vmatpush1.msra.mxu0 0.0
        %5121 = vmatprep.subr.mxu0 0.0
        %5122 = vmatpush1.msra.mxu0 0.0
        %5123 = vmatprep.subr.mxu0 0.0
        %5124 = vmatpush1.msra.mxu0 0.0
        %5125 = vmatprep.subr.mxu0 0.0
        %5126 = vmatpush1.msra.mxu0 %v5095
        %5127 = vmatprep.subr.mxu0 0.0
        %5128 = vmatpush1.msra.mxu0 %v4797
        %5129 = vmatprep.subr.mxu0 0.0
        %5130 = vmatpush2.msra.mxu0 0.0
        %5131 = vmatprep.subr.mxu0 0.0
        %5132 = vmatpush2.msra.mxu0 0.0
        %5133 = vmatprep.subr.mxu0 0.0
        %5134 = vmatpush2.msra.mxu0 0.0
        %5135 = vmatprep.subr.mxu0 0.0
        %5136 = vmatpush2.msra.mxu0 0.0
        %5137 = vmatprep.subr.mxu0 0.0
        %5138 = vmatpush2.msra.mxu0 0.0
        %5139 = vmatprep.subr.mxu0 0.0
        %5140 = vmatpush2.msra.mxu0 0.0
        %5141 = vmatprep.subr.mxu0 0.0
        %5142 = vmatpush2.msra.mxu0 0.0
        %5143 = vmatprep.subr.mxu0 0.0
        %5144 = vmatpush2.msra.mxu0 0.0
        %5145 = vmatprep.subr.mxu0 0.0
        %5146 = vmatpush2.msra.mxu0 0.0
        %5147 = vmatprep.subr.mxu0 0.0
        %5148 = vmatpush2.msra.mxu0 0.0
        %5149 = vmatprep.subr.mxu0 0.0
        %5150 = vmatpush2.msra.mxu0 0.0
        %5151 = vmatprep.subr.mxu0 0.0
        %5152 = vmatpush2.msra.mxu0 0.0
        %5153 = vmatprep.subr.mxu0 0.0
        %5154 = vmatpush2.msra.mxu0 0.0
        %5155 = vmatprep.subr.mxu0 0.0
        %5156 = vmatpush2.msra.mxu0 0.0
        %5157 = vmatprep.subr.mxu0 0.0
        %5158 = vmatpush2.msra.mxu0 0.0
        %5159 = vmatprep.subr.mxu0 0.0
        %5160 = vmatpush2.msra.mxu0 0.0
        %5161 = vmatprep.mubr.f32.mxu0 0.0
        %5162 = vmatmul.mubr.f32.gmra.mxu0 %v4800
        %v5163 = vpop.f32.mrf.mxu0
        %v5164 = vadd.f32 0.0, %v5163
        %v5165 = vpop.f32.mrf.mxu0
        %5166 = vmatprep.mubr.f32.mxu0 0.0
        %5167 = vmatmul.mubr.f32.gmra.mxu0 %v4803
        %v5168 = vpop.f32.mrf.mxu0
        %v5169 = vadd.f32 0.0, %v5168
        %v5170 = vpop.f32.mrf.mxu0
        %5171 = vmatprep.mubr.f32.mxu0 0.0
        %5172 = vmatmul.mubr.f32.gmra.mxu0 %v4806
        %v5173 = vpop.f32.mrf.mxu0
        %v5174 = vadd.f32 0.0, %v5173
        %v5175 = vpop.f32.mrf.mxu0
        %5176 = vmatprep.mubr.f32.mxu0 0.0
        %5177 = vmatmul.mubr.f32.gmra.mxu0 %v4809
        %v5178 = vpop.f32.mrf.mxu0
        %v5179 = vadd.f32 0.0, %v5178
        %v5180 = vpop.f32.mrf.mxu0
        %5181 = vmatprep.mubr.f32.mxu0 0.0
        %5182 = vmatmul.mubr.f32.gmra.mxu0 %v4812
        %v5183 = vpop.f32.mrf.mxu0
        %v5184 = vadd.f32 0.0, %v5183
        %v5185 = vpop.f32.mrf.mxu0
        %5186 = vmatprep.mubr.f32.mxu0 0.0
        %5187 = vmatmul.mubr.f32.gmra.mxu0 %v4815
        %v5188 = vpop.f32.mrf.mxu0
        %v5189 = vadd.f32 0.0, %v5188
        %v5190 = vpop.f32.mrf.mxu0
        %5191 = vmatprep.mubr.f32.mxu0 0.0
        %5192 = vmatmul.mubr.f32.gmra.mxu0 %v4818
        %v5193 = vpop.f32.mrf.mxu0
        %v5194 = vadd.f32 0.0, %v5193
        %v5195 = vpop.f32.mrf.mxu0
        %5196 = vmatprep.mubr.f32.mxu0 0.0
        %5197 = vmatmul.mubr.f32.gmra.mxu0 %v4821
        %v5198 = vpop.f32.mrf.mxu0
        %v5199 = vadd.f32 0.0, %v5198
        %v5200 = vpop.f32.mrf.mxu0
        %5201 = vmatprep.mubr.f32.mxu0 0.0
        %5202 = vmatmul.mubr.f32.gmra.mxu0 %v4824
        %v5203 = vpop.f32.mrf.mxu0
        %v5204 = vadd.f32 0.0, %v5203
        %v5205 = vpop.f32.mrf.mxu0
        %5206 = vmatprep.mubr.f32.mxu0 0.0
        %5207 = vmatmul.mubr.f32.gmra.mxu0 %v4827
        %v5208 = vpop.f32.mrf.mxu0
        %v5209 = vadd.f32 0.0, %v5208
        %v5210 = vpop.f32.mrf.mxu0
        %5211 = vmatprep.mubr.f32.mxu0 0.0
        %5212 = vmatmul.mubr.f32.gmra.mxu0 %v4830
        %v5213 = vpop.f32.mrf.mxu0
        %v5214 = vadd.f32 0.0, %v5213
        %v5215 = vpop.f32.mrf.mxu0
        %5216 = vmatprep.mubr.f32.mxu0 0.0
        %5217 = vmatmul.mubr.f32.gmra.mxu0 %v4833
        %v5218 = vpop.f32.mrf.mxu0
        %v5219 = vadd.f32 0.0, %v5218
        %v5220 = vpop.f32.mrf.mxu0
        %5221 = vmatprep.mubr.f32.mxu0 0.0
        %5222 = vmatmul.mubr.f32.gmra.mxu0 %v4836
        %v5223 = vpop.f32.mrf.mxu0
        %v5224 = vadd.f32 0.0, %v5223
        %v5225 = vpop.f32.mrf.mxu0
        %5226 = vmatprep.mubr.f32.mxu0 0.0
        %5227 = vmatmul.mubr.f32.gmra.mxu0 %v4839
        %v5228 = vpop.f32.mrf.mxu0
        %v5229 = vadd.f32 0.0, %v5228
        %v5230 = vpop.f32.mrf.mxu0
        %5231 = vmatprep.mubr.f32.mxu0 0.0
        %5232 = vmatmul.mubr.f32.gmra.mxu0 %v4842
        %v5233 = vpop.f32.mrf.mxu0
        %v5234 = vadd.f32 0.0, %v5233
        %v5235 = vpop.f32.mrf.mxu0
        %5236 = vmatprep.mubr.f32.mxu0 0.0
        %5237 = vmatmul.mubr.f32.gmra.mxu0 %v4845
        %v5238 = vpop.f32.mrf.mxu0
        %v5239 = vadd.f32 0.0, %v5238
        %v5240 = vpop.f32.mrf.mxu0
        %5241 = vmatprep.mubr.f32.mxu0 0.0
        %5242 = vmatmul.mubr.f32.gmra.mxu0 %v4848
        %v5243 = vpop.f32.mrf.mxu0
        %v5244 = vadd.f32 0.0, %v5243
        %v5245 = vpop.f32.mrf.mxu0
        %5246 = vmatprep.mubr.f32.mxu0 0.0
        %5247 = vmatmul.mubr.f32.gmra.mxu0 %v4851
        %v5248 = vpop.f32.mrf.mxu0
        %v5249 = vadd.f32 0.0, %v5248
        %v5250 = vpop.f32.mrf.mxu0
        %5251 = vmatprep.mubr.f32.mxu0 0.0
        %5252 = vmatmul.mubr.f32.gmra.mxu0 %v4854
        %v5253 = vpop.f32.mrf.mxu0
        %v5254 = vadd.f32 0.0, %v5253
        %v5255 = vpop.f32.mrf.mxu0
        %5256 = vmatprep.mubr.f32.mxu0 0.0
        %5257 = vmatmul.mubr.f32.gmra.mxu0 %v4857
        %v5258 = vpop.f32.mrf.mxu0
        %v5259 = vadd.f32 0.0, %v5258
        %v5260 = vpop.f32.mrf.mxu0
        %5261 = vmatprep.mubr.f32.mxu0 0.0
        %5262 = vmatmul.mubr.f32.gmra.mxu0 %v4860
        %v5263 = vpop.f32.mrf.mxu0
        %v5264 = vadd.f32 0.0, %v5263
        %v5265 = vpop.f32.mrf.mxu0
        %5266 = vmatprep.mubr.f32.mxu0 0.0
        %5267 = vmatmul.mubr.f32.gmra.mxu0 %v4863
        %v5268 = vpop.f32.mrf.mxu0
        %v5269 = vadd.f32 0.0, %v5268
        %v5270 = vpop.f32.mrf.mxu0
        %5271 = vmatprep.mubr.f32.mxu0 0.0
        %5272 = vmatmul.mubr.f32.gmra.mxu0 %v4866
        %v5273 = vpop.f32.mrf.mxu0
        %v5274 = vadd.f32 0.0, %v5273
        %v5275 = vpop.f32.mrf.mxu0
        %5276 = vmatprep.mubr.f32.mxu0 0.0
        %5277 = vmatmul.mubr.f32.gmra.mxu0 %v4869
        %v5278 = vpop.f32.mrf.mxu0
        %v5279 = vadd.f32 0.0, %v5278
        %v5280 = vpop.f32.mrf.mxu0
        %5281 = vmatprep.mubr.f32.mxu0 0.0
        %5282 = vmatmul.mubr.f32.gmra.mxu0 %v4872
        %v5283 = vpop.f32.mrf.mxu0
        %v5284 = vadd.f32 0.0, %v5283
        %v5285 = vpop.f32.mrf.mxu0
        %5286 = vmatprep.mubr.f32.mxu0 0.0
        %5287 = vmatmul.mubr.f32.gmra.mxu0 %v4875
        %v5288 = vpop.f32.mrf.mxu0
        %v5289 = vadd.f32 0.0, %v5288
        %v5290 = vpop.f32.mrf.mxu0
        %5291 = vmatprep.mubr.f32.mxu0 0.0
        %5292 = vmatmul.mubr.f32.gmra.mxu0 %v4878
        %v5293 = vpop.f32.mrf.mxu0
        %v5294 = vadd.f32 0.0, %v5293
        %v5295 = vpop.f32.mrf.mxu0
        %5296 = vmatprep.mubr.f32.mxu0 0.0
        %5297 = vmatmul.mubr.f32.gmra.mxu0 %v4881
        %v5298 = vpop.f32.mrf.mxu0
        %v5299 = vadd.f32 0.0, %v5298
        %v5300 = vpop.f32.mrf.mxu0
        %5301 = vmatprep.mubr.f32.mxu0 0.0
        %5302 = vmatmul.mubr.f32.gmra.mxu0 %v4884
        %v5303 = vpop.f32.mrf.mxu0
        %v5304 = vadd.f32 0.0, %v5303
        %v5305 = vpop.f32.mrf.mxu0
        %5306 = vmatprep.mubr.f32.mxu0 0.0
        %5307 = vmatmul.mubr.f32.gmra.mxu0 %v4887
        %v5308 = vpop.f32.mrf.mxu0
        %v5309 = vadd.f32 0.0, %v5308
        %v5310 = vpop.f32.mrf.mxu0
        %5311 = vmatprep.mubr.f32.mxu0 0.0
        %5312 = vmatmul.mubr.f32.gmra.mxu0 %v4890
        %v5313 = vpop.f32.mrf.mxu0
        %v5314 = vadd.f32 0.0, %v5313
        %v5315 = vpop.f32.mrf.mxu0
        %5316 = vmatprep.mubr.f32.mxu0 0.0
        %5317 = vmatmul.mubr.f32.gmra.mxu0 %v4893
        %v5318 = vpop.f32.mrf.mxu0
        %v5319 = vadd.f32 0.0, %v5318
        %v5320 = vpop.f32.mrf.mxu0
        %5321 = vmatprep.mubr.f32.mxu0 0.0
        %5322 = vmatmul.mubr.f32.gmra.mxu0 %v4896
        %v5323 = vpop.f32.mrf.mxu0
        %v5324 = vadd.f32 0.0, %v5323
        %v5325 = vpop.f32.mrf.mxu0
        %5326 = vmatprep.mubr.f32.mxu0 0.0
        %5327 = vmatmul.mubr.f32.gmra.mxu0 %v4899
        %v5328 = vpop.f32.mrf.mxu0
        %v5329 = vadd.f32 0.0, %v5328
        %v5330 = vpop.f32.mrf.mxu0
        %5331 = vmatprep.mubr.f32.mxu0 0.0
        %5332 = vmatmul.mubr.f32.gmra.mxu0 %v4902
        %v5333 = vpop.f32.mrf.mxu0
        %v5334 = vadd.f32 0.0, %v5333
        %v5335 = vpop.f32.mrf.mxu0
        %5336 = vmatprep.mubr.f32.mxu0 0.0
        %5337 = vmatmul.mubr.f32.gmra.mxu0 %v4905
        %v5338 = vpop.f32.mrf.mxu0
        %v5339 = vadd.f32 0.0, %v5338
        %v5340 = vpop.f32.mrf.mxu0
        %5341 = vmatprep.mubr.f32.mxu0 0.0
        %5342 = vmatmul.mubr.f32.gmra.mxu0 %v4908
        %v5343 = vpop.f32.mrf.mxu0
        %v5344 = vadd.f32 0.0, %v5343
        %v5345 = vpop.f32.mrf.mxu0
        %5346 = vmatprep.mubr.f32.mxu0 0.0
        %5347 = vmatmul.mubr.f32.gmra.mxu0 %v4911
        %v5348 = vpop.f32.mrf.mxu0
        %v5349 = vadd.f32 0.0, %v5348
        %v5350 = vpop.f32.mrf.mxu0
        %5351 = vmatprep.mubr.f32.mxu0 0.0
        %5352 = vmatmul.mubr.f32.gmra.mxu0 %v4914
        %v5353 = vpop.f32.mrf.mxu0
        %v5354 = vadd.f32 0.0, %v5353
        %v5355 = vpop.f32.mrf.mxu0
        %5356 = vmatprep.mubr.f32.mxu0 0.0
        %5357 = vmatmul.mubr.f32.gmra.mxu0 %v4917
        %v5358 = vpop.f32.mrf.mxu0
        %v5359 = vadd.f32 0.0, %v5358
        %v5360 = vpop.f32.mrf.mxu0
        %5361 = vmatprep.mubr.f32.mxu0 0.0
        %5362 = vmatmul.mubr.f32.gmra.mxu0 %v4920
        %v5363 = vpop.f32.mrf.mxu0
        %v5364 = vadd.f32 0.0, %v5363
        %v5365 = vpop.f32.mrf.mxu0
        %5366 = vmatprep.mubr.f32.mxu0 0.0
        %5367 = vmatmul.mubr.f32.gmra.mxu0 %v4923
        %v5368 = vpop.f32.mrf.mxu0
        %v5369 = vadd.f32 0.0, %v5368
        %v5370 = vpop.f32.mrf.mxu0
        %5371 = vmatprep.mubr.f32.mxu0 0.0
        %5372 = vmatmul.mubr.f32.gmra.mxu0 %v4926
        %v5373 = vpop.f32.mrf.mxu0
        %v5374 = vadd.f32 0.0, %v5373
        %v5375 = vpop.f32.mrf.mxu0
        %5376 = vmatprep.mubr.f32.mxu0 0.0
        %5377 = vmatmul.mubr.f32.gmra.mxu0 %v4929
        %v5378 = vpop.f32.mrf.mxu0
        %v5379 = vadd.f32 0.0, %v5378
        %v5380 = vpop.f32.mrf.mxu0
        %5381 = vmatprep.mubr.f32.mxu0 0.0
        %5382 = vmatmul.mubr.f32.gmra.mxu0 %v4932
        %v5383 = vpop.f32.mrf.mxu0
        %v5384 = vadd.f32 0.0, %v5383
        %v5385 = vpop.f32.mrf.mxu0
        %5386 = vmatprep.mubr.f32.mxu0 0.0
        %5387 = vmatmul.mubr.f32.gmra.mxu0 %v4935
        %v5388 = vpop.f32.mrf.mxu0
        %v5389 = vadd.f32 0.0, %v5388
        %v5390 = vpop.f32.mrf.mxu0
        %5391 = vmatprep.mubr.f32.mxu0 0.0
        %5392 = vmatmul.mubr.f32.gmra.mxu0 %v4938
        %v5393 = vpop.f32.mrf.mxu0
        %v5394 = vadd.f32 0.0, %v5393
        %v5395 = vpop.f32.mrf.mxu0
        %5396 = vmatprep.mubr.f32.mxu0 0.0
        %5397 = vmatmul.mubr.f32.gmra.mxu0 %v4941
        %v5398 = vpop.f32.mrf.mxu0
        %v5399 = vadd.f32 0.0, %v5398
        %v5400 = vpop.f32.mrf.mxu0
        %5401 = vmatprep.mubr.f32.mxu0 0.0
        %5402 = vmatmul.mubr.f32.gmra.mxu0 %v4944
        %v5403 = vpop.f32.mrf.mxu0
        %v5404 = vadd.f32 0.0, %v5403
        %v5405 = vpop.f32.mrf.mxu0
        %5406 = vmatprep.mubr.f32.mxu0 0.0
        %5407 = vmatmul.mubr.f32.gmra.mxu0 %v4947
        %v5408 = vpop.f32.mrf.mxu0
        %v5409 = vadd.f32 0.0, %v5408
        %v5410 = vpop.f32.mrf.mxu0
        %5411 = vmatprep.mubr.f32.mxu0 0.0
        %5412 = vmatmul.mubr.f32.gmra.mxu0 %v4950
        %v5413 = vpop.f32.mrf.mxu0
        %v5414 = vadd.f32 0.0, %v5413
        %v5415 = vpop.f32.mrf.mxu0
        %5416 = vmatprep.mubr.f32.mxu0 0.0
        %5417 = vmatmul.mubr.f32.gmra.mxu0 %v4953
        %v5418 = vpop.f32.mrf.mxu0
        %v5419 = vadd.f32 0.0, %v5418
        %v5420 = vpop.f32.mrf.mxu0
        %5421 = vmatprep.mubr.f32.mxu0 0.0
        %5422 = vmatmul.mubr.f32.gmra.mxu0 %v4956
        %v5423 = vpop.f32.mrf.mxu0
        %v5424 = vadd.f32 0.0, %v5423
        %v5425 = vpop.f32.mrf.mxu0
        %5426 = vmatprep.mubr.f32.mxu0 0.0
        %5427 = vmatmul.mubr.f32.gmra.mxu0 %v4959
        %v5428 = vpop.f32.mrf.mxu0
        %v5429 = vadd.f32 0.0, %v5428
        %v5430 = vpop.f32.mrf.mxu0
        %5431 = vmatprep.mubr.f32.mxu0 0.0
        %5432 = vmatmul.mubr.f32.gmra.mxu0 %v4962
        %v5433 = vpop.f32.mrf.mxu0
        %v5434 = vadd.f32 0.0, %v5433
        %v5435 = vpop.f32.mrf.mxu0
        %5436 = vmatprep.mubr.f32.mxu0 0.0
        %5437 = vmatmul.mubr.f32.gmra.mxu0 %v4965
        %v5438 = vpop.f32.mrf.mxu0
        %v5439 = vadd.f32 0.0, %v5438
        %v5440 = vpop.f32.mrf.mxu0
        %5441 = vmatprep.mubr.f32.mxu0 0.0
        %5442 = vmatmul.mubr.f32.gmra.mxu0 %v4968
        %v5443 = vpop.f32.mrf.mxu0
        %v5444 = vadd.f32 0.0, %v5443
        %v5445 = vpop.f32.mrf.mxu0
        %5446 = vmatprep.mubr.f32.mxu0 0.0
        %5447 = vmatmul.mubr.f32.gmra.mxu0 %v4971
        %v5448 = vpop.f32.mrf.mxu0
        %v5449 = vadd.f32 0.0, %v5448
        %v5450 = vpop.f32.mrf.mxu0
        %5451 = vmatprep.mubr.f32.mxu0 0.0
        %5452 = vmatmul.mubr.f32.gmra.mxu0 %v4974
        %v5453 = vpop.f32.mrf.mxu0
        %v5454 = vadd.f32 0.0, %v5453
        %v5455 = vpop.f32.mrf.mxu0
        %5456 = vmatprep.mubr.f32.mxu0 0.0
        %5457 = vmatmul.mubr.f32.gmra.mxu0 %v4977
        %v5458 = vpop.f32.mrf.mxu0
        %v5459 = vadd.f32 0.0, %v5458
        %v5460 = vpop.f32.mrf.mxu0
        %5461 = vmatprep.mubr.f32.mxu0 0.0
        %5462 = vmatmul.mubr.f32.gmra.mxu0 %v4980
        %v5463 = vpop.f32.mrf.mxu0
        %v5464 = vadd.f32 0.0, %v5463
        %v5465 = vpop.f32.mrf.mxu0
        %5466 = vmatprep.mubr.f32.mxu0 0.0
        %5467 = vmatmul.mubr.f32.gmra.mxu0 %v4983
        %v5468 = vpop.f32.mrf.mxu0
        %v5469 = vadd.f32 0.0, %v5468
        %v5470 = vpop.f32.mrf.mxu0
        %5471 = vmatprep.mubr.f32.mxu0 0.0
        %5472 = vmatmul.mubr.f32.gmra.mxu0 %v4986
        %v5473 = vpop.f32.mrf.mxu0
        %v5474 = vadd.f32 0.0, %v5473
        %v5475 = vpop.f32.mrf.mxu0
        %5476 = vmatprep.mubr.f32.mxu0 0.0
        %5477 = vmatmul.mubr.f32.gmra.mxu0 %v4989
        %v5478 = vpop.f32.mrf.mxu0
        %v5479 = vadd.f32 0.0, %v5478
        %v5480 = vpop.f32.mrf.mxu0
        %5481 = vmatprep.mubr.f32.mxu0 0.0
        %5482 = vmatmul.mubr.f32.gmra.mxu0 %v4992
        %v5483 = vpop.f32.mrf.mxu0
        %v5484 = vadd.f32 0.0, %v5483
        %v5485 = vpop.f32.mrf.mxu0
        %5486 = vmatprep.mubr.f32.mxu0 0.0
        %5487 = vmatmul.mubr.f32.gmra.mxu0 %v4995
        %v5488 = vpop.f32.mrf.mxu0
        %v5489 = vadd.f32 0.0, %v5488
        %v5490 = vpop.f32.mrf.mxu0
        %5491 = vmatprep.mubr.f32.mxu0 0.0
        %5492 = vmatmul.mubr.f32.gmra.mxu0 %v4998
        %v5493 = vpop.f32.mrf.mxu0
        %v5494 = vadd.f32 0.0, %v5493
        %v5495 = vpop.f32.mrf.mxu0
        %5496 = vmatprep.mubr.f32.mxu0 0.0
        %5497 = vmatmul.mubr.f32.gmra.mxu0 %v5001
        %v5498 = vpop.f32.mrf.mxu0
        %v5499 = vadd.f32 0.0, %v5498
        %v5500 = vpop.f32.mrf.mxu0
        %5501 = vmatprep.mubr.f32.mxu0 0.0
        %5502 = vmatmul.mubr.f32.gmra.mxu0 %v5004
        %v5503 = vpop.f32.mrf.mxu0
        %v5504 = vadd.f32 0.0, %v5503
        %v5505 = vpop.f32.mrf.mxu0
        %5506 = vmatprep.mubr.f32.mxu0 0.0
        %5507 = vmatmul.mubr.f32.gmra.mxu0 %v5007
        %v5508 = vpop.f32.mrf.mxu0
        %v5509 = vadd.f32 0.0, %v5508
        %v5510 = vpop.f32.mrf.mxu0
        %5511 = vmatprep.mubr.f32.mxu0 0.0
        %5512 = vmatmul.mubr.f32.gmra.mxu0 %v5010
        %v5513 = vpop.f32.mrf.mxu0
        %v5514 = vadd.f32 0.0, %v5513
        %v5515 = vpop.f32.mrf.mxu0
        %5516 = vmatprep.mubr.f32.mxu0 0.0
        %5517 = vmatmul.mubr.f32.gmra.mxu0 %v5013
        %v5518 = vpop.f32.mrf.mxu0
        %v5519 = vadd.f32 0.0, %v5518
        %v5520 = vpop.f32.mrf.mxu0
        %5521 = vmatprep.mubr.f32.mxu0 0.0
        %5522 = vmatmul.mubr.f32.gmra.mxu0 %v5016
        %v5523 = vpop.f32.mrf.mxu0
        %v5524 = vadd.f32 0.0, %v5523
        %v5525 = vpop.f32.mrf.mxu0
        %5526 = vmatprep.mubr.f32.mxu0 0.0
        %5527 = vmatmul.mubr.f32.gmra.mxu0 %v5019
        %v5528 = vpop.f32.mrf.mxu0
        %v5529 = vadd.f32 0.0, %v5528
        %v5530 = vpop.f32.mrf.mxu0
        %5531 = vmatprep.mubr.f32.mxu0 0.0
        %5532 = vmatmul.mubr.f32.gmra.mxu0 %v5022
        %v5533 = vpop.f32.mrf.mxu0
        %v5534 = vadd.f32 0.0, %v5533
        %v5535 = vpop.f32.mrf.mxu0
        %5536 = vmatprep.mubr.f32.mxu0 0.0
        %5537 = vmatmul.mubr.f32.gmra.mxu0 %v5025
        %v5538 = vpop.f32.mrf.mxu0
        %v5539 = vadd.f32 0.0, %v5538
        %v5540 = vpop.f32.mrf.mxu0
        %5541 = vmatprep.mubr.f32.mxu0 0.0
        %5542 = vmatmul.mubr.f32.gmra.mxu0 %v5028
        %v5543 = vpop.f32.mrf.mxu0
        %v5544 = vadd.f32 0.0, %v5543
        %v5545 = vpop.f32.mrf.mxu0
        %5546 = vmatprep.mubr.f32.mxu0 0.0
        %5547 = vmatmul.mubr.f32.gmra.mxu0 %v5031
        %v5548 = vpop.f32.mrf.mxu0
        %v5549 = vadd.f32 0.0, %v5548
        %v5550 = vpop.f32.mrf.mxu0
        %5551 = vmatprep.mubr.f32.mxu0 0.0
        %5552 = vmatmul.mubr.f32.gmra.mxu0 %v5034
        %v5553 = vpop.f32.mrf.mxu0
        %v5554 = vadd.f32 0.0, %v5553
        %v5555 = vpop.f32.mrf.mxu0
        %5556 = vmatprep.mubr.f32.mxu0 0.0
        %5557 = vmatmul.mubr.f32.gmra.mxu0 %v5037
        %v5558 = vpop.f32.mrf.mxu0
        %v5559 = vadd.f32 0.0, %v5558
        %v5560 = vpop.f32.mrf.mxu0
        %5561 = vmatprep.mubr.f32.mxu0 0.0
        %5562 = vmatmul.mubr.f32.gmra.mxu0 %v5040
        %v5563 = vpop.f32.mrf.mxu0
        %v5564 = vadd.f32 0.0, %v5563
        %v5565 = vpop.f32.mrf.mxu0
        %5566 = vmatprep.mubr.f32.mxu0 0.0
        %5567 = vmatmul.mubr.f32.gmra.mxu0 %v5043
        %v5568 = vpop.f32.mrf.mxu0
        %v5569 = vadd.f32 0.0, %v5568
        %v5570 = vpop.f32.mrf.mxu0
        %5571 = vmatprep.mubr.f32.mxu0 0.0
        %5572 = vmatmul.mubr.f32.gmra.mxu0 %v5046
        %v5573 = vpop.f32.mrf.mxu0
        %v5574 = vadd.f32 0.0, %v5573
        %v5575 = vpop.f32.mrf.mxu0
        %5576 = vmatprep.mubr.f32.mxu0 0.0
        %5577 = vmatmul.mubr.f32.gmra.mxu0 %v5049
        %v5578 = vpop.f32.mrf.mxu0
        %v5579 = vadd.f32 0.0, %v5578
        %v5580 = vpop.f32.mrf.mxu0
        %5581 = vmatprep.mubr.f32.mxu0 0.0
        %5582 = vmatmul.mubr.f32.gmra.mxu0 %v5052
        %v5583 = vpop.f32.mrf.mxu0
        %v5584 = vadd.f32 0.0, %v5583
        %v5585 = vpop.f32.mrf.mxu0
        %5586 = vmatprep.mubr.f32.mxu0 0.0
        %5587 = vmatmul.mubr.f32.gmra.mxu0 %v5055
        %v5588 = vpop.f32.mrf.mxu0
        %v5589 = vadd.f32 0.0, %v5588
        %v5590 = vpop.f32.mrf.mxu0
        %5591 = vmatprep.mubr.f32.mxu0 0.0
        %5592 = vmatmul.mubr.f32.gmra.mxu0 %v5058
        %v5593 = vpop.f32.mrf.mxu0
        %v5594 = vadd.f32 0.0, %v5593
        %v5595 = vpop.f32.mrf.mxu0
        %5596 = vmatprep.mubr.f32.mxu0 0.0
        %5597 = vmatmul.mubr.f32.gmra.mxu0 %v5061
        %v5598 = vpop.f32.mrf.mxu0
        %v5599 = vadd.f32 0.0, %v5598
        %v5600 = vpop.f32.mrf.mxu0
        %5601 = vmatprep.mubr.f32.mxu0 0.0
        %5602 = vmatmul.mubr.f32.gmra.mxu0 %v5064
        %v5603 = vpop.f32.mrf.mxu0
        %v5604 = vadd.f32 0.0, %v5603
        %v5605 = vpop.f32.mrf.mxu0
        %5606 = vmatprep.mubr.f32.mxu0 0.0
        %5607 = vmatmul.mubr.f32.gmra.mxu0 %v5067
        %v5608 = vpop.f32.mrf.mxu0
        %v5609 = vadd.f32 0.0, %v5608
        %v5610 = vpop.f32.mrf.mxu0
        %5611 = vmatprep.mubr.f32.mxu0 0.0
        %5612 = vmatmul.mubr.f32.gmra.mxu0 %v5070
        %v5613 = vpop.f32.mrf.mxu0
        %v5614 = vadd.f32 0.0, %v5613
        %v5615 = vpop.f32.mrf.mxu0
        %5616 = vmatprep.mubr.f32.mxu0 0.0
        %5617 = vmatmul.mubr.f32.gmra.mxu0 %v5073
        %v5618 = vpop.f32.mrf.mxu0
        %v5619 = vadd.f32 0.0, %v5618
        %v5620 = vpop.f32.mrf.mxu0
        %5621 = vmatprep.mubr.f32.mxu0 0.0
        %5622 = vmatmul.mubr.f32.gmra.mxu0 %v5076
        %v5623 = vpop.f32.mrf.mxu0
        %v5624 = vadd.f32 0.0, %v5623
        %v5625 = vpop.f32.mrf.mxu0
        %5626 = vmatprep.mubr.f32.mxu0 0.0
        %5627 = vmatmul.mubr.f32.gmra.mxu0 %v5079
        %v5628 = vpop.f32.mrf.mxu0
        %v5629 = vadd.f32 0.0, %v5628
        %v5630 = vpop.f32.mrf.mxu0
        %5631 = vmatprep.mubr.f32.mxu0 0.0
        %5632 = vmatmul.mubr.f32.gmra.mxu0 %v5082
        %v5633 = vpop.f32.mrf.mxu0
        %v5634 = vadd.f32 0.0, %v5633
        %v5635 = vpop.f32.mrf.mxu0
        %5636 = vmatprep.mubr.f32.mxu0 0.0
        %5637 = vmatmul.mubr.f32.gmra.mxu0 %v5085
        %v5638 = vpop.f32.mrf.mxu0
        %v5639 = vadd.f32 0.0, %v5638
        %v5640 = vpop.f32.mrf.mxu0
        %5641 = vmatprep.mubr.f32.mxu0 0.0
        %5642 = vmatmul.mubr.f32.gmra.mxu0 %v5088
        %v5643 = vpop.f32.mrf.mxu0
        %v5644 = vadd.f32 0.0, %v5643
        %v5645 = vpop.f32.mrf.mxu0
        %5646 = vmatprep.mubr.f32.mxu0 0.0
        %5647 = vmatmul.mubr.f32.gmra.mxu0 %v5091
        %v5648 = vpop.f32.mrf.mxu0
        %v5649 = vadd.f32 0.0, %v5648
        %v5650 = vpop.f32.mrf.mxu0
        %5651 = vdwg.mxu0
        %vm5656 = vcmask 1043456
        %v5657 = vrot.slane %v5179, 4
        %v5658 = vrot.slane %v5184, 4
        %v5659 = vsel %vm5656, %v5657, %v5658
        %v5660 = vrot.slane %v5189, 4
        %v5661 = vsel %vm5656, %v5658, %v5660
        %v5662 = vrot.slane %v5194, 4
        %v5663 = vsel %vm5656, %v5660, %v5662
        %v5668 = vmax.f32 %v5164, %v5659
        %v5669 = vmax.f32 %v5169, %v5661
        %v5670 = vmax.f32 %v5174, %v5663
        %v5671 = vmax.f32 %v5179, %v5662
        %vm5672 = vcmask 261120
        %5673 = vst.msk [vmem:[#allocation3] sm:$0xff] %vm5672, %v5668
        %5674 = vst.msk [vmem:[#allocation3 + $0x8] sm:$0xff] %vm5672, %v5669
        %5675 = vst.msk [vmem:[#allocation3 + $0x10] sm:$0xff] %vm5672, %v5670
        %vm5676 = vcmask 257024
        %5677 = vst.msk [vmem:[#allocation3 + $0x18] sm:$0xf] %vm5676, %v5671
        %v5682 = vrot.slane %v5214, 4
        %v5683 = vrot.slane %v5219, 4
        %v5684 = vsel %vm5656, %v5682, %v5683
        %v5685 = vrot.slane %v5224, 4
        %v5686 = vsel %vm5656, %v5683, %v5685
        %v5687 = vrot.slane %v5229, 4
        %v5688 = vsel %vm5656, %v5685, %v5687
        %v5693 = vmax.f32 %v5199, %v5684
        %v5694 = vmax.f32 %v5204, %v5686
        %v5695 = vmax.f32 %v5209, %v5688
        %v5696 = vmax.f32 %v5214, %v5687
        %s5697 = scalar_lea.vmem [#allocation3], 32
        %5698 = vst.msk [vmem:[%s5697] sm:$0xff] %vm5672, %v5693
        %5699 = vst.msk [vmem:[%s5697 + $0x8] sm:$0xff] %vm5672, %v5694
        %5700 = vst.msk [vmem:[%s5697 + $0x10] sm:$0xff] %vm5672, %v5695
        %5701 = vst.msk [vmem:[%s5697 + $0x18] sm:$0xf] %vm5676, %v5696
        %v5706 = vrot.slane %v5249, 4
        %v5707 = vrot.slane %v5254, 4
        %v5708 = vsel %vm5656, %v5706, %v5707
        %v5709 = vrot.slane %v5259, 4
        %v5710 = vsel %vm5656, %v5707, %v5709
        %v5711 = vrot.slane %v5264, 4
        %v5712 = vsel %vm5656, %v5709, %v5711
        %v5717 = vmax.f32 %v5234, %v5708
        %v5718 = vmax.f32 %v5239, %v5710
        %v5719 = vmax.f32 %v5244, %v5712
        %v5720 = vmax.f32 %v5249, %v5711
        %s5721 = scalar_lea.vmem [#allocation3], 64
        %5722 = vst.msk [vmem:[%s5721] sm:$0xff] %vm5672, %v5717
        %5723 = vst.msk [vmem:[%s5721 + $0x8] sm:$0xff] %vm5672, %v5718
        %5724 = vst.msk [vmem:[%s5721 + $0x10] sm:$0xff] %vm5672, %v5719
        %5725 = vst.msk [vmem:[%s5721 + $0x18] sm:$0xf] %vm5676, %v5720
        %v5730 = vrot.slane %v5284, 4
        %v5731 = vrot.slane %v5289, 4
        %v5732 = vsel %vm5656, %v5730, %v5731
        %v5733 = vrot.slane %v5294, 4
        %v5734 = vsel %vm5656, %v5731, %v5733
        %v5735 = vrot.slane %v5299, 4
        %v5736 = vsel %vm5656, %v5733, %v5735
        %v5741 = vmax.f32 %v5269, %v5732
        %v5742 = vmax.f32 %v5274, %v5734
        %v5743 = vmax.f32 %v5279, %v5736
        %v5744 = vmax.f32 %v5284, %v5735
        %s5745 = scalar_lea.vmem [#allocation3], 96
        %5746 = vst.msk [vmem:[%s5745] sm:$0xff] %vm5672, %v5741
        %5747 = vst.msk [vmem:[%s5745 + $0x8] sm:$0xff] %vm5672, %v5742
        %5748 = vst.msk [vmem:[%s5745 + $0x10] sm:$0xff] %vm5672, %v5743
        %5749 = vst.msk [vmem:[%s5745 + $0x18] sm:$0xf] %vm5676, %v5744
        %v5754 = vrot.slane %v5319, 4
        %v5755 = vrot.slane %v5324, 4
        %v5756 = vsel %vm5656, %v5754, %v5755
        %v5757 = vrot.slane %v5329, 4
        %v5758 = vsel %vm5656, %v5755, %v5757
        %v5759 = vrot.slane %v5334, 4
        %v5760 = vsel %vm5656, %v5757, %v5759
        %v5765 = vmax.f32 %v5304, %v5756
        %v5766 = vmax.f32 %v5309, %v5758
        %v5767 = vmax.f32 %v5314, %v5760
        %v5768 = vmax.f32 %v5319, %v5759
        %s5769 = scalar_lea.vmem [#allocation3], 128
        %5770 = vst.msk [vmem:[%s5769] sm:$0xff] %vm5672, %v5765
        %5771 = vst.msk [vmem:[%s5769 + $0x8] sm:$0xff] %vm5672, %v5766
        %5772 = vst.msk [vmem:[%s5769 + $0x10] sm:$0xff] %vm5672, %v5767
        %5773 = vst.msk [vmem:[%s5769 + $0x18] sm:$0xf] %vm5676, %v5768
        %v5778 = vrot.slane %v5354, 4
        %v5779 = vrot.slane %v5359, 4
        %v5780 = vsel %vm5656, %v5778, %v5779
        %v5781 = vrot.slane %v5364, 4
        %v5782 = vsel %vm5656, %v5779, %v5781
        %v5783 = vrot.slane %v5369, 4
        %v5784 = vsel %vm5656, %v5781, %v5783
        %v5789 = vmax.f32 %v5339, %v5780
        %v5790 = vmax.f32 %v5344, %v5782
        %v5791 = vmax.f32 %v5349, %v5784
        %v5792 = vmax.f32 %v5354, %v5783
        %s5793 = scalar_lea.vmem [#allocation3], 160
        %5794 = vst.msk [vmem:[%s5793] sm:$0xff] %vm5672, %v5789
        %5795 = vst.msk [vmem:[%s5793 + $0x8] sm:$0xff] %vm5672, %v5790
        %5796 = vst.msk [vmem:[%s5793 + $0x10] sm:$0xff] %vm5672, %v5791
        %5797 = vst.msk [vmem:[%s5793 + $0x18] sm:$0xf] %vm5676, %v5792
        %v5802 = vrot.slane %v5389, 4
        %v5803 = vrot.slane %v5394, 4
        %v5804 = vsel %vm5656, %v5802, %v5803
        %v5805 = vrot.slane %v5399, 4
        %v5806 = vsel %vm5656, %v5803, %v5805
        %v5807 = vrot.slane %v5404, 4
        %v5808 = vsel %vm5656, %v5805, %v5807
        %v5813 = vmax.f32 %v5374, %v5804
        %v5814 = vmax.f32 %v5379, %v5806
        %v5815 = vmax.f32 %v5384, %v5808
        %v5816 = vmax.f32 %v5389, %v5807
        %s5817 = scalar_lea.vmem [#allocation3], 192
        %5818 = vst.msk [vmem:[%s5817] sm:$0xff] %vm5672, %v5813
        %5819 = vst.msk [vmem:[%s5817 + $0x8] sm:$0xff] %vm5672, %v5814
        %5820 = vst.msk [vmem:[%s5817 + $0x10] sm:$0xff] %vm5672, %v5815
        %5821 = vst.msk [vmem:[%s5817 + $0x18] sm:$0xf] %vm5676, %v5816
        %v5826 = vrot.slane %v5424, 4
        %v5827 = vrot.slane %v5429, 4
        %v5828 = vsel %vm5656, %v5826, %v5827
        %v5829 = vrot.slane %v5434, 4
        %v5830 = vsel %vm5656, %v5827, %v5829
        %v5831 = vrot.slane %v5439, 4
        %v5832 = vsel %vm5656, %v5829, %v5831
        %v5837 = vmax.f32 %v5409, %v5828
        %v5838 = vmax.f32 %v5414, %v5830
        %v5839 = vmax.f32 %v5419, %v5832
        %v5840 = vmax.f32 %v5424, %v5831
        %s5841 = scalar_lea.vmem [#allocation3], 224
        %5842 = vst.msk [vmem:[%s5841] sm:$0xff] %vm5672, %v5837
        %5843 = vst.msk [vmem:[%s5841 + $0x8] sm:$0xff] %vm5672, %v5838
        %5844 = vst.msk [vmem:[%s5841 + $0x10] sm:$0xff] %vm5672, %v5839
        %5845 = vst.msk [vmem:[%s5841 + $0x18] sm:$0xf] %vm5676, %v5840
        %v5850 = vrot.slane %v5459, 4
        %v5851 = vrot.slane %v5464, 4
        %v5852 = vsel %vm5656, %v5850, %v5851
        %v5853 = vrot.slane %v5469, 4
        %v5854 = vsel %vm5656, %v5851, %v5853
        %v5855 = vrot.slane %v5474, 4
        %v5856 = vsel %vm5656, %v5853, %v5855
        %v5861 = vmax.f32 %v5444, %v5852
        %v5862 = vmax.f32 %v5449, %v5854
        %v5863 = vmax.f32 %v5454, %v5856
        %v5864 = vmax.f32 %v5459, %v5855
        %s5865 = scalar_lea.vmem [#allocation3], 256
        %5866 = vst.msk [vmem:[%s5865] sm:$0xff] %vm5672, %v5861
        %5867 = vst.msk [vmem:[%s5865 + $0x8] sm:$0xff] %vm5672, %v5862
        %5868 = vst.msk [vmem:[%s5865 + $0x10] sm:$0xff] %vm5672, %v5863
        %5869 = vst.msk [vmem:[%s5865 + $0x18] sm:$0xf] %vm5676, %v5864
        %v5874 = vrot.slane %v5494, 4
        %v5875 = vrot.slane %v5499, 4
        %v5876 = vsel %vm5656, %v5874, %v5875
        %v5877 = vrot.slane %v5504, 4
        %v5878 = vsel %vm5656, %v5875, %v5877
        %v5879 = vrot.slane %v5509, 4
        %v5880 = vsel %vm5656, %v5877, %v5879
        %v5885 = vmax.f32 %v5479, %v5876
        %v5886 = vmax.f32 %v5484, %v5878
        %v5887 = vmax.f32 %v5489, %v5880
        %v5888 = vmax.f32 %v5494, %v5879
        %s5889 = scalar_lea.vmem [#allocation3], 288
        %5890 = vst.msk [vmem:[%s5889] sm:$0xff] %vm5672, %v5885
        %5891 = vst.msk [vmem:[%s5889 + $0x8] sm:$0xff] %vm5672, %v5886
        %5892 = vst.msk [vmem:[%s5889 + $0x10] sm:$0xff] %vm5672, %v5887
        %5893 = vst.msk [vmem:[%s5889 + $0x18] sm:$0xf] %vm5676, %v5888
        %v5898 = vrot.slane %v5529, 4
        %v5899 = vrot.slane %v5534, 4
        %v5900 = vsel %vm5656, %v5898, %v5899
        %v5901 = vrot.slane %v5539, 4
        %v5902 = vsel %vm5656, %v5899, %v5901
        %v5903 = vrot.slane %v5544, 4
        %v5904 = vsel %vm5656, %v5901, %v5903
        %v5909 = vmax.f32 %v5514, %v5900
        %v5910 = vmax.f32 %v5519, %v5902
        %v5911 = vmax.f32 %v5524, %v5904
        %v5912 = vmax.f32 %v5529, %v5903
        %s5913 = scalar_lea.vmem [#allocation3], 320
        %5914 = vst.msk [vmem:[%s5913] sm:$0xff] %vm5672, %v5909
        %5915 = vst.msk [vmem:[%s5913 + $0x8] sm:$0xff] %vm5672, %v5910
        %5916 = vst.msk [vmem:[%s5913 + $0x10] sm:$0xff] %vm5672, %v5911
        %5917 = vst.msk [vmem:[%s5913 + $0x18] sm:$0xf] %vm5676, %v5912
        %v5922 = vrot.slane %v5564, 4
        %v5923 = vrot.slane %v5569, 4
        %v5924 = vsel %vm5656, %v5922, %v5923
        %v5925 = vrot.slane %v5574, 4
        %v5926 = vsel %vm5656, %v5923, %v5925
        %v5927 = vrot.slane %v5579, 4
        %v5928 = vsel %vm5656, %v5925, %v5927
        %v5933 = vmax.f32 %v5549, %v5924
        %v5934 = vmax.f32 %v5554, %v5926
        %v5935 = vmax.f32 %v5559, %v5928
        %v5936 = vmax.f32 %v5564, %v5927
        %s5937 = scalar_lea.vmem [#allocation3], 352
        %5938 = vst.msk [vmem:[%s5937] sm:$0xff] %vm5672, %v5933
        %5939 = vst.msk [vmem:[%s5937 + $0x8] sm:$0xff] %vm5672, %v5934
        %5940 = vst.msk [vmem:[%s5937 + $0x10] sm:$0xff] %vm5672, %v5935
        %5941 = vst.msk [vmem:[%s5937 + $0x18] sm:$0xf] %vm5676, %v5936
        %v5946 = vrot.slane %v5599, 4
        %v5947 = vrot.slane %v5604, 4
        %v5948 = vsel %vm5656, %v5946, %v5947
        %v5949 = vrot.slane %v5609, 4
        %v5950 = vsel %vm5656, %v5947, %v5949
        %v5951 = vrot.slane %v5614, 4
        %v5952 = vsel %vm5656, %v5949, %v5951
        %v5957 = vmax.f32 %v5584, %v5948
        %v5958 = vmax.f32 %v5589, %v5950
        %v5959 = vmax.f32 %v5594, %v5952
        %v5960 = vmax.f32 %v5599, %v5951
        %s5961 = scalar_lea.vmem [#allocation3], 384
        %5962 = vst.msk [vmem:[%s5961] sm:$0xff] %vm5672, %v5957
        %5963 = vst.msk [vmem:[%s5961 + $0x8] sm:$0xff] %vm5672, %v5958
        %5964 = vst.msk [vmem:[%s5961 + $0x10] sm:$0xff] %vm5672, %v5959
        %5965 = vst.msk [vmem:[%s5961 + $0x18] sm:$0xf] %vm5676, %v5960
        %v5970 = vrot.slane %v5634, 4
        %v5971 = vrot.slane %v5639, 4
        %v5972 = vsel %vm5656, %v5970, %v5971
        %v5973 = vrot.slane %v5644, 4
        %v5974 = vsel %vm5656, %v5971, %v5973
        %v5975 = vrot.slane %v5649, 4
        %v5976 = vsel %vm5656, %v5973, %v5975
        %v5981 = vmax.f32 %v5619, %v5972
        %v5982 = vmax.f32 %v5624, %v5974
        %v5983 = vmax.f32 %v5629, %v5976
        %v5984 = vmax.f32 %v5634, %v5975
        %s5985 = scalar_lea.vmem [#allocation3], 416
        %5986 = vst.msk [vmem:[%s5985] sm:$0xff] %vm5672, %v5981
        %5987 = vst.msk [vmem:[%s5985 + $0x8] sm:$0xff] %vm5672, %v5982
        %5988 = vst.msk [vmem:[%s5985 + $0x10] sm:$0xff] %vm5672, %v5983
        %5989 = vst.msk [vmem:[%s5985 + $0x18] sm:$0xf] %vm5676, %v5984
        %v5990 = vld [vmem:[#allocation3] ss:$2 sm:$0xff]
        %s5991 = scalar_lea.vmem [#allocation3], 16
        %v5992 = vld [vmem:[%s5991] ss:$2 sm:$0x3f]
        %s5993 = scalar_lea.vmem [#allocation3], 32
        %v5994 = vld [vmem:[%s5993] ss:$2 sm:$0xff]
        %s5995 = scalar_lea.vmem [#allocation3], 48
        %v5996 = vld [vmem:[%s5995] ss:$2 sm:$0x3f]
        %s5997 = scalar_lea.vmem [#allocation3], 64
        %v5998 = vld [vmem:[%s5997] ss:$2 sm:$0xff]
        %s5999 = scalar_lea.vmem [#allocation3], 80
        %v6000 = vld [vmem:[%s5999] ss:$2 sm:$0x3f]
        %s6001 = scalar_lea.vmem [#allocation3], 96
        %v6002 = vld [vmem:[%s6001] ss:$2 sm:$0xff]
        %s6003 = scalar_lea.vmem [#allocation3], 112
        %v6004 = vld [vmem:[%s6003] ss:$2 sm:$0x3f]
        %s6005 = scalar_lea.vmem [#allocation3], 128
        %v6006 = vld [vmem:[%s6005] ss:$2 sm:$0xff]
        %s6007 = scalar_lea.vmem [#allocation3], 144
        %v6008 = vld [vmem:[%s6007] ss:$2 sm:$0x3f]
        %s6009 = scalar_lea.vmem [#allocation3], 160
        %v6010 = vld [vmem:[%s6009] ss:$2 sm:$0xff]
        %s6011 = scalar_lea.vmem [#allocation3], 176
        %v6012 = vld [vmem:[%s6011] ss:$2 sm:$0x3f]
        %s6013 = scalar_lea.vmem [#allocation3], 192
        %v6014 = vld [vmem:[%s6013] ss:$2 sm:$0xff]
        %s6015 = scalar_lea.vmem [#allocation3], 208
        %v6016 = vld [vmem:[%s6015] ss:$2 sm:$0x3f]
        %s6017 = scalar_lea.vmem [#allocation3], 224
        %v6018 = vld [vmem:[%s6017] ss:$2 sm:$0xff]
        %s6019 = scalar_lea.vmem [#allocation3], 240
        %v6020 = vld [vmem:[%s6019] ss:$2 sm:$0x3f]
        %s6021 = scalar_lea.vmem [#allocation3], 256
        %v6022 = vld [vmem:[%s6021] ss:$2 sm:$0xff]
        %s6023 = scalar_lea.vmem [#allocation3], 272
        %v6024 = vld [vmem:[%s6023] ss:$2 sm:$0x3f]
        %s6025 = scalar_lea.vmem [#allocation3], 288
        %v6026 = vld [vmem:[%s6025] ss:$2 sm:$0xff]
        %s6027 = scalar_lea.vmem [#allocation3], 304
        %v6028 = vld [vmem:[%s6027] ss:$2 sm:$0x3f]
        %s6029 = scalar_lea.vmem [#allocation3], 320
        %v6030 = vld [vmem:[%s6029] ss:$2 sm:$0xff]
        %s6031 = scalar_lea.vmem [#allocation3], 336
        %v6032 = vld [vmem:[%s6031] ss:$2 sm:$0x3f]
        %s6033 = scalar_lea.vmem [#allocation3], 352
        %v6034 = vld [vmem:[%s6033] ss:$2 sm:$0xff]
        %s6035 = scalar_lea.vmem [#allocation3], 368
        %v6036 = vld [vmem:[%s6035] ss:$2 sm:$0x3f]
        %s6037 = scalar_lea.vmem [#allocation3], 384
        %v6038 = vld [vmem:[%s6037] ss:$2 sm:$0xff]
        %s6039 = scalar_lea.vmem [#allocation3], 400
        %v6040 = vld [vmem:[%s6039] ss:$2 sm:$0x3f]
        %s6041 = scalar_lea.vmem [#allocation3], 416
        %v6042 = vld [vmem:[%s6041] ss:$2 sm:$0xff]
        %s6043 = scalar_lea.vmem [#allocation3], 432
        %v6044 = vld [vmem:[%s6043] ss:$2 sm:$0x3f]
        %s6045 = scalar_lea.vmem [#allocation3], 1
        %v6046 = vld [vmem:[%s6045] ss:$2 sm:$0xff]
        %s6047 = scalar_lea.vmem [#allocation3], 17
        %v6048 = vld [vmem:[%s6047] ss:$2 sm:$0x3f]
        %s6049 = scalar_lea.vmem [#allocation3], 33
        %v6050 = vld [vmem:[%s6049] ss:$2 sm:$0xff]
        %s6051 = scalar_lea.vmem [#allocation3], 49
        %v6052 = vld [vmem:[%s6051] ss:$2 sm:$0x3f]
        %s6053 = scalar_lea.vmem [#allocation3], 65
        %v6054 = vld [vmem:[%s6053] ss:$2 sm:$0xff]
        %s6055 = scalar_lea.vmem [#allocation3], 81
        %v6056 = vld [vmem:[%s6055] ss:$2 sm:$0x3f]
        %s6057 = scalar_lea.vmem [#allocation3], 97
        %v6058 = vld [vmem:[%s6057] ss:$2 sm:$0xff]
        %s6059 = scalar_lea.vmem [#allocation3], 113
        %v6060 = vld [vmem:[%s6059] ss:$2 sm:$0x3f]
        %s6061 = scalar_lea.vmem [#allocation3], 129
        %v6062 = vld [vmem:[%s6061] ss:$2 sm:$0xff]
        %s6063 = scalar_lea.vmem [#allocation3], 145
        %v6064 = vld [vmem:[%s6063] ss:$2 sm:$0x3f]
        %s6065 = scalar_lea.vmem [#allocation3], 161
        %v6066 = vld [vmem:[%s6065] ss:$2 sm:$0xff]
        %s6067 = scalar_lea.vmem [#allocation3], 177
        %v6068 = vld [vmem:[%s6067] ss:$2 sm:$0x3f]
        %s6069 = scalar_lea.vmem [#allocation3], 193
        %v6070 = vld [vmem:[%s6069] ss:$2 sm:$0xff]
        %s6071 = scalar_lea.vmem [#allocation3], 209
        %v6072 = vld [vmem:[%s6071] ss:$2 sm:$0x3f]
        %s6073 = scalar_lea.vmem [#allocation3], 225
        %v6074 = vld [vmem:[%s6073] ss:$2 sm:$0xff]
        %s6075 = scalar_lea.vmem [#allocation3], 241
        %v6076 = vld [vmem:[%s6075] ss:$2 sm:$0x3f]
        %s6077 = scalar_lea.vmem [#allocation3], 257
        %v6078 = vld [vmem:[%s6077] ss:$2 sm:$0xff]
        %s6079 = scalar_lea.vmem [#allocation3], 273
        %v6080 = vld [vmem:[%s6079] ss:$2 sm:$0x3f]
        %s6081 = scalar_lea.vmem [#allocation3], 289
        %v6082 = vld [vmem:[%s6081] ss:$2 sm:$0xff]
        %s6083 = scalar_lea.vmem [#allocation3], 305
        %v6084 = vld [vmem:[%s6083] ss:$2 sm:$0x3f]
        %s6085 = scalar_lea.vmem [#allocation3], 321
        %v6086 = vld [vmem:[%s6085] ss:$2 sm:$0xff]
        %s6087 = scalar_lea.vmem [#allocation3], 337
        %v6088 = vld [vmem:[%s6087] ss:$2 sm:$0x3f]
        %s6089 = scalar_lea.vmem [#allocation3], 353
        %v6090 = vld [vmem:[%s6089] ss:$2 sm:$0xff]
        %s6091 = scalar_lea.vmem [#allocation3], 369
        %v6092 = vld [vmem:[%s6091] ss:$2 sm:$0x3f]
        %s6093 = scalar_lea.vmem [#allocation3], 385
        %v6094 = vld [vmem:[%s6093] ss:$2 sm:$0xff]
        %s6095 = scalar_lea.vmem [#allocation3], 401
        %v6096 = vld [vmem:[%s6095] ss:$2 sm:$0x3f]
        %s6097 = scalar_lea.vmem [#allocation3], 417
        %v6098 = vld [vmem:[%s6097] ss:$2 sm:$0xff]
        %s6099 = scalar_lea.vmem [#allocation3], 433
        %v6100 = vld [vmem:[%s6099] ss:$2 sm:$0x3f]
        %v6101 = vmax.f32 %v5990, %v6046
        %v6102 = vmax.f32 %v5992, %v6048
        %v6103 = vmax.f32 %v5994, %v6050
        %v6104 = vmax.f32 %v5996, %v6052
        %v6105 = vmax.f32 %v5998, %v6054
        %v6106 = vmax.f32 %v6000, %v6056
        %v6107 = vmax.f32 %v6002, %v6058
        %v6108 = vmax.f32 %v6004, %v6060
        %v6109 = vmax.f32 %v6006, %v6062
        %v6110 = vmax.f32 %v6008, %v6064
        %v6111 = vmax.f32 %v6010, %v6066
        %v6112 = vmax.f32 %v6012, %v6068
        %v6113 = vmax.f32 %v6014, %v6070
        %v6114 = vmax.f32 %v6016, %v6072
        %v6115 = vmax.f32 %v6018, %v6074
        %v6116 = vmax.f32 %v6020, %v6076
        %v6117 = vmax.f32 %v6022, %v6078
        %v6118 = vmax.f32 %v6024, %v6080
        %v6119 = vmax.f32 %v6026, %v6082
        %v6120 = vmax.f32 %v6028, %v6084
        %v6121 = vmax.f32 %v6030, %v6086
        %v6122 = vmax.f32 %v6032, %v6088
        %v6123 = vmax.f32 %v6034, %v6090
        %v6124 = vmax.f32 %v6036, %v6092
        %v6125 = vmax.f32 %v6038, %v6094
        %v6126 = vmax.f32 %v6040, %v6096
        %v6127 = vmax.f32 %v6042, %v6098
        %v6128 = vmax.f32 %v6044, %v6100
        %v6129 = vld [vmem:[%s2] sm:$0x1]
        %v6131 = vlaneseq
        %v6132 = vshrl.u32 %v6131, 7
        %v6133 = vsub.s32 0, %v6132
        %v6134 = vrot.slane %v6129, %v6133
        %v6136 = vadd.f32 %v6101, %v6134
        %v6137 = vadd.f32 %v6102, %v6134
        %v6138 = vadd.f32 %v6103, %v6134
        %v6139 = vadd.f32 %v6104, %v6134
        %v6140 = vadd.f32 %v6105, %v6134
        %v6141 = vadd.f32 %v6106, %v6134
        %v6142 = vadd.f32 %v6107, %v6134
        %v6143 = vadd.f32 %v6108, %v6134
        %v6144 = vadd.f32 %v6109, %v6134
        %v6145 = vadd.f32 %v6110, %v6134
        %v6146 = vadd.f32 %v6111, %v6134
        %v6147 = vadd.f32 %v6112, %v6134
        %v6148 = vadd.f32 %v6113, %v6134
        %v6149 = vadd.f32 %v6114, %v6134
        %v6150 = vadd.f32 %v6115, %v6134
        %v6151 = vadd.f32 %v6116, %v6134
        %v6152 = vadd.f32 %v6117, %v6134
        %v6153 = vadd.f32 %v6118, %v6134
        %v6154 = vadd.f32 %v6119, %v6134
        %v6155 = vadd.f32 %v6120, %v6134
        %v6156 = vadd.f32 %v6121, %v6134
        %v6157 = vadd.f32 %v6122, %v6134
        %v6158 = vadd.f32 %v6123, %v6134
        %v6159 = vadd.f32 %v6124, %v6134
        %v6160 = vadd.f32 %v6125, %v6134
        %v6161 = vadd.f32 %v6126, %v6134
        %v6162 = vadd.f32 %v6127, %v6134
        %v6163 = vadd.f32 %v6128, %v6134
        %v6164 = vmax.f32 %v6136, 0.0
        %v6165 = vmax.f32 %v6137, 0.0
        %v6166 = vmax.f32 %v6138, 0.0
        %v6167 = vmax.f32 %v6139, 0.0
        %v6168 = vmax.f32 %v6140, 0.0
        %v6169 = vmax.f32 %v6141, 0.0
        %v6170 = vmax.f32 %v6142, 0.0
        %v6171 = vmax.f32 %v6143, 0.0
        %v6172 = vmax.f32 %v6144, 0.0
        %v6173 = vmax.f32 %v6145, 0.0
        %v6174 = vmax.f32 %v6146, 0.0
        %v6175 = vmax.f32 %v6147, 0.0
        %v6176 = vmax.f32 %v6148, 0.0
        %v6177 = vmax.f32 %v6149, 0.0
        %v6178 = vmax.f32 %v6150, 0.0
        %v6179 = vmax.f32 %v6151, 0.0
        %v6180 = vmax.f32 %v6152, 0.0
        %v6181 = vmax.f32 %v6153, 0.0
        %v6182 = vmax.f32 %v6154, 0.0
        %v6183 = vmax.f32 %v6155, 0.0
        %v6184 = vmax.f32 %v6156, 0.0
        %v6185 = vmax.f32 %v6157, 0.0
        %v6186 = vmax.f32 %v6158, 0.0
        %v6187 = vmax.f32 %v6159, 0.0
        %v6188 = vmax.f32 %v6160, 0.0
        %v6189 = vmax.f32 %v6161, 0.0
        %v6190 = vmax.f32 %v6162, 0.0
        %v6191 = vmax.f32 %v6163, 0.0
        %6192 = vst.msk [vmem:[#allocation4] sm:$0xff] %vm5672, 0.0
        %6193 = vst.msk [vmem:[#allocation4 + $0x8] sm:$0xff] %vm5672, 0.0
        %6194 = vst.msk [vmem:[#allocation4 + $0x10] sm:$0xff] %vm5672, 0.0
        %6195 = vst.msk [vmem:[#allocation4 + $0x18] sm:$0xff] %vm5672, 0.0
        %6196 = vst.msk [vmem:[#allocation4 + $0x20] sm:$0xff] %vm5672, 0.0
        %6197 = vst.msk [vmem:[#allocation4 + $0x28] sm:$0xff] %vm5672, 0.0
        %6198 = vst.msk [vmem:[#allocation4 + $0x30] sm:$0xff] %vm5672, 0.0
        %6199 = vst.msk [vmem:[#allocation4 + $0x38] sm:$0xff] %vm5672, 0.0
        %6200 = vst.msk [vmem:[#allocation4 + $0x40] sm:$0xff] %vm5672, 0.0
        %6201 = vst.msk [vmem:[#allocation4 + $0x48] sm:$0xff] %vm5672, 0.0
        %6202 = vst.msk [vmem:[#allocation4 + $0x50] sm:$0xff] %vm5672, 0.0
        %6203 = vst.msk [vmem:[#allocation4 + $0x58] sm:$0xff] %vm5672, 0.0
        %6204 = vst.msk [vmem:[#allocation4 + $0x60] sm:$0xff] %vm5672, 0.0
        %6205 = vst.msk [vmem:[#allocation4 + $0x68] sm:$0xff] %vm5672, 0.0
        %6206 = vst.msk [vmem:[#allocation4 + $0x70] sm:$0xff] %vm5672, 0.0
        %6207 = vst.msk [vmem:[#allocation4 + $0x78] sm:$0xff] %vm5672, 0.0
        %6208 = vst.msk [vmem:[#allocation4 + $0x80] sm:$0xff] %vm5672, 0.0
        %6209 = vst.msk [vmem:[#allocation4 + $0x88] sm:$0xff] %vm5672, 0.0
        %6210 = vst.msk [vmem:[#allocation4 + $0x90] sm:$0xff] %vm5672, 0.0
        %6211 = vst.msk [vmem:[#allocation4 + $0x98] sm:$0xff] %vm5672, 0.0
        %6212 = vst.msk [vmem:[#allocation4 + $0xa0] sm:$0xff] %vm5672, 0.0
        %6213 = vst.msk [vmem:[#allocation4 + $0xa8] sm:$0xff] %vm5672, 0.0
        %6214 = vst.msk [vmem:[#allocation4 + $0xb0] sm:$0xff] %vm5672, 0.0
        %6215 = vst.msk [vmem:[#allocation4 + $0xb8] sm:$0xff] %vm5672, 0.0
        %6216 = vst.msk [vmem:[#allocation4 + $0xc0] sm:$0xff] %vm5672, 0.0
        %6217 = vst.msk [vmem:[#allocation4 + $0xc8] sm:$0xff] %vm5672, 0.0
        %6218 = vst.msk [vmem:[#allocation4 + $0xd0] sm:$0xff] %vm5672, 0.0
        %6219 = vst.msk [vmem:[#allocation4 + $0xd8] sm:$0xff] %vm5672, 0.0
        %6220 = vst.msk [vmem:[#allocation4 + $0xe0] sm:$0xff] %vm5672, 0.0
        %6221 = vst.msk [vmem:[#allocation4 + $0xe8] sm:$0xff] %vm5672, 0.0
        %6222 = vst.msk [vmem:[#allocation4 + $0xf0] sm:$0xff] %vm5672, 0.0
        %6223 = vst.msk [vmem:[#allocation4 + $0xf8] sm:$0xff] %vm5672, 0.0
        %s6224 = scalar_lea.vmem [#allocation4], 16
        %6225 = vst.msk [vmem:[%s6224 + $0x1] sm:$0xff] %vm5672, %v6164
        %vm6226 = vcmask 259072
        %6227 = vst.msk [vmem:[%s6224 + $0x9] sm:$0x3f] %vm6226, %v6165
        %6228 = vst.msk [vmem:[%s6224 + $0x11] sm:$0xff] %vm5672, %v6166
        %6229 = vst.msk [vmem:[%s6224 + $0x19] sm:$0x3f] %vm6226, %v6167
        %6230 = vst.msk [vmem:[%s6224 + $0x21] sm:$0xff] %vm5672, %v6168
        %6231 = vst.msk [vmem:[%s6224 + $0x29] sm:$0x3f] %vm6226, %v6169
        %6232 = vst.msk [vmem:[%s6224 + $0x31] sm:$0xff] %vm5672, %v6170
        %6233 = vst.msk [vmem:[%s6224 + $0x39] sm:$0x3f] %vm6226, %v6171
        %6234 = vst.msk [vmem:[%s6224 + $0x41] sm:$0xff] %vm5672, %v6172
        %6235 = vst.msk [vmem:[%s6224 + $0x49] sm:$0x3f] %vm6226, %v6173
        %6236 = vst.msk [vmem:[%s6224 + $0x51] sm:$0xff] %vm5672, %v6174
        %6237 = vst.msk [vmem:[%s6224 + $0x59] sm:$0x3f] %vm6226, %v6175
        %6238 = vst.msk [vmem:[%s6224 + $0x61] sm:$0xff] %vm5672, %v6176
        %6239 = vst.msk [vmem:[%s6224 + $0x69] sm:$0x3f] %vm6226, %v6177
        %6240 = vst.msk [vmem:[%s6224 + $0x71] sm:$0xff] %vm5672, %v6178
        %6241 = vst.msk [vmem:[%s6224 + $0x79] sm:$0x3f] %vm6226, %v6179
        %6242 = vst.msk [vmem:[%s6224 + $0x81] sm:$0xff] %vm5672, %v6180
        %6243 = vst.msk [vmem:[%s6224 + $0x89] sm:$0x3f] %vm6226, %v6181
        %6244 = vst.msk [vmem:[%s6224 + $0x91] sm:$0xff] %vm5672, %v6182
        %6245 = vst.msk [vmem:[%s6224 + $0x99] sm:$0x3f] %vm6226, %v6183
        %6246 = vst.msk [vmem:[%s6224 + $0xa1] sm:$0xff] %vm5672, %v6184
        %6247 = vst.msk [vmem:[%s6224 + $0xa9] sm:$0x3f] %vm6226, %v6185
        %6248 = vst.msk [vmem:[%s6224 + $0xb1] sm:$0xff] %vm5672, %v6186
        %6249 = vst.msk [vmem:[%s6224 + $0xb9] sm:$0x3f] %vm6226, %v6187
        %6250 = vst.msk [vmem:[%s6224 + $0xc1] sm:$0xff] %vm5672, %v6188
        %6251 = vst.msk [vmem:[%s6224 + $0xc9] sm:$0x3f] %vm6226, %v6189
        %6252 = vst.msk [vmem:[%s6224 + $0xd1] sm:$0xff] %vm5672, %v6190
        %6253 = vst.msk [vmem:[%s6224 + $0xd9] sm:$0x3f] %vm6226, %v6191
        %v6254 = vld [vmem:[#allocation4] sm:$0xff]
        %v6255 = vld [vmem:[#allocation4 + $0x8] sm:$0x3f]
        %v6256 = vld [vmem:[#allocation4 + $0x10] sm:$0xff]
        %v6257 = vld [vmem:[#allocation4 + $0x18] sm:$0x3f]
        %v6258 = vld [vmem:[#allocation4 + $0x20] sm:$0xff]
        %v6259 = vld [vmem:[#allocation4 + $0x28] sm:$0x3f]
        %v6260 = vld [vmem:[#allocation4 + $0x30] sm:$0xff]
        %v6261 = vld [vmem:[#allocation4 + $0x38] sm:$0x3f]
        %v6262 = vld [vmem:[#allocation4 + $0x40] sm:$0xff]
        %v6263 = vld [vmem:[#allocation4 + $0x48] sm:$0x3f]
        %v6264 = vld [vmem:[#allocation4 + $0x50] sm:$0xff]
        %v6265 = vld [vmem:[#allocation4 + $0x58] sm:$0x3f]
        %v6266 = vld [vmem:[#allocation4 + $0x60] sm:$0xff]
        %v6267 = vld [vmem:[#allocation4 + $0x68] sm:$0x3f]
        %v6268 = vld [vmem:[#allocation4 + $0x70] sm:$0xff]
        %v6269 = vld [vmem:[#allocation4 + $0x78] sm:$0x3f]
        %v6270 = vld [vmem:[#allocation4 + $0x80] sm:$0xff]
        %v6271 = vld [vmem:[#allocation4 + $0x88] sm:$0x3f]
        %v6272 = vld [vmem:[#allocation4 + $0x90] sm:$0xff]
        %v6273 = vld [vmem:[#allocation4 + $0x98] sm:$0x3f]
        %v6274 = vld [vmem:[#allocation4 + $0xa0] sm:$0xff]
        %v6275 = vld [vmem:[#allocation4 + $0xa8] sm:$0x3f]
        %v6276 = vld [vmem:[#allocation4 + $0xb0] sm:$0xff]
        %v6277 = vld [vmem:[#allocation4 + $0xb8] sm:$0x3f]
        %v6278 = vld [vmem:[#allocation4 + $0xc0] sm:$0xff]
        %v6279 = vld [vmem:[#allocation4 + $0xc8] sm:$0x3f]
        %v6280 = vld [vmem:[#allocation4 + $0xd0] sm:$0xff]
        %v6281 = vld [vmem:[#allocation4 + $0xd8] sm:$0x3f]
        %v6282 = vld [vmem:[#allocation4 + $0x1] sm:$0xff]
        %v6283 = vld [vmem:[#allocation4 + $0x9] sm:$0x3f]
        %v6284 = vld [vmem:[#allocation4 + $0x11] sm:$0xff]
        %v6285 = vld [vmem:[#allocation4 + $0x19] sm:$0x3f]
        %v6286 = vld [vmem:[#allocation4 + $0x21] sm:$0xff]
        %v6287 = vld [vmem:[#allocation4 + $0x29] sm:$0x3f]
        %v6288 = vld [vmem:[#allocation4 + $0x31] sm:$0xff]
        %v6289 = vld [vmem:[#allocation4 + $0x39] sm:$0x3f]
        %v6290 = vld [vmem:[#allocation4 + $0x41] sm:$0xff]
        %v6291 = vld [vmem:[#allocation4 + $0x49] sm:$0x3f]
        %v6292 = vld [vmem:[#allocation4 + $0x51] sm:$0xff]
        %v6293 = vld [vmem:[#allocation4 + $0x59] sm:$0x3f]
        %v6294 = vld [vmem:[#allocation4 + $0x61] sm:$0xff]
        %v6295 = vld [vmem:[#allocation4 + $0x69] sm:$0x3f]
        %v6296 = vld [vmem:[#allocation4 + $0x71] sm:$0xff]
        %v6297 = vld [vmem:[#allocation4 + $0x79] sm:$0x3f]
        %v6298 = vld [vmem:[#allocation4 + $0x81] sm:$0xff]
        %v6299 = vld [vmem:[#allocation4 + $0x89] sm:$0x3f]
        %v6300 = vld [vmem:[#allocation4 + $0x91] sm:$0xff]
        %v6301 = vld [vmem:[#allocation4 + $0x99] sm:$0x3f]
        %v6302 = vld [vmem:[#allocation4 + $0xa1] sm:$0xff]
        %v6303 = vld [vmem:[#allocation4 + $0xa9] sm:$0x3f]
        %v6304 = vld [vmem:[#allocation4 + $0xb1] sm:$0xff]
        %v6305 = vld [vmem:[#allocation4 + $0xb9] sm:$0x3f]
        %v6306 = vld [vmem:[#allocation4 + $0xc1] sm:$0xff]
        %v6307 = vld [vmem:[#allocation4 + $0xc9] sm:$0x3f]
        %v6308 = vld [vmem:[#allocation4 + $0xd1] sm:$0xff]
        %v6309 = vld [vmem:[#allocation4 + $0xd9] sm:$0x3f]
        %v6310 = vld [vmem:[#allocation4 + $0x2] sm:$0xff]
        %v6311 = vld [vmem:[#allocation4 + $0xa] sm:$0x3f]
        %v6312 = vld [vmem:[#allocation4 + $0x12] sm:$0xff]
        %v6313 = vld [vmem:[#allocation4 + $0x1a] sm:$0x3f]
        %v6314 = vld [vmem:[#allocation4 + $0x22] sm:$0xff]
        %v6315 = vld [vmem:[#allocation4 + $0x2a] sm:$0x3f]
        %v6316 = vld [vmem:[#allocation4 + $0x32] sm:$0xff]
        %v6317 = vld [vmem:[#allocation4 + $0x3a] sm:$0x3f]
        %v6318 = vld [vmem:[#allocation4 + $0x42] sm:$0xff]
        %v6319 = vld [vmem:[#allocation4 + $0x4a] sm:$0x3f]
        %v6320 = vld [vmem:[#allocation4 + $0x52] sm:$0xff]
        %v6321 = vld [vmem:[#allocation4 + $0x5a] sm:$0x3f]
        %v6322 = vld [vmem:[#allocation4 + $0x62] sm:$0xff]
        %v6323 = vld [vmem:[#allocation4 + $0x6a] sm:$0x3f]
        %v6324 = vld [vmem:[#allocation4 + $0x72] sm:$0xff]
        %v6325 = vld [vmem:[#allocation4 + $0x7a] sm:$0x3f]
        %v6326 = vld [vmem:[#allocation4 + $0x82] sm:$0xff]
        %v6327 = vld [vmem:[#allocation4 + $0x8a] sm:$0x3f]
        %v6328 = vld [vmem:[#allocation4 + $0x92] sm:$0xff]
        %v6329 = vld [vmem:[#allocation4 + $0x9a] sm:$0x3f]
        %v6330 = vld [vmem:[#allocation4 + $0xa2] sm:$0xff]
        %v6331 = vld [vmem:[#allocation4 + $0xaa] sm:$0x3f]
        %v6332 = vld [vmem:[#allocation4 + $0xb2] sm:$0xff]
        %v6333 = vld [vmem:[#allocation4 + $0xba] sm:$0x3f]
        %v6334 = vld [vmem:[#allocation4 + $0xc2] sm:$0xff]
        %v6335 = vld [vmem:[#allocation4 + $0xca] sm:$0x3f]
        %v6336 = vld [vmem:[#allocation4 + $0xd2] sm:$0xff]
        %v6337 = vld [vmem:[#allocation4 + $0xda] sm:$0x3f]
        %v6338 = vld [vmem:[%s6224] sm:$0xff]
        %v6339 = vld [vmem:[%s6224 + $0x8] sm:$0x3f]
        %v6340 = vld [vmem:[%s6224 + $0x10] sm:$0xff]
        %v6341 = vld [vmem:[%s6224 + $0x18] sm:$0x3f]
        %v6342 = vld [vmem:[%s6224 + $0x20] sm:$0xff]
        %v6343 = vld [vmem:[%s6224 + $0x28] sm:$0x3f]
        %v6344 = vld [vmem:[%s6224 + $0x30] sm:$0xff]
        %v6345 = vld [vmem:[%s6224 + $0x38] sm:$0x3f]
        %v6346 = vld [vmem:[%s6224 + $0x40] sm:$0xff]
        %v6347 = vld [vmem:[%s6224 + $0x48] sm:$0x3f]
        %v6348 = vld [vmem:[%s6224 + $0x50] sm:$0xff]
        %v6349 = vld [vmem:[%s6224 + $0x58] sm:$0x3f]
        %v6350 = vld [vmem:[%s6224 + $0x60] sm:$0xff]
        %v6351 = vld [vmem:[%s6224 + $0x68] sm:$0x3f]
        %v6352 = vld [vmem:[%s6224 + $0x70] sm:$0xff]
        %v6353 = vld [vmem:[%s6224 + $0x78] sm:$0x3f]
        %v6354 = vld [vmem:[%s6224 + $0x80] sm:$0xff]
        %v6355 = vld [vmem:[%s6224 + $0x88] sm:$0x3f]
        %v6356 = vld [vmem:[%s6224 + $0x90] sm:$0xff]
        %v6357 = vld [vmem:[%s6224 + $0x98] sm:$0x3f]
        %v6358 = vld [vmem:[%s6224 + $0xa0] sm:$0xff]
        %v6359 = vld [vmem:[%s6224 + $0xa8] sm:$0x3f]
        %v6360 = vld [vmem:[%s6224 + $0xb0] sm:$0xff]
        %v6361 = vld [vmem:[%s6224 + $0xb8] sm:$0x3f]
        %v6362 = vld [vmem:[%s6224 + $0xc0] sm:$0xff]
        %v6363 = vld [vmem:[%s6224 + $0xc8] sm:$0x3f]
        %v6364 = vld [vmem:[%s6224 + $0xd0] sm:$0xff]
        %v6365 = vld [vmem:[%s6224 + $0xd8] sm:$0x3f]
        %v6366 = vld [vmem:[%s6224 + $0x1] sm:$0xff]
        %v6367 = vld [vmem:[%s6224 + $0x9] sm:$0x3f]
        %v6368 = vld [vmem:[%s6224 + $0x11] sm:$0xff]
        %v6369 = vld [vmem:[%s6224 + $0x19] sm:$0x3f]
        %v6370 = vld [vmem:[%s6224 + $0x21] sm:$0xff]
        %v6371 = vld [vmem:[%s6224 + $0x29] sm:$0x3f]
        %v6372 = vld [vmem:[%s6224 + $0x31] sm:$0xff]
        %v6373 = vld [vmem:[%s6224 + $0x39] sm:$0x3f]
        %v6374 = vld [vmem:[%s6224 + $0x41] sm:$0xff]
        %v6375 = vld [vmem:[%s6224 + $0x49] sm:$0x3f]
        %v6376 = vld [vmem:[%s6224 + $0x51] sm:$0xff]
        %v6377 = vld [vmem:[%s6224 + $0x59] sm:$0x3f]
        %v6378 = vld [vmem:[%s6224 + $0x61] sm:$0xff]
        %v6379 = vld [vmem:[%s6224 + $0x69] sm:$0x3f]
        %v6380 = vld [vmem:[%s6224 + $0x71] sm:$0xff]
        %v6381 = vld [vmem:[%s6224 + $0x79] sm:$0x3f]
        %v6382 = vld [vmem:[%s6224 + $0x81] sm:$0xff]
        %v6383 = vld [vmem:[%s6224 + $0x89] sm:$0x3f]
        %v6384 = vld [vmem:[%s6224 + $0x91] sm:$0xff]
        %v6385 = vld [vmem:[%s6224 + $0x99] sm:$0x3f]
        %v6386 = vld [vmem:[%s6224 + $0xa1] sm:$0xff]
        %v6387 = vld [vmem:[%s6224 + $0xa9] sm:$0x3f]
        %v6388 = vld [vmem:[%s6224 + $0xb1] sm:$0xff]
        %v6389 = vld [vmem:[%s6224 + $0xb9] sm:$0x3f]
        %v6390 = vld [vmem:[%s6224 + $0xc1] sm:$0xff]
        %v6391 = vld [vmem:[%s6224 + $0xc9] sm:$0x3f]
        %v6392 = vld [vmem:[%s6224 + $0xd1] sm:$0xff]
        %v6393 = vld [vmem:[%s6224 + $0xd9] sm:$0x3f]
        %v6394 = vld [vmem:[%s6224 + $0x2] sm:$0xff]
        %v6395 = vld [vmem:[%s6224 + $0xa] sm:$0x3f]
        %v6396 = vld [vmem:[%s6224 + $0x12] sm:$0xff]
        %v6397 = vld [vmem:[%s6224 + $0x1a] sm:$0x3f]
        %v6398 = vld [vmem:[%s6224 + $0x22] sm:$0xff]
        %v6399 = vld [vmem:[%s6224 + $0x2a] sm:$0x3f]
        %v6400 = vld [vmem:[%s6224 + $0x32] sm:$0xff]
        %v6401 = vld [vmem:[%s6224 + $0x3a] sm:$0x3f]
        %v6402 = vld [vmem:[%s6224 + $0x42] sm:$0xff]
        %v6403 = vld [vmem:[%s6224 + $0x4a] sm:$0x3f]
        %v6404 = vld [vmem:[%s6224 + $0x52] sm:$0xff]
        %v6405 = vld [vmem:[%s6224 + $0x5a] sm:$0x3f]
        %v6406 = vld [vmem:[%s6224 + $0x62] sm:$0xff]
        %v6407 = vld [vmem:[%s6224 + $0x6a] sm:$0x3f]
        %v6408 = vld [vmem:[%s6224 + $0x72] sm:$0xff]
        %v6409 = vld [vmem:[%s6224 + $0x7a] sm:$0x3f]
        %v6410 = vld [vmem:[%s6224 + $0x82] sm:$0xff]
        %v6411 = vld [vmem:[%s6224 + $0x8a] sm:$0x3f]
        %v6412 = vld [vmem:[%s6224 + $0x92] sm:$0xff]
        %v6413 = vld [vmem:[%s6224 + $0x9a] sm:$0x3f]
        %v6414 = vld [vmem:[%s6224 + $0xa2] sm:$0xff]
        %v6415 = vld [vmem:[%s6224 + $0xaa] sm:$0x3f]
        %v6416 = vld [vmem:[%s6224 + $0xb2] sm:$0xff]
        %v6417 = vld [vmem:[%s6224 + $0xba] sm:$0x3f]
        %v6418 = vld [vmem:[%s6224 + $0xc2] sm:$0xff]
        %v6419 = vld [vmem:[%s6224 + $0xca] sm:$0x3f]
        %v6420 = vld [vmem:[%s6224 + $0xd2] sm:$0xff]
        %v6421 = vld [vmem:[%s6224 + $0xda] sm:$0x3f]
        %s6422 = scalar_lea.vmem [#allocation4], 32
        %v6423 = vld [vmem:[%s6422] sm:$0xff]
        %v6424 = vld [vmem:[%s6422 + $0x8] sm:$0x3f]
        %v6425 = vld [vmem:[%s6422 + $0x10] sm:$0xff]
        %v6426 = vld [vmem:[%s6422 + $0x18] sm:$0x3f]
        %v6427 = vld [vmem:[%s6422 + $0x20] sm:$0xff]
        %v6428 = vld [vmem:[%s6422 + $0x28] sm:$0x3f]
        %v6429 = vld [vmem:[%s6422 + $0x30] sm:$0xff]
        %v6430 = vld [vmem:[%s6422 + $0x38] sm:$0x3f]
        %v6431 = vld [vmem:[%s6422 + $0x40] sm:$0xff]
        %v6432 = vld [vmem:[%s6422 + $0x48] sm:$0x3f]
        %v6433 = vld [vmem:[%s6422 + $0x50] sm:$0xff]
        %v6434 = vld [vmem:[%s6422 + $0x58] sm:$0x3f]
        %v6435 = vld [vmem:[%s6422 + $0x60] sm:$0xff]
        %v6436 = vld [vmem:[%s6422 + $0x68] sm:$0x3f]
        %v6437 = vld [vmem:[%s6422 + $0x70] sm:$0xff]
        %v6438 = vld [vmem:[%s6422 + $0x78] sm:$0x3f]
        %v6439 = vld [vmem:[%s6422 + $0x80] sm:$0xff]
        %v6440 = vld [vmem:[%s6422 + $0x88] sm:$0x3f]
        %v6441 = vld [vmem:[%s6422 + $0x90] sm:$0xff]
        %v6442 = vld [vmem:[%s6422 + $0x98] sm:$0x3f]
        %v6443 = vld [vmem:[%s6422 + $0xa0] sm:$0xff]
        %v6444 = vld [vmem:[%s6422 + $0xa8] sm:$0x3f]
        %v6445 = vld [vmem:[%s6422 + $0xb0] sm:$0xff]
        %v6446 = vld [vmem:[%s6422 + $0xb8] sm:$0x3f]
        %v6447 = vld [vmem:[%s6422 + $0xc0] sm:$0xff]
        %v6448 = vld [vmem:[%s6422 + $0xc8] sm:$0x3f]
        %v6449 = vld [vmem:[%s6422 + $0xd0] sm:$0xff]
        %v6450 = vld [vmem:[%s6422 + $0xd8] sm:$0x3f]
        %v6451 = vld [vmem:[%s6422 + $0x1] sm:$0xff]
        %v6452 = vld [vmem:[%s6422 + $0x9] sm:$0x3f]
        %v6453 = vld [vmem:[%s6422 + $0x11] sm:$0xff]
        %v6454 = vld [vmem:[%s6422 + $0x19] sm:$0x3f]
        %v6455 = vld [vmem:[%s6422 + $0x21] sm:$0xff]
        %v6456 = vld [vmem:[%s6422 + $0x29] sm:$0x3f]
        %v6457 = vld [vmem:[%s6422 + $0x31] sm:$0xff]
        %v6458 = vld [vmem:[%s6422 + $0x39] sm:$0x3f]
        %v6459 = vld [vmem:[%s6422 + $0x41] sm:$0xff]
        %v6460 = vld [vmem:[%s6422 + $0x49] sm:$0x3f]
        %v6461 = vld [vmem:[%s6422 + $0x51] sm:$0xff]
        %v6462 = vld [vmem:[%s6422 + $0x59] sm:$0x3f]
        %v6463 = vld [vmem:[%s6422 + $0x61] sm:$0xff]
        %v6464 = vld [vmem:[%s6422 + $0x69] sm:$0x3f]
        %v6465 = vld [vmem:[%s6422 + $0x71] sm:$0xff]
        %v6466 = vld [vmem:[%s6422 + $0x79] sm:$0x3f]
        %v6467 = vld [vmem:[%s6422 + $0x81] sm:$0xff]
        %v6468 = vld [vmem:[%s6422 + $0x89] sm:$0x3f]
        %v6469 = vld [vmem:[%s6422 + $0x91] sm:$0xff]
        %v6470 = vld [vmem:[%s6422 + $0x99] sm:$0x3f]
        %v6471 = vld [vmem:[%s6422 + $0xa1] sm:$0xff]
        %v6472 = vld [vmem:[%s6422 + $0xa9] sm:$0x3f]
        %v6473 = vld [vmem:[%s6422 + $0xb1] sm:$0xff]
        %v6474 = vld [vmem:[%s6422 + $0xb9] sm:$0x3f]
        %v6475 = vld [vmem:[%s6422 + $0xc1] sm:$0xff]
        %v6476 = vld [vmem:[%s6422 + $0xc9] sm:$0x3f]
        %v6477 = vld [vmem:[%s6422 + $0xd1] sm:$0xff]
        %v6478 = vld [vmem:[%s6422 + $0xd9] sm:$0x3f]
        %v6479 = vld [vmem:[%s6422 + $0x2] sm:$0xff]
        %v6480 = vld [vmem:[%s6422 + $0xa] sm:$0x3f]
        %v6481 = vld [vmem:[%s6422 + $0x12] sm:$0xff]
        %v6482 = vld [vmem:[%s6422 + $0x1a] sm:$0x3f]
        %v6483 = vld [vmem:[%s6422 + $0x22] sm:$0xff]
        %v6484 = vld [vmem:[%s6422 + $0x2a] sm:$0x3f]
        %v6485 = vld [vmem:[%s6422 + $0x32] sm:$0xff]
        %v6486 = vld [vmem:[%s6422 + $0x3a] sm:$0x3f]
        %v6487 = vld [vmem:[%s6422 + $0x42] sm:$0xff]
        %v6488 = vld [vmem:[%s6422 + $0x4a] sm:$0x3f]
        %v6489 = vld [vmem:[%s6422 + $0x52] sm:$0xff]
        %v6490 = vld [vmem:[%s6422 + $0x5a] sm:$0x3f]
        %v6491 = vld [vmem:[%s6422 + $0x62] sm:$0xff]
        %v6492 = vld [vmem:[%s6422 + $0x6a] sm:$0x3f]
        %v6493 = vld [vmem:[%s6422 + $0x72] sm:$0xff]
        %v6494 = vld [vmem:[%s6422 + $0x7a] sm:$0x3f]
        %v6495 = vld [vmem:[%s6422 + $0x82] sm:$0xff]
        %v6496 = vld [vmem:[%s6422 + $0x8a] sm:$0x3f]
        %v6497 = vld [vmem:[%s6422 + $0x92] sm:$0xff]
        %v6498 = vld [vmem:[%s6422 + $0x9a] sm:$0x3f]
        %v6499 = vld [vmem:[%s6422 + $0xa2] sm:$0xff]
        %v6500 = vld [vmem:[%s6422 + $0xaa] sm:$0x3f]
        %v6501 = vld [vmem:[%s6422 + $0xb2] sm:$0xff]
        %v6502 = vld [vmem:[%s6422 + $0xba] sm:$0x3f]
        %v6503 = vld [vmem:[%s6422 + $0xc2] sm:$0xff]
        %v6504 = vld [vmem:[%s6422 + $0xca] sm:$0x3f]
        %v6505 = vld [vmem:[%s6422 + $0xd2] sm:$0xff]
        %v6506 = vld [vmem:[%s6422 + $0xda] sm:$0x3f]
        %6535 = vrot.lane.b32.xlu0 %v6282, 32
        %v6536 = vpop.permute.xlu0 %6535
        %6537 = vrot.lane.b32.xlu0 %v6283, 32
        %v6538 = vpop.permute.xlu0 %6537
        %6539 = vrot.lane.b32.xlu0 %v6284, 32
        %v6540 = vpop.permute.xlu0 %6539
        %6541 = vrot.lane.b32.xlu0 %v6285, 32
        %v6542 = vpop.permute.xlu0 %6541
        %6543 = vrot.lane.b32.xlu0 %v6286, 32
        %v6544 = vpop.permute.xlu0 %6543
        %6545 = vrot.lane.b32.xlu0 %v6287, 32
        %v6546 = vpop.permute.xlu0 %6545
        %6547 = vrot.lane.b32.xlu0 %v6288, 32
        %v6548 = vpop.permute.xlu0 %6547
        %6549 = vrot.lane.b32.xlu0 %v6289, 32
        %v6550 = vpop.permute.xlu0 %6549
        %6551 = vrot.lane.b32.xlu0 %v6290, 32
        %v6552 = vpop.permute.xlu0 %6551
        %6553 = vrot.lane.b32.xlu0 %v6291, 32
        %v6554 = vpop.permute.xlu0 %6553
        %6555 = vrot.lane.b32.xlu0 %v6292, 32
        %v6556 = vpop.permute.xlu0 %6555
        %6557 = vrot.lane.b32.xlu0 %v6293, 32
        %v6558 = vpop.permute.xlu0 %6557
        %6559 = vrot.lane.b32.xlu0 %v6294, 32
        %v6560 = vpop.permute.xlu0 %6559
        %6561 = vrot.lane.b32.xlu0 %v6295, 32
        %v6562 = vpop.permute.xlu0 %6561
        %6563 = vrot.lane.b32.xlu0 %v6296, 32
        %v6564 = vpop.permute.xlu0 %6563
        %6565 = vrot.lane.b32.xlu0 %v6297, 32
        %v6566 = vpop.permute.xlu0 %6565
        %6567 = vrot.lane.b32.xlu0 %v6298, 32
        %v6568 = vpop.permute.xlu0 %6567
        %6569 = vrot.lane.b32.xlu0 %v6299, 32
        %v6570 = vpop.permute.xlu0 %6569
        %6571 = vrot.lane.b32.xlu0 %v6300, 32
        %v6572 = vpop.permute.xlu0 %6571
        %6573 = vrot.lane.b32.xlu0 %v6301, 32
        %v6574 = vpop.permute.xlu0 %6573
        %6575 = vrot.lane.b32.xlu0 %v6302, 32
        %v6576 = vpop.permute.xlu0 %6575
        %6577 = vrot.lane.b32.xlu0 %v6303, 32
        %v6578 = vpop.permute.xlu0 %6577
        %6579 = vrot.lane.b32.xlu0 %v6304, 32
        %v6580 = vpop.permute.xlu0 %6579
        %6581 = vrot.lane.b32.xlu0 %v6305, 32
        %v6582 = vpop.permute.xlu0 %6581
        %6583 = vrot.lane.b32.xlu0 %v6306, 32
        %v6584 = vpop.permute.xlu0 %6583
        %6585 = vrot.lane.b32.xlu0 %v6307, 32
        %v6586 = vpop.permute.xlu0 %6585
        %6587 = vrot.lane.b32.xlu0 %v6308, 32
        %v6588 = vpop.permute.xlu0 %6587
        %6589 = vrot.lane.b32.xlu0 %v6309, 32
        %v6590 = vpop.permute.xlu0 %6589
        %6647 = vrot.lane.b32.xlu0 %v6310, 64
        %v6648 = vpop.permute.xlu0 %6647
        %6649 = vrot.lane.b32.xlu0 %v6311, 64
        %v6650 = vpop.permute.xlu0 %6649
        %6651 = vrot.lane.b32.xlu0 %v6312, 64
        %v6652 = vpop.permute.xlu0 %6651
        %6653 = vrot.lane.b32.xlu0 %v6313, 64
        %v6654 = vpop.permute.xlu0 %6653
        %6655 = vrot.lane.b32.xlu0 %v6314, 64
        %v6656 = vpop.permute.xlu0 %6655
        %6657 = vrot.lane.b32.xlu0 %v6315, 64
        %v6658 = vpop.permute.xlu0 %6657
        %6659 = vrot.lane.b32.xlu0 %v6316, 64
        %v6660 = vpop.permute.xlu0 %6659
        %6661 = vrot.lane.b32.xlu0 %v6317, 64
        %v6662 = vpop.permute.xlu0 %6661
        %6663 = vrot.lane.b32.xlu0 %v6318, 64
        %v6664 = vpop.permute.xlu0 %6663
        %6665 = vrot.lane.b32.xlu0 %v6319, 64
        %v6666 = vpop.permute.xlu0 %6665
        %6667 = vrot.lane.b32.xlu0 %v6320, 64
        %v6668 = vpop.permute.xlu0 %6667
        %6669 = vrot.lane.b32.xlu0 %v6321, 64
        %v6670 = vpop.permute.xlu0 %6669
        %6671 = vrot.lane.b32.xlu0 %v6322, 64
        %v6672 = vpop.permute.xlu0 %6671
        %6673 = vrot.lane.b32.xlu0 %v6323, 64
        %v6674 = vpop.permute.xlu0 %6673
        %6675 = vrot.lane.b32.xlu0 %v6324, 64
        %v6676 = vpop.permute.xlu0 %6675
        %6677 = vrot.lane.b32.xlu0 %v6325, 64
        %v6678 = vpop.permute.xlu0 %6677
        %6679 = vrot.lane.b32.xlu0 %v6326, 64
        %v6680 = vpop.permute.xlu0 %6679
        %6681 = vrot.lane.b32.xlu0 %v6327, 64
        %v6682 = vpop.permute.xlu0 %6681
        %6683 = vrot.lane.b32.xlu0 %v6328, 64
        %v6684 = vpop.permute.xlu0 %6683
        %6685 = vrot.lane.b32.xlu0 %v6329, 64
        %v6686 = vpop.permute.xlu0 %6685
        %6687 = vrot.lane.b32.xlu0 %v6330, 64
        %v6688 = vpop.permute.xlu0 %6687
        %6689 = vrot.lane.b32.xlu0 %v6331, 64
        %v6690 = vpop.permute.xlu0 %6689
        %6691 = vrot.lane.b32.xlu0 %v6332, 64
        %v6692 = vpop.permute.xlu0 %6691
        %6693 = vrot.lane.b32.xlu0 %v6333, 64
        %v6694 = vpop.permute.xlu0 %6693
        %6695 = vrot.lane.b32.xlu0 %v6334, 64
        %v6696 = vpop.permute.xlu0 %6695
        %6697 = vrot.lane.b32.xlu0 %v6335, 64
        %v6698 = vpop.permute.xlu0 %6697
        %6699 = vrot.lane.b32.xlu0 %v6336, 64
        %v6700 = vpop.permute.xlu0 %6699
        %6701 = vrot.lane.b32.xlu0 %v6337, 64
        %v6702 = vpop.permute.xlu0 %6701
        %6759 = vrot.lane.b32.xlu0 %v6338, 96
        %v6760 = vpop.permute.xlu0 %6759
        %6761 = vrot.lane.b32.xlu0 %v6339, 96
        %v6762 = vpop.permute.xlu0 %6761
        %6763 = vrot.lane.b32.xlu0 %v6340, 96
        %v6764 = vpop.permute.xlu0 %6763
        %6765 = vrot.lane.b32.xlu0 %v6341, 96
        %v6766 = vpop.permute.xlu0 %6765
        %6767 = vrot.lane.b32.xlu0 %v6342, 96
        %v6768 = vpop.permute.xlu0 %6767
        %6769 = vrot.lane.b32.xlu0 %v6343, 96
        %v6770 = vpop.permute.xlu0 %6769
        %6771 = vrot.lane.b32.xlu0 %v6344, 96
        %v6772 = vpop.permute.xlu0 %6771
        %6773 = vrot.lane.b32.xlu0 %v6345, 96
        %v6774 = vpop.permute.xlu0 %6773
        %6775 = vrot.lane.b32.xlu0 %v6346, 96
        %v6776 = vpop.permute.xlu0 %6775
        %6777 = vrot.lane.b32.xlu0 %v6347, 96
        %v6778 = vpop.permute.xlu0 %6777
        %6779 = vrot.lane.b32.xlu0 %v6348, 96
        %v6780 = vpop.permute.xlu0 %6779
        %6781 = vrot.lane.b32.xlu0 %v6349, 96
        %v6782 = vpop.permute.xlu0 %6781
        %6783 = vrot.lane.b32.xlu0 %v6350, 96
        %v6784 = vpop.permute.xlu0 %6783
        %6785 = vrot.lane.b32.xlu0 %v6351, 96
        %v6786 = vpop.permute.xlu0 %6785
        %6787 = vrot.lane.b32.xlu0 %v6352, 96
        %v6788 = vpop.permute.xlu0 %6787
        %6789 = vrot.lane.b32.xlu0 %v6353, 96
        %v6790 = vpop.permute.xlu0 %6789
        %6791 = vrot.lane.b32.xlu0 %v6354, 96
        %v6792 = vpop.permute.xlu0 %6791
        %6793 = vrot.lane.b32.xlu0 %v6355, 96
        %v6794 = vpop.permute.xlu0 %6793
        %6795 = vrot.lane.b32.xlu0 %v6356, 96
        %v6796 = vpop.permute.xlu0 %6795
        %6797 = vrot.lane.b32.xlu0 %v6357, 96
        %v6798 = vpop.permute.xlu0 %6797
        %6799 = vrot.lane.b32.xlu0 %v6358, 96
        %v6800 = vpop.permute.xlu0 %6799
        %6801 = vrot.lane.b32.xlu0 %v6359, 96
        %v6802 = vpop.permute.xlu0 %6801
        %6803 = vrot.lane.b32.xlu0 %v6360, 96
        %v6804 = vpop.permute.xlu0 %6803
        %6805 = vrot.lane.b32.xlu0 %v6361, 96
        %v6806 = vpop.permute.xlu0 %6805
        %6807 = vrot.lane.b32.xlu0 %v6362, 96
        %v6808 = vpop.permute.xlu0 %6807
        %6809 = vrot.lane.b32.xlu0 %v6363, 96
        %v6810 = vpop.permute.xlu0 %6809
        %6811 = vrot.lane.b32.xlu0 %v6364, 96
        %v6812 = vpop.permute.xlu0 %6811
        %6813 = vrot.lane.b32.xlu0 %v6365, 96
        %v6814 = vpop.permute.xlu0 %6813
        %6871 = vrot.lane.b32.xlu0 %v6394, 32
        %v6872 = vpop.permute.xlu0 %6871
        %6873 = vrot.lane.b32.xlu0 %v6395, 32
        %v6874 = vpop.permute.xlu0 %6873
        %6875 = vrot.lane.b32.xlu0 %v6396, 32
        %v6876 = vpop.permute.xlu0 %6875
        %6877 = vrot.lane.b32.xlu0 %v6397, 32
        %v6878 = vpop.permute.xlu0 %6877
        %6879 = vrot.lane.b32.xlu0 %v6398, 32
        %v6880 = vpop.permute.xlu0 %6879
        %6881 = vrot.lane.b32.xlu0 %v6399, 32
        %v6882 = vpop.permute.xlu0 %6881
        %6883 = vrot.lane.b32.xlu0 %v6400, 32
        %v6884 = vpop.permute.xlu0 %6883
        %6885 = vrot.lane.b32.xlu0 %v6401, 32
        %v6886 = vpop.permute.xlu0 %6885
        %6887 = vrot.lane.b32.xlu0 %v6402, 32
        %v6888 = vpop.permute.xlu0 %6887
        %6889 = vrot.lane.b32.xlu0 %v6403, 32
        %v6890 = vpop.permute.xlu0 %6889
        %6891 = vrot.lane.b32.xlu0 %v6404, 32
        %v6892 = vpop.permute.xlu0 %6891
        %6893 = vrot.lane.b32.xlu0 %v6405, 32
        %v6894 = vpop.permute.xlu0 %6893
        %6895 = vrot.lane.b32.xlu0 %v6406, 32
        %v6896 = vpop.permute.xlu0 %6895
        %6897 = vrot.lane.b32.xlu0 %v6407, 32
        %v6898 = vpop.permute.xlu0 %6897
        %6899 = vrot.lane.b32.xlu0 %v6408, 32
        %v6900 = vpop.permute.xlu0 %6899
        %6901 = vrot.lane.b32.xlu0 %v6409, 32
        %v6902 = vpop.permute.xlu0 %6901
        %6903 = vrot.lane.b32.xlu0 %v6410, 32
        %v6904 = vpop.permute.xlu0 %6903
        %6905 = vrot.lane.b32.xlu0 %v6411, 32
        %v6906 = vpop.permute.xlu0 %6905
        %6907 = vrot.lane.b32.xlu0 %v6412, 32
        %v6908 = vpop.permute.xlu0 %6907
        %6909 = vrot.lane.b32.xlu0 %v6413, 32
        %v6910 = vpop.permute.xlu0 %6909
        %6911 = vrot.lane.b32.xlu0 %v6414, 32
        %v6912 = vpop.permute.xlu0 %6911
        %6913 = vrot.lane.b32.xlu0 %v6415, 32
        %v6914 = vpop.permute.xlu0 %6913
        %6915 = vrot.lane.b32.xlu0 %v6416, 32
        %v6916 = vpop.permute.xlu0 %6915
        %6917 = vrot.lane.b32.xlu0 %v6417, 32
        %v6918 = vpop.permute.xlu0 %6917
        %6919 = vrot.lane.b32.xlu0 %v6418, 32
        %v6920 = vpop.permute.xlu0 %6919
        %6921 = vrot.lane.b32.xlu0 %v6419, 32
        %v6922 = vpop.permute.xlu0 %6921
        %6923 = vrot.lane.b32.xlu0 %v6420, 32
        %v6924 = vpop.permute.xlu0 %6923
        %6925 = vrot.lane.b32.xlu0 %v6421, 32
        %v6926 = vpop.permute.xlu0 %6925
        %6983 = vrot.lane.b32.xlu0 %v6423, 64
        %v6984 = vpop.permute.xlu0 %6983
        %6985 = vrot.lane.b32.xlu0 %v6424, 64
        %v6986 = vpop.permute.xlu0 %6985
        %6987 = vrot.lane.b32.xlu0 %v6425, 64
        %v6988 = vpop.permute.xlu0 %6987
        %6989 = vrot.lane.b32.xlu0 %v6426, 64
        %v6990 = vpop.permute.xlu0 %6989
        %6991 = vrot.lane.b32.xlu0 %v6427, 64
        %v6992 = vpop.permute.xlu0 %6991
        %6993 = vrot.lane.b32.xlu0 %v6428, 64
        %v6994 = vpop.permute.xlu0 %6993
        %6995 = vrot.lane.b32.xlu0 %v6429, 64
        %v6996 = vpop.permute.xlu0 %6995
        %6997 = vrot.lane.b32.xlu0 %v6430, 64
        %v6998 = vpop.permute.xlu0 %6997
        %6999 = vrot.lane.b32.xlu0 %v6431, 64
        %v7000 = vpop.permute.xlu0 %6999
        %7001 = vrot.lane.b32.xlu0 %v6432, 64
        %v7002 = vpop.permute.xlu0 %7001
        %7003 = vrot.lane.b32.xlu0 %v6433, 64
        %v7004 = vpop.permute.xlu0 %7003
        %7005 = vrot.lane.b32.xlu0 %v6434, 64
        %v7006 = vpop.permute.xlu0 %7005
        %7007 = vrot.lane.b32.xlu0 %v6435, 64
        %v7008 = vpop.permute.xlu0 %7007
        %7009 = vrot.lane.b32.xlu0 %v6436, 64
        %v7010 = vpop.permute.xlu0 %7009
        %7011 = vrot.lane.b32.xlu0 %v6437, 64
        %v7012 = vpop.permute.xlu0 %7011
        %7013 = vrot.lane.b32.xlu0 %v6438, 64
        %v7014 = vpop.permute.xlu0 %7013
        %7015 = vrot.lane.b32.xlu0 %v6439, 64
        %v7016 = vpop.permute.xlu0 %7015
        %7017 = vrot.lane.b32.xlu0 %v6440, 64
        %v7018 = vpop.permute.xlu0 %7017
        %7019 = vrot.lane.b32.xlu0 %v6441, 64
        %v7020 = vpop.permute.xlu0 %7019
        %7021 = vrot.lane.b32.xlu0 %v6442, 64
        %v7022 = vpop.permute.xlu0 %7021
        %7023 = vrot.lane.b32.xlu0 %v6443, 64
        %v7024 = vpop.permute.xlu0 %7023
        %7025 = vrot.lane.b32.xlu0 %v6444, 64
        %v7026 = vpop.permute.xlu0 %7025
        %7027 = vrot.lane.b32.xlu0 %v6445, 64
        %v7028 = vpop.permute.xlu0 %7027
        %7029 = vrot.lane.b32.xlu0 %v6446, 64
        %v7030 = vpop.permute.xlu0 %7029
        %7031 = vrot.lane.b32.xlu0 %v6447, 64
        %v7032 = vpop.permute.xlu0 %7031
        %7033 = vrot.lane.b32.xlu0 %v6448, 64
        %v7034 = vpop.permute.xlu0 %7033
        %7035 = vrot.lane.b32.xlu0 %v6449, 64
        %v7036 = vpop.permute.xlu0 %7035
        %7037 = vrot.lane.b32.xlu0 %v6450, 64
        %v7038 = vpop.permute.xlu0 %7037
        %7095 = vrot.lane.b32.xlu0 %v6451, 96
        %v7096 = vpop.permute.xlu0 %7095
        %7097 = vrot.lane.b32.xlu0 %v6452, 96
        %v7098 = vpop.permute.xlu0 %7097
        %7099 = vrot.lane.b32.xlu0 %v6453, 96
        %v7100 = vpop.permute.xlu0 %7099
        %7101 = vrot.lane.b32.xlu0 %v6454, 96
        %v7102 = vpop.permute.xlu0 %7101
        %7103 = vrot.lane.b32.xlu0 %v6455, 96
        %v7104 = vpop.permute.xlu0 %7103
        %7105 = vrot.lane.b32.xlu0 %v6456, 96
        %v7106 = vpop.permute.xlu0 %7105
        %7107 = vrot.lane.b32.xlu0 %v6457, 96
        %v7108 = vpop.permute.xlu0 %7107
        %7109 = vrot.lane.b32.xlu0 %v6458, 96
        %v7110 = vpop.permute.xlu0 %7109
        %7111 = vrot.lane.b32.xlu0 %v6459, 96
        %v7112 = vpop.permute.xlu0 %7111
        %7113 = vrot.lane.b32.xlu0 %v6460, 96
        %v7114 = vpop.permute.xlu0 %7113
        %7115 = vrot.lane.b32.xlu0 %v6461, 96
        %v7116 = vpop.permute.xlu0 %7115
        %7117 = vrot.lane.b32.xlu0 %v6462, 96
        %v7118 = vpop.permute.xlu0 %7117
        %7119 = vrot.lane.b32.xlu0 %v6463, 96
        %v7120 = vpop.permute.xlu0 %7119
        %7121 = vrot.lane.b32.xlu0 %v6464, 96
        %v7122 = vpop.permute.xlu0 %7121
        %7123 = vrot.lane.b32.xlu0 %v6465, 96
        %v7124 = vpop.permute.xlu0 %7123
        %7125 = vrot.lane.b32.xlu0 %v6466, 96
        %v7126 = vpop.permute.xlu0 %7125
        %7127 = vrot.lane.b32.xlu0 %v6467, 96
        %v7128 = vpop.permute.xlu0 %7127
        %7129 = vrot.lane.b32.xlu0 %v6468, 96
        %v7130 = vpop.permute.xlu0 %7129
        %7131 = vrot.lane.b32.xlu0 %v6469, 96
        %v7132 = vpop.permute.xlu0 %7131
        %7133 = vrot.lane.b32.xlu0 %v6470, 96
        %v7134 = vpop.permute.xlu0 %7133
        %7135 = vrot.lane.b32.xlu0 %v6471, 96
        %v7136 = vpop.permute.xlu0 %7135
        %7137 = vrot.lane.b32.xlu0 %v6472, 96
        %v7138 = vpop.permute.xlu0 %7137
        %7139 = vrot.lane.b32.xlu0 %v6473, 96
        %v7140 = vpop.permute.xlu0 %7139
        %7141 = vrot.lane.b32.xlu0 %v6474, 96
        %v7142 = vpop.permute.xlu0 %7141
        %7143 = vrot.lane.b32.xlu0 %v6475, 96
        %v7144 = vpop.permute.xlu0 %7143
        %7145 = vrot.lane.b32.xlu0 %v6476, 96
        %v7146 = vpop.permute.xlu0 %7145
        %7147 = vrot.lane.b32.xlu0 %v6477, 96
        %v7148 = vpop.permute.xlu0 %7147
        %7149 = vrot.lane.b32.xlu0 %v6478, 96
        %v7150 = vpop.permute.xlu0 %7149
        %v7179 = vsel %vm5672, %v6254, %v6536
        %v7180 = vsel %vm5672, %v6255, %v6538
        %v7181 = vsel %vm5672, %v6256, %v6540
        %v7182 = vsel %vm5672, %v6257, %v6542
        %v7183 = vsel %vm5672, %v6258, %v6544
        %v7184 = vsel %vm5672, %v6259, %v6546
        %v7185 = vsel %vm5672, %v6260, %v6548
        %v7186 = vsel %vm5672, %v6261, %v6550
        %v7187 = vsel %vm5672, %v6262, %v6552
        %v7188 = vsel %vm5672, %v6263, %v6554
        %v7189 = vsel %vm5672, %v6264, %v6556
        %v7190 = vsel %vm5672, %v6265, %v6558
        %v7191 = vsel %vm5672, %v6266, %v6560
        %v7192 = vsel %vm5672, %v6267, %v6562
        %v7193 = vsel %vm5672, %v6268, %v6564
        %v7194 = vsel %vm5672, %v6269, %v6566
        %v7195 = vsel %vm5672, %v6270, %v6568
        %v7196 = vsel %vm5672, %v6271, %v6570
        %v7197 = vsel %vm5672, %v6272, %v6572
        %v7198 = vsel %vm5672, %v6273, %v6574
        %v7199 = vsel %vm5672, %v6274, %v6576
        %v7200 = vsel %vm5672, %v6275, %v6578
        %v7201 = vsel %vm5672, %v6276, %v6580
        %v7202 = vsel %vm5672, %v6277, %v6582
        %v7203 = vsel %vm5672, %v6278, %v6584
        %v7204 = vsel %vm5672, %v6279, %v6586
        %v7205 = vsel %vm5672, %v6280, %v6588
        %v7206 = vsel %vm5672, %v6281, %v6590
        %vm7207 = vcmask 523264
        %v7208 = vsel %vm7207, %v7179, %v6648
        %v7209 = vsel %vm7207, %v7180, %v6650
        %v7210 = vsel %vm7207, %v7181, %v6652
        %v7211 = vsel %vm7207, %v7182, %v6654
        %v7212 = vsel %vm7207, %v7183, %v6656
        %v7213 = vsel %vm7207, %v7184, %v6658
        %v7214 = vsel %vm7207, %v7185, %v6660
        %v7215 = vsel %vm7207, %v7186, %v6662
        %v7216 = vsel %vm7207, %v7187, %v6664
        %v7217 = vsel %vm7207, %v7188, %v6666
        %v7218 = vsel %vm7207, %v7189, %v6668
        %v7219 = vsel %vm7207, %v7190, %v6670
        %v7220 = vsel %vm7207, %v7191, %v6672
        %v7221 = vsel %vm7207, %v7192, %v6674
        %v7222 = vsel %vm7207, %v7193, %v6676
        %v7223 = vsel %vm7207, %v7194, %v6678
        %v7224 = vsel %vm7207, %v7195, %v6680
        %v7225 = vsel %vm7207, %v7196, %v6682
        %v7226 = vsel %vm7207, %v7197, %v6684
        %v7227 = vsel %vm7207, %v7198, %v6686
        %v7228 = vsel %vm7207, %v7199, %v6688
        %v7229 = vsel %vm7207, %v7200, %v6690
        %v7230 = vsel %vm7207, %v7201, %v6692
        %v7231 = vsel %vm7207, %v7202, %v6694
        %v7232 = vsel %vm7207, %v7203, %v6696
        %v7233 = vsel %vm7207, %v7204, %v6698
        %v7234 = vsel %vm7207, %v7205, %v6700
        %v7235 = vsel %vm7207, %v7206, %v6702
        %vm7236 = vcmask 785408
        %v7237 = vsel %vm7236, %v7208, %v6760
        %v7238 = vsel %vm7236, %v7209, %v6762
        %v7239 = vsel %vm7236, %v7210, %v6764
        %v7240 = vsel %vm7236, %v7211, %v6766
        %v7241 = vsel %vm7236, %v7212, %v6768
        %v7242 = vsel %vm7236, %v7213, %v6770
        %v7243 = vsel %vm7236, %v7214, %v6772
        %v7244 = vsel %vm7236, %v7215, %v6774
        %v7245 = vsel %vm7236, %v7216, %v6776
        %v7246 = vsel %vm7236, %v7217, %v6778
        %v7247 = vsel %vm7236, %v7218, %v6780
        %v7248 = vsel %vm7236, %v7219, %v6782
        %v7249 = vsel %vm7236, %v7220, %v6784
        %v7250 = vsel %vm7236, %v7221, %v6786
        %v7251 = vsel %vm7236, %v7222, %v6788
        %v7252 = vsel %vm7236, %v7223, %v6790
        %v7253 = vsel %vm7236, %v7224, %v6792
        %v7254 = vsel %vm7236, %v7225, %v6794
        %v7255 = vsel %vm7236, %v7226, %v6796
        %v7256 = vsel %vm7236, %v7227, %v6798
        %v7257 = vsel %vm7236, %v7228, %v6800
        %v7258 = vsel %vm7236, %v7229, %v6802
        %v7259 = vsel %vm7236, %v7230, %v6804
        %v7260 = vsel %vm7236, %v7231, %v6806
        %v7261 = vsel %vm7236, %v7232, %v6808
        %v7262 = vsel %vm7236, %v7233, %v6810
        %v7263 = vsel %vm7236, %v7234, %v6812
        %v7264 = vsel %vm7236, %v7235, %v6814
        %v7265 = vsel %vm5672, %v6366, %v6872
        %v7266 = vsel %vm5672, %v6367, %v6874
        %v7267 = vsel %vm5672, %v6368, %v6876
        %v7268 = vsel %vm5672, %v6369, %v6878
        %v7269 = vsel %vm5672, %v6370, %v6880
        %v7270 = vsel %vm5672, %v6371, %v6882
        %v7271 = vsel %vm5672, %v6372, %v6884
        %v7272 = vsel %vm5672, %v6373, %v6886
        %v7273 = vsel %vm5672, %v6374, %v6888
        %v7274 = vsel %vm5672, %v6375, %v6890
        %v7275 = vsel %vm5672, %v6376, %v6892
        %v7276 = vsel %vm5672, %v6377, %v6894
        %v7277 = vsel %vm5672, %v6378, %v6896
        %v7278 = vsel %vm5672, %v6379, %v6898
        %v7279 = vsel %vm5672, %v6380, %v6900
        %v7280 = vsel %vm5672, %v6381, %v6902
        %v7281 = vsel %vm5672, %v6382, %v6904
        %v7282 = vsel %vm5672, %v6383, %v6906
        %v7283 = vsel %vm5672, %v6384, %v6908
        %v7284 = vsel %vm5672, %v6385, %v6910
        %v7285 = vsel %vm5672, %v6386, %v6912
        %v7286 = vsel %vm5672, %v6387, %v6914
        %v7287 = vsel %vm5672, %v6388, %v6916
        %v7288 = vsel %vm5672, %v6389, %v6918
        %v7289 = vsel %vm5672, %v6390, %v6920
        %v7290 = vsel %vm5672, %v6391, %v6922
        %v7291 = vsel %vm5672, %v6392, %v6924
        %v7292 = vsel %vm5672, %v6393, %v6926
        %v7293 = vsel %vm7207, %v7265, %v6984
        %v7294 = vsel %vm7207, %v7266, %v6986
        %v7295 = vsel %vm7207, %v7267, %v6988
        %v7296 = vsel %vm7207, %v7268, %v6990
        %v7297 = vsel %vm7207, %v7269, %v6992
        %v7298 = vsel %vm7207, %v7270, %v6994
        %v7299 = vsel %vm7207, %v7271, %v6996
        %v7300 = vsel %vm7207, %v7272, %v6998
        %v7301 = vsel %vm7207, %v7273, %v7000
        %v7302 = vsel %vm7207, %v7274, %v7002
        %v7303 = vsel %vm7207, %v7275, %v7004
        %v7304 = vsel %vm7207, %v7276, %v7006
        %v7305 = vsel %vm7207, %v7277, %v7008
        %v7306 = vsel %vm7207, %v7278, %v7010
        %v7307 = vsel %vm7207, %v7279, %v7012
        %v7308 = vsel %vm7207, %v7280, %v7014
        %v7309 = vsel %vm7207, %v7281, %v7016
        %v7310 = vsel %vm7207, %v7282, %v7018
        %v7311 = vsel %vm7207, %v7283, %v7020
        %v7312 = vsel %vm7207, %v7284, %v7022
        %v7313 = vsel %vm7207, %v7285, %v7024
        %v7314 = vsel %vm7207, %v7286, %v7026
        %v7315 = vsel %vm7207, %v7287, %v7028
        %v7316 = vsel %vm7207, %v7288, %v7030
        %v7317 = vsel %vm7207, %v7289, %v7032
        %v7318 = vsel %vm7207, %v7290, %v7034
        %v7319 = vsel %vm7207, %v7291, %v7036
        %v7320 = vsel %vm7207, %v7292, %v7038
        %v7321 = vsel %vm7236, %v7293, %v7096
        %v7322 = vsel %vm7236, %v7294, %v7098
        %v7323 = vsel %vm7236, %v7295, %v7100
        %v7324 = vsel %vm7236, %v7296, %v7102
        %v7325 = vsel %vm7236, %v7297, %v7104
        %v7326 = vsel %vm7236, %v7298, %v7106
        %v7327 = vsel %vm7236, %v7299, %v7108
        %v7328 = vsel %vm7236, %v7300, %v7110
        %v7329 = vsel %vm7236, %v7301, %v7112
        %v7330 = vsel %vm7236, %v7302, %v7114
        %v7331 = vsel %vm7236, %v7303, %v7116
        %v7332 = vsel %vm7236, %v7304, %v7118
        %v7333 = vsel %vm7236, %v7305, %v7120
        %v7334 = vsel %vm7236, %v7306, %v7122
        %v7335 = vsel %vm7236, %v7307, %v7124
        %v7336 = vsel %vm7236, %v7308, %v7126
        %v7337 = vsel %vm7236, %v7309, %v7128
        %v7338 = vsel %vm7236, %v7310, %v7130
        %v7339 = vsel %vm7236, %v7311, %v7132
        %v7340 = vsel %vm7236, %v7312, %v7134
        %v7341 = vsel %vm7236, %v7313, %v7136
        %v7342 = vsel %vm7236, %v7314, %v7138
        %v7343 = vsel %vm7236, %v7315, %v7140
        %v7344 = vsel %vm7236, %v7316, %v7142
        %v7345 = vsel %vm7236, %v7317, %v7144
        %v7346 = vsel %vm7236, %v7318, %v7146
        %v7347 = vsel %vm7236, %v7319, %v7148
        %v7348 = vsel %vm7236, %v7320, %v7150
        %7349 = vst [vmem:[#allocation5] sm:$0xff] %v7237
        %7350 = vst [vmem:[#allocation5 + $0x8] sm:$0xff] %v7321
        %7351 = vst.msk [vmem:[#allocation5 + $0x10] sm:$0xff] %vm5672, %v6479
        %7352 = vst [vmem:[#allocation5 + $0x18] sm:$0x3f] %v7238
        %7353 = vst [vmem:[#allocation5 + $0x20] sm:$0x3f] %v7322
        %7354 = vst.msk [vmem:[#allocation5 + $0x28] sm:$0x3f] %vm6226, %v6480
        %v7361 = vrot.slane %v7239, 2
        %v7362 = vrot.slane %v7323, 2
        %v7363 = vrot.slane %v6481, 2
        %v7364 = vrot.slane %v7240, 2
        %v7365 = vsel %vm1096, %v7361, %v7364
        %v7366 = vrot.slane %v7324, 2
        %v7367 = vsel %vm1096, %v7362, %v7366
        %v7368 = vrot.slane %v6482, 2
        %v7369 = vsel %vm1096, %v7363, %v7368
        %7379 = vst [vmem:[#allocation5 + $0x18] sm:$0xc0] %v7361
        %7380 = vst [vmem:[#allocation5 + $0x20] sm:$0xc0] %v7362
        %vm7381 = vcmask 261126
        %7382 = vst.msk [vmem:[#allocation5 + $0x28] sm:$0xc0] %vm7381, %v7363
        %7383 = vst [vmem:[#allocation5 + $0x30] sm:$0xff] %v7365
        %7384 = vst [vmem:[#allocation5 + $0x38] sm:$0xff] %v7367
        %7385 = vst.msk [vmem:[#allocation5 + $0x40] sm:$0xff] %vm5672, %v7369
        %7386 = vst [vmem:[#allocation5 + $0x48] sm:$0xf] %v7364
        %7387 = vst [vmem:[#allocation5 + $0x50] sm:$0xf] %v7366
        %7388 = vst.msk [vmem:[#allocation5 + $0x58] sm:$0xf] %vm5676, %v7368
        %v7395 = vrot.slane %v7241, 4
        %v7396 = vrot.slane %v7325, 4
        %v7397 = vrot.slane %v6483, 4
        %v7398 = vrot.slane %v7242, 4
        %v7399 = vsel %vm5656, %v7395, %v7398
        %v7400 = vrot.slane %v7326, 4
        %v7401 = vsel %vm5656, %v7396, %v7400
        %v7402 = vrot.slane %v6484, 4
        %v7403 = vsel %vm5656, %v7397, %v7402
        %7413 = vst [vmem:[#allocation5 + $0x48] sm:$0xf0] %v7395
        %7414 = vst [vmem:[#allocation5 + $0x50] sm:$0xf0] %v7396
        %vm7415 = vcmask 261124
        %7416 = vst.msk [vmem:[#allocation5 + $0x58] sm:$0xf0] %vm7415, %v7397
        %7417 = vst [vmem:[#allocation5 + $0x60] sm:$0xff] %v7399
        %7418 = vst [vmem:[#allocation5 + $0x68] sm:$0xff] %v7401
        %7419 = vst.msk [vmem:[#allocation5 + $0x70] sm:$0xff] %vm5672, %v7403
        %7420 = vst [vmem:[#allocation5 + $0x78] sm:$0x3] %v7398
        %7421 = vst [vmem:[#allocation5 + $0x80] sm:$0x3] %v7400
        %vm7422 = vcmask 254976
        %7423 = vst.msk [vmem:[#allocation5 + $0x88] sm:$0x3] %vm7422, %v7402
        %vm7430 = vcmask 1041408
        %v7431 = vrot.slane %v7243, 6
        %v7432 = vrot.slane %v7327, 6
        %v7433 = vrot.slane %v6485, 6
        %v7434 = vrot.slane %v7244, 6
        %v7435 = vsel %vm7430, %v7431, %v7434
        %v7436 = vrot.slane %v7328, 6
        %v7437 = vsel %vm7430, %v7432, %v7436
        %v7438 = vrot.slane %v6486, 6
        %v7439 = vsel %vm7430, %v7433, %v7438
        %7446 = vst [vmem:[#allocation5 + $0x78] sm:$0xfc] %v7431
        %7447 = vst [vmem:[#allocation5 + $0x80] sm:$0xfc] %v7432
        %vm7448 = vcmask 261122
        %7449 = vst.msk [vmem:[#allocation5 + $0x88] sm:$0xfc] %vm7448, %v7433
        %7450 = vst [vmem:[#allocation5 + $0x90] sm:$0xff] %v7435
        %7451 = vst [vmem:[#allocation5 + $0x98] sm:$0xff] %v7437
        %7452 = vst.msk [vmem:[#allocation5 + $0xa0] sm:$0xff] %vm5672, %v7439
        %7453 = vst [vmem:[#allocation5 + $0xa8] sm:$0xff] %v7245
        %7454 = vst [vmem:[#allocation5 + $0xb0] sm:$0xff] %v7329
        %7455 = vst.msk [vmem:[#allocation5 + $0xb8] sm:$0xff] %vm5672, %v6487
        %7456 = vst [vmem:[#allocation5 + $0xc0] sm:$0x3f] %v7246
        %7457 = vst [vmem:[#allocation5 + $0xc8] sm:$0x3f] %v7330
        %7458 = vst.msk [vmem:[#allocation5 + $0xd0] sm:$0x3f] %vm6226, %v6488
        %v7465 = vrot.slane %v7247, 2
        %v7466 = vrot.slane %v7331, 2
        %v7467 = vrot.slane %v6489, 2
        %v7468 = vrot.slane %v7248, 2
        %v7469 = vsel %vm1096, %v7465, %v7468
        %v7470 = vrot.slane %v7332, 2
        %v7471 = vsel %vm1096, %v7466, %v7470
        %v7472 = vrot.slane %v6490, 2
        %v7473 = vsel %vm1096, %v7467, %v7472
        %7483 = vst [vmem:[#allocation5 + $0xc0] sm:$0xc0] %v7465
        %7484 = vst [vmem:[#allocation5 + $0xc8] sm:$0xc0] %v7466
        %7485 = vst.msk [vmem:[#allocation5 + $0xd0] sm:$0xc0] %vm7381, %v7467
        %7486 = vst [vmem:[#allocation5 + $0xd8] sm:$0xff] %v7469
        %7487 = vst [vmem:[#allocation5 + $0xe0] sm:$0xff] %v7471
        %7488 = vst.msk [vmem:[#allocation5 + $0xe8] sm:$0xff] %vm5672, %v7473
        %7489 = vst [vmem:[#allocation5 + $0xf0] sm:$0xf] %v7468
        %7490 = vst [vmem:[#allocation5 + $0xf8] sm:$0xf] %v7470
        %7491 = vst.msk [vmem:[#allocation5 + $0x100] sm:$0xf] %vm5676, %v7472
        %v7498 = vrot.slane %v7249, 4
        %v7499 = vrot.slane %v7333, 4
        %v7500 = vrot.slane %v6491, 4
        %v7501 = vrot.slane %v7250, 4
        %v7502 = vsel %vm5656, %v7498, %v7501
        %v7503 = vrot.slane %v7334, 4
        %v7504 = vsel %vm5656, %v7499, %v7503
        %v7505 = vrot.slane %v6492, 4
        %v7506 = vsel %vm5656, %v7500, %v7505
        %7516 = vst [vmem:[#allocation5 + $0xf0] sm:$0xf0] %v7498
        %7517 = vst [vmem:[#allocation5 + $0xf8] sm:$0xf0] %v7499
        %7518 = vst.msk [vmem:[#allocation5 + $0x100] sm:$0xf0] %vm7415, %v7500
        %7519 = vst [vmem:[#allocation5 + $0x108] sm:$0xff] %v7502
        %7520 = vst [vmem:[#allocation5 + $0x110] sm:$0xff] %v7504
        %7521 = vst.msk [vmem:[#allocation5 + $0x118] sm:$0xff] %vm5672, %v7506
        %7522 = vst [vmem:[#allocation5 + $0x120] sm:$0x3] %v7501
        %7523 = vst [vmem:[#allocation5 + $0x128] sm:$0x3] %v7503
        %7524 = vst.msk [vmem:[#allocation5 + $0x130] sm:$0x3] %vm7422, %v7505
        %v7531 = vrot.slane %v7251, 6
        %v7532 = vrot.slane %v7335, 6
        %v7533 = vrot.slane %v6493, 6
        %v7534 = vrot.slane %v7252, 6
        %v7535 = vsel %vm7430, %v7531, %v7534
        %v7536 = vrot.slane %v7336, 6
        %v7537 = vsel %vm7430, %v7532, %v7536
        %v7538 = vrot.slane %v6494, 6
        %v7539 = vsel %vm7430, %v7533, %v7538
        %7546 = vst [vmem:[#allocation5 + $0x120] sm:$0xfc] %v7531
        %7547 = vst [vmem:[#allocation5 + $0x128] sm:$0xfc] %v7532
        %7548 = vst.msk [vmem:[#allocation5 + $0x130] sm:$0xfc] %vm7448, %v7533
        %7549 = vst [vmem:[#allocation5 + $0x138] sm:$0xff] %v7535
        %7550 = vst [vmem:[#allocation5 + $0x140] sm:$0xff] %v7537
        %7551 = vst.msk [vmem:[#allocation5 + $0x148] sm:$0xff] %vm5672, %v7539
        %7552 = vst [vmem:[#allocation5 + $0x150] sm:$0xff] %v7253
        %7553 = vst [vmem:[#allocation5 + $0x158] sm:$0xff] %v7337
        %7554 = vst.msk [vmem:[#allocation5 + $0x160] sm:$0xff] %vm5672, %v6495
        %7555 = vst [vmem:[#allocation5 + $0x168] sm:$0x3f] %v7254
        %7556 = vst [vmem:[#allocation5 + $0x170] sm:$0x3f] %v7338
        %7557 = vst.msk [vmem:[#allocation5 + $0x178] sm:$0x3f] %vm6226, %v6496
        %v7564 = vrot.slane %v7255, 2
        %v7565 = vrot.slane %v7339, 2
        %v7566 = vrot.slane %v6497, 2
        %v7567 = vrot.slane %v7256, 2
        %v7568 = vsel %vm1096, %v7564, %v7567
        %v7569 = vrot.slane %v7340, 2
        %v7570 = vsel %vm1096, %v7565, %v7569
        %v7571 = vrot.slane %v6498, 2
        %v7572 = vsel %vm1096, %v7566, %v7571
        %7582 = vst [vmem:[#allocation5 + $0x168] sm:$0xc0] %v7564
        %7583 = vst [vmem:[#allocation5 + $0x170] sm:$0xc0] %v7565
        %7584 = vst.msk [vmem:[#allocation5 + $0x178] sm:$0xc0] %vm7381, %v7566
        %7585 = vst [vmem:[#allocation5 + $0x180] sm:$0xff] %v7568
        %7586 = vst [vmem:[#allocation5 + $0x188] sm:$0xff] %v7570
        %7587 = vst.msk [vmem:[#allocation5 + $0x190] sm:$0xff] %vm5672, %v7572
        %7588 = vst [vmem:[#allocation5 + $0x198] sm:$0xf] %v7567
        %7589 = vst [vmem:[#allocation5 + $0x1a0] sm:$0xf] %v7569
        %7590 = vst.msk [vmem:[#allocation5 + $0x1a8] sm:$0xf] %vm5676, %v7571
        %v7597 = vrot.slane %v7257, 4
        %v7598 = vrot.slane %v7341, 4
        %v7599 = vrot.slane %v6499, 4
        %v7600 = vrot.slane %v7258, 4
        %v7601 = vsel %vm5656, %v7597, %v7600
        %v7602 = vrot.slane %v7342, 4
        %v7603 = vsel %vm5656, %v7598, %v7602
        %v7604 = vrot.slane %v6500, 4
        %v7605 = vsel %vm5656, %v7599, %v7604
        %7615 = vst [vmem:[#allocation5 + $0x198] sm:$0xf0] %v7597
        %7616 = vst [vmem:[#allocation5 + $0x1a0] sm:$0xf0] %v7598
        %7617 = vst.msk [vmem:[#allocation5 + $0x1a8] sm:$0xf0] %vm7415, %v7599
        %7618 = vst [vmem:[#allocation5 + $0x1b0] sm:$0xff] %v7601
        %7619 = vst [vmem:[#allocation5 + $0x1b8] sm:$0xff] %v7603
        %7620 = vst.msk [vmem:[#allocation5 + $0x1c0] sm:$0xff] %vm5672, %v7605
        %7621 = vst [vmem:[#allocation5 + $0x1c8] sm:$0x3] %v7600
        %7622 = vst [vmem:[#allocation5 + $0x1d0] sm:$0x3] %v7602
        %7623 = vst.msk [vmem:[#allocation5 + $0x1d8] sm:$0x3] %vm7422, %v7604
        %v7630 = vrot.slane %v7259, 6
        %v7631 = vrot.slane %v7343, 6
        %v7632 = vrot.slane %v6501, 6
        %v7633 = vrot.slane %v7260, 6
        %v7634 = vsel %vm7430, %v7630, %v7633
        %v7635 = vrot.slane %v7344, 6
        %v7636 = vsel %vm7430, %v7631, %v7635
        %v7637 = vrot.slane %v6502, 6
        %v7638 = vsel %vm7430, %v7632, %v7637
        %7645 = vst [vmem:[#allocation5 + $0x1c8] sm:$0xfc] %v7630
        %7646 = vst [vmem:[#allocation5 + $0x1d0] sm:$0xfc] %v7631
        %7647 = vst.msk [vmem:[#allocation5 + $0x1d8] sm:$0xfc] %vm7448, %v7632
        %7648 = vst [vmem:[#allocation5 + $0x1e0] sm:$0xff] %v7634
        %7649 = vst [vmem:[#allocation5 + $0x1e8] sm:$0xff] %v7636
        %7650 = vst.msk [vmem:[#allocation5 + $0x1f0] sm:$0xff] %vm5672, %v7638
        %7651 = vst [vmem:[#allocation5 + $0x1f8] sm:$0xff] %v7261
        %7652 = vst [vmem:[#allocation5 + $0x200] sm:$0xff] %v7345
        %7653 = vst.msk [vmem:[#allocation5 + $0x208] sm:$0xff] %vm5672, %v6503
        %7654 = vst [vmem:[#allocation5 + $0x210] sm:$0x3f] %v7262
        %7655 = vst [vmem:[#allocation5 + $0x218] sm:$0x3f] %v7346
        %7656 = vst.msk [vmem:[#allocation5 + $0x220] sm:$0x3f] %vm6226, %v6504
        %v7663 = vrot.slane %v7263, 2
        %v7664 = vrot.slane %v7347, 2
        %v7665 = vrot.slane %v6505, 2
        %v7666 = vrot.slane %v7264, 2
        %v7667 = vsel %vm1096, %v7663, %v7666
        %v7668 = vrot.slane %v7348, 2
        %v7669 = vsel %vm1096, %v7664, %v7668
        %v7670 = vrot.slane %v6506, 2
        %v7671 = vsel %vm1096, %v7665, %v7670
        %7681 = vst [vmem:[#allocation5 + $0x210] sm:$0xc0] %v7663
        %7682 = vst [vmem:[#allocation5 + $0x218] sm:$0xc0] %v7664
        %7683 = vst.msk [vmem:[#allocation5 + $0x220] sm:$0xc0] %vm7381, %v7665
        %7684 = vst [vmem:[#allocation5 + $0x228] sm:$0xff] %v7667
        %7685 = vst [vmem:[#allocation5 + $0x230] sm:$0xff] %v7669
        %7686 = vst.msk [vmem:[#allocation5 + $0x238] sm:$0xff] %vm5672, %v7671
        %7687 = vst [vmem:[#allocation5 + $0x240] sm:$0xf] %v7666
        %7688 = vst [vmem:[#allocation5 + $0x248] sm:$0xf] %v7668
        %7689 = vst.msk [vmem:[#allocation5 + $0x250] sm:$0xf] %vm5676, %v7670
        %v7690 = vld [vmem:[#allocation5] sm:$0xff]
        %v7691 = vld [vmem:[#allocation5 + $0x8] sm:$0xff]
        %v7692 = vld [vmem:[#allocation5 + $0x10] sm:$0xff]
        %v7693 = vld [vmem:[#allocation5 + $0x18] sm:$0xff]
        %v7694 = vld [vmem:[#allocation5 + $0x20] sm:$0xff]
        %v7695 = vld [vmem:[#allocation5 + $0x28] sm:$0xff]
        %v7696 = vld [vmem:[#allocation5 + $0x30] sm:$0xff]
        %v7697 = vld [vmem:[#allocation5 + $0x38] sm:$0xff]
        %v7698 = vld [vmem:[#allocation5 + $0x40] sm:$0xff]
        %v7699 = vld [vmem:[#allocation5 + $0x48] sm:$0xff]
        %v7700 = vld [vmem:[#allocation5 + $0x50] sm:$0xff]
        %v7701 = vld [vmem:[#allocation5 + $0x58] sm:$0xff]
        %v7702 = vld [vmem:[#allocation5 + $0x60] sm:$0xff]
        %v7703 = vld [vmem:[#allocation5 + $0x68] sm:$0xff]
        %v7704 = vld [vmem:[#allocation5 + $0x70] sm:$0xff]
        %v7705 = vld [vmem:[#allocation5 + $0x78] sm:$0xff]
        %v7706 = vld [vmem:[#allocation5 + $0x80] sm:$0xff]
        %v7707 = vld [vmem:[#allocation5 + $0x88] sm:$0xff]
        %v7708 = vld [vmem:[#allocation5 + $0x90] sm:$0xff]
        %v7709 = vld [vmem:[#allocation5 + $0x98] sm:$0xff]
        %v7710 = vld [vmem:[#allocation5 + $0xa0] sm:$0xff]
        %v7711 = vld [vmem:[#allocation5 + $0xa8] sm:$0xff]
        %v7712 = vld [vmem:[#allocation5 + $0xb0] sm:$0xff]
        %v7713 = vld [vmem:[#allocation5 + $0xb8] sm:$0xff]
        %v7714 = vld [vmem:[#allocation5 + $0xc0] sm:$0xff]
        %v7715 = vld [vmem:[#allocation5 + $0xc8] sm:$0xff]
        %v7716 = vld [vmem:[#allocation5 + $0xd0] sm:$0xff]
        %v7717 = vld [vmem:[#allocation5 + $0xd8] sm:$0xff]
        %v7718 = vld [vmem:[#allocation5 + $0xe0] sm:$0xff]
        %v7719 = vld [vmem:[#allocation5 + $0xe8] sm:$0xff]
        %v7720 = vld [vmem:[#allocation5 + $0xf0] sm:$0xff]
        %v7721 = vld [vmem:[#allocation5 + $0xf8] sm:$0xff]
        %v7722 = vld [vmem:[#allocation5 + $0x100] sm:$0xff]
        %v7723 = vld [vmem:[#allocation5 + $0x108] sm:$0xff]
        %v7724 = vld [vmem:[#allocation5 + $0x110] sm:$0xff]
        %v7725 = vld [vmem:[#allocation5 + $0x118] sm:$0xff]
        %v7726 = vld [vmem:[#allocation5 + $0x120] sm:$0xff]
        %v7727 = vld [vmem:[#allocation5 + $0x128] sm:$0xff]
        %v7728 = vld [vmem:[#allocation5 + $0x130] sm:$0xff]
        %v7729 = vld [vmem:[#allocation5 + $0x138] sm:$0xff]
        %v7730 = vld [vmem:[#allocation5 + $0x140] sm:$0xff]
        %v7731 = vld [vmem:[#allocation5 + $0x148] sm:$0xff]
        %v7732 = vld [vmem:[#allocation5 + $0x150] sm:$0xff]
        %v7733 = vld [vmem:[#allocation5 + $0x158] sm:$0xff]
        %v7734 = vld [vmem:[#allocation5 + $0x160] sm:$0xff]
        %v7735 = vld [vmem:[#allocation5 + $0x168] sm:$0xff]
        %v7736 = vld [vmem:[#allocation5 + $0x170] sm:$0xff]
        %v7737 = vld [vmem:[#allocation5 + $0x178] sm:$0xff]
        %v7738 = vld [vmem:[#allocation5 + $0x180] sm:$0xff]
        %v7739 = vld [vmem:[#allocation5 + $0x188] sm:$0xff]
        %v7740 = vld [vmem:[#allocation5 + $0x190] sm:$0xff]
        %v7741 = vld [vmem:[#allocation5 + $0x198] sm:$0xff]
        %v7742 = vld [vmem:[#allocation5 + $0x1a0] sm:$0xff]
        %v7743 = vld [vmem:[#allocation5 + $0x1a8] sm:$0xff]
        %v7744 = vld [vmem:[#allocation5 + $0x1b0] sm:$0xff]
        %v7745 = vld [vmem:[#allocation5 + $0x1b8] sm:$0xff]
        %v7746 = vld [vmem:[#allocation5 + $0x1c0] sm:$0xff]
        %v7747 = vld [vmem:[#allocation5 + $0x1c8] sm:$0xff]
        %v7748 = vld [vmem:[#allocation5 + $0x1d0] sm:$0xff]
        %v7749 = vld [vmem:[#allocation5 + $0x1d8] sm:$0xff]
        %v7750 = vld [vmem:[#allocation5 + $0x1e0] sm:$0xff]
        %v7751 = vld [vmem:[#allocation5 + $0x1e8] sm:$0xff]
        %v7752 = vld [vmem:[#allocation5 + $0x1f0] sm:$0xff]
        %v7753 = vld [vmem:[#allocation5 + $0x1f8] sm:$0xff]
        %v7754 = vld [vmem:[#allocation5 + $0x200] sm:$0xff]
        %v7755 = vld [vmem:[#allocation5 + $0x208] sm:$0xff]
        %v7756 = vld [vmem:[#allocation5 + $0x210] sm:$0xff]
        %v7757 = vld [vmem:[#allocation5 + $0x218] sm:$0xff]
        %v7758 = vld [vmem:[#allocation5 + $0x220] sm:$0xff]
        %v7759 = vld [vmem:[#allocation5 + $0x228] sm:$0xff]
        %v7760 = vld [vmem:[#allocation5 + $0x230] sm:$0xff]
        %v7761 = vld [vmem:[#allocation5 + $0x238] sm:$0xff]
        %v7762 = vld [vmem:[#allocation5 + $0x240] sm:$0xf]
        %v7763 = vld [vmem:[#allocation5 + $0x248] sm:$0xf]
        %v7764 = vld [vmem:[#allocation5 + $0x250] sm:$0xf]
        %v7765 = vpack.c.bf16 %v7693, %v7690
        %v7766 = vpack.c.bf16 %v7694, %v7691
        %v7767 = vpack.c.bf16 %v7695, %v7692
        %v7768 = vpack.c.bf16 %v7699, %v7696
        %v7769 = vpack.c.bf16 %v7700, %v7697
        %v7770 = vpack.c.bf16 %v7701, %v7698
        %v7771 = vpack.c.bf16 %v7705, %v7702
        %v7772 = vpack.c.bf16 %v7706, %v7703
        %v7773 = vpack.c.bf16 %v7707, %v7704
        %v7774 = vpack.c.bf16 %v7711, %v7708
        %v7775 = vpack.c.bf16 %v7712, %v7709
        %v7776 = vpack.c.bf16 %v7713, %v7710
        %v7777 = vpack.c.bf16 %v7717, %v7714
        %v7778 = vpack.c.bf16 %v7718, %v7715
        %v7779 = vpack.c.bf16 %v7719, %v7716
        %v7780 = vpack.c.bf16 %v7723, %v7720
        %v7781 = vpack.c.bf16 %v7724, %v7721
        %v7782 = vpack.c.bf16 %v7725, %v7722
        %v7783 = vpack.c.bf16 %v7729, %v7726
        %v7784 = vpack.c.bf16 %v7730, %v7727
        %v7785 = vpack.c.bf16 %v7731, %v7728
        %v7786 = vpack.c.bf16 %v7735, %v7732
        %v7787 = vpack.c.bf16 %v7736, %v7733
        %v7788 = vpack.c.bf16 %v7737, %v7734
        %v7789 = vpack.c.bf16 %v7741, %v7738
        %v7790 = vpack.c.bf16 %v7742, %v7739
        %v7791 = vpack.c.bf16 %v7743, %v7740
        %v7792 = vpack.c.bf16 %v7747, %v7744
        %v7793 = vpack.c.bf16 %v7748, %v7745
        %v7794 = vpack.c.bf16 %v7749, %v7746
        %v7795 = vpack.c.bf16 %v7753, %v7750
        %v7796 = vpack.c.bf16 %v7754, %v7751
        %v7797 = vpack.c.bf16 %v7755, %v7752
        %v7798 = vpack.c.bf16 %v7759, %v7756
        %v7799 = vpack.c.bf16 %v7760, %v7757
        %v7800 = vpack.c.bf16 %v7761, %v7758
        %v7801 = vpack.c.bf16 %v7762, %v7762
        %v7802 = vpack.c.bf16 %v7763, %v7763
        %v7803 = vpack.c.bf16 %v7764, %v7764
        %v7804 = vld [vmem:[%s3] sm:$0xf]
        %v7805 = vld [vmem:[%s3 + $0x4] sm:$0xf]
        %v7806 = vld [vmem:[%s3 + $0x8] sm:$0xf]
        %v7807 = vld [vmem:[%s3 + $0xc] sm:$0xf]
        %v7808 = vld [vmem:[%s3 + $0x10] sm:$0xf]
        %v7809 = vld [vmem:[%s3 + $0x14] sm:$0xf]
        %v7810 = vld [vmem:[%s3 + $0x18] sm:$0xf]
        %v7811 = vld [vmem:[%s3 + $0x1c] sm:$0xf]
        %v7812 = vld [vmem:[%s3 + $0x20] sm:$0xf]
        %v7813 = vld [vmem:[%s3 + $0x24] sm:$0xf]
        %v7814 = vld [vmem:[%s3 + $0x28] sm:$0xf]
        %v7815 = vld [vmem:[%s3 + $0x2c] sm:$0xf]
        %v7816 = vld [vmem:[%s3 + $0x30] sm:$0xf]
        %v7817 = vld [vmem:[%s3 + $0x34] sm:$0xf]
        %v7818 = vld [vmem:[%s3 + $0x38] sm:$0xf]
        %v7819 = vld [vmem:[%s3 + $0x3c] sm:$0xf]
        %v7820 = vld [vmem:[%s3 + $0x40] sm:$0xf]
        %v7821 = vld [vmem:[%s3 + $0x44] sm:$0xf]
        %v7822 = vld [vmem:[%s3 + $0x48] sm:$0xf]
        %v7823 = vld [vmem:[%s3 + $0x4c] sm:$0xf]
        %v7824 = vld [vmem:[%s3 + $0x50] sm:$0xf]
        %v7825 = vld [vmem:[%s3 + $0x54] sm:$0xf]
        %v7826 = vld [vmem:[%s3 + $0x58] sm:$0xf]
        %v7827 = vld [vmem:[%s3 + $0x5c] sm:$0xf]
        %v7828 = vld [vmem:[%s3 + $0x60] sm:$0xf]
        %v7829 = vld [vmem:[%s3 + $0x64] sm:$0xf]
        %v7830 = vld [vmem:[%s3 + $0x68] sm:$0xf]
        %v7831 = vld [vmem:[%s3 + $0x6c] sm:$0xf]
        %v7832 = vld [vmem:[%s3 + $0x70] sm:$0xf]
        %v7833 = vld [vmem:[%s3 + $0x74] sm:$0xf]
        %v7834 = vld [vmem:[%s3 + $0x78] sm:$0xf]
        %v7835 = vld [vmem:[%s3 + $0x7c] sm:$0xf]
        %v7836 = vld [vmem:[%s3 + $0x80] sm:$0xf]
        %v7837 = vld [vmem:[%s3 + $0x84] sm:$0xf]
        %v7838 = vld [vmem:[%s3 + $0x88] sm:$0xf]
        %v7839 = vld [vmem:[%s3 + $0x8c] sm:$0xf]
        %v7876 = vunpack.c.l.b16 %v7804
        %v7877 = vunpack.c.l.b16 %v7805
        %v7878 = vunpack.c.l.b16 %v7806
        %v7879 = vunpack.c.l.b16 %v7807
        %v7880 = vunpack.c.l.b16 %v7808
        %v7881 = vunpack.c.l.b16 %v7809
        %v7882 = vunpack.c.l.b16 %v7810
        %v7883 = vunpack.c.l.b16 %v7811
        %v7884 = vunpack.c.l.b16 %v7812
        %v7885 = vunpack.c.l.b16 %v7813
        %v7886 = vunpack.c.l.b16 %v7814
        %v7887 = vunpack.c.l.b16 %v7815
        %v7888 = vunpack.c.l.b16 %v7816
        %v7889 = vunpack.c.l.b16 %v7817
        %v7890 = vunpack.c.l.b16 %v7818
        %v7891 = vunpack.c.l.b16 %v7819
        %v7892 = vunpack.c.l.b16 %v7820
        %v7893 = vunpack.c.l.b16 %v7821
        %v7894 = vunpack.c.l.b16 %v7822
        %v7895 = vunpack.c.l.b16 %v7823
        %v7896 = vunpack.c.l.b16 %v7824
        %v7897 = vunpack.c.l.b16 %v7825
        %v7898 = vunpack.c.l.b16 %v7826
        %v7899 = vunpack.c.l.b16 %v7827
        %v7900 = vunpack.c.l.b16 %v7828
        %v7901 = vunpack.c.l.b16 %v7829
        %v7902 = vunpack.c.l.b16 %v7830
        %v7903 = vunpack.c.l.b16 %v7831
        %v7904 = vunpack.c.l.b16 %v7832
        %v7905 = vunpack.c.l.b16 %v7833
        %v7906 = vunpack.c.l.b16 %v7834
        %v7907 = vunpack.c.l.b16 %v7835
        %v7908 = vunpack.c.l.b16 %v7836
        %v7909 = vunpack.c.l.b16 %v7837
        %v7910 = vunpack.c.l.b16 %v7838
        %v7911 = vunpack.c.l.b16 %v7839
        %v7912 = vpack.c.b16 %v7877, %v7876
        %v7913 = vpack.c.b16 %v7879, %v7878
        %v7914 = vpack.c.b16 %v7881, %v7880
        %v7915 = vpack.c.b16 %v7883, %v7882
        %v7916 = vpack.c.b16 %v7885, %v7884
        %v7917 = vpack.c.b16 %v7887, %v7886
        %v7918 = vpack.c.b16 %v7889, %v7888
        %v7919 = vpack.c.b16 %v7891, %v7890
        %v7920 = vpack.c.b16 %v7893, %v7892
        %v7921 = vpack.c.b16 %v7895, %v7894
        %v7922 = vpack.c.b16 %v7897, %v7896
        %v7923 = vpack.c.b16 %v7899, %v7898
        %v7924 = vpack.c.b16 %v7901, %v7900
        %v7925 = vpack.c.b16 %v7903, %v7902
        %v7926 = vpack.c.b16 %v7905, %v7904
        %v7927 = vpack.c.b16 %v7907, %v7906
        %v7928 = vpack.c.b16 %v7909, %v7908
        %v7929 = vpack.c.b16 %v7911, %v7910
        %v7949 = vsel %vm5672, %v7767, 0
        %v7952 = vsel %vm5672, %v7770, 0
        %v7955 = vsel %vm5672, %v7773, 0
        %v7958 = vsel %vm5672, %v7776, 0
        %v7961 = vsel %vm5672, %v7779, 0
        %v7964 = vsel %vm5672, %v7782, 0
        %v7967 = vsel %vm5672, %v7785, 0
        %v7970 = vsel %vm5672, %v7788, 0
        %v7973 = vsel %vm5672, %v7791, 0
        %v7976 = vsel %vm5672, %v7794, 0
        %v7979 = vsel %vm5672, %v7797, 0
        %v7982 = vsel %vm5672, %v7800, 0
        %v7985 = vsel %vm5672, %v7803, 0
        %7987 = vmatprep.subr.bf16.mxu0 0
        %7988 = vmatpush1.bf16.msra.mxu0 %v7919
        %7989 = vmatprep.subr.bf16.mxu0 0
        %7990 = vmatpush1.bf16.msra.mxu0 %v7918
        %7991 = vmatprep.subr.bf16.mxu0 0
        %7992 = vmatpush1.bf16.msra.mxu0 %v7917
        %7993 = vmatprep.subr.bf16.mxu0 0
        %7994 = vmatpush1.bf16.msra.mxu0 %v7916
        %7995 = vmatprep.subr.bf16.mxu0 0
        %7996 = vmatpush1.bf16.msra.mxu0 %v7915
        %7997 = vmatprep.subr.bf16.mxu0 0
        %7998 = vmatpush1.bf16.msra.mxu0 %v7914
        %7999 = vmatprep.subr.bf16.mxu0 0
        %8000 = vmatpush1.bf16.msra.mxu0 %v7913
        %8001 = vmatprep.subr.bf16.mxu0 0
        %8002 = vmatpush1.bf16.msra.mxu0 %v7912
        %8003 = vmatprep.subr.bf16.mxu0 0
        %8004 = vmatpush2.bf16.msra.mxu0 %v7927
        %8005 = vmatprep.subr.bf16.mxu0 0
        %8006 = vmatpush2.bf16.msra.mxu0 %v7926
        %8007 = vmatprep.subr.bf16.mxu0 0
        %8008 = vmatpush2.bf16.msra.mxu0 %v7925
        %8009 = vmatprep.subr.bf16.mxu0 0
        %8010 = vmatpush2.bf16.msra.mxu0 %v7924
        %8011 = vmatprep.subr.bf16.mxu0 0
        %8012 = vmatpush2.bf16.msra.mxu0 %v7923
        %8013 = vmatprep.subr.bf16.mxu0 0
        %8014 = vmatpush2.bf16.msra.mxu0 %v7922
        %8015 = vmatprep.subr.bf16.mxu0 0
        %8016 = vmatpush2.bf16.msra.mxu0 %v7921
        %8017 = vmatprep.subr.bf16.mxu0 0
        %8018 = vmatpush2.bf16.msra.mxu0 %v7920
        %8019 = vmatprep.mubr.bf16.mxu0 %v7766
        %8020 = vmatmul.mubr.bf16.gmra.mxu0 %v7765
        %v8021 = vpop.f32.mrf.mxu0
        %v8022 = vadd.f32 0.0, %v8021
        %v8023 = vpop.f32.mrf.mxu0
        %v8024 = vpop.f32.mrf.mxu0
        %v8025 = vadd.f32 0.0, %v8024
        %v8026 = vpop.f32.mrf.mxu0
        %8027 = vmatprep.mubr.bf16.mxu0 %v7769
        %8028 = vmatmul.mubr.bf16.gmra.mxu0 %v7768
        %v8029 = vpop.f32.mrf.mxu0
        %v8030 = vadd.f32 0.0, %v8029
        %v8031 = vpop.f32.mrf.mxu0
        %v8032 = vpop.f32.mrf.mxu0
        %v8033 = vadd.f32 0.0, %v8032
        %v8034 = vpop.f32.mrf.mxu0
        %8035 = vmatprep.mubr.bf16.mxu0 %v7772
        %8036 = vmatmul.mubr.bf16.gmra.mxu0 %v7771
        %v8037 = vpop.f32.mrf.mxu0
        %v8038 = vadd.f32 0.0, %v8037
        %v8039 = vpop.f32.mrf.mxu0
        %v8040 = vpop.f32.mrf.mxu0
        %v8041 = vadd.f32 0.0, %v8040
        %v8042 = vpop.f32.mrf.mxu0
        %8043 = vmatprep.mubr.bf16.mxu0 %v7775
        %8044 = vmatmul.mubr.bf16.gmra.mxu0 %v7774
        %v8045 = vpop.f32.mrf.mxu0
        %v8046 = vadd.f32 0.0, %v8045
        %v8047 = vpop.f32.mrf.mxu0
        %v8048 = vpop.f32.mrf.mxu0
        %v8049 = vadd.f32 0.0, %v8048
        %v8050 = vpop.f32.mrf.mxu0
        %8051 = vmatprep.mubr.bf16.mxu0 %v7778
        %8052 = vmatmul.mubr.bf16.gmra.mxu0 %v7777
        %v8053 = vpop.f32.mrf.mxu0
        %v8054 = vadd.f32 0.0, %v8053
        %v8055 = vpop.f32.mrf.mxu0
        %v8056 = vpop.f32.mrf.mxu0
        %v8057 = vadd.f32 0.0, %v8056
        %v8058 = vpop.f32.mrf.mxu0
        %8059 = vmatprep.mubr.bf16.mxu0 %v7781
        %8060 = vmatmul.mubr.bf16.gmra.mxu0 %v7780
        %v8061 = vpop.f32.mrf.mxu0
        %v8062 = vadd.f32 0.0, %v8061
        %v8063 = vpop.f32.mrf.mxu0
        %v8064 = vpop.f32.mrf.mxu0
        %v8065 = vadd.f32 0.0, %v8064
        %v8066 = vpop.f32.mrf.mxu0
        %8067 = vmatprep.mubr.bf16.mxu0 %v7784
        %8068 = vmatmul.mubr.bf16.gmra.mxu0 %v7783
        %v8069 = vpop.f32.mrf.mxu0
        %v8070 = vadd.f32 0.0, %v8069
        %v8071 = vpop.f32.mrf.mxu0
        %v8072 = vpop.f32.mrf.mxu0
        %v8073 = vadd.f32 0.0, %v8072
        %v8074 = vpop.f32.mrf.mxu0
        %8075 = vmatprep.mubr.bf16.mxu0 %v7787
        %8076 = vmatmul.mubr.bf16.gmra.mxu0 %v7786
        %v8077 = vpop.f32.mrf.mxu0
        %v8078 = vadd.f32 0.0, %v8077
        %v8079 = vpop.f32.mrf.mxu0
        %v8080 = vpop.f32.mrf.mxu0
        %v8081 = vadd.f32 0.0, %v8080
        %v8082 = vpop.f32.mrf.mxu0
        %8083 = vmatprep.mubr.bf16.mxu0 %v7790
        %8084 = vmatmul.mubr.bf16.gmra.mxu0 %v7789
        %v8085 = vpop.f32.mrf.mxu0
        %v8086 = vadd.f32 0.0, %v8085
        %v8087 = vpop.f32.mrf.mxu0
        %v8088 = vpop.f32.mrf.mxu0
        %v8089 = vadd.f32 0.0, %v8088
        %v8090 = vpop.f32.mrf.mxu0
        %8091 = vmatprep.mubr.bf16.mxu0 %v7793
        %8092 = vmatmul.mubr.bf16.gmra.mxu0 %v7792
        %v8093 = vpop.f32.mrf.mxu0
        %v8094 = vadd.f32 0.0, %v8093
        %v8095 = vpop.f32.mrf.mxu0
        %v8096 = vpop.f32.mrf.mxu0
        %v8097 = vadd.f32 0.0, %v8096
        %v8098 = vpop.f32.mrf.mxu0
        %8099 = vmatprep.mubr.bf16.mxu0 %v7796
        %8100 = vmatmul.mubr.bf16.gmra.mxu0 %v7795
        %v8101 = vpop.f32.mrf.mxu0
        %v8102 = vadd.f32 0.0, %v8101
        %v8103 = vpop.f32.mrf.mxu0
        %v8104 = vpop.f32.mrf.mxu0
        %v8105 = vadd.f32 0.0, %v8104
        %v8106 = vpop.f32.mrf.mxu0
        %8107 = vmatprep.mubr.bf16.mxu0 %v7799
        %8108 = vmatmul.mubr.bf16.gmra.mxu0 %v7798
        %v8109 = vpop.f32.mrf.mxu0
        %v8110 = vadd.f32 0.0, %v8109
        %v8111 = vpop.f32.mrf.mxu0
        %v8112 = vpop.f32.mrf.mxu0
        %v8113 = vadd.f32 0.0, %v8112
        %v8114 = vpop.f32.mrf.mxu0
        %8115 = vmatprep.mubr.bf16.mxu0 %v7802
        %8116 = vmatmul.mubr.bf16.gmra.mxu0 %v7801
        %v8117 = vpop.f32.mrf.mxu0
        %v8118 = vadd.f32 0.0, %v8117
        %v8119 = vpop.f32.mrf.mxu0
        %v8120 = vpop.f32.mrf.mxu0
        %v8121 = vpop.f32.mrf.mxu0
        %8122 = vdwg.mxu0
        %8123 = vmatprep.subr.bf16.mxu0 0
        %8124 = vmatpush1.bf16.msra.mxu0 0
        %8125 = vmatprep.subr.bf16.mxu0 0
        %8126 = vmatpush1.bf16.msra.mxu0 0
        %8127 = vmatprep.subr.bf16.mxu0 0
        %8128 = vmatpush1.bf16.msra.mxu0 0
        %8129 = vmatprep.subr.bf16.mxu0 0
        %8130 = vmatpush1.bf16.msra.mxu0 0
        %8131 = vmatprep.subr.bf16.mxu0 0
        %8132 = vmatpush1.bf16.msra.mxu0 0
        %8133 = vmatprep.subr.bf16.mxu0 0
        %8134 = vmatpush1.bf16.msra.mxu0 0
        %8135 = vmatprep.subr.bf16.mxu0 0
        %8136 = vmatpush1.bf16.msra.mxu0 %v7929
        %8137 = vmatprep.subr.bf16.mxu0 0
        %8138 = vmatpush1.bf16.msra.mxu0 %v7928
        %8139 = vmatprep.subr.bf16.mxu0 0
        %8140 = vmatpush2.bf16.msra.mxu0 0
        %8141 = vmatprep.subr.bf16.mxu0 0
        %8142 = vmatpush2.bf16.msra.mxu0 0
        %8143 = vmatprep.subr.bf16.mxu0 0
        %8144 = vmatpush2.bf16.msra.mxu0 0
        %8145 = vmatprep.subr.bf16.mxu0 0
        %8146 = vmatpush2.bf16.msra.mxu0 0
        %8147 = vmatprep.subr.bf16.mxu0 0
        %8148 = vmatpush2.bf16.msra.mxu0 0
        %8149 = vmatprep.subr.bf16.mxu0 0
        %8150 = vmatpush2.bf16.msra.mxu0 0
        %8151 = vmatprep.subr.bf16.mxu0 0
        %8152 = vmatpush2.bf16.msra.mxu0 0
        %8153 = vmatprep.subr.bf16.mxu0 0
        %8154 = vmatpush2.bf16.msra.mxu0 0
        %8155 = vmatprep.mubr.bf16.mxu0 0
        %8156 = vmatmul.mubr.bf16.gmra.mxu0 %v7949
        %v8157 = vpop.f32.mrf.mxu0
        %v8158 = vadd.f32 %v8022, %v8157
        %v8159 = vpop.f32.mrf.mxu0
        %v8160 = vpop.f32.mrf.mxu0
        %v8161 = vadd.f32 %v8025, %v8160
        %v8162 = vpop.f32.mrf.mxu0
        %8163 = vmatprep.mubr.bf16.mxu0 0
        %8164 = vmatmul.mubr.bf16.gmra.mxu0 %v7952
        %v8165 = vpop.f32.mrf.mxu0
        %v8166 = vadd.f32 %v8030, %v8165
        %v8167 = vpop.f32.mrf.mxu0
        %v8168 = vpop.f32.mrf.mxu0
        %v8169 = vadd.f32 %v8033, %v8168
        %v8170 = vpop.f32.mrf.mxu0
        %8171 = vmatprep.mubr.bf16.mxu0 0
        %8172 = vmatmul.mubr.bf16.gmra.mxu0 %v7955
        %v8173 = vpop.f32.mrf.mxu0
        %v8174 = vadd.f32 %v8038, %v8173
        %v8175 = vpop.f32.mrf.mxu0
        %v8176 = vpop.f32.mrf.mxu0
        %v8177 = vadd.f32 %v8041, %v8176
        %v8178 = vpop.f32.mrf.mxu0
        %8179 = vmatprep.mubr.bf16.mxu0 0
        %8180 = vmatmul.mubr.bf16.gmra.mxu0 %v7958
        %v8181 = vpop.f32.mrf.mxu0
        %v8182 = vadd.f32 %v8046, %v8181
        %v8183 = vpop.f32.mrf.mxu0
        %v8184 = vpop.f32.mrf.mxu0
        %v8185 = vadd.f32 %v8049, %v8184
        %v8186 = vpop.f32.mrf.mxu0
        %8187 = vmatprep.mubr.bf16.mxu0 0
        %8188 = vmatmul.mubr.bf16.gmra.mxu0 %v7961
        %v8189 = vpop.f32.mrf.mxu0
        %v8190 = vadd.f32 %v8054, %v8189
        %v8191 = vpop.f32.mrf.mxu0
        %v8192 = vpop.f32.mrf.mxu0
        %v8193 = vadd.f32 %v8057, %v8192
        %v8194 = vpop.f32.mrf.mxu0
        %8195 = vmatprep.mubr.bf16.mxu0 0
        %8196 = vmatmul.mubr.bf16.gmra.mxu0 %v7964
        %v8197 = vpop.f32.mrf.mxu0
        %v8198 = vadd.f32 %v8062, %v8197
        %v8199 = vpop.f32.mrf.mxu0
        %v8200 = vpop.f32.mrf.mxu0
        %v8201 = vadd.f32 %v8065, %v8200
        %v8202 = vpop.f32.mrf.mxu0
        %8203 = vmatprep.mubr.bf16.mxu0 0
        %8204 = vmatmul.mubr.bf16.gmra.mxu0 %v7967
        %v8205 = vpop.f32.mrf.mxu0
        %v8206 = vadd.f32 %v8070, %v8205
        %v8207 = vpop.f32.mrf.mxu0
        %v8208 = vpop.f32.mrf.mxu0
        %v8209 = vadd.f32 %v8073, %v8208
        %v8210 = vpop.f32.mrf.mxu0
        %8211 = vmatprep.mubr.bf16.mxu0 0
        %8212 = vmatmul.mubr.bf16.gmra.mxu0 %v7970
        %v8213 = vpop.f32.mrf.mxu0
        %v8214 = vadd.f32 %v8078, %v8213
        %v8215 = vpop.f32.mrf.mxu0
        %v8216 = vpop.f32.mrf.mxu0
        %v8217 = vadd.f32 %v8081, %v8216
        %v8218 = vpop.f32.mrf.mxu0
        %8219 = vmatprep.mubr.bf16.mxu0 0
        %8220 = vmatmul.mubr.bf16.gmra.mxu0 %v7973
        %v8221 = vpop.f32.mrf.mxu0
        %v8222 = vadd.f32 %v8086, %v8221
        %v8223 = vpop.f32.mrf.mxu0
        %v8224 = vpop.f32.mrf.mxu0
        %v8225 = vadd.f32 %v8089, %v8224
        %v8226 = vpop.f32.mrf.mxu0
        %8227 = vmatprep.mubr.bf16.mxu0 0
        %8228 = vmatmul.mubr.bf16.gmra.mxu0 %v7976
        %v8229 = vpop.f32.mrf.mxu0
        %v8230 = vadd.f32 %v8094, %v8229
        %v8231 = vpop.f32.mrf.mxu0
        %v8232 = vpop.f32.mrf.mxu0
        %v8233 = vadd.f32 %v8097, %v8232
        %v8234 = vpop.f32.mrf.mxu0
        %8235 = vmatprep.mubr.bf16.mxu0 0
        %8236 = vmatmul.mubr.bf16.gmra.mxu0 %v7979
        %v8237 = vpop.f32.mrf.mxu0
        %v8238 = vadd.f32 %v8102, %v8237
        %v8239 = vpop.f32.mrf.mxu0
        %v8240 = vpop.f32.mrf.mxu0
        %v8241 = vadd.f32 %v8105, %v8240
        %v8242 = vpop.f32.mrf.mxu0
        %8243 = vmatprep.mubr.bf16.mxu0 0
        %8244 = vmatmul.mubr.bf16.gmra.mxu0 %v7982
        %v8245 = vpop.f32.mrf.mxu0
        %v8246 = vadd.f32 %v8110, %v8245
        %v8247 = vpop.f32.mrf.mxu0
        %v8248 = vpop.f32.mrf.mxu0
        %v8249 = vadd.f32 %v8113, %v8248
        %v8250 = vpop.f32.mrf.mxu0
        %8251 = vmatprep.mubr.bf16.mxu0 0
        %8252 = vmatmul.mubr.bf16.gmra.mxu0 %v7985
        %v8253 = vpop.f32.mrf.mxu0
        %v8254 = vadd.f32 %v8118, %v8253
        %v8255 = vpop.f32.mrf.mxu0
        %v8256 = vpop.f32.mrf.mxu0
        %v8257 = vpop.f32.mrf.mxu0
        %8258 = vdwg.mxu0
        %v8262 = vrot.slane %v8161, 6
        %v8263 = vrot.slane %v8166, 6
        %v8264 = vsel %vm7430, %v8262, %v8263
        %v8265 = vrot.slane %v8169, 6
        %v8266 = vsel %vm7430, %v8263, %v8265
        %v8269 = vmax.f32 %v8158, %v8264
        %v8270 = vmax.f32 %v8161, %v8266
        %8271 = vst.msk [vmem:[#allocation6] sm:$0xff] %vm7207, %v8269
        %vm8272 = vcmask 521216
        %8273 = vst.msk [vmem:[#allocation6 + $0x8] sm:$0x3f] %vm8272, %v8270
        %v8276 = vrot.slane %v8177, 6
        %v8277 = vrot.slane %v8182, 6
        %v8278 = vsel %vm7430, %v8276, %v8277
        %v8282 = vmax.f32 %v8169, %v8276
        %v8283 = vmax.f32 %v8174, %v8278
        %v8284 = vmax.f32 %v8177, %v8277
        %s8285 = scalar_lea.vmem [#allocation6], 16
        %vm8286 = vcmask 523268
        %8287 = vst.msk [vmem:[%s8285 - $0x4] sm:$0xf0] %vm8286, %v8282
        %8288 = vst.msk [vmem:[%s8285 + $0x4] sm:$0xff] %vm7207, %v8283
        %vm8289 = vcmask 517120
        %8290 = vst.msk [vmem:[%s8285 + $0xc] sm:$0x3] %vm8289, %v8284
        %v8294 = vrot.slane %v8190, 6
        %v8295 = vrot.slane %v8193, 6
        %v8296 = vsel %vm7430, %v8294, %v8295
        %v8297 = vrot.slane %v8198, 6
        %v8298 = vsel %vm7430, %v8295, %v8297
        %v8301 = vmax.f32 %v8185, %v8296
        %v8302 = vmax.f32 %v8190, %v8298
        %s8303 = scalar_lea.vmem [#allocation6], 32
        %8304 = vst.msk [vmem:[%s8303] sm:$0xff] %vm7207, %v8301
        %8305 = vst.msk [vmem:[%s8303 + $0x8] sm:$0x3f] %vm8272, %v8302
        %v8308 = vrot.slane %v8206, 6
        %v8309 = vrot.slane %v8209, 6
        %v8310 = vsel %vm7430, %v8308, %v8309
        %v8314 = vmax.f32 %v8198, %v8308
        %v8315 = vmax.f32 %v8201, %v8310
        %v8316 = vmax.f32 %v8206, %v8309
        %s8317 = scalar_lea.vmem [#allocation6], 48
        %8318 = vst.msk [vmem:[%s8317 - $0x4] sm:$0xf0] %vm8286, %v8314
        %8319 = vst.msk [vmem:[%s8317 + $0x4] sm:$0xff] %vm7207, %v8315
        %8320 = vst.msk [vmem:[%s8317 + $0xc] sm:$0x3] %vm8289, %v8316
        %v8324 = vrot.slane %v8217, 6
        %v8325 = vrot.slane %v8222, 6
        %v8326 = vsel %vm7430, %v8324, %v8325
        %v8327 = vrot.slane %v8225, 6
        %v8328 = vsel %vm7430, %v8325, %v8327
        %v8331 = vmax.f32 %v8214, %v8326
        %v8332 = vmax.f32 %v8217, %v8328
        %s8333 = scalar_lea.vmem [#allocation6], 64
        %8334 = vst.msk [vmem:[%s8333] sm:$0xff] %vm7207, %v8331
        %8335 = vst.msk [vmem:[%s8333 + $0x8] sm:$0x3f] %vm8272, %v8332
        %v8338 = vrot.slane %v8233, 6
        %v8339 = vrot.slane %v8238, 6
        %v8340 = vsel %vm7430, %v8338, %v8339
        %v8344 = vmax.f32 %v8225, %v8338
        %v8345 = vmax.f32 %v8230, %v8340
        %v8346 = vmax.f32 %v8233, %v8339
        %s8347 = scalar_lea.vmem [#allocation6], 80
        %8348 = vst.msk [vmem:[%s8347 - $0x4] sm:$0xf0] %vm8286, %v8344
        %8349 = vst.msk [vmem:[%s8347 + $0x4] sm:$0xff] %vm7207, %v8345
        %8350 = vst.msk [vmem:[%s8347 + $0xc] sm:$0x3] %vm8289, %v8346
        %v8354 = vrot.slane %v8246, 6
        %v8355 = vrot.slane %v8249, 6
        %v8356 = vsel %vm7430, %v8354, %v8355
        %v8357 = vrot.slane %v8254, 6
        %v8358 = vsel %vm7430, %v8355, %v8357
        %v8361 = vmax.f32 %v8241, %v8356
        %v8362 = vmax.f32 %v8246, %v8358
        %s8363 = scalar_lea.vmem [#allocation6], 96
        %8364 = vst.msk [vmem:[%s8363] sm:$0xff] %vm7207, %v8361
        %8365 = vst.msk [vmem:[%s8363 + $0x8] sm:$0x3f] %vm8272, %v8362
        %v8366 = vld [vmem:[#allocation6] ss:$2 sm:$0x7f]
        %s8367 = scalar_lea.vmem [#allocation6], 16
        %v8368 = vld [vmem:[%s8367] ss:$2 sm:$0x7f]
        %s8369 = scalar_lea.vmem [#allocation6], 32
        %v8370 = vld [vmem:[%s8369] ss:$2 sm:$0x7f]
        %s8371 = scalar_lea.vmem [#allocation6], 48
        %v8372 = vld [vmem:[%s8371] ss:$2 sm:$0x7f]
        %s8373 = scalar_lea.vmem [#allocation6], 64
        %v8374 = vld [vmem:[%s8373] ss:$2 sm:$0x7f]
        %s8375 = scalar_lea.vmem [#allocation6], 80
        %v8376 = vld [vmem:[%s8375] ss:$2 sm:$0x7f]
        %s8377 = scalar_lea.vmem [#allocation6], 96
        %v8378 = vld [vmem:[%s8377] ss:$2 sm:$0x7f]
        %s8379 = scalar_lea.vmem [#allocation6], 1
        %v8380 = vld [vmem:[%s8379] ss:$2 sm:$0x7f]
        %s8381 = scalar_lea.vmem [#allocation6], 17
        %v8382 = vld [vmem:[%s8381] ss:$2 sm:$0x7f]
        %s8383 = scalar_lea.vmem [#allocation6], 33
        %v8384 = vld [vmem:[%s8383] ss:$2 sm:$0x7f]
        %s8385 = scalar_lea.vmem [#allocation6], 49
        %v8386 = vld [vmem:[%s8385] ss:$2 sm:$0x7f]
        %s8387 = scalar_lea.vmem [#allocation6], 65
        %v8388 = vld [vmem:[%s8387] ss:$2 sm:$0x7f]
        %s8389 = scalar_lea.vmem [#allocation6], 81
        %v8390 = vld [vmem:[%s8389] ss:$2 sm:$0x7f]
        %s8391 = scalar_lea.vmem [#allocation6], 97
        %v8392 = vld [vmem:[%s8391] ss:$2 sm:$0x7f]
        %v8393 = vmax.f32 %v8366, %v8380
        %v8394 = vmax.f32 %v8368, %v8382
        %v8395 = vmax.f32 %v8370, %v8384
        %v8396 = vmax.f32 %v8372, %v8386
        %v8397 = vmax.f32 %v8374, %v8388
        %v8398 = vmax.f32 %v8376, %v8390
        %v8399 = vmax.f32 %v8378, %v8392
        %v8400 = vld [vmem:[%s4] sm:$0x1]
        %v8402 = vlaneseq
        %v8403 = vshrl.u32 %v8402, 7
        %v8404 = vsub.s32 0, %v8403
        %v8405 = vrot.slane %v8400, %v8404
        %v8407 = vadd.f32 %v8393, %v8405
        %v8408 = vadd.f32 %v8394, %v8405
        %v8409 = vadd.f32 %v8395, %v8405
        %v8410 = vadd.f32 %v8396, %v8405
        %v8411 = vadd.f32 %v8397, %v8405
        %v8412 = vadd.f32 %v8398, %v8405
        %v8413 = vadd.f32 %v8399, %v8405
        %v8414 = vmax.f32 %v8407, 0.0
        %v8415 = vmax.f32 %v8408, 0.0
        %v8416 = vmax.f32 %v8409, 0.0
        %v8417 = vmax.f32 %v8410, 0.0
        %v8418 = vmax.f32 %v8411, 0.0
        %v8419 = vmax.f32 %v8412, 0.0
        %v8420 = vmax.f32 %v8413, 0.0
        %v8428 = vrot.slane %v8414, 1
        %v8429 = vrot.slane %v8415, 1
        %v8430 = vrot.slane %v8416, 1
        %v8431 = vrot.slane %v8417, 1
        %v8432 = vrot.slane %v8418, 1
        %v8433 = vrot.slane %v8419, 1
        %v8434 = vrot.slane %v8420, 1
        %8435 = vrot.lane.b32.xlu0 %v8428, 64
        %v8436 = vpop.permute.xlu0 %8435
        %8437 = vrot.lane.b32.xlu0 %v8429, 64
        %v8438 = vpop.permute.xlu0 %8437
        %8439 = vrot.lane.b32.xlu0 %v8430, 64
        %v8440 = vpop.permute.xlu0 %8439
        %8441 = vrot.lane.b32.xlu0 %v8431, 64
        %v8442 = vpop.permute.xlu0 %8441
        %8443 = vrot.lane.b32.xlu0 %v8432, 64
        %v8444 = vpop.permute.xlu0 %8443
        %8445 = vrot.lane.b32.xlu0 %v8433, 64
        %v8446 = vpop.permute.xlu0 %8445
        %8447 = vrot.lane.b32.xlu0 %v8434, 64
        %v8448 = vpop.permute.xlu0 %8447
        %v8456 = vrot.slane %v8414, 2
        %v8457 = vrot.slane %v8415, 2
        %v8458 = vrot.slane %v8416, 2
        %v8459 = vrot.slane %v8417, 2
        %v8460 = vrot.slane %v8418, 2
        %v8461 = vrot.slane %v8419, 2
        %v8462 = vrot.slane %v8420, 2
        %v8470 = vrot.slane %v8414, 3
        %v8471 = vrot.slane %v8415, 3
        %v8472 = vrot.slane %v8416, 3
        %v8473 = vrot.slane %v8417, 3
        %v8474 = vrot.slane %v8418, 3
        %v8475 = vrot.slane %v8419, 3
        %v8476 = vrot.slane %v8420, 3
        %8477 = vrot.lane.b32.xlu0 %v8470, 64
        %v8478 = vpop.permute.xlu0 %8477
        %8479 = vrot.lane.b32.xlu0 %v8471, 64
        %v8480 = vpop.permute.xlu0 %8479
        %8481 = vrot.lane.b32.xlu0 %v8472, 64
        %v8482 = vpop.permute.xlu0 %8481
        %8483 = vrot.lane.b32.xlu0 %v8473, 64
        %v8484 = vpop.permute.xlu0 %8483
        %8485 = vrot.lane.b32.xlu0 %v8474, 64
        %v8486 = vpop.permute.xlu0 %8485
        %8487 = vrot.lane.b32.xlu0 %v8475, 64
        %v8488 = vpop.permute.xlu0 %8487
        %8489 = vrot.lane.b32.xlu0 %v8476, 64
        %v8490 = vpop.permute.xlu0 %8489
        %v8498 = vrot.slane %v8414, 4
        %v8499 = vrot.slane %v8415, 4
        %v8500 = vrot.slane %v8416, 4
        %v8501 = vrot.slane %v8417, 4
        %v8502 = vrot.slane %v8418, 4
        %v8503 = vrot.slane %v8419, 4
        %v8504 = vrot.slane %v8420, 4
        %v8512 = vrot.slane %v8414, 5
        %v8513 = vrot.slane %v8415, 5
        %v8514 = vrot.slane %v8416, 5
        %v8515 = vrot.slane %v8417, 5
        %v8516 = vrot.slane %v8418, 5
        %v8517 = vrot.slane %v8419, 5
        %v8518 = vrot.slane %v8420, 5
        %8519 = vrot.lane.b32.xlu0 %v8512, 64
        %v8520 = vpop.permute.xlu0 %8519
        %8521 = vrot.lane.b32.xlu0 %v8513, 64
        %v8522 = vpop.permute.xlu0 %8521
        %8523 = vrot.lane.b32.xlu0 %v8514, 64
        %v8524 = vpop.permute.xlu0 %8523
        %8525 = vrot.lane.b32.xlu0 %v8515, 64
        %v8526 = vpop.permute.xlu0 %8525
        %8527 = vrot.lane.b32.xlu0 %v8516, 64
        %v8528 = vpop.permute.xlu0 %8527
        %8529 = vrot.lane.b32.xlu0 %v8517, 64
        %v8530 = vpop.permute.xlu0 %8529
        %8531 = vrot.lane.b32.xlu0 %v8518, 64
        %v8532 = vpop.permute.xlu0 %8531
        %v8540 = vrot.slane %v8414, 6
        %v8541 = vrot.slane %v8415, 6
        %v8542 = vrot.slane %v8416, 6
        %v8543 = vrot.slane %v8417, 6
        %v8544 = vrot.slane %v8418, 6
        %v8545 = vrot.slane %v8419, 6
        %v8546 = vrot.slane %v8420, 6
        %v8551 = vsel %vm7207, %v8414, %v8436
        %v8552 = vsel %vm7207, %v8415, %v8438
        %v8553 = vsel %vm7207, %v8416, %v8440
        %v8554 = vsel %vm7207, %v8417, %v8442
        %v8555 = vsel %vm7207, %v8418, %v8444
        %v8556 = vsel %vm7207, %v8419, %v8446
        %v8557 = vsel %vm7207, %v8420, %v8448
        %v8558 = vsel %vm7207, %v8456, %v8478
        %v8559 = vsel %vm7207, %v8457, %v8480
        %v8560 = vsel %vm7207, %v8458, %v8482
        %v8561 = vsel %vm7207, %v8459, %v8484
        %v8562 = vsel %vm7207, %v8460, %v8486
        %v8563 = vsel %vm7207, %v8461, %v8488
        %v8564 = vsel %vm7207, %v8462, %v8490
        %v8565 = vsel %vm7207, %v8498, %v8520
        %v8566 = vsel %vm7207, %v8499, %v8522
        %v8567 = vsel %vm7207, %v8500, %v8524
        %v8568 = vsel %vm7207, %v8501, %v8526
        %v8569 = vsel %vm7207, %v8502, %v8528
        %v8570 = vsel %vm7207, %v8503, %v8530
        %v8571 = vsel %vm7207, %v8504, %v8532
        %8575 = vrot.lane.b32.xlu0 %v8552, 64
        %v8576 = vpop.permute.xlu0 %8575
        %8577 = vrot.lane.b32.xlu0 %v8559, 64
        %v8578 = vpop.permute.xlu0 %8577
        %8579 = vrot.lane.b32.xlu0 %v8566, 64
        %v8580 = vpop.permute.xlu0 %8579
        %8581 = vrot.lane.b32.xlu0 %v8541, 64
        %v8582 = vpop.permute.xlu0 %8581
        %v8583 = vsel %vm7207, %v8576, %v8578
        %v8584 = vsel %vm7207, %v8578, %v8580
        %v8585 = vsel %vm7207, %v8580, %v8582
        %8593 = vrot.lane.b32.xlu0 %v8554, 64
        %v8594 = vpop.permute.xlu0 %8593
        %8595 = vrot.lane.b32.xlu0 %v8561, 64
        %v8596 = vpop.permute.xlu0 %8595
        %8597 = vrot.lane.b32.xlu0 %v8568, 64
        %v8598 = vpop.permute.xlu0 %8597
        %8599 = vrot.lane.b32.xlu0 %v8543, 64
        %v8600 = vpop.permute.xlu0 %8599
        %v8601 = vsel %vm7207, %v8594, %v8596
        %v8602 = vsel %vm7207, %v8596, %v8598
        %v8603 = vsel %vm7207, %v8598, %v8600
        %8611 = vrot.lane.b32.xlu0 %v8556, 64
        %v8612 = vpop.permute.xlu0 %8611
        %8613 = vrot.lane.b32.xlu0 %v8563, 64
        %v8614 = vpop.permute.xlu0 %8613
        %8615 = vrot.lane.b32.xlu0 %v8570, 64
        %v8616 = vpop.permute.xlu0 %8615
        %8617 = vrot.lane.b32.xlu0 %v8545, 64
        %v8618 = vpop.permute.xlu0 %8617
        %v8619 = vsel %vm7207, %v8612, %v8614
        %v8620 = vsel %vm7207, %v8614, %v8616
        %v8621 = vsel %vm7207, %v8616, %v8618
        %v8626 = vsel %vm7207, %v8540, %v8576
        %v8627 = vsel %vm7207, %v8542, %v8594
        %v8628 = vsel %vm7207, %v8544, %v8612
        %v8629 = vpack.c.bf16 %v8551, %v8551
        %v8630 = vpack.c.bf16 %v8558, %v8558
        %v8631 = vpack.c.bf16 %v8565, %v8565
        %v8632 = vpack.c.bf16 %v8626, %v8626
        %v8633 = vpack.c.bf16 %v8583, %v8583
        %v8634 = vpack.c.bf16 %v8584, %v8584
        %v8635 = vpack.c.bf16 %v8585, %v8585
        %v8636 = vpack.c.bf16 %v8553, %v8553
        %v8637 = vpack.c.bf16 %v8560, %v8560
        %v8638 = vpack.c.bf16 %v8567, %v8567
        %v8639 = vpack.c.bf16 %v8627, %v8627
        %v8640 = vpack.c.bf16 %v8601, %v8601
        %v8641 = vpack.c.bf16 %v8602, %v8602
        %v8642 = vpack.c.bf16 %v8603, %v8603
        %v8643 = vpack.c.bf16 %v8555, %v8555
        %v8644 = vpack.c.bf16 %v8562, %v8562
        %v8645 = vpack.c.bf16 %v8569, %v8569
        %v8646 = vpack.c.bf16 %v8628, %v8628
        %v8647 = vpack.c.bf16 %v8619, %v8619
        %v8648 = vpack.c.bf16 %v8620, %v8620
        %v8649 = vpack.c.bf16 %v8621, %v8621
        %v8650 = vpack.c.bf16 %v8557, %v8557
        %v8651 = vpack.c.bf16 %v8564, %v8564
        %v8652 = vpack.c.bf16 %v8571, %v8571
        %v8653 = vpack.c.bf16 %v8546, %v8546
        %v8654 = vld [vmem:[%s5] sm:$0xf]
        %v8655 = vld [vmem:[%s5 + $0x4] sm:$0xf]
        %v8656 = vld [vmem:[%s5 + $0x8] sm:$0xf]
        %v8657 = vld [vmem:[%s5 + $0xc] sm:$0xf]
        %v8658 = vld [vmem:[%s5 + $0x10] sm:$0xf]
        %v8659 = vld [vmem:[%s5 + $0x14] sm:$0xf]
        %v8660 = vld [vmem:[%s5 + $0x18] sm:$0xf]
        %v8661 = vld [vmem:[%s5 + $0x1c] sm:$0xf]
        %v8662 = vld [vmem:[%s5 + $0x20] sm:$0xf]
        %v8663 = vld [vmem:[%s5 + $0x24] sm:$0xf]
        %v8664 = vld [vmem:[%s5 + $0x28] sm:$0xf]
        %v8665 = vld [vmem:[%s5 + $0x2c] sm:$0xf]
        %v8666 = vld [vmem:[%s5 + $0x30] sm:$0xf]
        %v8667 = vld [vmem:[%s5 + $0x34] sm:$0xf]
        %v8668 = vld [vmem:[%s5 + $0x38] sm:$0xf]
        %v8669 = vld [vmem:[%s5 + $0x3c] sm:$0xf]
        %v8670 = vld [vmem:[%s5 + $0x40] sm:$0xf]
        %v8671 = vld [vmem:[%s5 + $0x44] sm:$0xf]
        %v8672 = vld [vmem:[%s5 + $0x48] sm:$0xf]
        %v8673 = vld [vmem:[%s5 + $0x4c] sm:$0xf]
        %v8674 = vld [vmem:[%s5 + $0x50] sm:$0xf]
        %v8675 = vld [vmem:[%s5 + $0x54] sm:$0xf]
        %v8676 = vld [vmem:[%s5 + $0x58] sm:$0xf]
        %v8677 = vld [vmem:[%s5 + $0x5c] sm:$0xf]
        %v8678 = vld [vmem:[%s5 + $0x60] sm:$0xf]
        %v8679 = vld [vmem:[%s5 + $0x64] sm:$0xf]
        %v8680 = vld [vmem:[%s5 + $0x68] sm:$0xf]
        %v8681 = vld [vmem:[%s5 + $0x6c] sm:$0xf]
        %v8682 = vld [vmem:[%s5 + $0x70] sm:$0xf]
        %v8683 = vld [vmem:[%s5 + $0x74] sm:$0xf]
        %v8684 = vld [vmem:[%s5 + $0x78] sm:$0xf]
        %v8685 = vld [vmem:[%s5 + $0x7c] sm:$0xf]
        %v8686 = vld [vmem:[%s5 + $0x80] sm:$0xf]
        %v8687 = vld [vmem:[%s5 + $0x84] sm:$0xf]
        %v8688 = vld [vmem:[%s5 + $0x88] sm:$0xf]
        %v8689 = vld [vmem:[%s5 + $0x8c] sm:$0xf]
        %v8690 = vld [vmem:[%s5 + $0x90] sm:$0xf]
        %v8691 = vld [vmem:[%s5 + $0x94] sm:$0xf]
        %v8692 = vld [vmem:[%s5 + $0x98] sm:$0xf]
        %v8693 = vld [vmem:[%s5 + $0x9c] sm:$0xf]
        %v8694 = vld [vmem:[%s5 + $0xa0] sm:$0xf]
        %v8695 = vld [vmem:[%s5 + $0xa4] sm:$0xf]
        %v8696 = vld [vmem:[%s5 + $0xa8] sm:$0xf]
        %v8697 = vld [vmem:[%s5 + $0xac] sm:$0xf]
        %v8698 = vld [vmem:[%s5 + $0xb0] sm:$0xf]
        %v8699 = vld [vmem:[%s5 + $0xb4] sm:$0xf]
        %v8700 = vld [vmem:[%s5 + $0xb8] sm:$0xf]
        %v8701 = vld [vmem:[%s5 + $0xbc] sm:$0xf]
        %v8702 = vld [vmem:[%s5 + $0xc0] sm:$0xf]
        %v8703 = vld [vmem:[%s5 + $0xc4] sm:$0xf]
        %v8704 = vld [vmem:[%s5 + $0xc8] sm:$0xf]
        %v8705 = vld [vmem:[%s5 + $0xcc] sm:$0xf]
        %v8706 = vld [vmem:[%s5 + $0xd0] sm:$0xf]
        %v8707 = vld [vmem:[%s5 + $0xd4] sm:$0xf]
        %v8708 = vld [vmem:[%s5 + $0xd8] sm:$0xf]
        %v8709 = vld [vmem:[%s5 + $0xdc] sm:$0xf]
        %v8710 = vld [vmem:[%s5 + $0xe0] sm:$0xf]
        %v8711 = vld [vmem:[%s5 + $0xe4] sm:$0xf]
        %v8712 = vld [vmem:[%s5 + $0xe8] sm:$0xf]
        %v8713 = vld [vmem:[%s5 + $0xec] sm:$0xf]
        %v8714 = vld [vmem:[%s5 + $0xf0] sm:$0xf]
        %v8715 = vld [vmem:[%s5 + $0xf4] sm:$0xf]
        %v8716 = vld [vmem:[%s5 + $0xf8] sm:$0xf]
        %v8717 = vld [vmem:[%s5 + $0xfc] sm:$0xf]
        %v8718 = vld [vmem:[%s5 + $0x100] sm:$0xf]
        %v8719 = vld [vmem:[%s5 + $0x104] sm:$0xf]
        %v8720 = vld [vmem:[%s5 + $0x108] sm:$0xf]
        %v8721 = vld [vmem:[%s5 + $0x10c] sm:$0xf]
        %v8722 = vld [vmem:[%s5 + $0x110] sm:$0xf]
        %v8723 = vld [vmem:[%s5 + $0x114] sm:$0xf]
        %v8724 = vld [vmem:[%s5 + $0x118] sm:$0xf]
        %v8725 = vld [vmem:[%s5 + $0x11c] sm:$0xf]
        %v8726 = vld [vmem:[%s5 + $0x120] sm:$0xf]
        %v8727 = vld [vmem:[%s5 + $0x124] sm:$0xf]
        %v8728 = vld [vmem:[%s5 + $0x128] sm:$0xf]
        %v8729 = vld [vmem:[%s5 + $0x12c] sm:$0xf]
        %v8730 = vld [vmem:[%s5 + $0x130] sm:$0xf]
        %v8731 = vld [vmem:[%s5 + $0x134] sm:$0xf]
        %v8732 = vld [vmem:[%s5 + $0x138] sm:$0xf]
        %v8733 = vld [vmem:[%s5 + $0x13c] sm:$0xf]
        %v8734 = vld [vmem:[%s5 + $0x140] sm:$0xf]
        %v8735 = vld [vmem:[%s5 + $0x144] sm:$0xf]
        %v8736 = vld [vmem:[%s5 + $0x148] sm:$0xf]
        %v8737 = vld [vmem:[%s5 + $0x14c] sm:$0xf]
        %v8738 = vld [vmem:[%s5 + $0x150] sm:$0xf]
        %v8739 = vld [vmem:[%s5 + $0x154] sm:$0xf]
        %v8740 = vld [vmem:[%s5 + $0x158] sm:$0xf]
        %v8741 = vld [vmem:[%s5 + $0x15c] sm:$0xf]
        %v8742 = vld [vmem:[%s5 + $0x160] sm:$0xf]
        %v8743 = vld [vmem:[%s5 + $0x164] sm:$0xf]
        %v8744 = vld [vmem:[%s5 + $0x168] sm:$0xf]
        %v8745 = vld [vmem:[%s5 + $0x16c] sm:$0xf]
        %v8746 = vld [vmem:[%s5 + $0x170] sm:$0xf]
        %v8747 = vld [vmem:[%s5 + $0x174] sm:$0xf]
        %v8748 = vld [vmem:[%s5 + $0x178] sm:$0xf]
        %v8749 = vld [vmem:[%s5 + $0x17c] sm:$0xf]
        %v8750 = vld [vmem:[%s5 + $0x180] sm:$0xf]
        %v8751 = vld [vmem:[%s5 + $0x184] sm:$0xf]
        %v8752 = vld [vmem:[%s5 + $0x188] sm:$0xf]
        %v8753 = vld [vmem:[%s5 + $0x18c] sm:$0xf]
        %v8754 = vld [vmem:[%s5 + $0x190] sm:$0xf]
        %v8755 = vld [vmem:[%s5 + $0x194] sm:$0xf]
        %v8756 = vld [vmem:[%s5 + $0x198] sm:$0xf]
        %v8757 = vld [vmem:[%s5 + $0x19c] sm:$0xf]
        %v8758 = vld [vmem:[%s5 + $0x1a0] sm:$0xf]
        %v8759 = vld [vmem:[%s5 + $0x1a4] sm:$0xf]
        %v8760 = vld [vmem:[%s5 + $0x1a8] sm:$0xf]
        %v8761 = vld [vmem:[%s5 + $0x1ac] sm:$0xf]
        %v8762 = vld [vmem:[%s5 + $0x1b0] sm:$0xf]
        %v8763 = vld [vmem:[%s5 + $0x1b4] sm:$0xf]
        %v8764 = vld [vmem:[%s5 + $0x1b8] sm:$0xf]
        %v8765 = vld [vmem:[%s5 + $0x1bc] sm:$0xf]
        %v8766 = vld [vmem:[%s5 + $0x1c0] sm:$0xf]
        %v8767 = vld [vmem:[%s5 + $0x1c4] sm:$0xf]
        %v8768 = vld [vmem:[%s5 + $0x1c8] sm:$0xf]
        %v8769 = vld [vmem:[%s5 + $0x1cc] sm:$0xf]
        %v8770 = vld [vmem:[%s5 + $0x1d0] sm:$0xf]
        %v8771 = vld [vmem:[%s5 + $0x1d4] sm:$0xf]
        %v8772 = vld [vmem:[%s5 + $0x1d8] sm:$0xf]
        %v8773 = vld [vmem:[%s5 + $0x1dc] sm:$0xf]
        %v8774 = vld [vmem:[%s5 + $0x1e0] sm:$0xf]
        %v8775 = vld [vmem:[%s5 + $0x1e4] sm:$0xf]
        %v8776 = vld [vmem:[%s5 + $0x1e8] sm:$0xf]
        %v8777 = vld [vmem:[%s5 + $0x1ec] sm:$0xf]
        %v8778 = vld [vmem:[%s5 + $0x1f0] sm:$0xf]
        %v8779 = vld [vmem:[%s5 + $0x1f4] sm:$0xf]
        %v8780 = vld [vmem:[%s5 + $0x1f8] sm:$0xf]
        %v8781 = vld [vmem:[%s5 + $0x1fc] sm:$0xf]
        %v8782 = vld [vmem:[%s5 + $0x200] sm:$0xf]
        %v8783 = vld [vmem:[%s5 + $0x204] sm:$0xf]
        %v8784 = vld [vmem:[%s5 + $0x208] sm:$0xf]
        %v8785 = vld [vmem:[%s5 + $0x20c] sm:$0xf]
        %v8786 = vld [vmem:[%s5 + $0x210] sm:$0xf]
        %v8787 = vld [vmem:[%s5 + $0x214] sm:$0xf]
        %v8788 = vld [vmem:[%s5 + $0x218] sm:$0xf]
        %v8789 = vld [vmem:[%s5 + $0x21c] sm:$0xf]
        %v8790 = vld [vmem:[%s5 + $0x220] sm:$0xf]
        %v8791 = vld [vmem:[%s5 + $0x224] sm:$0xf]
        %v8792 = vld [vmem:[%s5 + $0x228] sm:$0xf]
        %v8793 = vld [vmem:[%s5 + $0x22c] sm:$0xf]
        %v8794 = vld [vmem:[%s5 + $0x230] sm:$0xf]
        %v8795 = vld [vmem:[%s5 + $0x234] sm:$0xf]
        %v8796 = vld [vmem:[%s5 + $0x238] sm:$0xf]
        %v8797 = vld [vmem:[%s5 + $0x23c] sm:$0xf]
        %v8798 = vld [vmem:[%s5 + $0x240] sm:$0xf]
        %v8799 = vld [vmem:[%s5 + $0x244] sm:$0xf]
        %v8800 = vld [vmem:[%s5 + $0x248] sm:$0xf]
        %v8801 = vld [vmem:[%s5 + $0x24c] sm:$0xf]
        %v8802 = vld [vmem:[%s5 + $0x250] sm:$0xf]
        %v8803 = vld [vmem:[%s5 + $0x254] sm:$0xf]
        %v8804 = vld [vmem:[%s5 + $0x258] sm:$0xf]
        %v8805 = vld [vmem:[%s5 + $0x25c] sm:$0xf]
        %v8806 = vld [vmem:[%s5 + $0x260] sm:$0xf]
        %v8807 = vld [vmem:[%s5 + $0x264] sm:$0xf]
        %v8808 = vld [vmem:[%s5 + $0x268] sm:$0xf]
        %v8809 = vld [vmem:[%s5 + $0x26c] sm:$0xf]
        %v8810 = vld [vmem:[%s5 + $0x270] sm:$0xf]
        %v8811 = vld [vmem:[%s5 + $0x274] sm:$0xf]
        %v8812 = vld [vmem:[%s5 + $0x278] sm:$0xf]
        %v8813 = vld [vmem:[%s5 + $0x27c] sm:$0xf]
        %v8814 = vld [vmem:[%s5 + $0x280] sm:$0xf]
        %v8815 = vld [vmem:[%s5 + $0x284] sm:$0xf]
        %v8816 = vld [vmem:[%s5 + $0x288] sm:$0xf]
        %v8817 = vld [vmem:[%s5 + $0x28c] sm:$0xf]
        %v8818 = vld [vmem:[%s5 + $0x290] sm:$0xf]
        %v8819 = vld [vmem:[%s5 + $0x294] sm:$0xf]
        %v8820 = vld [vmem:[%s5 + $0x298] sm:$0xf]
        %v8821 = vld [vmem:[%s5 + $0x29c] sm:$0xf]
        %v8822 = vld [vmem:[%s5 + $0x2a0] sm:$0xf]
        %v8823 = vld [vmem:[%s5 + $0x2a4] sm:$0xf]
        %v8824 = vld [vmem:[%s5 + $0x2a8] sm:$0xf]
        %v8825 = vld [vmem:[%s5 + $0x2ac] sm:$0xf]
        %v8826 = vld [vmem:[%s5 + $0x2b0] sm:$0xf]
        %v8827 = vld [vmem:[%s5 + $0x2b4] sm:$0xf]
        %v8828 = vld [vmem:[%s5 + $0x2b8] sm:$0xf]
        %v8829 = vld [vmem:[%s5 + $0x2bc] sm:$0xf]
        %v8830 = vld [vmem:[%s5 + $0x2c0] sm:$0xf]
        %v8831 = vld [vmem:[%s5 + $0x2c4] sm:$0xf]
        %v8832 = vld [vmem:[%s5 + $0x2c8] sm:$0xf]
        %v8833 = vld [vmem:[%s5 + $0x2cc] sm:$0xf]
        %v8834 = vld [vmem:[%s5 + $0x2d0] sm:$0xf]
        %v8835 = vld [vmem:[%s5 + $0x2d4] sm:$0xf]
        %v8836 = vld [vmem:[%s5 + $0x2d8] sm:$0xf]
        %v8837 = vld [vmem:[%s5 + $0x2dc] sm:$0xf]
        %v8838 = vld [vmem:[%s5 + $0x2e0] sm:$0xf]
        %v8839 = vld [vmem:[%s5 + $0x2e4] sm:$0xf]
        %v8840 = vld [vmem:[%s5 + $0x2e8] sm:$0xf]
        %v8841 = vld [vmem:[%s5 + $0x2ec] sm:$0xf]
        %v8842 = vld [vmem:[%s5 + $0x2f0] sm:$0xf]
        %v8843 = vld [vmem:[%s5 + $0x2f4] sm:$0xf]
        %v8844 = vld [vmem:[%s5 + $0x2f8] sm:$0xf]
        %v8845 = vld [vmem:[%s5 + $0x2fc] sm:$0xf]
        %v8846 = vld [vmem:[%s5 + $0x300] sm:$0xf]
        %v8847 = vld [vmem:[%s5 + $0x304] sm:$0xf]
        %v8848 = vld [vmem:[%s5 + $0x308] sm:$0xf]
        %v8849 = vld [vmem:[%s5 + $0x30c] sm:$0xf]
        %v8850 = vld [vmem:[%s5 + $0x310] sm:$0xf]
        %v8851 = vld [vmem:[%s5 + $0x314] sm:$0xf]
        %v8852 = vld [vmem:[%s5 + $0x318] sm:$0xf]
        %v8853 = vld [vmem:[%s5 + $0x31c] sm:$0xf]
        %v8854 = vld [vmem:[%s5 + $0x320] sm:$0xf]
        %v8855 = vld [vmem:[%s5 + $0x324] sm:$0xf]
        %v8856 = vld [vmem:[%s5 + $0x328] sm:$0xf]
        %v8857 = vld [vmem:[%s5 + $0x32c] sm:$0xf]
        %v8858 = vld [vmem:[%s5 + $0x330] sm:$0xf]
        %v8859 = vld [vmem:[%s5 + $0x334] sm:$0xf]
        %v8860 = vld [vmem:[%s5 + $0x338] sm:$0xf]
        %v8861 = vld [vmem:[%s5 + $0x33c] sm:$0xf]
        %v8862 = vld [vmem:[%s5 + $0x340] sm:$0xf]
        %v8863 = vld [vmem:[%s5 + $0x344] sm:$0xf]
        %v8864 = vld [vmem:[%s5 + $0x348] sm:$0xf]
        %v8865 = vld [vmem:[%s5 + $0x34c] sm:$0xf]
        %v8866 = vld [vmem:[%s5 + $0x350] sm:$0xf]
        %v8867 = vld [vmem:[%s5 + $0x354] sm:$0xf]
        %v8868 = vld [vmem:[%s5 + $0x358] sm:$0xf]
        %v8869 = vld [vmem:[%s5 + $0x35c] sm:$0xf]
        %v8870 = vld [vmem:[%s5 + $0x360] sm:$0xf]
        %v8871 = vld [vmem:[%s5 + $0x364] sm:$0xf]
        %v8872 = vld [vmem:[%s5 + $0x368] sm:$0xf]
        %v8873 = vld [vmem:[%s5 + $0x36c] sm:$0xf]
        %v8874 = vld [vmem:[%s5 + $0x370] sm:$0xf]
        %v8875 = vld [vmem:[%s5 + $0x374] sm:$0xf]
        %v8876 = vld [vmem:[%s5 + $0x378] sm:$0xf]
        %v8877 = vld [vmem:[%s5 + $0x37c] sm:$0xf]
        %v8878 = vld [vmem:[%s5 + $0x380] sm:$0xf]
        %v8879 = vld [vmem:[%s5 + $0x384] sm:$0xf]
        %v8880 = vld [vmem:[%s5 + $0x388] sm:$0xf]
        %v8881 = vld [vmem:[%s5 + $0x38c] sm:$0xf]
        %v8882 = vld [vmem:[%s5 + $0x390] sm:$0xf]
        %v8883 = vld [vmem:[%s5 + $0x394] sm:$0xf]
        %v8884 = vld [vmem:[%s5 + $0x398] sm:$0xf]
        %v8885 = vld [vmem:[%s5 + $0x39c] sm:$0xf]
        %v8886 = vld [vmem:[%s5 + $0x3a0] sm:$0xf]
        %v8887 = vld [vmem:[%s5 + $0x3a4] sm:$0xf]
        %v8888 = vld [vmem:[%s5 + $0x3a8] sm:$0xf]
        %v8889 = vld [vmem:[%s5 + $0x3ac] sm:$0xf]
        %v8890 = vld [vmem:[%s5 + $0x3b0] sm:$0xf]
        %v8891 = vld [vmem:[%s5 + $0x3b4] sm:$0xf]
        %v8892 = vld [vmem:[%s5 + $0x3b8] sm:$0xf]
        %v8893 = vld [vmem:[%s5 + $0x3bc] sm:$0xf]
        %v8894 = vld [vmem:[%s5 + $0x3c0] sm:$0xf]
        %v8895 = vld [vmem:[%s5 + $0x3c4] sm:$0xf]
        %v8896 = vld [vmem:[%s5 + $0x3c8] sm:$0xf]
        %v8897 = vld [vmem:[%s5 + $0x3cc] sm:$0xf]
        %v8898 = vld [vmem:[%s5 + $0x3d0] sm:$0xf]
        %v8899 = vld [vmem:[%s5 + $0x3d4] sm:$0xf]
        %v8900 = vld [vmem:[%s5 + $0x3d8] sm:$0xf]
        %v8901 = vld [vmem:[%s5 + $0x3dc] sm:$0xf]
        %v8902 = vld [vmem:[%s5 + $0x3e0] sm:$0xf]
        %v8903 = vld [vmem:[%s5 + $0x3e4] sm:$0xf]
        %v8904 = vld [vmem:[%s5 + $0x3e8] sm:$0xf]
        %v8905 = vld [vmem:[%s5 + $0x3ec] sm:$0xf]
        %v8906 = vld [vmem:[%s5 + $0x3f0] sm:$0xf]
        %v8907 = vld [vmem:[%s5 + $0x3f4] sm:$0xf]
        %v8908 = vld [vmem:[%s5 + $0x3f8] sm:$0xf]
        %v8909 = vld [vmem:[%s5 + $0x3fc] sm:$0xf]
        %v8910 = vld [vmem:[%s5 + $0x400] sm:$0xf]
        %v8911 = vld [vmem:[%s5 + $0x404] sm:$0xf]
        %v8912 = vld [vmem:[%s5 + $0x408] sm:$0xf]
        %v8913 = vld [vmem:[%s5 + $0x40c] sm:$0xf]
        %v8914 = vld [vmem:[%s5 + $0x410] sm:$0xf]
        %v8915 = vld [vmem:[%s5 + $0x414] sm:$0xf]
        %v8916 = vld [vmem:[%s5 + $0x418] sm:$0xf]
        %v8917 = vld [vmem:[%s5 + $0x41c] sm:$0xf]
        %v8918 = vld [vmem:[%s5 + $0x420] sm:$0xf]
        %v8919 = vld [vmem:[%s5 + $0x424] sm:$0xf]
        %v8920 = vld [vmem:[%s5 + $0x428] sm:$0xf]
        %v8921 = vld [vmem:[%s5 + $0x42c] sm:$0xf]
        %v8922 = vld [vmem:[%s5 + $0x430] sm:$0xf]
        %v8923 = vld [vmem:[%s5 + $0x434] sm:$0xf]
        %v8924 = vld [vmem:[%s5 + $0x438] sm:$0xf]
        %v8925 = vld [vmem:[%s5 + $0x43c] sm:$0xf]
        %v8926 = vld [vmem:[%s5 + $0x440] sm:$0xf]
        %v8927 = vld [vmem:[%s5 + $0x444] sm:$0xf]
        %v8928 = vld [vmem:[%s5 + $0x448] sm:$0xf]
        %v8929 = vld [vmem:[%s5 + $0x44c] sm:$0xf]
        %v8930 = vld [vmem:[%s5 + $0x450] sm:$0xf]
        %v8931 = vld [vmem:[%s5 + $0x454] sm:$0xf]
        %v8932 = vld [vmem:[%s5 + $0x458] sm:$0xf]
        %v8933 = vld [vmem:[%s5 + $0x45c] sm:$0xf]
        %v8934 = vld [vmem:[%s5 + $0x460] sm:$0xf]
        %v8935 = vld [vmem:[%s5 + $0x464] sm:$0xf]
        %v8936 = vld [vmem:[%s5 + $0x468] sm:$0xf]
        %v8937 = vld [vmem:[%s5 + $0x46c] sm:$0xf]
        %v8938 = vld [vmem:[%s5 + $0x470] sm:$0xf]
        %v8939 = vld [vmem:[%s5 + $0x474] sm:$0xf]
        %v8940 = vld [vmem:[%s5 + $0x478] sm:$0xf]
        %v8941 = vld [vmem:[%s5 + $0x47c] sm:$0xf]
        %v8942 = vld [vmem:[%s5 + $0x480] sm:$0xf]
        %v8943 = vld [vmem:[%s5 + $0x484] sm:$0xf]
        %v8944 = vld [vmem:[%s5 + $0x488] sm:$0xf]
        %v8945 = vld [vmem:[%s5 + $0x48c] sm:$0xf]
        %v8946 = vld [vmem:[%s5 + $0x490] sm:$0xf]
        %v8947 = vld [vmem:[%s5 + $0x494] sm:$0xf]
        %v8948 = vld [vmem:[%s5 + $0x498] sm:$0xf]
        %v8949 = vld [vmem:[%s5 + $0x49c] sm:$0xf]
        %v8950 = vld [vmem:[%s5 + $0x4a0] sm:$0xf]
        %v8951 = vld [vmem:[%s5 + $0x4a4] sm:$0xf]
        %v8952 = vld [vmem:[%s5 + $0x4a8] sm:$0xf]
        %v8953 = vld [vmem:[%s5 + $0x4ac] sm:$0xf]
        %v8954 = vld [vmem:[%s5 + $0x4b0] sm:$0xf]
        %v8955 = vld [vmem:[%s5 + $0x4b4] sm:$0xf]
        %v8956 = vld [vmem:[%s5 + $0x4b8] sm:$0xf]
        %v8957 = vld [vmem:[%s5 + $0x4bc] sm:$0xf]
        %v8958 = vld [vmem:[%s5 + $0x4c0] sm:$0xf]
        %v8959 = vld [vmem:[%s5 + $0x4c4] sm:$0xf]
        %v8960 = vld [vmem:[%s5 + $0x4c8] sm:$0xf]
        %v8961 = vld [vmem:[%s5 + $0x4cc] sm:$0xf]
        %v8962 = vld [vmem:[%s5 + $0x4d0] sm:$0xf]
        %v8963 = vld [vmem:[%s5 + $0x4d4] sm:$0xf]
        %v8964 = vld [vmem:[%s5 + $0x4d8] sm:$0xf]
        %v8965 = vld [vmem:[%s5 + $0x4dc] sm:$0xf]
        %v8966 = vld [vmem:[%s5 + $0x4e0] sm:$0xf]
        %v8967 = vld [vmem:[%s5 + $0x4e4] sm:$0xf]
        %v8968 = vld [vmem:[%s5 + $0x4e8] sm:$0xf]
        %v8969 = vld [vmem:[%s5 + $0x4ec] sm:$0xf]
        %v8970 = vld [vmem:[%s5 + $0x4f0] sm:$0xf]
        %v8971 = vld [vmem:[%s5 + $0x4f4] sm:$0xf]
        %v8972 = vld [vmem:[%s5 + $0x4f8] sm:$0xf]
        %v8973 = vld [vmem:[%s5 + $0x4fc] sm:$0xf]
        %v8974 = vld [vmem:[%s5 + $0x500] sm:$0xf]
        %v8975 = vld [vmem:[%s5 + $0x504] sm:$0xf]
        %v8976 = vld [vmem:[%s5 + $0x508] sm:$0xf]
        %v8977 = vld [vmem:[%s5 + $0x50c] sm:$0xf]
        %v8978 = vld [vmem:[%s5 + $0x510] sm:$0xf]
        %v8979 = vld [vmem:[%s5 + $0x514] sm:$0xf]
        %v8980 = vld [vmem:[%s5 + $0x518] sm:$0xf]
        %v8981 = vld [vmem:[%s5 + $0x51c] sm:$0xf]
        %v8982 = vld [vmem:[%s5 + $0x520] sm:$0xf]
        %v8983 = vld [vmem:[%s5 + $0x524] sm:$0xf]
        %v8984 = vld [vmem:[%s5 + $0x528] sm:$0xf]
        %v8985 = vld [vmem:[%s5 + $0x52c] sm:$0xf]
        %v8986 = vld [vmem:[%s5 + $0x530] sm:$0xf]
        %v8987 = vld [vmem:[%s5 + $0x534] sm:$0xf]
        %v8988 = vld [vmem:[%s5 + $0x538] sm:$0xf]
        %v8989 = vld [vmem:[%s5 + $0x53c] sm:$0xf]
        %v8990 = vld [vmem:[%s5 + $0x540] sm:$0xf]
        %v8991 = vld [vmem:[%s5 + $0x544] sm:$0xf]
        %v8992 = vld [vmem:[%s5 + $0x548] sm:$0xf]
        %v8993 = vld [vmem:[%s5 + $0x54c] sm:$0xf]
        %v8994 = vld [vmem:[%s5 + $0x550] sm:$0xf]
        %v8995 = vld [vmem:[%s5 + $0x554] sm:$0xf]
        %v8996 = vld [vmem:[%s5 + $0x558] sm:$0xf]
        %v8997 = vld [vmem:[%s5 + $0x55c] sm:$0xf]
        %v8998 = vld [vmem:[%s5 + $0x560] sm:$0xf]
        %v8999 = vld [vmem:[%s5 + $0x564] sm:$0xf]
        %v9000 = vld [vmem:[%s5 + $0x568] sm:$0xf]
        %v9001 = vld [vmem:[%s5 + $0x56c] sm:$0xf]
        %v9002 = vld [vmem:[%s5 + $0x570] sm:$0xf]
        %v9003 = vld [vmem:[%s5 + $0x574] sm:$0xf]
        %v9004 = vld [vmem:[%s5 + $0x578] sm:$0xf]
        %v9005 = vld [vmem:[%s5 + $0x57c] sm:$0xf]
        %v9006 = vld [vmem:[%s5 + $0x580] sm:$0xf]
        %v9007 = vld [vmem:[%s5 + $0x584] sm:$0xf]
        %v9008 = vld [vmem:[%s5 + $0x588] sm:$0xf]
        %v9009 = vld [vmem:[%s5 + $0x58c] sm:$0xf]
        %v9010 = vld [vmem:[%s5 + $0x590] sm:$0xf]
        %v9011 = vld [vmem:[%s5 + $0x594] sm:$0xf]
        %v9012 = vld [vmem:[%s5 + $0x598] sm:$0xf]
        %v9013 = vld [vmem:[%s5 + $0x59c] sm:$0xf]
        %v9014 = vld [vmem:[%s5 + $0x5a0] sm:$0xf]
        %v9015 = vld [vmem:[%s5 + $0x5a4] sm:$0xf]
        %v9016 = vld [vmem:[%s5 + $0x5a8] sm:$0xf]
        %v9017 = vld [vmem:[%s5 + $0x5ac] sm:$0xf]
        %v9018 = vld [vmem:[%s5 + $0x5b0] sm:$0xf]
        %v9019 = vld [vmem:[%s5 + $0x5b4] sm:$0xf]
        %v9020 = vld [vmem:[%s5 + $0x5b8] sm:$0xf]
        %v9021 = vld [vmem:[%s5 + $0x5bc] sm:$0xf]
        %v9022 = vld [vmem:[%s5 + $0x5c0] sm:$0xf]
        %v9023 = vld [vmem:[%s5 + $0x5c4] sm:$0xf]
        %v9024 = vld [vmem:[%s5 + $0x5c8] sm:$0xf]
        %v9025 = vld [vmem:[%s5 + $0x5cc] sm:$0xf]
        %v9026 = vld [vmem:[%s5 + $0x5d0] sm:$0xf]
        %v9027 = vld [vmem:[%s5 + $0x5d4] sm:$0xf]
        %v9028 = vld [vmem:[%s5 + $0x5d8] sm:$0xf]
        %v9029 = vld [vmem:[%s5 + $0x5dc] sm:$0xf]
        %v9030 = vld [vmem:[%s5 + $0x5e0] sm:$0xf]
        %v9031 = vld [vmem:[%s5 + $0x5e4] sm:$0xf]
        %v9032 = vld [vmem:[%s5 + $0x5e8] sm:$0xf]
        %v9033 = vld [vmem:[%s5 + $0x5ec] sm:$0xf]
        %v9034 = vld [vmem:[%s5 + $0x5f0] sm:$0xf]
        %v9035 = vld [vmem:[%s5 + $0x5f4] sm:$0xf]
        %v9036 = vld [vmem:[%s5 + $0x5f8] sm:$0xf]
        %v9037 = vld [vmem:[%s5 + $0x5fc] sm:$0xf]
        %v9038 = vld [vmem:[%s5 + $0x600] sm:$0xf]
        %v9039 = vld [vmem:[%s5 + $0x604] sm:$0xf]
        %v9040 = vld [vmem:[%s5 + $0x608] sm:$0xf]
        %v9041 = vld [vmem:[%s5 + $0x60c] sm:$0xf]
        %v9042 = vld [vmem:[%s5 + $0x610] sm:$0xf]
        %v9043 = vld [vmem:[%s5 + $0x614] sm:$0xf]
        %v9044 = vld [vmem:[%s5 + $0x618] sm:$0xf]
        %v9045 = vld [vmem:[%s5 + $0x61c] sm:$0xf]
        %v9046 = vld [vmem:[%s6] sm:$0x1]
        %v9439 = vunpack.c.l.b16 %v8654
        %v9440 = vunpack.c.l.b16 %v8655
        %v9441 = vunpack.c.l.b16 %v8656
        %v9442 = vunpack.c.l.b16 %v8657
        %v9443 = vunpack.c.l.b16 %v8658
        %v9444 = vunpack.c.l.b16 %v8659
        %v9445 = vunpack.c.l.b16 %v8660
        %v9446 = vunpack.c.l.b16 %v8661
        %v9447 = vunpack.c.l.b16 %v8662
        %v9448 = vunpack.c.l.b16 %v8663
        %v9449 = vunpack.c.l.b16 %v8664
        %v9450 = vunpack.c.l.b16 %v8665
        %v9451 = vunpack.c.l.b16 %v8666
        %v9452 = vunpack.c.l.b16 %v8667
        %v9453 = vunpack.c.l.b16 %v8668
        %v9454 = vunpack.c.l.b16 %v8669
        %v9455 = vunpack.c.l.b16 %v8670
        %v9456 = vunpack.c.l.b16 %v8671
        %v9457 = vunpack.c.l.b16 %v8672
        %v9458 = vunpack.c.l.b16 %v8673
        %v9459 = vunpack.c.l.b16 %v8674
        %v9460 = vunpack.c.l.b16 %v8675
        %v9461 = vunpack.c.l.b16 %v8676
        %v9462 = vunpack.c.l.b16 %v8677
        %v9463 = vunpack.c.l.b16 %v8678
        %v9464 = vunpack.c.l.b16 %v8679
        %v9465 = vunpack.c.l.b16 %v8680
        %v9466 = vunpack.c.l.b16 %v8681
        %v9467 = vunpack.c.l.b16 %v8682
        %v9468 = vunpack.c.l.b16 %v8683
        %v9469 = vunpack.c.l.b16 %v8684
        %v9470 = vunpack.c.l.b16 %v8685
        %v9471 = vunpack.c.l.b16 %v8686
        %v9472 = vunpack.c.l.b16 %v8687
        %v9473 = vunpack.c.l.b16 %v8688
        %v9474 = vunpack.c.l.b16 %v8689
        %v9475 = vunpack.c.l.b16 %v8690
        %v9476 = vunpack.c.l.b16 %v8691
        %v9477 = vunpack.c.l.b16 %v8692
        %v9478 = vunpack.c.l.b16 %v8693
        %v9479 = vunpack.c.l.b16 %v8694
        %v9480 = vunpack.c.l.b16 %v8695
        %v9481 = vunpack.c.l.b16 %v8696
        %v9482 = vunpack.c.l.b16 %v8697
        %v9483 = vunpack.c.l.b16 %v8698
        %v9484 = vunpack.c.l.b16 %v8699
        %v9485 = vunpack.c.l.b16 %v8700
        %v9486 = vunpack.c.l.b16 %v8701
        %v9487 = vunpack.c.l.b16 %v8702
        %v9488 = vunpack.c.l.b16 %v8703
        %v9489 = vunpack.c.l.b16 %v8704
        %v9490 = vunpack.c.l.b16 %v8705
        %v9491 = vunpack.c.l.b16 %v8706
        %v9492 = vunpack.c.l.b16 %v8707
        %v9493 = vunpack.c.l.b16 %v8708
        %v9494 = vunpack.c.l.b16 %v8709
        %v9495 = vunpack.c.l.b16 %v8710
        %v9496 = vunpack.c.l.b16 %v8711
        %v9497 = vunpack.c.l.b16 %v8712
        %v9498 = vunpack.c.l.b16 %v8713
        %v9499 = vunpack.c.l.b16 %v8714
        %v9500 = vunpack.c.l.b16 %v8715
        %v9501 = vunpack.c.l.b16 %v8716
        %v9502 = vunpack.c.l.b16 %v8717
        %v9503 = vunpack.c.l.b16 %v8718
        %v9504 = vunpack.c.l.b16 %v8719
        %v9505 = vunpack.c.l.b16 %v8720
        %v9506 = vunpack.c.l.b16 %v8721
        %v9507 = vunpack.c.l.b16 %v8722
        %v9508 = vunpack.c.l.b16 %v8723
        %v9509 = vunpack.c.l.b16 %v8724
        %v9510 = vunpack.c.l.b16 %v8725
        %v9511 = vunpack.c.l.b16 %v8726
        %v9512 = vunpack.c.l.b16 %v8727
        %v9513 = vunpack.c.l.b16 %v8728
        %v9514 = vunpack.c.l.b16 %v8729
        %v9515 = vunpack.c.l.b16 %v8730
        %v9516 = vunpack.c.l.b16 %v8731
        %v9517 = vunpack.c.l.b16 %v8732
        %v9518 = vunpack.c.l.b16 %v8733
        %v9519 = vunpack.c.l.b16 %v8734
        %v9520 = vunpack.c.l.b16 %v8735
        %v9521 = vunpack.c.l.b16 %v8736
        %v9522 = vunpack.c.l.b16 %v8737
        %v9523 = vunpack.c.l.b16 %v8738
        %v9524 = vunpack.c.l.b16 %v8739
        %v9525 = vunpack.c.l.b16 %v8740
        %v9526 = vunpack.c.l.b16 %v8741
        %v9527 = vunpack.c.l.b16 %v8742
        %v9528 = vunpack.c.l.b16 %v8743
        %v9529 = vunpack.c.l.b16 %v8744
        %v9530 = vunpack.c.l.b16 %v8745
        %v9531 = vunpack.c.l.b16 %v8746
        %v9532 = vunpack.c.l.b16 %v8747
        %v9533 = vunpack.c.l.b16 %v8748
        %v9534 = vunpack.c.l.b16 %v8749
        %v9535 = vunpack.c.l.b16 %v8750
        %v9536 = vunpack.c.l.b16 %v8751
        %v9537 = vunpack.c.l.b16 %v8752
        %v9538 = vunpack.c.l.b16 %v8753
        %v9539 = vunpack.c.l.b16 %v8754
        %v9540 = vunpack.c.l.b16 %v8755
        %v9541 = vunpack.c.l.b16 %v8756
        %v9542 = vunpack.c.l.b16 %v8757
        %v9543 = vunpack.c.l.b16 %v8758
        %v9544 = vunpack.c.l.b16 %v8759
        %v9545 = vunpack.c.l.b16 %v8760
        %v9546 = vunpack.c.l.b16 %v8761
        %v9547 = vunpack.c.l.b16 %v8762
        %v9548 = vunpack.c.l.b16 %v8763
        %v9549 = vunpack.c.l.b16 %v8764
        %v9550 = vunpack.c.l.b16 %v8765
        %v9551 = vunpack.c.l.b16 %v8766
        %v9552 = vunpack.c.l.b16 %v8767
        %v9553 = vunpack.c.l.b16 %v8768
        %v9554 = vunpack.c.l.b16 %v8769
        %v9555 = vunpack.c.l.b16 %v8770
        %v9556 = vunpack.c.l.b16 %v8771
        %v9557 = vunpack.c.l.b16 %v8772
        %v9558 = vunpack.c.l.b16 %v8773
        %v9559 = vunpack.c.l.b16 %v8774
        %v9560 = vunpack.c.l.b16 %v8775
        %v9561 = vunpack.c.l.b16 %v8776
        %v9562 = vunpack.c.l.b16 %v8777
        %v9563 = vunpack.c.l.b16 %v8778
        %v9564 = vunpack.c.l.b16 %v8779
        %v9565 = vunpack.c.l.b16 %v8780
        %v9566 = vunpack.c.l.b16 %v8781
        %v9567 = vunpack.c.l.b16 %v8782
        %v9568 = vunpack.c.l.b16 %v8783
        %v9569 = vunpack.c.l.b16 %v8784
        %v9570 = vunpack.c.l.b16 %v8785
        %v9571 = vunpack.c.l.b16 %v8786
        %v9572 = vunpack.c.l.b16 %v8787
        %v9573 = vunpack.c.l.b16 %v8788
        %v9574 = vunpack.c.l.b16 %v8789
        %v9575 = vunpack.c.l.b16 %v8790
        %v9576 = vunpack.c.l.b16 %v8791
        %v9577 = vunpack.c.l.b16 %v8792
        %v9578 = vunpack.c.l.b16 %v8793
        %v9579 = vunpack.c.l.b16 %v8794
        %v9580 = vunpack.c.l.b16 %v8795
        %v9581 = vunpack.c.l.b16 %v8796
        %v9582 = vunpack.c.l.b16 %v8797
        %v9583 = vunpack.c.l.b16 %v8798
        %v9584 = vunpack.c.l.b16 %v8799
        %v9585 = vunpack.c.l.b16 %v8800
        %v9586 = vunpack.c.l.b16 %v8801
        %v9587 = vunpack.c.l.b16 %v8802
        %v9588 = vunpack.c.l.b16 %v8803
        %v9589 = vunpack.c.l.b16 %v8804
        %v9590 = vunpack.c.l.b16 %v8805
        %v9591 = vunpack.c.l.b16 %v8806
        %v9592 = vunpack.c.l.b16 %v8807
        %v9593 = vunpack.c.l.b16 %v8808
        %v9594 = vunpack.c.l.b16 %v8809
        %v9595 = vunpack.c.l.b16 %v8810
        %v9596 = vunpack.c.l.b16 %v8811
        %v9597 = vunpack.c.l.b16 %v8812
        %v9598 = vunpack.c.l.b16 %v8813
        %v9599 = vunpack.c.l.b16 %v8814
        %v9600 = vunpack.c.l.b16 %v8815
        %v9601 = vunpack.c.l.b16 %v8816
        %v9602 = vunpack.c.l.b16 %v8817
        %v9603 = vunpack.c.l.b16 %v8818
        %v9604 = vunpack.c.l.b16 %v8819
        %v9605 = vunpack.c.l.b16 %v8820
        %v9606 = vunpack.c.l.b16 %v8821
        %v9607 = vunpack.c.l.b16 %v8822
        %v9608 = vunpack.c.l.b16 %v8823
        %v9609 = vunpack.c.l.b16 %v8824
        %v9610 = vunpack.c.l.b16 %v8825
        %v9611 = vunpack.c.l.b16 %v8826
        %v9612 = vunpack.c.l.b16 %v8827
        %v9613 = vunpack.c.l.b16 %v8828
        %v9614 = vunpack.c.l.b16 %v8829
        %v9615 = vunpack.c.l.b16 %v8830
        %v9616 = vunpack.c.l.b16 %v8831
        %v9617 = vunpack.c.l.b16 %v8832
        %v9618 = vunpack.c.l.b16 %v8833
        %v9619 = vunpack.c.l.b16 %v8834
        %v9620 = vunpack.c.l.b16 %v8835
        %v9621 = vunpack.c.l.b16 %v8836
        %v9622 = vunpack.c.l.b16 %v8837
        %v9623 = vunpack.c.l.b16 %v8838
        %v9624 = vunpack.c.l.b16 %v8839
        %v9625 = vunpack.c.l.b16 %v8840
        %v9626 = vunpack.c.l.b16 %v8841
        %v9627 = vunpack.c.l.b16 %v8842
        %v9628 = vunpack.c.l.b16 %v8843
        %v9629 = vunpack.c.l.b16 %v8844
        %v9630 = vunpack.c.l.b16 %v8845
        %v9631 = vunpack.c.l.b16 %v8846
        %v9632 = vunpack.c.l.b16 %v8847
        %v9633 = vunpack.c.l.b16 %v8848
        %v9634 = vunpack.c.l.b16 %v8849
        %v9635 = vunpack.c.l.b16 %v8850
        %v9636 = vunpack.c.l.b16 %v8851
        %v9637 = vunpack.c.l.b16 %v8852
        %v9638 = vunpack.c.l.b16 %v8853
        %v9639 = vunpack.c.l.b16 %v8854
        %v9640 = vunpack.c.l.b16 %v8855
        %v9641 = vunpack.c.l.b16 %v8856
        %v9642 = vunpack.c.l.b16 %v8857
        %v9643 = vunpack.c.l.b16 %v8858
        %v9644 = vunpack.c.l.b16 %v8859
        %v9645 = vunpack.c.l.b16 %v8860
        %v9646 = vunpack.c.l.b16 %v8861
        %v9647 = vunpack.c.l.b16 %v8862
        %v9648 = vunpack.c.l.b16 %v8863
        %v9649 = vunpack.c.l.b16 %v8864
        %v9650 = vunpack.c.l.b16 %v8865
        %v9651 = vunpack.c.l.b16 %v8866
        %v9652 = vunpack.c.l.b16 %v8867
        %v9653 = vunpack.c.l.b16 %v8868
        %v9654 = vunpack.c.l.b16 %v8869
        %v9655 = vunpack.c.l.b16 %v8870
        %v9656 = vunpack.c.l.b16 %v8871
        %v9657 = vunpack.c.l.b16 %v8872
        %v9658 = vunpack.c.l.b16 %v8873
        %v9659 = vunpack.c.l.b16 %v8874
        %v9660 = vunpack.c.l.b16 %v8875
        %v9661 = vunpack.c.l.b16 %v8876
        %v9662 = vunpack.c.l.b16 %v8877
        %v9663 = vunpack.c.l.b16 %v8878
        %v9664 = vunpack.c.l.b16 %v8879
        %v9665 = vunpack.c.l.b16 %v8880
        %v9666 = vunpack.c.l.b16 %v8881
        %v9667 = vunpack.c.l.b16 %v8882
        %v9668 = vunpack.c.l.b16 %v8883
        %v9669 = vunpack.c.l.b16 %v8884
        %v9670 = vunpack.c.l.b16 %v8885
        %v9671 = vunpack.c.l.b16 %v8886
        %v9672 = vunpack.c.l.b16 %v8887
        %v9673 = vunpack.c.l.b16 %v8888
        %v9674 = vunpack.c.l.b16 %v8889
        %v9675 = vunpack.c.l.b16 %v8890
        %v9676 = vunpack.c.l.b16 %v8891
        %v9677 = vunpack.c.l.b16 %v8892
        %v9678 = vunpack.c.l.b16 %v8893
        %v9679 = vunpack.c.l.b16 %v8894
        %v9680 = vunpack.c.l.b16 %v8895
        %v9681 = vunpack.c.l.b16 %v8896
        %v9682 = vunpack.c.l.b16 %v8897
        %v9683 = vunpack.c.l.b16 %v8898
        %v9684 = vunpack.c.l.b16 %v8899
        %v9685 = vunpack.c.l.b16 %v8900
        %v9686 = vunpack.c.l.b16 %v8901
        %v9687 = vunpack.c.l.b16 %v8902
        %v9688 = vunpack.c.l.b16 %v8903
        %v9689 = vunpack.c.l.b16 %v8904
        %v9690 = vunpack.c.l.b16 %v8905
        %v9691 = vunpack.c.l.b16 %v8906
        %v9692 = vunpack.c.l.b16 %v8907
        %v9693 = vunpack.c.l.b16 %v8908
        %v9694 = vunpack.c.l.b16 %v8909
        %v9695 = vunpack.c.l.b16 %v8910
        %v9696 = vunpack.c.l.b16 %v8911
        %v9697 = vunpack.c.l.b16 %v8912
        %v9698 = vunpack.c.l.b16 %v8913
        %v9699 = vunpack.c.l.b16 %v8914
        %v9700 = vunpack.c.l.b16 %v8915
        %v9701 = vunpack.c.l.b16 %v8916
        %v9702 = vunpack.c.l.b16 %v8917
        %v9703 = vunpack.c.l.b16 %v8918
        %v9704 = vunpack.c.l.b16 %v8919
        %v9705 = vunpack.c.l.b16 %v8920
        %v9706 = vunpack.c.l.b16 %v8921
        %v9707 = vunpack.c.l.b16 %v8922
        %v9708 = vunpack.c.l.b16 %v8923
        %v9709 = vunpack.c.l.b16 %v8924
        %v9710 = vunpack.c.l.b16 %v8925
        %v9711 = vunpack.c.l.b16 %v8926
        %v9712 = vunpack.c.l.b16 %v8927
        %v9713 = vunpack.c.l.b16 %v8928
        %v9714 = vunpack.c.l.b16 %v8929
        %v9715 = vunpack.c.l.b16 %v8930
        %v9716 = vunpack.c.l.b16 %v8931
        %v9717 = vunpack.c.l.b16 %v8932
        %v9718 = vunpack.c.l.b16 %v8933
        %v9719 = vunpack.c.l.b16 %v8934
        %v9720 = vunpack.c.l.b16 %v8935
        %v9721 = vunpack.c.l.b16 %v8936
        %v9722 = vunpack.c.l.b16 %v8937
        %v9723 = vunpack.c.l.b16 %v8938
        %v9724 = vunpack.c.l.b16 %v8939
        %v9725 = vunpack.c.l.b16 %v8940
        %v9726 = vunpack.c.l.b16 %v8941
        %v9727 = vunpack.c.l.b16 %v8942
        %v9728 = vunpack.c.l.b16 %v8943
        %v9729 = vunpack.c.l.b16 %v8944
        %v9730 = vunpack.c.l.b16 %v8945
        %v9731 = vunpack.c.l.b16 %v8946
        %v9732 = vunpack.c.l.b16 %v8947
        %v9733 = vunpack.c.l.b16 %v8948
        %v9734 = vunpack.c.l.b16 %v8949
        %v9735 = vunpack.c.l.b16 %v8950
        %v9736 = vunpack.c.l.b16 %v8951
        %v9737 = vunpack.c.l.b16 %v8952
        %v9738 = vunpack.c.l.b16 %v8953
        %v9739 = vunpack.c.l.b16 %v8954
        %v9740 = vunpack.c.l.b16 %v8955
        %v9741 = vunpack.c.l.b16 %v8956
        %v9742 = vunpack.c.l.b16 %v8957
        %v9743 = vunpack.c.l.b16 %v8958
        %v9744 = vunpack.c.l.b16 %v8959
        %v9745 = vunpack.c.l.b16 %v8960
        %v9746 = vunpack.c.l.b16 %v8961
        %v9747 = vunpack.c.l.b16 %v8962
        %v9748 = vunpack.c.l.b16 %v8963
        %v9749 = vunpack.c.l.b16 %v8964
        %v9750 = vunpack.c.l.b16 %v8965
        %v9751 = vunpack.c.l.b16 %v8966
        %v9752 = vunpack.c.l.b16 %v8967
        %v9753 = vunpack.c.l.b16 %v8968
        %v9754 = vunpack.c.l.b16 %v8969
        %v9755 = vunpack.c.l.b16 %v8970
        %v9756 = vunpack.c.l.b16 %v8971
        %v9757 = vunpack.c.l.b16 %v8972
        %v9758 = vunpack.c.l.b16 %v8973
        %v9759 = vunpack.c.l.b16 %v8974
        %v9760 = vunpack.c.l.b16 %v8975
        %v9761 = vunpack.c.l.b16 %v8976
        %v9762 = vunpack.c.l.b16 %v8977
        %v9763 = vunpack.c.l.b16 %v8978
        %v9764 = vunpack.c.l.b16 %v8979
        %v9765 = vunpack.c.l.b16 %v8980
        %v9766 = vunpack.c.l.b16 %v8981
        %v9767 = vunpack.c.l.b16 %v8982
        %v9768 = vunpack.c.l.b16 %v8983
        %v9769 = vunpack.c.l.b16 %v8984
        %v9770 = vunpack.c.l.b16 %v8985
        %v9771 = vunpack.c.l.b16 %v8986
        %v9772 = vunpack.c.l.b16 %v8987
        %v9773 = vunpack.c.l.b16 %v8988
        %v9774 = vunpack.c.l.b16 %v8989
        %v9775 = vunpack.c.l.b16 %v8990
        %v9776 = vunpack.c.l.b16 %v8991
        %v9777 = vunpack.c.l.b16 %v8992
        %v9778 = vunpack.c.l.b16 %v8993
        %v9779 = vunpack.c.l.b16 %v8994
        %v9780 = vunpack.c.l.b16 %v8995
        %v9781 = vunpack.c.l.b16 %v8996
        %v9782 = vunpack.c.l.b16 %v8997
        %v9783 = vunpack.c.l.b16 %v8998
        %v9784 = vunpack.c.l.b16 %v8999
        %v9785 = vunpack.c.l.b16 %v9000
        %v9786 = vunpack.c.l.b16 %v9001
        %v9787 = vunpack.c.l.b16 %v9002
        %v9788 = vunpack.c.l.b16 %v9003
        %v9789 = vunpack.c.l.b16 %v9004
        %v9790 = vunpack.c.l.b16 %v9005
        %v9791 = vunpack.c.l.b16 %v9006
        %v9792 = vunpack.c.l.b16 %v9007
        %v9793 = vunpack.c.l.b16 %v9008
        %v9794 = vunpack.c.l.b16 %v9009
        %v9795 = vunpack.c.l.b16 %v9010
        %v9796 = vunpack.c.l.b16 %v9011
        %v9797 = vunpack.c.l.b16 %v9012
        %v9798 = vunpack.c.l.b16 %v9013
        %v9799 = vunpack.c.l.b16 %v9014
        %v9800 = vunpack.c.l.b16 %v9015
        %v9801 = vunpack.c.l.b16 %v9016
        %v9802 = vunpack.c.l.b16 %v9017
        %v9803 = vunpack.c.l.b16 %v9018
        %v9804 = vunpack.c.l.b16 %v9019
        %v9805 = vunpack.c.l.b16 %v9020
        %v9806 = vunpack.c.l.b16 %v9021
        %v9807 = vunpack.c.l.b16 %v9022
        %v9808 = vunpack.c.l.b16 %v9023
        %v9809 = vunpack.c.l.b16 %v9024
        %v9810 = vunpack.c.l.b16 %v9025
        %v9811 = vunpack.c.l.b16 %v9026
        %v9812 = vunpack.c.l.b16 %v9027
        %v9813 = vunpack.c.l.b16 %v9028
        %v9814 = vunpack.c.l.b16 %v9029
        %v9815 = vunpack.c.l.b16 %v9030
        %v9816 = vunpack.c.l.b16 %v9031
        %v9817 = vunpack.c.l.b16 %v9032
        %v9818 = vunpack.c.l.b16 %v9033
        %v9819 = vunpack.c.l.b16 %v9034
        %v9820 = vunpack.c.l.b16 %v9035
        %v9821 = vunpack.c.l.b16 %v9036
        %v9822 = vunpack.c.l.b16 %v9037
        %v9823 = vunpack.c.l.b16 %v9038
        %v9824 = vunpack.c.l.b16 %v9039
        %v9825 = vunpack.c.l.b16 %v9040
        %v9826 = vunpack.c.l.b16 %v9041
        %v9827 = vunpack.c.l.b16 %v9042
        %v9828 = vunpack.c.l.b16 %v9043
        %v9829 = vunpack.c.l.b16 %v9044
        %v9830 = vunpack.c.l.b16 %v9045
        %v9831 = vpack.c.b16 %v9440, %v9439
        %v9832 = vpack.c.b16 %v9442, %v9441
        %v9833 = vpack.c.b16 %v9444, %v9443
        %v9834 = vpack.c.b16 %v9446, %v9445
        %v9835 = vpack.c.b16 %v9448, %v9447
        %v9836 = vpack.c.b16 %v9450, %v9449
        %v9837 = vpack.c.b16 %v9452, %v9451
        %v9838 = vpack.c.b16 %v9454, %v9453
        %v9839 = vpack.c.b16 %v9456, %v9455
        %v9840 = vpack.c.b16 %v9458, %v9457
        %v9841 = vpack.c.b16 %v9460, %v9459
        %v9842 = vpack.c.b16 %v9462, %v9461
        %v9843 = vpack.c.b16 %v9464, %v9463
        %v9844 = vpack.c.b16 %v9466, %v9465
        %v9845 = vpack.c.b16 %v9468, %v9467
        %v9846 = vpack.c.b16 %v9470, %v9469
        %v9847 = vpack.c.b16 %v9472, %v9471
        %v9848 = vpack.c.b16 %v9474, %v9473
        %v9849 = vpack.c.b16 %v9476, %v9475
        %v9850 = vpack.c.b16 %v9478, %v9477
        %v9851 = vpack.c.b16 %v9480, %v9479
        %v9852 = vpack.c.b16 %v9482, %v9481
        %v9853 = vpack.c.b16 %v9484, %v9483
        %v9854 = vpack.c.b16 %v9486, %v9485
        %v9855 = vpack.c.b16 %v9488, %v9487
        %v9856 = vpack.c.b16 %v9490, %v9489
        %v9857 = vpack.c.b16 %v9492, %v9491
        %v9858 = vpack.c.b16 %v9494, %v9493
        %v9859 = vpack.c.b16 %v9496, %v9495
        %v9860 = vpack.c.b16 %v9498, %v9497
        %v9861 = vpack.c.b16 %v9500, %v9499
        %v9862 = vpack.c.b16 %v9502, %v9501
        %v9863 = vpack.c.b16 %v9504, %v9503
        %v9864 = vpack.c.b16 %v9506, %v9505
        %v9865 = vpack.c.b16 %v9508, %v9507
        %v9866 = vpack.c.b16 %v9510, %v9509
        %v9867 = vpack.c.b16 %v9512, %v9511
        %v9868 = vpack.c.b16 %v9514, %v9513
        %v9869 = vpack.c.b16 %v9516, %v9515
        %v9870 = vpack.c.b16 %v9518, %v9517
        %v9871 = vpack.c.b16 %v9520, %v9519
        %v9872 = vpack.c.b16 %v9522, %v9521
        %v9873 = vpack.c.b16 %v9524, %v9523
        %v9874 = vpack.c.b16 %v9526, %v9525
        %v9875 = vpack.c.b16 %v9528, %v9527
        %v9876 = vpack.c.b16 %v9530, %v9529
        %v9877 = vpack.c.b16 %v9532, %v9531
        %v9878 = vpack.c.b16 %v9534, %v9533
        %v9879 = vpack.c.b16 %v9536, %v9535
        %v9880 = vpack.c.b16 %v9538, %v9537
        %v9881 = vpack.c.b16 %v9540, %v9539
        %v9882 = vpack.c.b16 %v9542, %v9541
        %v9883 = vpack.c.b16 %v9544, %v9543
        %v9884 = vpack.c.b16 %v9546, %v9545
        %v9885 = vpack.c.b16 %v9548, %v9547
        %v9886 = vpack.c.b16 %v9550, %v9549
        %v9887 = vpack.c.b16 %v9552, %v9551
        %v9888 = vpack.c.b16 %v9554, %v9553
        %v9889 = vpack.c.b16 %v9556, %v9555
        %v9890 = vpack.c.b16 %v9558, %v9557
        %v9891 = vpack.c.b16 %v9560, %v9559
        %v9892 = vpack.c.b16 %v9562, %v9561
        %v9893 = vpack.c.b16 %v9564, %v9563
        %v9894 = vpack.c.b16 %v9566, %v9565
        %v9895 = vpack.c.b16 %v9568, %v9567
        %v9896 = vpack.c.b16 %v9570, %v9569
        %v9897 = vpack.c.b16 %v9572, %v9571
        %v9898 = vpack.c.b16 %v9574, %v9573
        %v9899 = vpack.c.b16 %v9576, %v9575
        %v9900 = vpack.c.b16 %v9578, %v9577
        %v9901 = vpack.c.b16 %v9580, %v9579
        %v9902 = vpack.c.b16 %v9582, %v9581
        %v9903 = vpack.c.b16 %v9584, %v9583
        %v9904 = vpack.c.b16 %v9586, %v9585
        %v9905 = vpack.c.b16 %v9588, %v9587
        %v9906 = vpack.c.b16 %v9590, %v9589
        %v9907 = vpack.c.b16 %v9592, %v9591
        %v9908 = vpack.c.b16 %v9594, %v9593
        %v9909 = vpack.c.b16 %v9596, %v9595
        %v9910 = vpack.c.b16 %v9598, %v9597
        %v9911 = vpack.c.b16 %v9600, %v9599
        %v9912 = vpack.c.b16 %v9602, %v9601
        %v9913 = vpack.c.b16 %v9604, %v9603
        %v9914 = vpack.c.b16 %v9606, %v9605
        %v9915 = vpack.c.b16 %v9608, %v9607
        %v9916 = vpack.c.b16 %v9610, %v9609
        %v9917 = vpack.c.b16 %v9612, %v9611
        %v9918 = vpack.c.b16 %v9614, %v9613
        %v9919 = vpack.c.b16 %v9616, %v9615
        %v9920 = vpack.c.b16 %v9618, %v9617
        %v9921 = vpack.c.b16 %v9620, %v9619
        %v9922 = vpack.c.b16 %v9622, %v9621
        %v9923 = vpack.c.b16 %v9624, %v9623
        %v9924 = vpack.c.b16 %v9626, %v9625
        %v9925 = vpack.c.b16 %v9628, %v9627
        %v9926 = vpack.c.b16 %v9630, %v9629
        %v9927 = vpack.c.b16 %v9632, %v9631
        %v9928 = vpack.c.b16 %v9634, %v9633
        %v9929 = vpack.c.b16 %v9636, %v9635
        %v9930 = vpack.c.b16 %v9638, %v9637
        %v9931 = vpack.c.b16 %v9640, %v9639
        %v9932 = vpack.c.b16 %v9642, %v9641
        %v9933 = vpack.c.b16 %v9644, %v9643
        %v9934 = vpack.c.b16 %v9646, %v9645
        %v9935 = vpack.c.b16 %v9648, %v9647
        %v9936 = vpack.c.b16 %v9650, %v9649
        %v9937 = vpack.c.b16 %v9652, %v9651
        %v9938 = vpack.c.b16 %v9654, %v9653
        %v9939 = vpack.c.b16 %v9656, %v9655
        %v9940 = vpack.c.b16 %v9658, %v9657
        %v9941 = vpack.c.b16 %v9660, %v9659
        %v9942 = vpack.c.b16 %v9662, %v9661
        %v9943 = vpack.c.b16 %v9664, %v9663
        %v9944 = vpack.c.b16 %v9666, %v9665
        %v9945 = vpack.c.b16 %v9668, %v9667
        %v9946 = vpack.c.b16 %v9670, %v9669
        %v9947 = vpack.c.b16 %v9672, %v9671
        %v9948 = vpack.c.b16 %v9674, %v9673
        %v9949 = vpack.c.b16 %v9676, %v9675
        %v9950 = vpack.c.b16 %v9678, %v9677
        %v9951 = vpack.c.b16 %v9680, %v9679
        %v9952 = vpack.c.b16 %v9682, %v9681
        %v9953 = vpack.c.b16 %v9684, %v9683
        %v9954 = vpack.c.b16 %v9686, %v9685
        %v9955 = vpack.c.b16 %v9688, %v9687
        %v9956 = vpack.c.b16 %v9690, %v9689
        %v9957 = vpack.c.b16 %v9692, %v9691
        %v9958 = vpack.c.b16 %v9694, %v9693
        %v9959 = vpack.c.b16 %v9696, %v9695
        %v9960 = vpack.c.b16 %v9698, %v9697
        %v9961 = vpack.c.b16 %v9700, %v9699
        %v9962 = vpack.c.b16 %v9702, %v9701
        %v9963 = vpack.c.b16 %v9704, %v9703
        %v9964 = vpack.c.b16 %v9706, %v9705
        %v9965 = vpack.c.b16 %v9708, %v9707
        %v9966 = vpack.c.b16 %v9710, %v9709
        %v9967 = vpack.c.b16 %v9712, %v9711
        %v9968 = vpack.c.b16 %v9714, %v9713
        %v9969 = vpack.c.b16 %v9716, %v9715
        %v9970 = vpack.c.b16 %v9718, %v9717
        %v9971 = vpack.c.b16 %v9720, %v9719
        %v9972 = vpack.c.b16 %v9722, %v9721
        %v9973 = vpack.c.b16 %v9724, %v9723
        %v9974 = vpack.c.b16 %v9726, %v9725
        %v9975 = vpack.c.b16 %v9728, %v9727
        %v9976 = vpack.c.b16 %v9730, %v9729
        %v9977 = vpack.c.b16 %v9732, %v9731
        %v9978 = vpack.c.b16 %v9734, %v9733
        %v9979 = vpack.c.b16 %v9736, %v9735
        %v9980 = vpack.c.b16 %v9738, %v9737
        %v9981 = vpack.c.b16 %v9740, %v9739
        %v9982 = vpack.c.b16 %v9742, %v9741
        %v9983 = vpack.c.b16 %v9744, %v9743
        %v9984 = vpack.c.b16 %v9746, %v9745
        %v9985 = vpack.c.b16 %v9748, %v9747
        %v9986 = vpack.c.b16 %v9750, %v9749
        %v9987 = vpack.c.b16 %v9752, %v9751
        %v9988 = vpack.c.b16 %v9754, %v9753
        %v9989 = vpack.c.b16 %v9756, %v9755
        %v9990 = vpack.c.b16 %v9758, %v9757
        %v9991 = vpack.c.b16 %v9760, %v9759
        %v9992 = vpack.c.b16 %v9762, %v9761
        %v9993 = vpack.c.b16 %v9764, %v9763
        %v9994 = vpack.c.b16 %v9766, %v9765
        %v9995 = vpack.c.b16 %v9768, %v9767
        %v9996 = vpack.c.b16 %v9770, %v9769
        %v9997 = vpack.c.b16 %v9772, %v9771
        %v9998 = vpack.c.b16 %v9774, %v9773
        %v9999 = vpack.c.b16 %v9776, %v9775
        %v10000 = vpack.c.b16 %v9778, %v9777
        %v10001 = vpack.c.b16 %v9780, %v9779
        %v10002 = vpack.c.b16 %v9782, %v9781
        %v10003 = vpack.c.b16 %v9784, %v9783
        %v10004 = vpack.c.b16 %v9786, %v9785
        %v10005 = vpack.c.b16 %v9788, %v9787
        %v10006 = vpack.c.b16 %v9790, %v9789
        %v10007 = vpack.c.b16 %v9792, %v9791
        %v10008 = vpack.c.b16 %v9794, %v9793
        %v10009 = vpack.c.b16 %v9796, %v9795
        %v10010 = vpack.c.b16 %v9798, %v9797
        %v10011 = vpack.c.b16 %v9800, %v9799
        %v10012 = vpack.c.b16 %v9802, %v9801
        %v10013 = vpack.c.b16 %v9804, %v9803
        %v10014 = vpack.c.b16 %v9806, %v9805
        %v10015 = vpack.c.b16 %v9808, %v9807
        %v10016 = vpack.c.b16 %v9810, %v9809
        %v10017 = vpack.c.b16 %v9812, %v9811
        %v10018 = vpack.c.b16 %v9814, %v9813
        %v10019 = vpack.c.b16 %v9816, %v9815
        %v10020 = vpack.c.b16 %v9818, %v9817
        %v10021 = vpack.c.b16 %v9820, %v9819
        %v10022 = vpack.c.b16 %v9822, %v9821
        %v10023 = vpack.c.b16 %v9824, %v9823
        %v10024 = vpack.c.b16 %v9826, %v9825
        %v10025 = vpack.c.b16 %v9828, %v9827
        %v10026 = vpack.c.b16 %v9830, %v9829
        %v10224 = vsel %vm7207, %v8653, 0
        %10226 = vmatprep.subr.bf16.mxu0 0
        %10227 = vmatpush1.bf16.msra.mxu0 %v9838
        %10228 = vmatprep.subr.bf16.mxu0 0
        %10229 = vmatpush1.bf16.msra.mxu0 %v9837
        %10230 = vmatprep.subr.bf16.mxu0 0
        %10231 = vmatpush1.bf16.msra.mxu0 %v9836
        %10232 = vmatprep.subr.bf16.mxu0 0
        %10233 = vmatpush1.bf16.msra.mxu0 %v9835
        %10234 = vmatprep.subr.bf16.mxu0 0
        %10235 = vmatpush1.bf16.msra.mxu0 %v9834
        %10236 = vmatprep.subr.bf16.mxu0 0
        %10237 = vmatpush1.bf16.msra.mxu0 %v9833
        %10238 = vmatprep.subr.bf16.mxu0 0
        %10239 = vmatpush1.bf16.msra.mxu0 %v9832
        %10240 = vmatprep.subr.bf16.mxu0 0
        %10241 = vmatpush1.bf16.msra.mxu0 %v9831
        %10242 = vmatprep.subr.bf16.mxu0 0
        %10243 = vmatpush2.bf16.msra.mxu0 %v9846
        %10244 = vmatprep.subr.bf16.mxu0 0
        %10245 = vmatpush2.bf16.msra.mxu0 %v9845
        %10246 = vmatprep.subr.bf16.mxu0 0
        %10247 = vmatpush2.bf16.msra.mxu0 %v9844
        %10248 = vmatprep.subr.bf16.mxu0 0
        %10249 = vmatpush2.bf16.msra.mxu0 %v9843
        %10250 = vmatprep.subr.bf16.mxu0 0
        %10251 = vmatpush2.bf16.msra.mxu0 %v9842
        %10252 = vmatprep.subr.bf16.mxu0 0
        %10253 = vmatpush2.bf16.msra.mxu0 %v9841
        %10254 = vmatprep.subr.bf16.mxu0 0
        %10255 = vmatpush2.bf16.msra.mxu0 %v9840
        %10256 = vmatprep.subr.bf16.mxu0 0
        %10257 = vmatpush2.bf16.msra.mxu0 %v9839
        %10258 = vmatprep.mubr.bf16.mxu0 %v8630
        %10259 = vmatmul.mubr.bf16.gmra.mxu0 %v8629
        %v10260 = vpop.f32.mrf.mxu0
        %v10261 = vadd.f32 %v9046, %v10260
        %v10262 = vpop.f32.mrf.mxu0
        %v10263 = vpop.f32.mrf.mxu0
        %v10264 = vpop.f32.mrf.mxu0
        %10265 = vdwg.mxu0
        %10266 = vmatprep.subr.bf16.mxu0 0
        %10267 = vmatpush1.bf16.msra.mxu0 %v9854
        %10268 = vmatprep.subr.bf16.mxu0 0
        %10269 = vmatpush1.bf16.msra.mxu0 %v9853
        %10270 = vmatprep.subr.bf16.mxu0 0
        %10271 = vmatpush1.bf16.msra.mxu0 %v9852
        %10272 = vmatprep.subr.bf16.mxu0 0
        %10273 = vmatpush1.bf16.msra.mxu0 %v9851
        %10274 = vmatprep.subr.bf16.mxu0 0
        %10275 = vmatpush1.bf16.msra.mxu0 %v9850
        %10276 = vmatprep.subr.bf16.mxu0 0
        %10277 = vmatpush1.bf16.msra.mxu0 %v9849
        %10278 = vmatprep.subr.bf16.mxu0 0
        %10279 = vmatpush1.bf16.msra.mxu0 %v9848
        %10280 = vmatprep.subr.bf16.mxu0 0
        %10281 = vmatpush1.bf16.msra.mxu0 %v9847
        %10282 = vmatprep.subr.bf16.mxu0 0
        %10283 = vmatpush2.bf16.msra.mxu0 %v9862
        %10284 = vmatprep.subr.bf16.mxu0 0
        %10285 = vmatpush2.bf16.msra.mxu0 %v9861
        %10286 = vmatprep.subr.bf16.mxu0 0
        %10287 = vmatpush2.bf16.msra.mxu0 %v9860
        %10288 = vmatprep.subr.bf16.mxu0 0
        %10289 = vmatpush2.bf16.msra.mxu0 %v9859
        %10290 = vmatprep.subr.bf16.mxu0 0
        %10291 = vmatpush2.bf16.msra.mxu0 %v9858
        %10292 = vmatprep.subr.bf16.mxu0 0
        %10293 = vmatpush2.bf16.msra.mxu0 %v9857
        %10294 = vmatprep.subr.bf16.mxu0 0
        %10295 = vmatpush2.bf16.msra.mxu0 %v9856
        %10296 = vmatprep.subr.bf16.mxu0 0
        %10297 = vmatpush2.bf16.msra.mxu0 %v9855
        %10298 = vmatprep.mubr.bf16.mxu0 %v8632
        %10299 = vmatmul.mubr.bf16.gmra.mxu0 %v8631
        %v10300 = vpop.f32.mrf.mxu0
        %v10301 = vadd.f32 %v10261, %v10300
        %v10302 = vpop.f32.mrf.mxu0
        %v10303 = vpop.f32.mrf.mxu0
        %v10304 = vpop.f32.mrf.mxu0
        %10305 = vdwg.mxu0
        %10306 = vmatprep.subr.bf16.mxu0 0
        %10307 = vmatpush1.bf16.msra.mxu0 %v9870
        %10308 = vmatprep.subr.bf16.mxu0 0
        %10309 = vmatpush1.bf16.msra.mxu0 %v9869
        %10310 = vmatprep.subr.bf16.mxu0 0
        %10311 = vmatpush1.bf16.msra.mxu0 %v9868
        %10312 = vmatprep.subr.bf16.mxu0 0
        %10313 = vmatpush1.bf16.msra.mxu0 %v9867
        %10314 = vmatprep.subr.bf16.mxu0 0
        %10315 = vmatpush1.bf16.msra.mxu0 %v9866
        %10316 = vmatprep.subr.bf16.mxu0 0
        %10317 = vmatpush1.bf16.msra.mxu0 %v9865
        %10318 = vmatprep.subr.bf16.mxu0 0
        %10319 = vmatpush1.bf16.msra.mxu0 %v9864
        %10320 = vmatprep.subr.bf16.mxu0 0
        %10321 = vmatpush1.bf16.msra.mxu0 %v9863
        %10322 = vmatprep.subr.bf16.mxu0 0
        %10323 = vmatpush2.bf16.msra.mxu0 %v9878
        %10324 = vmatprep.subr.bf16.mxu0 0
        %10325 = vmatpush2.bf16.msra.mxu0 %v9877
        %10326 = vmatprep.subr.bf16.mxu0 0
        %10327 = vmatpush2.bf16.msra.mxu0 %v9876
        %10328 = vmatprep.subr.bf16.mxu0 0
        %10329 = vmatpush2.bf16.msra.mxu0 %v9875
        %10330 = vmatprep.subr.bf16.mxu0 0
        %10331 = vmatpush2.bf16.msra.mxu0 %v9874
        %10332 = vmatprep.subr.bf16.mxu0 0
        %10333 = vmatpush2.bf16.msra.mxu0 %v9873
        %10334 = vmatprep.subr.bf16.mxu0 0
        %10335 = vmatpush2.bf16.msra.mxu0 %v9872
        %10336 = vmatprep.subr.bf16.mxu0 0
        %10337 = vmatpush2.bf16.msra.mxu0 %v9871
        %10338 = vmatprep.mubr.bf16.mxu0 %v8634
        %10339 = vmatmul.mubr.bf16.gmra.mxu0 %v8633
        %v10340 = vpop.f32.mrf.mxu0
        %v10341 = vadd.f32 %v10301, %v10340
        %v10342 = vpop.f32.mrf.mxu0
        %v10343 = vpop.f32.mrf.mxu0
        %v10344 = vpop.f32.mrf.mxu0
        %10345 = vdwg.mxu0
        %10346 = vmatprep.subr.bf16.mxu0 0
        %10347 = vmatpush1.bf16.msra.mxu0 %v9886
        %10348 = vmatprep.subr.bf16.mxu0 0
        %10349 = vmatpush1.bf16.msra.mxu0 %v9885
        %10350 = vmatprep.subr.bf16.mxu0 0
        %10351 = vmatpush1.bf16.msra.mxu0 %v9884
        %10352 = vmatprep.subr.bf16.mxu0 0
        %10353 = vmatpush1.bf16.msra.mxu0 %v9883
        %10354 = vmatprep.subr.bf16.mxu0 0
        %10355 = vmatpush1.bf16.msra.mxu0 %v9882
        %10356 = vmatprep.subr.bf16.mxu0 0
        %10357 = vmatpush1.bf16.msra.mxu0 %v9881
        %10358 = vmatprep.subr.bf16.mxu0 0
        %10359 = vmatpush1.bf16.msra.mxu0 %v9880
        %10360 = vmatprep.subr.bf16.mxu0 0
        %10361 = vmatpush1.bf16.msra.mxu0 %v9879
        %10362 = vmatprep.subr.bf16.mxu0 0
        %10363 = vmatpush2.bf16.msra.mxu0 %v9894
        %10364 = vmatprep.subr.bf16.mxu0 0
        %10365 = vmatpush2.bf16.msra.mxu0 %v9893
        %10366 = vmatprep.subr.bf16.mxu0 0
        %10367 = vmatpush2.bf16.msra.mxu0 %v9892
        %10368 = vmatprep.subr.bf16.mxu0 0
        %10369 = vmatpush2.bf16.msra.mxu0 %v9891
        %10370 = vmatprep.subr.bf16.mxu0 0
        %10371 = vmatpush2.bf16.msra.mxu0 %v9890
        %10372 = vmatprep.subr.bf16.mxu0 0
        %10373 = vmatpush2.bf16.msra.mxu0 %v9889
        %10374 = vmatprep.subr.bf16.mxu0 0
        %10375 = vmatpush2.bf16.msra.mxu0 %v9888
        %10376 = vmatprep.subr.bf16.mxu0 0
        %10377 = vmatpush2.bf16.msra.mxu0 %v9887
        %10378 = vmatprep.mubr.bf16.mxu0 %v8636
        %10379 = vmatmul.mubr.bf16.gmra.mxu0 %v8635
        %v10380 = vpop.f32.mrf.mxu0
        %v10381 = vadd.f32 %v10341, %v10380
        %v10382 = vpop.f32.mrf.mxu0
        %v10383 = vpop.f32.mrf.mxu0
        %v10384 = vpop.f32.mrf.mxu0
        %10385 = vdwg.mxu0
        %10386 = vmatprep.subr.bf16.mxu0 0
        %10387 = vmatpush1.bf16.msra.mxu0 %v9902
        %10388 = vmatprep.subr.bf16.mxu0 0
        %10389 = vmatpush1.bf16.msra.mxu0 %v9901
        %10390 = vmatprep.subr.bf16.mxu0 0
        %10391 = vmatpush1.bf16.msra.mxu0 %v9900
        %10392 = vmatprep.subr.bf16.mxu0 0
        %10393 = vmatpush1.bf16.msra.mxu0 %v9899
        %10394 = vmatprep.subr.bf16.mxu0 0
        %10395 = vmatpush1.bf16.msra.mxu0 %v9898
        %10396 = vmatprep.subr.bf16.mxu0 0
        %10397 = vmatpush1.bf16.msra.mxu0 %v9897
        %10398 = vmatprep.subr.bf16.mxu0 0
        %10399 = vmatpush1.bf16.msra.mxu0 %v9896
        %10400 = vmatprep.subr.bf16.mxu0 0
        %10401 = vmatpush1.bf16.msra.mxu0 %v9895
        %10402 = vmatprep.subr.bf16.mxu0 0
        %10403 = vmatpush2.bf16.msra.mxu0 %v9910
        %10404 = vmatprep.subr.bf16.mxu0 0
        %10405 = vmatpush2.bf16.msra.mxu0 %v9909
        %10406 = vmatprep.subr.bf16.mxu0 0
        %10407 = vmatpush2.bf16.msra.mxu0 %v9908
        %10408 = vmatprep.subr.bf16.mxu0 0
        %10409 = vmatpush2.bf16.msra.mxu0 %v9907
        %10410 = vmatprep.subr.bf16.mxu0 0
        %10411 = vmatpush2.bf16.msra.mxu0 %v9906
        %10412 = vmatprep.subr.bf16.mxu0 0
        %10413 = vmatpush2.bf16.msra.mxu0 %v9905
        %10414 = vmatprep.subr.bf16.mxu0 0
        %10415 = vmatpush2.bf16.msra.mxu0 %v9904
        %10416 = vmatprep.subr.bf16.mxu0 0
        %10417 = vmatpush2.bf16.msra.mxu0 %v9903
        %10418 = vmatprep.mubr.bf16.mxu0 %v8638
        %10419 = vmatmul.mubr.bf16.gmra.mxu0 %v8637
        %v10420 = vpop.f32.mrf.mxu0
        %v10421 = vadd.f32 %v10381, %v10420
        %v10422 = vpop.f32.mrf.mxu0
        %v10423 = vpop.f32.mrf.mxu0
        %v10424 = vpop.f32.mrf.mxu0
        %10425 = vdwg.mxu0
        %10426 = vmatprep.subr.bf16.mxu0 0
        %10427 = vmatpush1.bf16.msra.mxu0 %v9918
        %10428 = vmatprep.subr.bf16.mxu0 0
        %10429 = vmatpush1.bf16.msra.mxu0 %v9917
        %10430 = vmatprep.subr.bf16.mxu0 0
        %10431 = vmatpush1.bf16.msra.mxu0 %v9916
        %10432 = vmatprep.subr.bf16.mxu0 0
        %10433 = vmatpush1.bf16.msra.mxu0 %v9915
        %10434 = vmatprep.subr.bf16.mxu0 0
        %10435 = vmatpush1.bf16.msra.mxu0 %v9914
        %10436 = vmatprep.subr.bf16.mxu0 0
        %10437 = vmatpush1.bf16.msra.mxu0 %v9913
        %10438 = vmatprep.subr.bf16.mxu0 0
        %10439 = vmatpush1.bf16.msra.mxu0 %v9912
        %10440 = vmatprep.subr.bf16.mxu0 0
        %10441 = vmatpush1.bf16.msra.mxu0 %v9911
        %10442 = vmatprep.subr.bf16.mxu0 0
        %10443 = vmatpush2.bf16.msra.mxu0 %v9926
        %10444 = vmatprep.subr.bf16.mxu0 0
        %10445 = vmatpush2.bf16.msra.mxu0 %v9925
        %10446 = vmatprep.subr.bf16.mxu0 0
        %10447 = vmatpush2.bf16.msra.mxu0 %v9924
        %10448 = vmatprep.subr.bf16.mxu0 0
        %10449 = vmatpush2.bf16.msra.mxu0 %v9923
        %10450 = vmatprep.subr.bf16.mxu0 0
        %10451 = vmatpush2.bf16.msra.mxu0 %v9922
        %10452 = vmatprep.subr.bf16.mxu0 0
        %10453 = vmatpush2.bf16.msra.mxu0 %v9921
        %10454 = vmatprep.subr.bf16.mxu0 0
        %10455 = vmatpush2.bf16.msra.mxu0 %v9920
        %10456 = vmatprep.subr.bf16.mxu0 0
        %10457 = vmatpush2.bf16.msra.mxu0 %v9919
        %10458 = vmatprep.mubr.bf16.mxu0 %v8640
        %10459 = vmatmul.mubr.bf16.gmra.mxu0 %v8639
        %v10460 = vpop.f32.mrf.mxu0
        %v10461 = vadd.f32 %v10421, %v10460
        %v10462 = vpop.f32.mrf.mxu0
        %v10463 = vpop.f32.mrf.mxu0
        %v10464 = vpop.f32.mrf.mxu0
        %10465 = vdwg.mxu0
        %10466 = vmatprep.subr.bf16.mxu0 0
        %10467 = vmatpush1.bf16.msra.mxu0 %v9934
        %10468 = vmatprep.subr.bf16.mxu0 0
        %10469 = vmatpush1.bf16.msra.mxu0 %v9933
        %10470 = vmatprep.subr.bf16.mxu0 0
        %10471 = vmatpush1.bf16.msra.mxu0 %v9932
        %10472 = vmatprep.subr.bf16.mxu0 0
        %10473 = vmatpush1.bf16.msra.mxu0 %v9931
        %10474 = vmatprep.subr.bf16.mxu0 0
        %10475 = vmatpush1.bf16.msra.mxu0 %v9930
        %10476 = vmatprep.subr.bf16.mxu0 0
        %10477 = vmatpush1.bf16.msra.mxu0 %v9929
        %10478 = vmatprep.subr.bf16.mxu0 0
        %10479 = vmatpush1.bf16.msra.mxu0 %v9928
        %10480 = vmatprep.subr.bf16.mxu0 0
        %10481 = vmatpush1.bf16.msra.mxu0 %v9927
        %10482 = vmatprep.subr.bf16.mxu0 0
        %10483 = vmatpush2.bf16.msra.mxu0 %v9942
        %10484 = vmatprep.subr.bf16.mxu0 0
        %10485 = vmatpush2.bf16.msra.mxu0 %v9941
        %10486 = vmatprep.subr.bf16.mxu0 0
        %10487 = vmatpush2.bf16.msra.mxu0 %v9940
        %10488 = vmatprep.subr.bf16.mxu0 0
        %10489 = vmatpush2.bf16.msra.mxu0 %v9939
        %10490 = vmatprep.subr.bf16.mxu0 0
        %10491 = vmatpush2.bf16.msra.mxu0 %v9938
        %10492 = vmatprep.subr.bf16.mxu0 0
        %10493 = vmatpush2.bf16.msra.mxu0 %v9937
        %10494 = vmatprep.subr.bf16.mxu0 0
        %10495 = vmatpush2.bf16.msra.mxu0 %v9936
        %10496 = vmatprep.subr.bf16.mxu0 0
        %10497 = vmatpush2.bf16.msra.mxu0 %v9935
        %10498 = vmatprep.mubr.bf16.mxu0 %v8642
        %10499 = vmatmul.mubr.bf16.gmra.mxu0 %v8641
        %v10500 = vpop.f32.mrf.mxu0
        %v10501 = vadd.f32 %v10461, %v10500
        %v10502 = vpop.f32.mrf.mxu0
        %v10503 = vpop.f32.mrf.mxu0
        %v10504 = vpop.f32.mrf.mxu0
        %10505 = vdwg.mxu0
        %10506 = vmatprep.subr.bf16.mxu0 0
        %10507 = vmatpush1.bf16.msra.mxu0 %v9950
        %10508 = vmatprep.subr.bf16.mxu0 0
        %10509 = vmatpush1.bf16.msra.mxu0 %v9949
        %10510 = vmatprep.subr.bf16.mxu0 0
        %10511 = vmatpush1.bf16.msra.mxu0 %v9948
        %10512 = vmatprep.subr.bf16.mxu0 0
        %10513 = vmatpush1.bf16.msra.mxu0 %v9947
        %10514 = vmatprep.subr.bf16.mxu0 0
        %10515 = vmatpush1.bf16.msra.mxu0 %v9946
        %10516 = vmatprep.subr.bf16.mxu0 0
        %10517 = vmatpush1.bf16.msra.mxu0 %v9945
        %10518 = vmatprep.subr.bf16.mxu0 0
        %10519 = vmatpush1.bf16.msra.mxu0 %v9944
        %10520 = vmatprep.subr.bf16.mxu0 0
        %10521 = vmatpush1.bf16.msra.mxu0 %v9943
        %10522 = vmatprep.subr.bf16.mxu0 0
        %10523 = vmatpush2.bf16.msra.mxu0 %v9958
        %10524 = vmatprep.subr.bf16.mxu0 0
        %10525 = vmatpush2.bf16.msra.mxu0 %v9957
        %10526 = vmatprep.subr.bf16.mxu0 0
        %10527 = vmatpush2.bf16.msra.mxu0 %v9956
        %10528 = vmatprep.subr.bf16.mxu0 0
        %10529 = vmatpush2.bf16.msra.mxu0 %v9955
        %10530 = vmatprep.subr.bf16.mxu0 0
        %10531 = vmatpush2.bf16.msra.mxu0 %v9954
        %10532 = vmatprep.subr.bf16.mxu0 0
        %10533 = vmatpush2.bf16.msra.mxu0 %v9953
        %10534 = vmatprep.subr.bf16.mxu0 0
        %10535 = vmatpush2.bf16.msra.mxu0 %v9952
        %10536 = vmatprep.subr.bf16.mxu0 0
        %10537 = vmatpush2.bf16.msra.mxu0 %v9951
        %10538 = vmatprep.mubr.bf16.mxu0 %v8644
        %10539 = vmatmul.mubr.bf16.gmra.mxu0 %v8643
        %v10540 = vpop.f32.mrf.mxu0
        %v10541 = vadd.f32 %v10501, %v10540
        %v10542 = vpop.f32.mrf.mxu0
        %v10543 = vpop.f32.mrf.mxu0
        %v10544 = vpop.f32.mrf.mxu0
        %10545 = vdwg.mxu0
        %10546 = vmatprep.subr.bf16.mxu0 0
        %10547 = vmatpush1.bf16.msra.mxu0 %v9966
        %10548 = vmatprep.subr.bf16.mxu0 0
        %10549 = vmatpush1.bf16.msra.mxu0 %v9965
        %10550 = vmatprep.subr.bf16.mxu0 0
        %10551 = vmatpush1.bf16.msra.mxu0 %v9964
        %10552 = vmatprep.subr.bf16.mxu0 0
        %10553 = vmatpush1.bf16.msra.mxu0 %v9963
        %10554 = vmatprep.subr.bf16.mxu0 0
        %10555 = vmatpush1.bf16.msra.mxu0 %v9962
        %10556 = vmatprep.subr.bf16.mxu0 0
        %10557 = vmatpush1.bf16.msra.mxu0 %v9961
        %10558 = vmatprep.subr.bf16.mxu0 0
        %10559 = vmatpush1.bf16.msra.mxu0 %v9960
        %10560 = vmatprep.subr.bf16.mxu0 0
        %10561 = vmatpush1.bf16.msra.mxu0 %v9959
        %10562 = vmatprep.subr.bf16.mxu0 0
        %10563 = vmatpush2.bf16.msra.mxu0 %v9974
        %10564 = vmatprep.subr.bf16.mxu0 0
        %10565 = vmatpush2.bf16.msra.mxu0 %v9973
        %10566 = vmatprep.subr.bf16.mxu0 0
        %10567 = vmatpush2.bf16.msra.mxu0 %v9972
        %10568 = vmatprep.subr.bf16.mxu0 0
        %10569 = vmatpush2.bf16.msra.mxu0 %v9971
        %10570 = vmatprep.subr.bf16.mxu0 0
        %10571 = vmatpush2.bf16.msra.mxu0 %v9970
        %10572 = vmatprep.subr.bf16.mxu0 0
        %10573 = vmatpush2.bf16.msra.mxu0 %v9969
        %10574 = vmatprep.subr.bf16.mxu0 0
        %10575 = vmatpush2.bf16.msra.mxu0 %v9968
        %10576 = vmatprep.subr.bf16.mxu0 0
        %10577 = vmatpush2.bf16.msra.mxu0 %v9967
        %10578 = vmatprep.mubr.bf16.mxu0 %v8646
        %10579 = vmatmul.mubr.bf16.gmra.mxu0 %v8645
        %v10580 = vpop.f32.mrf.mxu0
        %v10581 = vadd.f32 %v10541, %v10580
        %v10582 = vpop.f32.mrf.mxu0
        %v10583 = vpop.f32.mrf.mxu0
        %v10584 = vpop.f32.mrf.mxu0
        %10585 = vdwg.mxu0
        %10586 = vmatprep.subr.bf16.mxu0 0
        %10587 = vmatpush1.bf16.msra.mxu0 %v9982
        %10588 = vmatprep.subr.bf16.mxu0 0
        %10589 = vmatpush1.bf16.msra.mxu0 %v9981
        %10590 = vmatprep.subr.bf16.mxu0 0
        %10591 = vmatpush1.bf16.msra.mxu0 %v9980
        %10592 = vmatprep.subr.bf16.mxu0 0
        %10593 = vmatpush1.bf16.msra.mxu0 %v9979
        %10594 = vmatprep.subr.bf16.mxu0 0
        %10595 = vmatpush1.bf16.msra.mxu0 %v9978
        %10596 = vmatprep.subr.bf16.mxu0 0
        %10597 = vmatpush1.bf16.msra.mxu0 %v9977
        %10598 = vmatprep.subr.bf16.mxu0 0
        %10599 = vmatpush1.bf16.msra.mxu0 %v9976
        %10600 = vmatprep.subr.bf16.mxu0 0
        %10601 = vmatpush1.bf16.msra.mxu0 %v9975
        %10602 = vmatprep.subr.bf16.mxu0 0
        %10603 = vmatpush2.bf16.msra.mxu0 %v9990
        %10604 = vmatprep.subr.bf16.mxu0 0
        %10605 = vmatpush2.bf16.msra.mxu0 %v9989
        %10606 = vmatprep.subr.bf16.mxu0 0
        %10607 = vmatpush2.bf16.msra.mxu0 %v9988
        %10608 = vmatprep.subr.bf16.mxu0 0
        %10609 = vmatpush2.bf16.msra.mxu0 %v9987
        %10610 = vmatprep.subr.bf16.mxu0 0
        %10611 = vmatpush2.bf16.msra.mxu0 %v9986
        %10612 = vmatprep.subr.bf16.mxu0 0
        %10613 = vmatpush2.bf16.msra.mxu0 %v9985
        %10614 = vmatprep.subr.bf16.mxu0 0
        %10615 = vmatpush2.bf16.msra.mxu0 %v9984
        %10616 = vmatprep.subr.bf16.mxu0 0
        %10617 = vmatpush2.bf16.msra.mxu0 %v9983
        %10618 = vmatprep.mubr.bf16.mxu0 %v8648
        %10619 = vmatmul.mubr.bf16.gmra.mxu0 %v8647
        %v10620 = vpop.f32.mrf.mxu0
        %v10621 = vadd.f32 %v10581, %v10620
        %v10622 = vpop.f32.mrf.mxu0
        %v10623 = vpop.f32.mrf.mxu0
        %v10624 = vpop.f32.mrf.mxu0
        %10625 = vdwg.mxu0
        %10626 = vmatprep.subr.bf16.mxu0 0
        %10627 = vmatpush1.bf16.msra.mxu0 %v9998
        %10628 = vmatprep.subr.bf16.mxu0 0
        %10629 = vmatpush1.bf16.msra.mxu0 %v9997
        %10630 = vmatprep.subr.bf16.mxu0 0
        %10631 = vmatpush1.bf16.msra.mxu0 %v9996
        %10632 = vmatprep.subr.bf16.mxu0 0
        %10633 = vmatpush1.bf16.msra.mxu0 %v9995
        %10634 = vmatprep.subr.bf16.mxu0 0
        %10635 = vmatpush1.bf16.msra.mxu0 %v9994
        %10636 = vmatprep.subr.bf16.mxu0 0
        %10637 = vmatpush1.bf16.msra.mxu0 %v9993
        %10638 = vmatprep.subr.bf16.mxu0 0
        %10639 = vmatpush1.bf16.msra.mxu0 %v9992
        %10640 = vmatprep.subr.bf16.mxu0 0
        %10641 = vmatpush1.bf16.msra.mxu0 %v9991
        %10642 = vmatprep.subr.bf16.mxu0 0
        %10643 = vmatpush2.bf16.msra.mxu0 %v10006
        %10644 = vmatprep.subr.bf16.mxu0 0
        %10645 = vmatpush2.bf16.msra.mxu0 %v10005
        %10646 = vmatprep.subr.bf16.mxu0 0
        %10647 = vmatpush2.bf16.msra.mxu0 %v10004
        %10648 = vmatprep.subr.bf16.mxu0 0
        %10649 = vmatpush2.bf16.msra.mxu0 %v10003
        %10650 = vmatprep.subr.bf16.mxu0 0
        %10651 = vmatpush2.bf16.msra.mxu0 %v10002
        %10652 = vmatprep.subr.bf16.mxu0 0
        %10653 = vmatpush2.bf16.msra.mxu0 %v10001
        %10654 = vmatprep.subr.bf16.mxu0 0
        %10655 = vmatpush2.bf16.msra.mxu0 %v10000
        %10656 = vmatprep.subr.bf16.mxu0 0
        %10657 = vmatpush2.bf16.msra.mxu0 %v9999
        %10658 = vmatprep.mubr.bf16.mxu0 %v8650
        %10659 = vmatmul.mubr.bf16.gmra.mxu0 %v8649
        %v10660 = vpop.f32.mrf.mxu0
        %v10661 = vadd.f32 %v10621, %v10660
        %v10662 = vpop.f32.mrf.mxu0
        %v10663 = vpop.f32.mrf.mxu0
        %v10664 = vpop.f32.mrf.mxu0
        %10665 = vdwg.mxu0
        %10666 = vmatprep.subr.bf16.mxu0 0
        %10667 = vmatpush1.bf16.msra.mxu0 %v10014
        %10668 = vmatprep.subr.bf16.mxu0 0
        %10669 = vmatpush1.bf16.msra.mxu0 %v10013
        %10670 = vmatprep.subr.bf16.mxu0 0
        %10671 = vmatpush1.bf16.msra.mxu0 %v10012
        %10672 = vmatprep.subr.bf16.mxu0 0
        %10673 = vmatpush1.bf16.msra.mxu0 %v10011
        %10674 = vmatprep.subr.bf16.mxu0 0
        %10675 = vmatpush1.bf16.msra.mxu0 %v10010
        %10676 = vmatprep.subr.bf16.mxu0 0
        %10677 = vmatpush1.bf16.msra.mxu0 %v10009
        %10678 = vmatprep.subr.bf16.mxu0 0
        %10679 = vmatpush1.bf16.msra.mxu0 %v10008
        %10680 = vmatprep.subr.bf16.mxu0 0
        %10681 = vmatpush1.bf16.msra.mxu0 %v10007
        %10682 = vmatprep.subr.bf16.mxu0 0
        %10683 = vmatpush2.bf16.msra.mxu0 %v10022
        %10684 = vmatprep.subr.bf16.mxu0 0
        %10685 = vmatpush2.bf16.msra.mxu0 %v10021
        %10686 = vmatprep.subr.bf16.mxu0 0
        %10687 = vmatpush2.bf16.msra.mxu0 %v10020
        %10688 = vmatprep.subr.bf16.mxu0 0
        %10689 = vmatpush2.bf16.msra.mxu0 %v10019
        %10690 = vmatprep.subr.bf16.mxu0 0
        %10691 = vmatpush2.bf16.msra.mxu0 %v10018
        %10692 = vmatprep.subr.bf16.mxu0 0
        %10693 = vmatpush2.bf16.msra.mxu0 %v10017
        %10694 = vmatprep.subr.bf16.mxu0 0
        %10695 = vmatpush2.bf16.msra.mxu0 %v10016
        %10696 = vmatprep.subr.bf16.mxu0 0
        %10697 = vmatpush2.bf16.msra.mxu0 %v10015
        %10698 = vmatprep.mubr.bf16.mxu0 %v8652
        %10699 = vmatmul.mubr.bf16.gmra.mxu0 %v8651
        %v10700 = vpop.f32.mrf.mxu0
        %v10701 = vadd.f32 %v10661, %v10700
        %v10702 = vpop.f32.mrf.mxu0
        %v10703 = vpop.f32.mrf.mxu0
        %v10704 = vpop.f32.mrf.mxu0
        %10705 = vdwg.mxu0
        %10706 = vmatprep.subr.bf16.mxu0 0
        %10707 = vmatpush1.bf16.msra.mxu0 0
        %10708 = vmatprep.subr.bf16.mxu0 0
        %10709 = vmatpush1.bf16.msra.mxu0 0
        %10710 = vmatprep.subr.bf16.mxu0 0
        %10711 = vmatpush1.bf16.msra.mxu0 0
        %10712 = vmatprep.subr.bf16.mxu0 0
        %10713 = vmatpush1.bf16.msra.mxu0 0
        %10714 = vmatprep.subr.bf16.mxu0 0
        %10715 = vmatpush1.bf16.msra.mxu0 %v10026
        %10716 = vmatprep.subr.bf16.mxu0 0
        %10717 = vmatpush1.bf16.msra.mxu0 %v10025
        %10718 = vmatprep.subr.bf16.mxu0 0
        %10719 = vmatpush1.bf16.msra.mxu0 %v10024
        %10720 = vmatprep.subr.bf16.mxu0 0
        %10721 = vmatpush1.bf16.msra.mxu0 %v10023
        %10722 = vmatprep.subr.bf16.mxu0 0
        %10723 = vmatpush2.bf16.msra.mxu0 0
        %10724 = vmatprep.subr.bf16.mxu0 0
        %10725 = vmatpush2.bf16.msra.mxu0 0
        %10726 = vmatprep.subr.bf16.mxu0 0
        %10727 = vmatpush2.bf16.msra.mxu0 0
        %10728 = vmatprep.subr.bf16.mxu0 0
        %10729 = vmatpush2.bf16.msra.mxu0 0
        %10730 = vmatprep.subr.bf16.mxu0 0
        %10731 = vmatpush2.bf16.msra.mxu0 0
        %10732 = vmatprep.subr.bf16.mxu0 0
        %10733 = vmatpush2.bf16.msra.mxu0 0
        %10734 = vmatprep.subr.bf16.mxu0 0
        %10735 = vmatpush2.bf16.msra.mxu0 0
        %10736 = vmatprep.subr.bf16.mxu0 0
        %10737 = vmatpush2.bf16.msra.mxu0 0
        %10738 = vmatprep.mubr.bf16.mxu0 0
        %10739 = vmatmul.mubr.bf16.gmra.mxu0 %v10224
        %v10740 = vpop.f32.mrf.mxu0
        %v10741 = vadd.f32 %v10701, %v10740
        %v10742 = vpop.f32.mrf.mxu0
        %v10743 = vpop.f32.mrf.mxu0
        %v10744 = vpop.f32.mrf.mxu0
        %10745 = vdwg.mxu0
        %v10746 = vmax.f32 %v10741, 0.0
        %v10747 = vld [vmem:[%s7] sm:$0xff]
        %v10748 = vld [vmem:[%s7 + $0x8] sm:$0xff]
        %v10749 = vld [vmem:[%s7 + $0x10] sm:$0xff]
        %v10750 = vld [vmem:[%s7 + $0x18] sm:$0xff]
        %v10751 = vld [vmem:[%s7 + $0x20] sm:$0xff]
        %v10752 = vld [vmem:[%s7 + $0x28] sm:$0xff]
        %v10753 = vld [vmem:[%s7 + $0x30] sm:$0xff]
        %v10754 = vld [vmem:[%s7 + $0x38] sm:$0xff]
        %v10755 = vld [vmem:[%s7 + $0x40] sm:$0xff]
        %v10756 = vld [vmem:[%s7 + $0x48] sm:$0xff]
        %v10757 = vld [vmem:[%s7 + $0x50] sm:$0xff]
        %v10758 = vld [vmem:[%s7 + $0x58] sm:$0xff]
        %v10759 = vld [vmem:[%s7 + $0x60] sm:$0xff]
        %v10760 = vld [vmem:[%s7 + $0x68] sm:$0xff]
        %v10761 = vld [vmem:[%s7 + $0x70] sm:$0xff]
        %v10762 = vld [vmem:[%s7 + $0x78] sm:$0xff]
        %v10763 = vld [vmem:[%s8] sm:$0x1]
        %10764 = vmatprep.subr.mxu0 0.0
        %10765 = vmatpush1.msra.mxu0 %v10762
        %10766 = vmatprep.subr.mxu0 0.0
        %10767 = vmatpush1.msra.mxu0 %v10761
        %10768 = vmatprep.subr.mxu0 0.0
        %10769 = vmatpush1.msra.mxu0 %v10760
        %10770 = vmatprep.subr.mxu0 0.0
        %10771 = vmatpush1.msra.mxu0 %v10759
        %10772 = vmatprep.subr.mxu0 0.0
        %10773 = vmatpush1.msra.mxu0 %v10758
        %10774 = vmatprep.subr.mxu0 0.0
        %10775 = vmatpush1.msra.mxu0 %v10757
        %10776 = vmatprep.subr.mxu0 0.0
        %10777 = vmatpush1.msra.mxu0 %v10756
        %10778 = vmatprep.subr.mxu0 0.0
        %10779 = vmatpush1.msra.mxu0 %v10755
        %10780 = vmatprep.subr.mxu0 0.0
        %10781 = vmatpush1.msra.mxu0 %v10754
        %10782 = vmatprep.subr.mxu0 0.0
        %10783 = vmatpush1.msra.mxu0 %v10753
        %10784 = vmatprep.subr.mxu0 0.0
        %10785 = vmatpush1.msra.mxu0 %v10752
        %10786 = vmatprep.subr.mxu0 0.0
        %10787 = vmatpush1.msra.mxu0 %v10751
        %10788 = vmatprep.subr.mxu0 0.0
        %10789 = vmatpush1.msra.mxu0 %v10750
        %10790 = vmatprep.subr.mxu0 0.0
        %10791 = vmatpush1.msra.mxu0 %v10749
        %10792 = vmatprep.subr.mxu0 0.0
        %10793 = vmatpush1.msra.mxu0 %v10748
        %10794 = vmatprep.subr.mxu0 0.0
        %10795 = vmatpush1.msra.mxu0 %v10747
        %10796 = vmatprep.subr.mxu0 0.0
        %10797 = vmatpush2.msra.mxu0 0.0
        %10798 = vmatprep.subr.mxu0 0.0
        %10799 = vmatpush2.msra.mxu0 0.0
        %10800 = vmatprep.subr.mxu0 0.0
        %10801 = vmatpush2.msra.mxu0 0.0
        %10802 = vmatprep.subr.mxu0 0.0
        %10803 = vmatpush2.msra.mxu0 0.0
        %10804 = vmatprep.subr.mxu0 0.0
        %10805 = vmatpush2.msra.mxu0 0.0
        %10806 = vmatprep.subr.mxu0 0.0
        %10807 = vmatpush2.msra.mxu0 0.0
        %10808 = vmatprep.subr.mxu0 0.0
        %10809 = vmatpush2.msra.mxu0 0.0
        %10810 = vmatprep.subr.mxu0 0.0
        %10811 = vmatpush2.msra.mxu0 0.0
        %10812 = vmatprep.subr.mxu0 0.0
        %10813 = vmatpush2.msra.mxu0 0.0
        %10814 = vmatprep.subr.mxu0 0.0
        %10815 = vmatpush2.msra.mxu0 0.0
        %10816 = vmatprep.subr.mxu0 0.0
        %10817 = vmatpush2.msra.mxu0 0.0
        %10818 = vmatprep.subr.mxu0 0.0
        %10819 = vmatpush2.msra.mxu0 0.0
        %10820 = vmatprep.subr.mxu0 0.0
        %10821 = vmatpush2.msra.mxu0 0.0
        %10822 = vmatprep.subr.mxu0 0.0
        %10823 = vmatpush2.msra.mxu0 0.0
        %10824 = vmatprep.subr.mxu0 0.0
        %10825 = vmatpush2.msra.mxu0 0.0
        %10826 = vmatprep.subr.mxu0 0.0
        %10827 = vmatpush2.msra.mxu0 0.0
        %10828 = vmatprep.mubr.f32.mxu0 0.0
        %10829 = vmatmul.mubr.f32.gmra.mxu0 %v10746
        %v10830 = vpop.f32.mrf.mxu0
        %v10831 = vadd.f32 %v10763, %v10830
        %v10832 = vpop.f32.mrf.mxu0
        %10833 = vdwg.mxu0
        %vm10834 = vcmask 73728
        %10835 = vst.msk [vmem:[%s324] sm:$0x1] %vm10834, %v10831
        %s10836 = sand.u32 %s225, 1
        %s10837 = scalar_lea.sflag [#allocation8], %s10836
        %s10838 = sand.u32 %s225, 1
        %s10839 = scalar_lea.vmem [#allocation7], %s10838
        // Predicated region
        $region57: #{net_forward.1} parent=55 // pred_check
          %p10840 = pneg %p235
        $region58: #{net_forward.1} parent=55 // pred_check_branch
          %10842 = sbr.rel (%p10840) target = $region60
        $region59: #{net_forward.1} parent=55 // pred_region
          %s10844 = ssub.s32 16, 16
          %10845 = vsyncadd %s10837, %s10844
          %s10846 = smul.addr %s23, 16
          %s10847 = scalar_lea.hbm %s9, %s10846
          %s10849 = sshll.u32 %s10839, 4
          %s10850 = int_to_ptr.vmem [resolvable:$true] %s10849
          %10852 = dma.vmem_to_hbm [thread:$0]  %s10850, 16, %s10847, %s10837
        $region60: #{net_forward.1} parent=55 // pred_fallthru
          _
      $region56: #{net_forward.1} parent=5 // pred_fallthru
        _
      %p10853 = scmp.le.s32.totalorder 2, %s18
      // Predicated region
      $region61: #{net_forward.1} parent=5 // pred_check
        %p10854 = pneg %p10853
      $region62: #{net_forward.1} parent=5 // pred_check_branch
        %10856 = sbr.rel (%p10854) target = $region64
      $region63: #{net_forward.1} parent=5 // pred_region
        %s10857 = ssub.s32 %s18, 2
        // Predicated region
        $region65: #{net_forward.1} parent=63 // pred_check
          %p10858 = pneg %p241
        $region66: #{net_forward.1} parent=63 // pred_check_branch
          %10860 = sbr.rel (%p10858) target = $region68
        $region67: #{net_forward.1} parent=63 // pred_region
          %s10861 = sand.u32 %s226, 1
          %s10862 = scalar_lea.sflag [#allocation8], %s10861
          %s10863 = sand.u32 %s226, 1
          %s10864 = scalar_lea.vmem [#allocation7], %s10863
          %10865 = dma.done %s10862, 16
        $region68: #{net_forward.1} parent=63 // pred_fallthru
          _
      $region64: #{net_forward.1} parent=5 // pred_fallthru
        _
    $region6: #{net_forward.1} parent=1 // loop_footer
      %s22 = sadd.s32 1, %s18
    $region7: #{net_forward.1} parent=1 // loop_footer_branch
      %17 = sbr.rel target = $region3
    $region8: #{net_forward.1} parent=1 // loop_exit
      _
    %10866 = vsyncpa [#allocation8], 1
    %s10867 = scalar_lea.sflag [#allocation8], 1
    %10868 = vsyncpa %s10867, 1

</llo_original>
